<compile_context>
chip_gen: v6e
topology: v6e:2x2x1
jax: 0.10.0
libtpu: 0.0.40
codegen_flags: <defaults>
</compile_context>

<pallas_src>
import functools

import jax
import jax.numpy as jnp
import numpy as np
from jax.experimental import pallas as pl
from jax.experimental.pallas import tpu as pltpu

NEG_SLOPE = 0.01  # nn.LeakyReLU default


def _round_up(v, m):
    return (v + m - 1) // m * m


def _lrelu(v):
    return jnp.where(v > 0, v, NEG_SLOPE * v)


# ----------------------------------------------------------------------------
# Kernel 1: K-tiled fused matmul  y = [LeakyReLU](x @ W [+ b]) [+ residual]
#   grid = (nk,) over the reduction axis only; f32 VMEM scratch accumulator,
#   output (any dtype) written once in the final K step.
# ----------------------------------------------------------------------------
def _fused_matmul_kernel(*refs, leaky, has_bias, has_residual):
    it = iter(refs)
    x_ref = next(it)
    w_ref = next(it)
    b_ref = next(it) if has_bias else None
    r_ref = next(it) if has_residual else None
    o_ref = next(it)
    acc_ref = next(it)

    k = pl.program_id(0)

    @pl.when(k == 0)
    def _():
        acc_ref[...] = jnp.zeros_like(acc_ref)

    acc_ref[...] += jnp.dot(x_ref[...], w_ref[...],
                            preferred_element_type=jnp.float32)

    @pl.when(k == pl.num_programs(0) - 1)
    def _():
        y = acc_ref[...]
        if has_bias:
            y = y + b_ref[...]
        if leaky:
            y = _lrelu(y)
        if has_residual:
            y = y + r_ref[...]
        o_ref[...] = y.astype(o_ref.dtype)


def fused_linear(x, pw, residual=None, leaky=True, out_dtype=jnp.float32):
    """[LeakyReLU](x @ W [+ b]) [+ residual] with pre-packed weights `pw`."""
    # TODO(synk): add an M grid axis for very large batch/spatial inputs; at the
    # shapes this network sees (M <= 64) a single M block is optimal.
    M, K = x.shape
    assert K == pw["K"], (K, pw["K"])
    Kp, Np = pw["w"].shape
    tk, nk, N = pw["tk"], pw["nk"], pw["N"]

    Mp = _round_up(M, 16)  # bf16 sublane packing
    xp = jnp.zeros((Mp, Kp), jnp.bfloat16).at[:M, :K].set(x.astype(jnp.bfloat16))

    has_bias = pw["b"] is not None
    has_res = residual is not None

    inputs = [xp, pw["w"]]
    in_specs = [
        pl.BlockSpec((Mp, tk), lambda k: (0, k)),
        pl.BlockSpec((tk, Np), lambda k: (k, 0)),
    ]
    if has_bias:
        inputs.append(pw["b"])
        in_specs.append(pl.BlockSpec((1, Np), lambda k: (0, 0)))
    if has_res:
        rp = jnp.zeros((Mp, Np), jnp.float32).at[:M, :N].set(
            residual.astype(jnp.float32))
        inputs.append(rp)
        in_specs.append(pl.BlockSpec((Mp, Np), lambda k: (0, 0)))

    out = pl.pallas_call(
        functools.partial(_fused_matmul_kernel, leaky=leaky,
                          has_bias=has_bias, has_residual=has_res),
        out_shape=jax.ShapeDtypeStruct((Mp, Np), out_dtype),
        grid=(nk,),
        in_specs=in_specs,
        out_specs=pl.BlockSpec((Mp, Np), lambda k: (0, 0)),
        scratch_shapes=[pltpu.VMEM((Mp, Np), jnp.float32)],
        compiler_params=pltpu.CompilerParams(
            dimension_semantics=("arbitrary",),
            vmem_limit_bytes=32 * 1024 * 1024,
        ),
    )(*inputs)
    return out[:M, :N]


def ref_linear(x, pw, residual=None, leaky=True, out_dtype=jnp.float32):
    """Pure-jnp reference with identical numerics (bf16 operands, f32 accum)."""
    K, N = pw["K"], pw["N"]
    y = jnp.dot(x.astype(jnp.bfloat16), pw["w"][:K, :N],
                preferred_element_type=jnp.float32)
    if pw["b"] is not None:
        y = y + pw["b"][:, :N]
    if leaky:
        y = _lrelu(y)
    if residual is not None:
        y = y + residual.astype(jnp.float32)
    return y.astype(out_dtype)


# ----------------------------------------------------------------------------
# Kernel 2: fused conv2 + head for the spatial==1 case.
#   grid = (nk2,): conv2 K-accumulates into a VMEM scratch; the final K step runs
#   LeakyReLU, the three 1x1x1 convs, residual add and Linear(6) entirely in VMEM.
# ----------------------------------------------------------------------------
def _conv2_head_kernel(x_ref, w2_ref, w3a, b3a, w3b, b3b, w3c, b3c, wf, bf,
                       o_ref, acc_ref):
    k = pl.program_id(0)

    @pl.when(k == 0)
    def _():
        acc_ref[...] = jnp.zeros_like(acc_ref)

    acc_ref[...] += jnp.dot(x_ref[...], w2_ref[...],
                            preferred_element_type=jnp.float32)

    @pl.when(k == pl.num_programs(0) - 1)
    def _():
        def mm(a, w_ref):
            return jnp.dot(a.astype(jnp.bfloat16), w_ref[...],
                           preferred_element_type=jnp.float32)

        y2 = _lrelu(acc_ref[...])                 # conv2 + LeakyReLU   (Mp, 256) f32
        y = _lrelu(mm(y2, w3a) + b3a[...])        # 1x1x1 conv -> 512
        y = _lrelu(mm(y, w3b) + b3b[...])         # 1x1x1 conv -> 512
        y = _lrelu(mm(y, w3c) + b3c[...])         # 1x1x1 conv -> 256
        y = y + y2                                # residual add
        o_ref[...] = mm(y, wf) + bf[...]          # Linear(6), no activation


def fused_conv2_head(p2, pw2, hp):
    M, K = p2.shape
    assert K == pw2["K"], (K, pw2["K"])
    Kp, Np2 = pw2["w"].shape
    tk, nk = pw2["tk"], pw2["nk"]
    Mp = _round_up(M, 16)
    xp = jnp.zeros((Mp, Kp), jnp.bfloat16).at[:M, :K].set(p2.astype(jnp.bfloat16))
    nf_pad = hp["wf"].shape[1]

    head_ins = [hp["w3a"], hp["b3a"], hp["w3b"], hp["b3b"],
                hp["w3c"], hp["b3c"], hp["wf"], hp["bf"]]
    head_specs = [pl.BlockSpec(a.shape, lambda k: (0, 0)) for a in head_ins]

    out = pl.pallas_call(
        _conv2_head_kernel,
        out_shape=jax.ShapeDtypeStruct((Mp, nf_pad), jnp.float32),
        grid=(nk,),
        in_specs=[pl.BlockSpec((Mp, tk), lambda k: (0, k)),
                  pl.BlockSpec((tk, Np2), lambda k: (k, 0))] + head_specs,
        out_specs=pl.BlockSpec((Mp, nf_pad), lambda k: (0, 0)),
        scratch_shapes=[pltpu.VMEM((Mp, Np2), jnp.float32)],
        compiler_params=pltpu.CompilerParams(
            dimension_semantics=("arbitrary",),
            vmem_limit_bytes=32 * 1024 * 1024,
        ),
    )(xp, pw2["w"], *head_ins)
    return out[:M, :hp["Nf"]]


def ref_conv2_head(p2, pw2, hp):
    def mm(a, w):
        return jnp.dot(a.astype(jnp.bfloat16), w, preferred_element_type=jnp.float32)

    K, N = pw2["K"], pw2["N"]
    y2 = _lrelu(mm(p2, pw2["w"][:K, :N]))
    y = _lrelu(mm(y2, hp["w3a"]) + hp["b3a"])
    y = _lrelu(mm(y, hp["w3b"]) + hp["b3b"])
    y = _lrelu(mm(y, hp["w3c"]) + hp["b3c"])
    y = y + y2
    out = mm(y, hp["wf"]) + hp["bf"]
    return out[:, :hp["Nf"]]


# ----------------------------------------------------------------------------
# im2col glue.
# ----------------------------------------------------------------------------
def im2col_conv1(x, ksize=21, stride=7):
    """x: (N, D, H, W) single input channel (squeezed, so the minor dim stays
    lane-dense). Returns (N*od*oh*ow, ksize^3) flattened in (kd, kh, kw) order
    with NO transpose needed."""
    N, D, H, W = x.shape
    od = (D - ksize) // stride + 1
    oh = (H - ksize) // stride + 1
    ow = (W - ksize) // stride + 1
    xd = jnp.stack([x[:, i * stride:i * stride + ksize] for i in range(od)],
                   axis=1)                                   # (N, od, k, H, W)
    xh = jnp.stack([xd[:, :, :, j * stride:j * stride + ksize] for j in range(oh)],
                   axis=2)                                   # (N, od, oh, k, k, W)
    xw = jnp.stack([xh[..., l * stride:l * stride + ksize] for l in range(ow)],
                   axis=3)                                   # (N, od, oh, ow, k, k, k)
    return xw.reshape(N * od * oh * ow, ksize ** 3), (od, oh, ow)


def im2col_3d(x, ksize, stride):
    """Channels-last im2col: (N, D, H, W, C) -> (N*od*oh*ow, k^3*C), (kd,kh,kw,C)."""
    N, D, H, W, C = x.shape
    od = (D - ksize) // stride + 1
    oh = (H - ksize) // stride + 1
    ow = (W - ksize) // stride + 1
    if (od, oh, ow) == (1, 1, 1) and (D, H, W) == (ksize,) * 3:
        return x.reshape(N, -1), (1, 1, 1)
    xd = jnp.stack([x[:, i * stride:i * stride + ksize] for i in range(od)], axis=1)
    xh = jnp.stack([xd[:, :, :, i * stride:i * stride + ksize] for i in range(oh)], axis=3)
    xw = jnp.stack([xh[:, :, :, :, :, i * stride:i * stride + ksize] for i in range(ow)], axis=5)
    p = jnp.transpose(xw, (0, 1, 3, 5, 2, 4, 6, 7))
    return p.reshape(N * od * oh * ow, ksize ** 3 * C), (od, oh, ow)


# ----------------------------------------------------------------------------
# VoxelNet forward.
# ----------------------------------------------------------------------------
def voxelnet_forward(x_ncdhw, packed, use_pallas=True):
    linear_fn = fused_linear if use_pallas else ref_linear
    c2h_fn = fused_conv2_head if use_pallas else ref_conv2_head

    N = x_ncdhw.shape[0]
    x = x_ncdhw[:, 0].astype(jnp.bfloat16)          # squeeze Cin=1 -> (N, D, H, W)

    # conv_layer1: Conv3d(1, 256, k=21, stride=7, bias=False) + LeakyReLU
    p1, (od1, oh1, ow1) = im2col_conv1(x, 21, 7)
    y1 = linear_fn(p1, packed["w1"], leaky=True, out_dtype=jnp.bfloat16)
    y1 = y1.reshape(N, od1, oh1, ow1, 256)

    od2, oh2, ow2 = od1 - 2, oh1 - 2, ow1 - 2
    spatial2 = od2 * oh2 * ow2

    if spatial2 == 1:
        # conv_layer2 + conv_layer3 + residual + flatten + Linear(6) fused in one call.
        p2 = y1.reshape(N, 27 * 256)
        return c2h_fn(p2, packed["w2"], packed["head"])

    # General spatial case (not exercised by the demo input).
    p2, _ = im2col_3d(y1, 3, 1)
    y2 = linear_fn(p2, packed["w2"], leaky=True)
    y = linear_fn(y2, packed["w3a"], leaky=True)
    y = linear_fn(y, packed["w3b"], leaky=True)
    y = linear_fn(y, packed["w3c"], leaky=True, residual=y2)
    # torch's x.view(N, -1) flattens (N, C, D, H, W) channel-major.
    y = y.reshape(N, od2, oh2, ow2, 256)
    feat = jnp.transpose(y, (0, 4, 1, 2, 3)).reshape(N, -1)
    return linear_fn(feat, packed["fc"], leaky=False)


# ----------------------------------------------------------------------------
# Parameters: PyTorch-style U(-1/sqrt(fan_in), 1/sqrt(fan_in)) init; conv weights
# stored as (kD*kH*kW*Cin, Cout) matrices.  pack_params pads + bf16-casts ONCE.
# ----------------------------------------------------------------------------
def init_params(key, input_dhw=(35, 35, 35)):
    def cout(d, k, s):
        return (d - k) // s + 1

    od1 = [cout(d, 21, 7) for d in input_dhw]
    od2 = [cout(d, 3, 1) for d in od1]
    assert min(od2) >= 1, "input too small for the conv stack"
    fc_in = 256 * int(np.prod(od2))     # LazyLinear(6) materialized for this input

    ks = jax.random.split(key, 10)

    def u(k, shape, fan_in):
        b = 1.0 / np.sqrt(fan_in)
        return jax.random.uniform(k, shape, jnp.float32, -b, b)

    return {
        "w1": u(ks[0], (21 * 21 * 21 * 1, 256), 21 * 21 * 21),
        "w2": u(ks[1], (3 * 3 * 3 * 256, 256), 3 * 3 * 3 * 256),
        "w3a": u(ks[2], (256, 512), 256), "b3a": u(ks[3], (512,), 256),
        "w3b": u(ks[4], (512, 512), 512), "b3b": u(ks[5], (512,), 512),
        "w3c": u(ks[6], (512, 256), 512), "b3c": u(ks[7], (256,), 512),
        "wf": u(ks[8], (fc_in, 6), fc_in), "bf": u(ks[9], (6,), fc_in),
    }


def pack_linear(w, b=None, tk_max=4800):
    """Pad + bf16-cast a (K, N) weight once; big K tiles (<= tk_max) so the large
    convs run in 2 grid steps (step-overhead bound regime)."""
    K, N = w.shape
    nk = -(-K // tk_max)
    tk = _round_up(-(-K // nk), 128)
    Kp = nk * tk
    Np = _round_up(N, 128)
    wp = jnp.zeros((Kp, Np), jnp.bfloat16).at[:K, :N].set(w.astype(jnp.bfloat16))
    bp = None
    if b is not None:
        bp = jnp.zeros((1, Np), jnp.float32).at[0, :N].set(b)
    return {"w": wp, "b": bp, "K": K, "N": N, "tk": tk, "nk": nk}


def pack_params(params):
    nf = params["wf"].shape[1]
    nfp = _round_up(nf, 128)
    head = {
        "w3a": params["w3a"].astype(jnp.bfloat16),
        "b3a": params["b3a"].reshape(1, -1).astype(jnp.float32),
        "w3b": params["w3b"].astype(jnp.bfloat16),
        "b3b": params["b3b"].reshape(1, -1).astype(jnp.float32),
        "w3c": params["w3c"].astype(jnp.bfloat16),
        "b3c": params["b3c"].reshape(1, -1).astype(jnp.float32),
        "wf": jnp.zeros((params["wf"].shape[0], nfp), jnp.bfloat16)
                 .at[:, :nf].set(params["wf"].astype(jnp.bfloat16)),
        "bf": jnp.zeros((1, nfp), jnp.float32).at[0, :nf].set(params["bf"]),
        "Nf": nf,
    }
    return {
        "w1": pack_linear(params["w1"]),
        "w2": pack_linear(params["w2"]),
        "head": head,
        # For the general (spatial > 1) fallback path only:
        "w3a": pack_linear(params["w3a"], params["b3a"]),
        "w3b": pack_linear(params["w3b"], params["b3b"]),
        "w3c": pack_linear(params["w3c"], params["b3c"]),
        "fc": pack_linear(params["wf"], params["bf"]),
    }


if __name__ == "__main__":
    key = jax.random.PRNGKey(0)
    kx, kp = jax.random.split(key)

    # Smallest input the architecture admits: conv1 (k=21, s=7) must leave >= 3
    # voxels per axis for conv2 (k=3) -> D = H = W = 35; spatial after conv2 = 1.
    x = jax.random.normal(kx, (2, 1, 35, 35, 35), jnp.float32)
    params = init_params(kp, input_dhw=(35, 35, 35))
    packed = pack_params(params)        # one-time pad + bf16 cast (not per forward)

    pallas_fwd = jax.jit(lambda inp: voxelnet_forward(inp, packed, use_pallas=True))
    ref_fwd = jax.jit(lambda inp: voxelnet_forward(inp, packed, use_pallas=False))

    out = jax.block_until_ready(pallas_fwd(x))
    ref = jax.block_until_ready(ref_fwd(x))

    assert out.shape == (2, 6), out.shape
    np.testing.assert_allclose(np.asarray(out), np.asarray(ref),
                               rtol=1e-2, atol=1e-2)
    print("KERNEL_OK")
</pallas_src>

<mosaic_0001>
module attributes {stable_mosaic.version = 11 : i64} {
  func.func @_fused_matmul_kernel(%arg0: i32, %arg1: memref<64x4736xbf16, #tpu.memory_space<vmem>>, %arg2: memref<4736x256xbf16, #tpu.memory_space<vmem>>, %arg3: memref<64x256xbf16, #tpu.memory_space<vmem>>, %arg4: memref<64x256xf32, #tpu.memory_space<vmem>>) attributes {dimension_semantics = [#tpu.dimension_semantics<arbitrary>], iteration_bounds = array<i64: 2>, scalar_prefetch = 0 : i64, scratch_operands = 1 : i64, tpu.core_type = #tpu.core_type<tc>, window_params = [{transform_indices = @transform_0, window_bounds = array<i64: 64, 4736>}, {transform_indices = @transform_1, window_bounds = array<i64: 4736, 256>}, {pipeline_mode = #tpu.pipeline_mode<synchronous>, transform_indices = @transform_2, window_bounds = array<i64: 64, 256>}]} {
    %c0_i32 = arith.constant 0 : i32
    %0 = arith.cmpi eq, %arg0, %c0_i32 : i32
    %1 = arith.extui %0 : i1 to i32
    %c0_i32_0 = arith.constant 0 : i32
    %2 = arith.cmpi ne, %1, %c0_i32_0 : i32
    scf.if %2 {
      %cst_9 = arith.constant 0.000000e+00 : f32
      %12 = vector.broadcast %cst_9 : f32 to vector<64x256xf32>
      %c0_10 = arith.constant 0 : index
      %c0_11 = arith.constant 0 : index
      %13 = vector.load %arg4[%c0_10, %c0_11] : memref<64x256xf32, #tpu.memory_space<vmem>>, vector<64x256xf32>
      tpu.vector_store %arg4[%c0_10, %c0_11], %12 {strides = array<i32>} : memref<64x256xf32, #tpu.memory_space<vmem>>, vector<64x256xf32>,
    } else {
    }
    %c0 = arith.constant 0 : index
    %c0_1 = arith.constant 0 : index
    %3 = vector.load %arg4[%c0, %c0_1] : memref<64x256xf32, #tpu.memory_space<vmem>>, vector<64x256xf32>
    %c0_2 = arith.constant 0 : index
    %c0_3 = arith.constant 0 : index
    %4 = vector.load %arg1[%c0_2, %c0_3] : memref<64x4736xbf16, #tpu.memory_space<vmem>>, vector<64x4736xbf16>
    %c0_4 = arith.constant 0 : index
    %c0_5 = arith.constant 0 : index
    %5 = vector.load %arg2[%c0_4, %c0_5] : memref<4736x256xbf16, #tpu.memory_space<vmem>>, vector<4736x256xbf16>
    %cst = arith.constant dense<0.000000e+00> : vector<64x256xf32>
    %6 = tpu.matmul %4, %5, %cst {dimension_numbers = #tpu.dot_dimension_numbers<[1], [0], [0], [1], [0, 0, 1, 1], [], []>} : vector<64x4736xbf16>, vector<4736x256xbf16>, vector<64x256xf32> -> vector<64x256xf32>
    %7 = arith.addf %3, %6 : vector<64x256xf32>
    %c0_6 = arith.constant 0 : index
    %c0_7 = arith.constant 0 : index
    %8 = vector.load %arg4[%c0_6, %c0_7] : memref<64x256xf32, #tpu.memory_space<vmem>>, vector<64x256xf32>
    tpu.vector_store %arg4[%c0_6, %c0_7], %7 {strides = array<i32>} : memref<64x256xf32, #tpu.memory_space<vmem>>, vector<64x256xf32>,
    %c1_i32 = arith.constant 1 : i32
    %9 = arith.cmpi eq, %arg0, %c1_i32 : i32
    %10 = arith.extui %9 : i1 to i32
    %c0_i32_8 = arith.constant 0 : i32
    %11 = arith.cmpi ne, %10, %c0_i32_8 : i32
    scf.if %11 {
      %c0_9 = arith.constant 0 : index
      %c0_10 = arith.constant 0 : index
      %12 = vector.load %arg4[%c0_9, %c0_10] : memref<64x256xf32, #tpu.memory_space<vmem>>, vector<64x256xf32>
      %cst_11 = arith.constant 0.000000e+00 : f32
      %13 = vector.broadcast %cst_11 : f32 to vector<64x256xf32>
      %14 = arith.cmpf ogt, %12, %13 : vector<64x256xf32>
      %cst_12 = arith.constant 0.00999999977 : f32
      %15 = vector.broadcast %cst_12 : f32 to vector<64x256xf32>
      %16 = arith.mulf %15, %12 : vector<64x256xf32>
      %17 = arith.select %14, %12, %16 : vector<64x256xi1>, vector<64x256xf32>
      %18 = arith.truncf %17 : vector<64x256xf32> to vector<64x256xbf16>
      %c0_13 = arith.constant 0 : index
      %c0_14 = arith.constant 0 : index
      %19 = vector.load %arg3[%c0_13, %c0_14] : memref<64x256xbf16, #tpu.memory_space<vmem>>, vector<64x256xbf16>
      tpu.vector_store %arg3[%c0_13, %c0_14], %18 {strides = array<i32>} : memref<64x256xbf16, #tpu.memory_space<vmem>>, vector<64x256xbf16>,
    } else {
    }
    return
  }
  func.func @transform_0(%arg0: i32) -> (i32, i32) {
    %c0_i32 = arith.constant 0 : i32
    %c0_i32_0 = arith.constant 0 : i32
    return %c0_i32, %arg0 : i32, i32
  }
  func.func @transform_1(%arg0: i32) -> (i32, i32) {
    %c0_i32 = arith.constant 0 : i32
    %c0_i32_0 = arith.constant 0 : i32
    return %arg0, %c0_i32 : i32, i32
  }
  func.func @transform_2(%arg0: i32) -> (i32, i32) {
    %c0_i32 = arith.constant 0 : i32
    %c0_i32_0 = arith.constant 0 : i32
    %c0_i32_1 = arith.constant 0 : i32
    return %c0_i32, %c0_i32_0 : i32, i32
  }
}

module attributes {stable_mosaic.version = 11 : i64} {
  func.func @_conv2_head_kernel(%arg0: i32, %arg1: memref<16x3456xbf16, #tpu.memory_space<vmem>>, %arg2: memref<3456x256xbf16, #tpu.memory_space<vmem>>, %arg3: memref<256x512xbf16, #tpu.memory_space<vmem>>, %arg4: memref<1x512xf32, #tpu.memory_space<vmem>>, %arg5: memref<512x512xbf16, #tpu.memory_space<vmem>>, %arg6: memref<1x512xf32, #tpu.memory_space<vmem>>, %arg7: memref<512x256xbf16, #tpu.memory_space<vmem>>, %arg8: memref<1x256xf32, #tpu.memory_space<vmem>>, %arg9: memref<256x128xbf16, #tpu.memory_space<vmem>>, %arg10: memref<1x128xf32, #tpu.memory_space<vmem>>, %arg11: memref<16x128xf32, #tpu.memory_space<vmem>>, %arg12: memref<16x256xf32, #tpu.memory_space<vmem>>) attributes {dimension_semantics = [#tpu.dimension_semantics<arbitrary>], iteration_bounds = array<i64: 2>, scalar_prefetch = 0 : i64, scratch_operands = 1 : i64, tpu.core_type = #tpu.core_type<tc>, window_params = [{transform_indices = @transform_0, window_bounds = array<i64: 16, 3456>}, {transform_indices = @transform_1, window_bounds = array<i64: 3456, 256>}, {pipeline_mode = #tpu.pipeline_mode<synchronous>, transform_indices = @transform_2, window_bounds = array<i64: 256, 512>}, {pipeline_mode = #tpu.pipeline_mode<synchronous>, transform_indices = @transform_3, window_bounds = array<i64: 1, 512>}, {pipeline_mode = #tpu.pipeline_mode<synchronous>, transform_indices = @transform_4, window_bounds = array<i64: 512, 512>}, {pipeline_mode = #tpu.pipeline_mode<synchronous>, transform_indices = @transform_5, window_bounds = array<i64: 1, 512>}, {pipeline_mode = #tpu.pipeline_mode<synchronous>, transform_indices = @transform_6, window_bounds = array<i64: 512, 256>}, {pipeline_mode = #tpu.pipeline_mode<synchronous>, transform_indices = @transform_7, window_bounds = array<i64: 1, 256>}, {pipeline_mode = #tpu.pipeline_mode<synchronous>, transform_indices = @transform_8, window_bounds = array<i64: 256, 128>}, {pipeline_mode = #tpu.pipeline_mode<synchronous>, transform_indices = @transform_9, window_bounds = array<i64: 1, 128>}, {pipeline_mode = #tpu.pipeline_mode<synchronous>, transform_indices = @transform_10, window_bounds = array<i64: 16, 128>}]} {
    %c0_i32 = arith.constant 0 : i32
    %0 = arith.cmpi eq, %arg0, %c0_i32 : i32
    %1 = arith.extui %0 : i1 to i32
    %c0_i32_0 = arith.constant 0 : i32
    %2 = arith.cmpi ne, %1, %c0_i32_0 : i32
    scf.if %2 {
      %cst_9 = arith.constant 0.000000e+00 : f32
      %12 = vector.broadcast %cst_9 : f32 to vector<16x256xf32>
      %c0_10 = arith.constant 0 : index
      %c0_11 = arith.constant 0 : index
      %13 = vector.load %arg12[%c0_10, %c0_11] : memref<16x256xf32, #tpu.memory_space<vmem>>, vector<16x256xf32>
      tpu.vector_store %arg12[%c0_10, %c0_11], %12 {strides = array<i32>} : memref<16x256xf32, #tpu.memory_space<vmem>>, vector<16x256xf32>,
    } else {
    }
    %c0 = arith.constant 0 : index
    %c0_1 = arith.constant 0 : index
    %3 = vector.load %arg12[%c0, %c0_1] : memref<16x256xf32, #tpu.memory_space<vmem>>, vector<16x256xf32>
    %c0_2 = arith.constant 0 : index
    %c0_3 = arith.constant 0 : index
    %4 = vector.load %arg1[%c0_2, %c0_3] : memref<16x3456xbf16, #tpu.memory_space<vmem>>, vector<16x3456xbf16>
    %c0_4 = arith.constant 0 : index
    %c0_5 = arith.constant 0 : index
    %5 = vector.load %arg2[%c0_4, %c0_5] : memref<3456x256xbf16, #tpu.memory_space<vmem>>, vector<3456x256xbf16>
    %cst = arith.constant dense<0.000000e+00> : vector<16x256xf32>
    %6 = tpu.matmul %4, %5, %cst {dimension_numbers = #tpu.dot_dimension_numbers<[1], [0], [0], [1], [0, 0, 1, 1], [], []>} : vector<16x3456xbf16>, vector<3456x256xbf16>, vector<16x256xf32> -> vector<16x256xf32>
    %7 = arith.addf %3, %6 : vector<16x256xf32>
    %c0_6 = arith.constant 0 : index
    %c0_7 = arith.constant 0 : index
    %8 = vector.load %arg12[%c0_6, %c0_7] : memref<16x256xf32, #tpu.memory_space<vmem>>, vector<16x256xf32>
    tpu.vector_store %arg12[%c0_6, %c0_7], %7 {strides = array<i32>} : memref<16x256xf32, #tpu.memory_space<vmem>>, vector<16x256xf32>,
    %c1_i32 = arith.constant 1 : i32
    %9 = arith.cmpi eq, %arg0, %c1_i32 : i32
    %10 = arith.extui %9 : i1 to i32
    %c0_i32_8 = arith.constant 0 : i32
    %11 = arith.cmpi ne, %10, %c0_i32_8 : i32
    scf.if %11 {
      %c0_9 = arith.constant 0 : index
      %c0_10 = arith.constant 0 : index
      %12 = vector.load %arg12[%c0_9, %c0_10] : memref<16x256xf32, #tpu.memory_space<vmem>>, vector<16x256xf32>
      %cst_11 = arith.constant 0.000000e+00 : f32
      %13 = vector.broadcast %cst_11 : f32 to vector<16x256xf32>
      %14 = arith.cmpf ogt, %12, %13 : vector<16x256xf32>
      %cst_12 = arith.constant 0.00999999977 : f32
      %15 = vector.broadcast %cst_12 : f32 to vector<16x256xf32>
      %16 = arith.mulf %15, %12 : vector<16x256xf32>
      %17 = arith.select %14, %12, %16 : vector<16x256xi1>, vector<16x256xf32>
      %18 = arith.truncf %17 : vector<16x256xf32> to vector<16x256xbf16>
      %c0_13 = arith.constant 0 : index
      %c0_14 = arith.constant 0 : index
      %19 = vector.load %arg3[%c0_13, %c0_14] : memref<256x512xbf16, #tpu.memory_space<vmem>>, vector<256x512xbf16>
      %cst_15 = arith.constant dense<0.000000e+00> : vector<16x512xf32>
      %20 = tpu.matmul %18, %19, %cst_15 {dimension_numbers = #tpu.dot_dimension_numbers<[1], [0], [0], [1], [0, 0, 1, 1], [], []>} : vector<16x256xbf16>, vector<256x512xbf16>, vector<16x512xf32> -> vector<16x512xf32>
      %c0_16 = arith.constant 0 : index
      %c0_17 = arith.constant 0 : index
      %21 = vector.load %arg4[%c0_16, %c0_17] : memref<1x512xf32, #tpu.memory_space<vmem>>, vector<1x512xf32>
      %22 = vector.broadcast %21 : vector<1x512xf32> to vector<16x512xf32>
      %23 = arith.addf %20, %22 : vector<16x512xf32>
      %cst_18 = arith.constant 0.000000e+00 : f32
      %24 = vector.broadcast %cst_18 : f32 to vector<16x512xf32>
      %25 = arith.cmpf ogt, %23, %24 : vector<16x512xf32>
      %cst_19 = arith.constant 0.00999999977 : f32
      %26 = vector.broadcast %cst_19 : f32 to vector<16x512xf32>
      %27 = arith.mulf %26, %23 : vector<16x512xf32>
      %28 = arith.select %25, %23, %27 : vector<16x512xi1>, vector<16x512xf32>
      %29 = arith.truncf %28 : vector<16x512xf32> to vector<16x512xbf16>
      %c0_20 = arith.constant 0 : index
      %c0_21 = arith.constant 0 : index
      %30 = vector.load %arg5[%c0_20, %c0_21] : memref<512x512xbf16, #tpu.memory_space<vmem>>, vector<512x512xbf16>
      %cst_22 = arith.constant dense<0.000000e+00> : vector<16x512xf32>
      %31 = tpu.matmul %29, %30, %cst_22 {dimension_numbers = #tpu.dot_dimension_numbers<[1], [0], [0], [1], [0, 0, 1, 1], [], []>} : vector<16x512xbf16>, vector<512x512xbf16>, vector<16x512xf32> -> vector<16x512xf32>
      %c0_23 = arith.constant 0 : index
      %c0_24 = arith.constant 0 : index
      %32 = vector.load %arg6[%c0_23, %c0_24] : memref<1x512xf32, #tpu.memory_space<vmem>>, vector<1x512xf32>
      %33 = vector.broadcast %32 : vector<1x512xf32> to vector<16x512xf32>
      %34 = arith.addf %31, %33 : vector<16x512xf32>
      %cst_25 = arith.constant 0.000000e+00 : f32
      %35 = vector.broadcast %cst_25 : f32 to vector<16x512xf32>
      %36 = arith.cmpf ogt, %34, %35 : vector<16x512xf32>
      %cst_26 = arith.constant 0.00999999977 : f32
      %37 = vector.broadcast %cst_26 : f32 to vector<16x512xf32>
      %38 = arith.mulf %37, %34 : vector<16x512xf32>
      %39 = arith.select %36, %34, %38 : vector<16x512xi1>, vector<16x512xf32>
      %40 = arith.truncf %39 : vector<16x512xf32> to vector<16x512xbf16>
      %c0_27 = arith.constant 0 : index
      %c0_28 = arith.constant 0 : index
      %41 = vector.load %arg7[%c0_27, %c0_28] : memref<512x256xbf16, #tpu.memory_space<vmem>>, vector<512x256xbf16>
      %cst_29 = arith.constant dense<0.000000e+00> : vector<16x256xf32>
      %42 = tpu.matmul %40, %41, %cst_29 {dimension_numbers = #tpu.dot_dimension_numbers<[1], [0], [0], [1], [0, 0, 1, 1], [], []>} : vector<16x512xbf16>, vector<512x256xbf16>, vector<16x256xf32> -> vector<16x256xf32>
      %c0_30 = arith.constant 0 : index
      %c0_31 = arith.constant 0 : index
      %43 = vector.load %arg8[%c0_30, %c0_31] : memref<1x256xf32, #tpu.memory_space<vmem>>, vector<1x256xf32>
      %44 = vector.broadcast %43 : vector<1x256xf32> to vector<16x256xf32>
      %45 = arith.addf %42, %44 : vector<16x256xf32>
      %cst_32 = arith.constant 0.000000e+00 : f32
      %46 = vector.broadcast %cst_32 : f32 to vector<16x256xf32>
      %47 = arith.cmpf ogt, %45, %46 : vector<16x256xf32>
      %cst_33 = arith.constant 0.00999999977 : f32
      %48 = vector.broadcast %cst_33 : f32 to vector<16x256xf32>
      %49 = arith.mulf %48, %45 : vector<16x256xf32>
      %50 = arith.select %47, %45, %49 : vector<16x256xi1>, vector<16x256xf32>
      %51 = arith.addf %50, %17 : vector<16x256xf32>
      %52 = arith.truncf %51 : vector<16x256xf32> to vector<16x256xbf16>
      %c0_34 = arith.constant 0 : index
      %c0_35 = arith.constant 0 : index
      %53 = vector.load %arg9[%c0_34, %c0_35] : memref<256x128xbf16, #tpu.memory_space<vmem>>, vector<256x128xbf16>
      %cst_36 = arith.constant dense<0.000000e+00> : vector<16x128xf32>
      %54 = tpu.matmul %52, %53, %cst_36 {dimension_numbers = #tpu.dot_dimension_numbers<[1], [0], [0], [1], [0, 0, 1, 1], [], []>} : vector<16x256xbf16>, vector<256x128xbf16>, vector<16x128xf32> -> vector<16x128xf32>
      %c0_37 = arith.constant 0 : index
      %c0_38 = arith.constant 0 : index
      %55 = vector.load %arg10[%c0_37, %c0_38] : memref<1x128xf32, #tpu.memory_space<vmem>>, vector<1x128xf32>
      %56 = vector.broadcast %55 : vector<1x128xf32> to vector<16x128xf32>
      %57 = arith.addf %54, %56 : vector<16x128xf32>
      %c0_39 = arith.constant 0 : index
      %c0_40 = arith.constant 0 : index
      %58 = vector.load %arg11[%c0_39, %c0_40] : memref<16x128xf32, #tpu.memory_space<vmem>>, vector<16x128xf32>
      tpu.vector_store %arg11[%c0_39, %c0_40], %57 {strides = array<i32>} : memref<16x128xf32, #tpu.memory_space<vmem>>, vector<16x128xf32>,
    } else {
    }
    return
  }
  func.func @transform_0(%arg0: i32) -> (i32, i32) {
    %c0_i32 = arith.constant 0 : i32
    %c0_i32_0 = arith.constant 0 : i32
    return %c0_i32, %arg0 : i32, i32
  }
  func.func @transform_1(%arg0: i32) -> (i32, i32) {
    %c0_i32 = arith.constant 0 : i32
    %c0_i32_0 = arith.constant 0 : i32
    return %arg0, %c0_i32 : i32, i32
  }
  func.func @transform_2(%arg0: i32) -> (i32, i32) {
    %c0_i32 = arith.constant 0 : i32
    %c0_i32_0 = arith.constant 0 : i32
    %c0_i32_1 = arith.constant 0 : i32
    return %c0_i32, %c0_i32_0 : i32, i32
  }
  func.func @transform_3(%arg0: i32) -> (i32, i32) {
    %c0_i32 = arith.constant 0 : i32
    %c0_i32_0 = arith.constant 0 : i32
    %c0_i32_1 = arith.constant 0 : i32
    return %c0_i32, %c0_i32_0 : i32, i32
  }
  func.func @transform_4(%arg0: i32) -> (i32, i32) {
    %c0_i32 = arith.constant 0 : i32
    %c0_i32_0 = arith.constant 0 : i32
    %c0_i32_1 = arith.constant 0 : i32
    return %c0_i32, %c0_i32_0 : i32, i32
  }
  func.func @transform_5(%arg0: i32) -> (i32, i32) {
    %c0_i32 = arith.constant 0 : i32
    %c0_i32_0 = arith.constant 0 : i32
    %c0_i32_1 = arith.constant 0 : i32
    return %c0_i32, %c0_i32_0 : i32, i32
  }
  func.func @transform_6(%arg0: i32) -> (i32, i32) {
    %c0_i32 = arith.constant 0 : i32
    %c0_i32_0 = arith.constant 0 : i32
    %c0_i32_1 = arith.constant 0 : i32
    return %c0_i32, %c0_i32_0 : i32, i32
  }
  func.func @transform_7(%arg0: i32) -> (i32, i32) {
    %c0_i32 = arith.constant 0 : i32
    %c0_i32_0 = arith.constant 0 : i32
    %c0_i32_1 = arith.constant 0 : i32
    return %c0_i32, %c0_i32_0 : i32, i32
  }
  func.func @transform_8(%arg0: i32) -> (i32, i32) {
    %c0_i32 = arith.constant 0 : i32
    %c0_i32_0 = arith.constant 0 : i32
    %c0_i32_1 = arith.constant 0 : i32
    return %c0_i32, %c0_i32_0 : i32, i32
  }
  func.func @transform_9(%arg0: i32) -> (i32, i32) {
    %c0_i32 = arith.constant 0 : i32
    %c0_i32_0 = arith.constant 0 : i32
    %c0_i32_1 = arith.constant 0 : i32
    return %c0_i32, %c0_i32_0 : i32, i32
  }
  func.func @transform_10(%arg0: i32) -> (i32, i32) {
    %c0_i32 = arith.constant 0 : i32
    %c0_i32_0 = arith.constant 0 : i32
    %c0_i32_1 = arith.constant 0 : i32
    return %c0_i32, %c0_i32_0 : i32, i32
  }
}

</mosaic_0001>

<llo_original>
// kernel: _lambda_.2
$region0: #{_lambda_.2}
  #allocation0 [shape = 'u32[]', space=smem, size = 0x4, offset = 0x4, fixed_abs, tag = 'smem constant byte address 0x4 - core index']
  #allocation1 [shape = 'u32[144,128]{1,0:T(1,128)}', space=vmem, size = 0x12000, scoped, tag = 'internal scratch']
  #allocation2 [shape = 'f32[64,256]{1,0:T(8,128)}', space=vmem, size = 0x10000, scoped, tag = 'scratch operand']
  %s0 = inlined_call_operand.vmem [shape: bf16[64,9472], index: 0, kind: input, shape index: {}]
  %s1 = inlined_call_operand.vmem [shape: bf16[9472,256], index: 1, kind: input, shape index: {}]
  %s2 = inlined_call_operand.vmem [shape: bf16[64,256], index: 2, kind: output, shape index: {}]
  %s3 = sld [smem:[#allocation0]]
  $region75: #{_lambda_.2} parent=0
    _
  %s5 = ssub.s32 1, %s3
  %s6 = scalar_select 0, %s5, %s3
  $region1: #{_lambda_.2} parent=0
    #allocation3 [shape = 'u8[1212416]{0}', space=vmem, size = 0x128000, scoped, tag = 'input window, operand 0']
    loop: start=0, step=1, limit=4
    $region2: #{_lambda_.2} parent=1 // loop_pre_header
      _
    $region3: #{_lambda_.2} parent=1 // loop_header
      %s8 = sphi 0, %s12
      %p9 = scmp.ge.s32.totalorder %s8, 4
      %s18 = sphi 0, %s20
      %s21 = sphi 0, %s18
      %s22 = sphi 0, %s21
      %s38 = sphi 0, %s22
      %s44 = sphi 0, %s46
      %s47 = sphi 0, %s44
      %s48 = sphi 0, %s47
      %s64 = sphi 0, %s48
      %s68 = sphi 0, %s68
      %s70 = sphi 0, %s68
      %s71 = sphi 0, %s70
      %s85 = sphi 0, %s71
    $region4: #{_lambda_.2} parent=1 // loop_header_branch
      %11 = sbr.rel (%p9) target = $region8
    $region5: #{_lambda_.2} parent=1 // loop_body
      %s13 = ssub.s32 %s8, 1
      %s14 = ssub.s32 %s8, 2
      %s15 = sadd.s32 %s8, 1
      %s16 = ssub.s32 %s8, %s15
      %p17 = scmp.eq.s32.totalorder %s16, 0
      %s19 = sadd.s32 %s18, 1
      %s20 = scalar_select %p17, %s18, %s19
      %p23 = pneg %p17
      %p24 = scmp.eq.s32.totalorder %s8, 1
      %p25 = por %p23, %p24
      %p26 = scmp.ne.s32.totalorder %s18, %s21
      %p27 = scmp.eq.s32.totalorder %s8, 0
      %p28 = por %p26, %p27
      %p29 = scmp.ne.s32.totalorder %s18, %s21
      %p30 = scmp.eq.s32.totalorder %s13, 1
      %p31 = por %p29, %p30
      %p32 = scmp.ne.s32.totalorder %s21, %s22
      %p33 = scmp.eq.s32.totalorder %s13, 0
      %p34 = por %p32, %p33
      %p35 = scmp.ne.s32.totalorder %s21, %s22
      %p36 = scmp.eq.s32.totalorder %s14, 1
      %p37 = por %p35, %p36
      %p39 = scmp.ne.s32.totalorder %s22, %s38
      %p40 = scmp.eq.s32.totalorder %s14, 0
      %p41 = por %p39, %p40
      %s42 = ssub.s32 %s8, %s15
      %p43 = scmp.eq.s32.totalorder %s42, 0
      %s45 = sadd.s32 %s44, 1
      %s46 = scalar_select %p43, %s44, %s45
      %p49 = pneg %p43
      %p50 = scmp.eq.s32.totalorder %s8, 1
      %p51 = por %p49, %p50
      %p52 = scmp.ne.s32.totalorder %s44, %s47
      %p53 = scmp.eq.s32.totalorder %s8, 0
      %p54 = por %p52, %p53
      %p55 = scmp.ne.s32.totalorder %s44, %s47
      %p56 = scmp.eq.s32.totalorder %s13, 1
      %p57 = por %p55, %p56
      %p58 = scmp.ne.s32.totalorder %s47, %s48
      %p59 = scmp.eq.s32.totalorder %s13, 0
      %p60 = por %p58, %p59
      %p61 = scmp.ne.s32.totalorder %s47, %s48
      %p62 = scmp.eq.s32.totalorder %s14, 1
      %p63 = por %p61, %p62
      %p65 = scmp.ne.s32.totalorder %s48, %s64
      %p66 = scmp.eq.s32.totalorder %s14, 0
      %p67 = por %p65, %p66
      %s69 = sadd.s32 %s68, 1
      %p72 = scmp.eq.s32.totalorder %s8, 1
      %p73 = scmp.ne.s32.totalorder %s68, %s70
      %p74 = scmp.eq.s32.totalorder %s8, 0
      %p75 = por %p73, %p74
      %p76 = scmp.ne.s32.totalorder %s68, %s70
      %p77 = scmp.eq.s32.totalorder %s13, 1
      %p78 = por %p76, %p77
      %p79 = scmp.ne.s32.totalorder %s70, %s71
      %p80 = scmp.eq.s32.totalorder %s13, 0
      %p81 = por %p79, %p80
      %p82 = scmp.ne.s32.totalorder %s70, %s71
      %p83 = scmp.eq.s32.totalorder %s14, 1
      %p84 = por %p82, %p83
      %p86 = scmp.ne.s32.totalorder %s71, %s85
      %p87 = scmp.eq.s32.totalorder %s14, 0
      %p88 = por %p86, %p87
      %p89 = scmp.le.s32.totalorder 1, %s8
      %p90 = scmp.lt.s32.totalorder %s8, 3
      %p91 = pnand %p89, %p90
      %p92 = pneg %p91
      // Predicated region
      $region9: #{_lambda_.2} parent=5 // pred_check
        _
      $region10: #{_lambda_.2} parent=5 // pred_check_branch
        %94 = sbr.rel (%p91) target = $region12
      $region11: #{_lambda_.2} parent=5 // pred_region
        %s95 = ssub.s32 %s8, 1
      $region12: #{_lambda_.2} parent=5 // pred_fallthru
        _
      %p96 = scmp.lt.s32.totalorder %s8, 2
      // Predicated region
      $region13: #{_lambda_.2} parent=5 // pred_check
        %p97 = pneg %p96
      $region14: #{_lambda_.2} parent=5 // pred_check_branch
        %99 = sbr.rel (%p97) target = $region16
      $region15: #{_lambda_.2} parent=5 // pred_region
        // Predicated region
        $region17: #{_lambda_.2} parent=15 // pred_check
          %p100 = pneg %p28
        $region18: #{_lambda_.2} parent=15 // pred_check_branch
          %102 = sbr.rel (%p100) target = $region20
        $region19: #{_lambda_.2} parent=15 // pred_region
          %s103 = sand.u32 %s18, 1
          %s104 = sand.u32 %s18, 1
          %s105 = smul.addr %s104, 1184
          %s106 = scalar_lea.vmem [#allocation3], %s105
          %s107 = smul.u32 37, %s8
          %s108 = smul.addr %s107, 4
          %s109 = scalar_lea.vmem %s0, %s108
          // Predicated region
          $region21: #{_lambda_.2} parent=19 // pred_check
            _
          $region22: #{_lambda_.2} parent=19 // pred_check_branch
            %111 = sbr.rel (0) target = $region24
          $region23: #{_lambda_.2} parent=19 // pred_region
            // Predicated region
            $region25: #{_lambda_.2} parent=23 // pred_check
              _
            $region26: #{_lambda_.2} parent=23 // pred_check_branch
              %113 = sbr.rel (0) target = $region28
            $region27: #{_lambda_.2} parent=23 // pred_region
              %s114 = scalar_lea.vmem %s109, 144
              %s115 = scalar_lea.vmem %s106, 144 [#allocation3]
              loop: start=0, step=1, limit=1
              $region29: #{_lambda_.2} parent=27 // loop_pre_header
                _
              $region30: #{_lambda_.2} parent=27 // loop_header
                %s117 = sphi 0, %s121
                %p118 = scmp.ge.s32.totalorder %s117, 1
                %s122 = sphi %s109, %s109
                %s123 = sphi %s106, %s106
              $region31: #{_lambda_.2} parent=27 // loop_header_branch
                %120 = sbr.rel (%p118) target = $region35
              $region32: #{_lambda_.2} parent=27 // loop_body
                %v124 = vld [vmem:[%s122] sm:$0xff]
                %125 = vst [vmem:[%s123] sm:$0xff] %v124
                %v126 = vld [vmem:[%s122 + $0x8] sm:$0xff]
                %127 = vst [vmem:[%s123 + $0x8] sm:$0xff] %v126
                %v128 = vld [vmem:[%s122 + $0x10] sm:$0xff]
                %129 = vst [vmem:[%s123 + $0x10] sm:$0xff] %v128
                %v130 = vld [vmem:[%s122 + $0x18] sm:$0xff]
                %131 = vst [vmem:[%s123 + $0x18] sm:$0xff] %v130
                %v132 = vld [vmem:[%s122 + $0x20] sm:$0xff]
                %133 = vst [vmem:[%s123 + $0x20] sm:$0xff] %v132
                %v134 = vld [vmem:[%s122 + $0x28] sm:$0xff]
                %135 = vst [vmem:[%s123 + $0x28] sm:$0xff] %v134
                %v136 = vld [vmem:[%s122 + $0x30] sm:$0xff]
                %137 = vst [vmem:[%s123 + $0x30] sm:$0xff] %v136
                %v138 = vld [vmem:[%s122 + $0x38] sm:$0xff]
                %139 = vst [vmem:[%s123 + $0x38] sm:$0xff] %v138
                %v140 = vld [vmem:[%s122 + $0x40] sm:$0xff]
                %141 = vst [vmem:[%s123 + $0x40] sm:$0xff] %v140
                %v142 = vld [vmem:[%s122 + $0x48] sm:$0xff]
                %143 = vst [vmem:[%s123 + $0x48] sm:$0xff] %v142
                %v144 = vld [vmem:[%s122 + $0x50] sm:$0xff]
                %145 = vst [vmem:[%s123 + $0x50] sm:$0xff] %v144
                %v146 = vld [vmem:[%s122 + $0x58] sm:$0xff]
                %147 = vst [vmem:[%s123 + $0x58] sm:$0xff] %v146
                %v148 = vld [vmem:[%s122 + $0x60] sm:$0xff]
                %149 = vst [vmem:[%s123 + $0x60] sm:$0xff] %v148
                %v150 = vld [vmem:[%s122 + $0x68] sm:$0xff]
                %151 = vst [vmem:[%s123 + $0x68] sm:$0xff] %v150
                %v152 = vld [vmem:[%s122 + $0x70] sm:$0xff]
                %153 = vst [vmem:[%s123 + $0x70] sm:$0xff] %v152
                %v154 = vld [vmem:[%s122 + $0x78] sm:$0xff]
                %155 = vst [vmem:[%s123 + $0x78] sm:$0xff] %v154
                %v156 = vld [vmem:[%s122 + $0x80] sm:$0xff]
                %157 = vst [vmem:[%s123 + $0x80] sm:$0xff] %v156
                %v158 = vld [vmem:[%s122 + $0x88] sm:$0xff]
                %159 = vst [vmem:[%s123 + $0x88] sm:$0xff] %v158
                %v160 = vld [vmem:[%s122 + $0x128] sm:$0xff]
                %161 = vst [vmem:[%s123 + $0x94] sm:$0xff] %v160
                %v162 = vld [vmem:[%s122 + $0x130] sm:$0xff]
                %163 = vst [vmem:[%s123 + $0x9c] sm:$0xff] %v162
                %v164 = vld [vmem:[%s122 + $0x138] sm:$0xff]
                %165 = vst [vmem:[%s123 + $0xa4] sm:$0xff] %v164
                %v166 = vld [vmem:[%s122 + $0x140] sm:$0xff]
                %167 = vst [vmem:[%s123 + $0xac] sm:$0xff] %v166
                %v168 = vld [vmem:[%s122 + $0x148] sm:$0xff]
                %169 = vst [vmem:[%s123 + $0xb4] sm:$0xff] %v168
                %v170 = vld [vmem:[%s122 + $0x150] sm:$0xff]
                %171 = vst [vmem:[%s123 + $0xbc] sm:$0xff] %v170
                %v172 = vld [vmem:[%s122 + $0x158] sm:$0xff]
                %173 = vst [vmem:[%s123 + $0xc4] sm:$0xff] %v172
                %v174 = vld [vmem:[%s122 + $0x160] sm:$0xff]
                %175 = vst [vmem:[%s123 + $0xcc] sm:$0xff] %v174
                %v176 = vld [vmem:[%s122 + $0x168] sm:$0xff]
                %177 = vst [vmem:[%s123 + $0xd4] sm:$0xff] %v176
                %v178 = vld [vmem:[%s122 + $0x170] sm:$0xff]
                %179 = vst [vmem:[%s123 + $0xdc] sm:$0xff] %v178
                %v180 = vld [vmem:[%s122 + $0x178] sm:$0xff]
                %181 = vst [vmem:[%s123 + $0xe4] sm:$0xff] %v180
                %v182 = vld [vmem:[%s122 + $0x180] sm:$0xff]
                %183 = vst [vmem:[%s123 + $0xec] sm:$0xff] %v182
                %v184 = vld [vmem:[%s122 + $0x188] sm:$0xff]
                %185 = vst [vmem:[%s123 + $0xf4] sm:$0xff] %v184
                %v186 = vld [vmem:[%s122 + $0x190] sm:$0xff]
                %187 = vst [vmem:[%s123 + $0xfc] sm:$0xff] %v186
                %v188 = vld [vmem:[%s122 + $0x198] sm:$0xff]
                %189 = vst [vmem:[%s123 + $0x104] sm:$0xff] %v188
                %v190 = vld [vmem:[%s122 + $0x1a0] sm:$0xff]
                %191 = vst [vmem:[%s123 + $0x10c] sm:$0xff] %v190
                %v192 = vld [vmem:[%s122 + $0x1a8] sm:$0xff]
                %193 = vst [vmem:[%s123 + $0x114] sm:$0xff] %v192
                %v194 = vld [vmem:[%s122 + $0x1b0] sm:$0xff]
                %195 = vst [vmem:[%s123 + $0x11c] sm:$0xff] %v194
                %v196 = vld [vmem:[%s122 + $0x250] sm:$0xff]
                %197 = vst [vmem:[%s123 + $0x128] sm:$0xff] %v196
                %v198 = vld [vmem:[%s122 + $0x258] sm:$0xff]
                %199 = vst [vmem:[%s123 + $0x130] sm:$0xff] %v198
                %v200 = vld [vmem:[%s122 + $0x260] sm:$0xff]
                %201 = vst [vmem:[%s123 + $0x138] sm:$0xff] %v200
                %v202 = vld [vmem:[%s122 + $0x268] sm:$0xff]
                %203 = vst [vmem:[%s123 + $0x140] sm:$0xff] %v202
                %v204 = vld [vmem:[%s122 + $0x270] sm:$0xff]
                %205 = vst [vmem:[%s123 + $0x148] sm:$0xff] %v204
                %v206 = vld [vmem:[%s122 + $0x278] sm:$0xff]
                %207 = vst [vmem:[%s123 + $0x150] sm:$0xff] %v206
                %v208 = vld [vmem:[%s122 + $0x280] sm:$0xff]
                %209 = vst [vmem:[%s123 + $0x158] sm:$0xff] %v208
                %v210 = vld [vmem:[%s122 + $0x288] sm:$0xff]
                %211 = vst [vmem:[%s123 + $0x160] sm:$0xff] %v210
                %v212 = vld [vmem:[%s122 + $0x290] sm:$0xff]
                %213 = vst [vmem:[%s123 + $0x168] sm:$0xff] %v212
                %v214 = vld [vmem:[%s122 + $0x298] sm:$0xff]
                %215 = vst [vmem:[%s123 + $0x170] sm:$0xff] %v214
                %v216 = vld [vmem:[%s122 + $0x2a0] sm:$0xff]
                %217 = vst [vmem:[%s123 + $0x178] sm:$0xff] %v216
                %v218 = vld [vmem:[%s122 + $0x2a8] sm:$0xff]
                %219 = vst [vmem:[%s123 + $0x180] sm:$0xff] %v218
                %v220 = vld [vmem:[%s122 + $0x2b0] sm:$0xff]
                %221 = vst [vmem:[%s123 + $0x188] sm:$0xff] %v220
                %v222 = vld [vmem:[%s122 + $0x2b8] sm:$0xff]
                %223 = vst [vmem:[%s123 + $0x190] sm:$0xff] %v222
                %v224 = vld [vmem:[%s122 + $0x2c0] sm:$0xff]
                %225 = vst [vmem:[%s123 + $0x198] sm:$0xff] %v224
                %v226 = vld [vmem:[%s122 + $0x2c8] sm:$0xff]
                %227 = vst [vmem:[%s123 + $0x1a0] sm:$0xff] %v226
                %v228 = vld [vmem:[%s122 + $0x2d0] sm:$0xff]
                %229 = vst [vmem:[%s123 + $0x1a8] sm:$0xff] %v228
                %v230 = vld [vmem:[%s122 + $0x2d8] sm:$0xff]
                %231 = vst [vmem:[%s123 + $0x1b0] sm:$0xff] %v230
                %v232 = vld [vmem:[%s122 + $0x378] sm:$0xff]
                %233 = vst [vmem:[%s123 + $0x1bc] sm:$0xff] %v232
                %v234 = vld [vmem:[%s122 + $0x380] sm:$0xff]
                %235 = vst [vmem:[%s123 + $0x1c4] sm:$0xff] %v234
                %v236 = vld [vmem:[%s122 + $0x388] sm:$0xff]
                %237 = vst [vmem:[%s123 + $0x1cc] sm:$0xff] %v236
                %v238 = vld [vmem:[%s122 + $0x390] sm:$0xff]
                %239 = vst [vmem:[%s123 + $0x1d4] sm:$0xff] %v238
                %v240 = vld [vmem:[%s122 + $0x398] sm:$0xff]
                %241 = vst [vmem:[%s123 + $0x1dc] sm:$0xff] %v240
                %v242 = vld [vmem:[%s122 + $0x3a0] sm:$0xff]
                %243 = vst [vmem:[%s123 + $0x1e4] sm:$0xff] %v242
                %v244 = vld [vmem:[%s122 + $0x3a8] sm:$0xff]
                %245 = vst [vmem:[%s123 + $0x1ec] sm:$0xff] %v244
                %v246 = vld [vmem:[%s122 + $0x3b0] sm:$0xff]
                %247 = vst [vmem:[%s123 + $0x1f4] sm:$0xff] %v246
                %v248 = vld [vmem:[%s122 + $0x3b8] sm:$0xff]
                %249 = vst [vmem:[%s123 + $0x1fc] sm:$0xff] %v248
                %v250 = vld [vmem:[%s122 + $0x3c0] sm:$0xff]
                %251 = vst [vmem:[%s123 + $0x204] sm:$0xff] %v250
                %v252 = vld [vmem:[%s122 + $0x3c8] sm:$0xff]
                %253 = vst [vmem:[%s123 + $0x20c] sm:$0xff] %v252
                %v254 = vld [vmem:[%s122 + $0x3d0] sm:$0xff]
                %255 = vst [vmem:[%s123 + $0x214] sm:$0xff] %v254
                %v256 = vld [vmem:[%s122 + $0x3d8] sm:$0xff]
                %257 = vst [vmem:[%s123 + $0x21c] sm:$0xff] %v256
                %v258 = vld [vmem:[%s122 + $0x3e0] sm:$0xff]
                %259 = vst [vmem:[%s123 + $0x224] sm:$0xff] %v258
                %v260 = vld [vmem:[%s122 + $0x3e8] sm:$0xff]
                %261 = vst [vmem:[%s123 + $0x22c] sm:$0xff] %v260
                %v262 = vld [vmem:[%s122 + $0x3f0] sm:$0xff]
                %263 = vst [vmem:[%s123 + $0x234] sm:$0xff] %v262
                %v264 = vld [vmem:[%s122 + $0x3f8] sm:$0xff]
                %265 = vst [vmem:[%s123 + $0x23c] sm:$0xff] %v264
                %v266 = vld [vmem:[%s122 + $0x400] sm:$0xff]
                %267 = vst [vmem:[%s123 + $0x244] sm:$0xff] %v266
                %v268 = vld [vmem:[%s122 + $0x4a0] sm:$0xff]
                %269 = vst [vmem:[%s123 + $0x250] sm:$0xff] %v268
                %v270 = vld [vmem:[%s122 + $0x4a8] sm:$0xff]
                %271 = vst [vmem:[%s123 + $0x258] sm:$0xff] %v270
                %v272 = vld [vmem:[%s122 + $0x4b0] sm:$0xff]
                %273 = vst [vmem:[%s123 + $0x260] sm:$0xff] %v272
                %v274 = vld [vmem:[%s122 + $0x4b8] sm:$0xff]
                %275 = vst [vmem:[%s123 + $0x268] sm:$0xff] %v274
                %v276 = vld [vmem:[%s122 + $0x4c0] sm:$0xff]
                %277 = vst [vmem:[%s123 + $0x270] sm:$0xff] %v276
                %v278 = vld [vmem:[%s122 + $0x4c8] sm:$0xff]
                %279 = vst [vmem:[%s123 + $0x278] sm:$0xff] %v278
                %v280 = vld [vmem:[%s122 + $0x4d0] sm:$0xff]
                %281 = vst [vmem:[%s123 + $0x280] sm:$0xff] %v280
                %v282 = vld [vmem:[%s122 + $0x4d8] sm:$0xff]
                %283 = vst [vmem:[%s123 + $0x288] sm:$0xff] %v282
                %v284 = vld [vmem:[%s122 + $0x4e0] sm:$0xff]
                %285 = vst [vmem:[%s123 + $0x290] sm:$0xff] %v284
                %v286 = vld [vmem:[%s122 + $0x4e8] sm:$0xff]
                %287 = vst [vmem:[%s123 + $0x298] sm:$0xff] %v286
                %v288 = vld [vmem:[%s122 + $0x4f0] sm:$0xff]
                %289 = vst [vmem:[%s123 + $0x2a0] sm:$0xff] %v288
                %v290 = vld [vmem:[%s122 + $0x4f8] sm:$0xff]
                %291 = vst [vmem:[%s123 + $0x2a8] sm:$0xff] %v290
                %v292 = vld [vmem:[%s122 + $0x500] sm:$0xff]
                %293 = vst [vmem:[%s123 + $0x2b0] sm:$0xff] %v292
                %v294 = vld [vmem:[%s122 + $0x508] sm:$0xff]
                %295 = vst [vmem:[%s123 + $0x2b8] sm:$0xff] %v294
                %v296 = vld [vmem:[%s122 + $0x510] sm:$0xff]
                %297 = vst [vmem:[%s123 + $0x2c0] sm:$0xff] %v296
                %v298 = vld [vmem:[%s122 + $0x518] sm:$0xff]
                %299 = vst [vmem:[%s123 + $0x2c8] sm:$0xff] %v298
                %v300 = vld [vmem:[%s122 + $0x520] sm:$0xff]
                %301 = vst [vmem:[%s123 + $0x2d0] sm:$0xff] %v300
                %v302 = vld [vmem:[%s122 + $0x528] sm:$0xff]
                %303 = vst [vmem:[%s123 + $0x2d8] sm:$0xff] %v302
                %v304 = vld [vmem:[%s122 + $0x5c8] sm:$0xff]
                %305 = vst [vmem:[%s123 + $0x2e4] sm:$0xff] %v304
                %v306 = vld [vmem:[%s122 + $0x5d0] sm:$0xff]
                %307 = vst [vmem:[%s123 + $0x2ec] sm:$0xff] %v306
                %v308 = vld [vmem:[%s122 + $0x5d8] sm:$0xff]
                %309 = vst [vmem:[%s123 + $0x2f4] sm:$0xff] %v308
                %v310 = vld [vmem:[%s122 + $0x5e0] sm:$0xff]
                %311 = vst [vmem:[%s123 + $0x2fc] sm:$0xff] %v310
                %v312 = vld [vmem:[%s122 + $0x5e8] sm:$0xff]
                %313 = vst [vmem:[%s123 + $0x304] sm:$0xff] %v312
                %v314 = vld [vmem:[%s122 + $0x5f0] sm:$0xff]
                %315 = vst [vmem:[%s123 + $0x30c] sm:$0xff] %v314
                %v316 = vld [vmem:[%s122 + $0x5f8] sm:$0xff]
                %317 = vst [vmem:[%s123 + $0x314] sm:$0xff] %v316
                %v318 = vld [vmem:[%s122 + $0x600] sm:$0xff]
                %319 = vst [vmem:[%s123 + $0x31c] sm:$0xff] %v318
                %v320 = vld [vmem:[%s122 + $0x608] sm:$0xff]
                %321 = vst [vmem:[%s123 + $0x324] sm:$0xff] %v320
                %v322 = vld [vmem:[%s122 + $0x610] sm:$0xff]
                %323 = vst [vmem:[%s123 + $0x32c] sm:$0xff] %v322
                %v324 = vld [vmem:[%s122 + $0x618] sm:$0xff]
                %325 = vst [vmem:[%s123 + $0x334] sm:$0xff] %v324
                %v326 = vld [vmem:[%s122 + $0x620] sm:$0xff]
                %327 = vst [vmem:[%s123 + $0x33c] sm:$0xff] %v326
                %v328 = vld [vmem:[%s122 + $0x628] sm:$0xff]
                %329 = vst [vmem:[%s123 + $0x344] sm:$0xff] %v328
                %v330 = vld [vmem:[%s122 + $0x630] sm:$0xff]
                %331 = vst [vmem:[%s123 + $0x34c] sm:$0xff] %v330
                %v332 = vld [vmem:[%s122 + $0x638] sm:$0xff]
                %333 = vst [vmem:[%s123 + $0x354] sm:$0xff] %v332
                %v334 = vld [vmem:[%s122 + $0x640] sm:$0xff]
                %335 = vst [vmem:[%s123 + $0x35c] sm:$0xff] %v334
                %v336 = vld [vmem:[%s122 + $0x648] sm:$0xff]
                %337 = vst [vmem:[%s123 + $0x364] sm:$0xff] %v336
                %v338 = vld [vmem:[%s122 + $0x650] sm:$0xff]
                %339 = vst [vmem:[%s123 + $0x36c] sm:$0xff] %v338
                %v340 = vld [vmem:[%s122 + $0x6f0] sm:$0xff]
                %341 = vst [vmem:[%s123 + $0x378] sm:$0xff] %v340
                %v342 = vld [vmem:[%s122 + $0x6f8] sm:$0xff]
                %343 = vst [vmem:[%s123 + $0x380] sm:$0xff] %v342
                %v344 = vld [vmem:[%s122 + $0x700] sm:$0xff]
                %345 = vst [vmem:[%s123 + $0x388] sm:$0xff] %v344
                %v346 = vld [vmem:[%s122 + $0x708] sm:$0xff]
                %347 = vst [vmem:[%s123 + $0x390] sm:$0xff] %v346
                %v348 = vld [vmem:[%s122 + $0x710] sm:$0xff]
                %349 = vst [vmem:[%s123 + $0x398] sm:$0xff] %v348
                %v350 = vld [vmem:[%s122 + $0x718] sm:$0xff]
                %351 = vst [vmem:[%s123 + $0x3a0] sm:$0xff] %v350
                %v352 = vld [vmem:[%s122 + $0x720] sm:$0xff]
                %353 = vst [vmem:[%s123 + $0x3a8] sm:$0xff] %v352
                %v354 = vld [vmem:[%s122 + $0x728] sm:$0xff]
                %355 = vst [vmem:[%s123 + $0x3b0] sm:$0xff] %v354
                %v356 = vld [vmem:[%s122 + $0x730] sm:$0xff]
                %357 = vst [vmem:[%s123 + $0x3b8] sm:$0xff] %v356
                %v358 = vld [vmem:[%s122 + $0x738] sm:$0xff]
                %359 = vst [vmem:[%s123 + $0x3c0] sm:$0xff] %v358
                %v360 = vld [vmem:[%s122 + $0x740] sm:$0xff]
                %361 = vst [vmem:[%s123 + $0x3c8] sm:$0xff] %v360
                %v362 = vld [vmem:[%s122 + $0x748] sm:$0xff]
                %363 = vst [vmem:[%s123 + $0x3d0] sm:$0xff] %v362
                %v364 = vld [vmem:[%s122 + $0x750] sm:$0xff]
                %365 = vst [vmem:[%s123 + $0x3d8] sm:$0xff] %v364
                %v366 = vld [vmem:[%s122 + $0x758] sm:$0xff]
                %367 = vst [vmem:[%s123 + $0x3e0] sm:$0xff] %v366
                %v368 = vld [vmem:[%s122 + $0x760] sm:$0xff]
                %369 = vst [vmem:[%s123 + $0x3e8] sm:$0xff] %v368
                %v370 = vld [vmem:[%s122 + $0x768] sm:$0xff]
                %371 = vst [vmem:[%s123 + $0x3f0] sm:$0xff] %v370
                %v372 = vld [vmem:[%s122 + $0x770] sm:$0xff]
                %373 = vst [vmem:[%s123 + $0x3f8] sm:$0xff] %v372
                %v374 = vld [vmem:[%s122 + $0x778] sm:$0xff]
                %375 = vst [vmem:[%s123 + $0x400] sm:$0xff] %v374
                %v376 = vld [vmem:[%s122 + $0x818] sm:$0xff]
                %377 = vst [vmem:[%s123 + $0x40c] sm:$0xff] %v376
                %v378 = vld [vmem:[%s122 + $0x820] sm:$0xff]
                %379 = vst [vmem:[%s123 + $0x414] sm:$0xff] %v378
                %v380 = vld [vmem:[%s122 + $0x828] sm:$0xff]
                %381 = vst [vmem:[%s123 + $0x41c] sm:$0xff] %v380
                %v382 = vld [vmem:[%s122 + $0x830] sm:$0xff]
                %383 = vst [vmem:[%s123 + $0x424] sm:$0xff] %v382
                %v384 = vld [vmem:[%s122 + $0x838] sm:$0xff]
                %385 = vst [vmem:[%s123 + $0x42c] sm:$0xff] %v384
                %v386 = vld [vmem:[%s122 + $0x840] sm:$0xff]
                %387 = vst [vmem:[%s123 + $0x434] sm:$0xff] %v386
                %v388 = vld [vmem:[%s122 + $0x848] sm:$0xff]
                %389 = vst [vmem:[%s123 + $0x43c] sm:$0xff] %v388
                %v390 = vld [vmem:[%s122 + $0x850] sm:$0xff]
                %391 = vst [vmem:[%s123 + $0x444] sm:$0xff] %v390
                %v392 = vld [vmem:[%s122 + $0x858] sm:$0xff]
                %393 = vst [vmem:[%s123 + $0x44c] sm:$0xff] %v392
                %v394 = vld [vmem:[%s122 + $0x860] sm:$0xff]
                %395 = vst [vmem:[%s123 + $0x454] sm:$0xff] %v394
                %v396 = vld [vmem:[%s122 + $0x868] sm:$0xff]
                %397 = vst [vmem:[%s123 + $0x45c] sm:$0xff] %v396
                %v398 = vld [vmem:[%s122 + $0x870] sm:$0xff]
                %399 = vst [vmem:[%s123 + $0x464] sm:$0xff] %v398
                %v400 = vld [vmem:[%s122 + $0x878] sm:$0xff]
                %401 = vst [vmem:[%s123 + $0x46c] sm:$0xff] %v400
                %v402 = vld [vmem:[%s122 + $0x880] sm:$0xff]
                %403 = vst [vmem:[%s123 + $0x474] sm:$0xff] %v402
                %v404 = vld [vmem:[%s122 + $0x888] sm:$0xff]
                %405 = vst [vmem:[%s123 + $0x47c] sm:$0xff] %v404
                %v406 = vld [vmem:[%s122 + $0x890] sm:$0xff]
                %407 = vst [vmem:[%s123 + $0x484] sm:$0xff] %v406
                %v408 = vld [vmem:[%s122 + $0x898] sm:$0xff]
                %409 = vst [vmem:[%s123 + $0x48c] sm:$0xff] %v408
                %v410 = vld [vmem:[%s122 + $0x8a0] sm:$0xff]
                %411 = vst [vmem:[%s123 + $0x494] sm:$0xff] %v410
              $region33: #{_lambda_.2} parent=27 // loop_footer
                %s121 = sadd.s32 1, %s117
              $region34: #{_lambda_.2} parent=27 // loop_footer_branch
                %116 = sbr.rel target = $region30
              $region35: #{_lambda_.2} parent=27 // loop_exit
                _
              %s413 = ssub.s32 16, 1
              loop: start=0, step=1, limit=1
              $region36: #{_lambda_.2} parent=27 // loop_pre_header
                _
              $region37: #{_lambda_.2} parent=27 // loop_header
                %s415 = sphi 0, %s419
                %p416 = scmp.ge.s32.totalorder %s415, 1
                %s420 = sphi %s114, %s114
                %s421 = sphi %s115, %s115
              $region38: #{_lambda_.2} parent=27 // loop_header_branch
                %418 = sbr.rel (%p416) target = $region42
              $region39: #{_lambda_.2} parent=27 // loop_body
                %v422 = vld [vmem:[%s420] sm:%s413]
                %423 = vst [vmem:[%s421] sm:%s413] %v422
                %v424 = vld [vmem:[%s420 + $0x128] sm:%s413]
                %425 = vst [vmem:[%s421 + $0x94] sm:%s413] %v424
                %v426 = vld [vmem:[%s420 + $0x250] sm:%s413]
                %427 = vst [vmem:[%s421 + $0x128] sm:%s413] %v426
                %v428 = vld [vmem:[%s420 + $0x378] sm:%s413]
                %429 = vst [vmem:[%s421 + $0x1bc] sm:%s413] %v428
                %v430 = vld [vmem:[%s420 + $0x4a0] sm:%s413]
                %431 = vst [vmem:[%s421 + $0x250] sm:%s413] %v430
                %v432 = vld [vmem:[%s420 + $0x5c8] sm:%s413]
                %433 = vst [vmem:[%s421 + $0x2e4] sm:%s413] %v432
                %v434 = vld [vmem:[%s420 + $0x6f0] sm:%s413]
                %435 = vst [vmem:[%s421 + $0x378] sm:%s413] %v434
                %v436 = vld [vmem:[%s420 + $0x818] sm:%s413]
                %437 = vst [vmem:[%s421 + $0x40c] sm:%s413] %v436
              $region40: #{_lambda_.2} parent=27 // loop_footer
                %s419 = sadd.s32 1, %s415
              $region41: #{_lambda_.2} parent=27 // loop_footer_branch
                %414 = sbr.rel target = $region37
              $region42: #{_lambda_.2} parent=27 // loop_exit
                _
            $region28: #{_lambda_.2} parent=23 // pred_fallthru
              _
          $region24: #{_lambda_.2} parent=19 // pred_fallthru
            _
          %438 = vnop
        $region20: #{_lambda_.2} parent=15 // pred_fallthru
          _
        // Predicated region
        $region43: #{_lambda_.2} parent=15 // pred_check
          %p439 = pneg %p54
        $region44: #{_lambda_.2} parent=15 // pred_check_branch
          %441 = sbr.rel (%p439) target = $region46
        $region45: #{_lambda_.2} parent=15 // pred_region
          %s442 = smul.u32 592, %s8
          %p443 = scmp.lt.s32.totalorder %s442, 1183
          %s444 = scalar_select %p443, %s442, 1183
          %s445 = smul.addr %s444, 2
          %s446 = smul.addr %s445, 4
          %s447 = scalar_lea.vmem %s1, %s446
          %s448 = smul.u32 592, %s8
        $region46: #{_lambda_.2} parent=15 // pred_fallthru
          _
      $region16: #{_lambda_.2} parent=5 // pred_fallthru
        _
      %p449 = scmp.le.s32.totalorder 1, %s8
      %p450 = scmp.lt.s32.totalorder %s8, 3
      %p451 = pnand %p449, %p450
      %p452 = pneg %p451
      // Predicated region
      $region47: #{_lambda_.2} parent=5 // pred_check
        _
      $region48: #{_lambda_.2} parent=5 // pred_check_branch
        %454 = sbr.rel (%p451) target = $region50
      $region49: #{_lambda_.2} parent=5 // pred_region
        %s455 = ssub.s32 %s8, 1
        %s456 = sand.u32 %s21, 1
        %s457 = sand.u32 %s21, 1
        %s458 = smul.addr %s457, 1184
        %s459 = scalar_lea.vmem [#allocation3], %s458
        // Predicated region
        $region51: #{_lambda_.2} parent=49 // pred_check
          %p460 = pneg %p34
        $region52: #{_lambda_.2} parent=49 // pred_check_branch
          %462 = sbr.rel (%p460) target = $region54
        $region53: #{_lambda_.2} parent=49 // pred_region
          _
        $region54: #{_lambda_.2} parent=49 // pred_fallthru
          _
        %s463 = sand.u32 %s21, 1
        %s464 = sand.u32 %s21, 1
        %s465 = smul.addr %s464, 1184
        %s466 = scalar_lea.vmem [#allocation3], %s465
        %p467 = pneg %p34
        %p468 = pneg %p31
        %s469 = smul.u32 592, %s13
        %p470 = scmp.lt.s32.totalorder %s469, 1183
        %s471 = scalar_select %p470, %s469, 1183
        %s472 = smul.addr %s471, 2
        %s473 = smul.addr %s472, 4
        %s474 = scalar_lea.vmem %s1, %s473
        %p475 = pneg %p60
        %p476 = pneg %p57
        %p477 = pneg %p81
        %p478 = pneg %p78
        %s479 = smul.u32 37, %s13
        %s480 = smul.u32 592, %s13
        %p481 = scmp.lt.s32.totalorder %s480, 1183
        %s482 = scalar_select %p481, %s480, 1183
        %s483 = smul.addr %s482, 2
        %s484 = smul.addr %s483, 4
        %s485 = scalar_lea.vmem %s1, %s484
        %s486 = smul.u32 592, %s13
        %p488 = scmp.eq.s32.totalorder %s13, 0
        // Predicated region
        $region55: #{_lambda_.2} parent=49 // pred_check
          %p489 = pneg %p488
        $region56: #{_lambda_.2} parent=49 // pred_check_branch
          %491 = sbr.rel (%p489) target = $region58
        $region57: #{_lambda_.2} parent=49 // pred_region
          %492 = vst [vmem:[#allocation2] sm:$0xff] 0.0
          %493 = vst [vmem:[#allocation2 + $0x8] sm:$0xff] 0.0
          %494 = vst [vmem:[#allocation2 + $0x10] sm:$0xff] 0.0
          %495 = vst [vmem:[#allocation2 + $0x18] sm:$0xff] 0.0
          %496 = vst [vmem:[#allocation2 + $0x20] sm:$0xff] 0.0
          %497 = vst [vmem:[#allocation2 + $0x28] sm:$0xff] 0.0
          %498 = vst [vmem:[#allocation2 + $0x30] sm:$0xff] 0.0
          %499 = vst [vmem:[#allocation2 + $0x38] sm:$0xff] 0.0
          %500 = vst [vmem:[#allocation2 + $0x40] sm:$0xff] 0.0
          %501 = vst [vmem:[#allocation2 + $0x48] sm:$0xff] 0.0
          %502 = vst [vmem:[#allocation2 + $0x50] sm:$0xff] 0.0
          %503 = vst [vmem:[#allocation2 + $0x58] sm:$0xff] 0.0
          %504 = vst [vmem:[#allocation2 + $0x60] sm:$0xff] 0.0
          %505 = vst [vmem:[#allocation2 + $0x68] sm:$0xff] 0.0
          %506 = vst [vmem:[#allocation2 + $0x70] sm:$0xff] 0.0
          %507 = vst [vmem:[#allocation2 + $0x78] sm:$0xff] 0.0
        $region58: #{_lambda_.2} parent=49 // pred_fallthru
          _
        %v508 = vld [vmem:[#allocation2] sm:$0xff]
        %v509 = vld [vmem:[#allocation2 + $0x8] sm:$0xff]
        %v510 = vld [vmem:[#allocation2 + $0x10] sm:$0xff]
        %v511 = vld [vmem:[#allocation2 + $0x18] sm:$0xff]
        %v512 = vld [vmem:[#allocation2 + $0x20] sm:$0xff]
        %v513 = vld [vmem:[#allocation2 + $0x28] sm:$0xff]
        %v514 = vld [vmem:[#allocation2 + $0x30] sm:$0xff]
        %v515 = vld [vmem:[#allocation2 + $0x38] sm:$0xff]
        %v516 = vld [vmem:[#allocation2 + $0x40] sm:$0xff]
        %v517 = vld [vmem:[#allocation2 + $0x48] sm:$0xff]
        %v518 = vld [vmem:[#allocation2 + $0x50] sm:$0xff]
        %v519 = vld [vmem:[#allocation2 + $0x58] sm:$0xff]
        %v520 = vld [vmem:[#allocation2 + $0x60] sm:$0xff]
        %v521 = vld [vmem:[#allocation2 + $0x68] sm:$0xff]
        %v522 = vld [vmem:[#allocation2 + $0x70] sm:$0xff]
        %v523 = vld [vmem:[#allocation2 + $0x78] sm:$0xff]
        %v524 = vld [vmem:[%s459] sm:$0xff]
        %v525 = vld [vmem:[%s459 + $0x8] sm:$0xff]
        %v526 = vld [vmem:[%s459 + $0x10] sm:$0xff]
        %v527 = vld [vmem:[%s459 + $0x18] sm:$0xff]
        %v528 = vld [vmem:[%s459 + $0x20] sm:$0xff]
        %v529 = vld [vmem:[%s459 + $0x28] sm:$0xff]
        %v530 = vld [vmem:[%s459 + $0x30] sm:$0xff]
        %v531 = vld [vmem:[%s459 + $0x38] sm:$0xff]
        %v532 = vld [vmem:[%s459 + $0x40] sm:$0xff]
        %v533 = vld [vmem:[%s459 + $0x48] sm:$0xff]
        %v534 = vld [vmem:[%s459 + $0x50] sm:$0xff]
        %v535 = vld [vmem:[%s459 + $0x58] sm:$0xff]
        %v536 = vld [vmem:[%s459 + $0x60] sm:$0xff]
        %v537 = vld [vmem:[%s459 + $0x68] sm:$0xff]
        %v538 = vld [vmem:[%s459 + $0x70] sm:$0xff]
        %v539 = vld [vmem:[%s459 + $0x78] sm:$0xff]
        %v540 = vld [vmem:[%s459 + $0x80] sm:$0xff]
        %v541 = vld [vmem:[%s459 + $0x88] sm:$0xff]
        %v542 = vld [vmem:[%s459 + $0x90] sm:$0xf]
        %v543 = vld [vmem:[%s459 + $0x94] sm:$0xff]
        %v544 = vld [vmem:[%s459 + $0x9c] sm:$0xff]
        %v545 = vld [vmem:[%s459 + $0xa4] sm:$0xff]
        %v546 = vld [vmem:[%s459 + $0xac] sm:$0xff]
        %v547 = vld [vmem:[%s459 + $0xb4] sm:$0xff]
        %v548 = vld [vmem:[%s459 + $0xbc] sm:$0xff]
        %v549 = vld [vmem:[%s459 + $0xc4] sm:$0xff]
        %v550 = vld [vmem:[%s459 + $0xcc] sm:$0xff]
        %v551 = vld [vmem:[%s459 + $0xd4] sm:$0xff]
        %v552 = vld [vmem:[%s459 + $0xdc] sm:$0xff]
        %v553 = vld [vmem:[%s459 + $0xe4] sm:$0xff]
        %v554 = vld [vmem:[%s459 + $0xec] sm:$0xff]
        %v555 = vld [vmem:[%s459 + $0xf4] sm:$0xff]
        %v556 = vld [vmem:[%s459 + $0xfc] sm:$0xff]
        %v557 = vld [vmem:[%s459 + $0x104] sm:$0xff]
        %v558 = vld [vmem:[%s459 + $0x10c] sm:$0xff]
        %v559 = vld [vmem:[%s459 + $0x114] sm:$0xff]
        %v560 = vld [vmem:[%s459 + $0x11c] sm:$0xff]
        %v561 = vld [vmem:[%s459 + $0x124] sm:$0xf]
        %v562 = vld [vmem:[%s459 + $0x128] sm:$0xff]
        %v563 = vld [vmem:[%s459 + $0x130] sm:$0xff]
        %v564 = vld [vmem:[%s459 + $0x138] sm:$0xff]
        %v565 = vld [vmem:[%s459 + $0x140] sm:$0xff]
        %v566 = vld [vmem:[%s459 + $0x148] sm:$0xff]
        %v567 = vld [vmem:[%s459 + $0x150] sm:$0xff]
        %v568 = vld [vmem:[%s459 + $0x158] sm:$0xff]
        %v569 = vld [vmem:[%s459 + $0x160] sm:$0xff]
        %v570 = vld [vmem:[%s459 + $0x168] sm:$0xff]
        %v571 = vld [vmem:[%s459 + $0x170] sm:$0xff]
        %v572 = vld [vmem:[%s459 + $0x178] sm:$0xff]
        %v573 = vld [vmem:[%s459 + $0x180] sm:$0xff]
        %v574 = vld [vmem:[%s459 + $0x188] sm:$0xff]
        %v575 = vld [vmem:[%s459 + $0x190] sm:$0xff]
        %v576 = vld [vmem:[%s459 + $0x198] sm:$0xff]
        %v577 = vld [vmem:[%s459 + $0x1a0] sm:$0xff]
        %v578 = vld [vmem:[%s459 + $0x1a8] sm:$0xff]
        %v579 = vld [vmem:[%s459 + $0x1b0] sm:$0xff]
        %v580 = vld [vmem:[%s459 + $0x1b8] sm:$0xf]
        %v581 = vld [vmem:[%s459 + $0x1bc] sm:$0xff]
        %v582 = vld [vmem:[%s459 + $0x1c4] sm:$0xff]
        %v583 = vld [vmem:[%s459 + $0x1cc] sm:$0xff]
        %v584 = vld [vmem:[%s459 + $0x1d4] sm:$0xff]
        %v585 = vld [vmem:[%s459 + $0x1dc] sm:$0xff]
        %v586 = vld [vmem:[%s459 + $0x1e4] sm:$0xff]
        %v587 = vld [vmem:[%s459 + $0x1ec] sm:$0xff]
        %v588 = vld [vmem:[%s459 + $0x1f4] sm:$0xff]
        %v589 = vld [vmem:[%s459 + $0x1fc] sm:$0xff]
        %v590 = vld [vmem:[%s459 + $0x204] sm:$0xff]
        %v591 = vld [vmem:[%s459 + $0x20c] sm:$0xff]
        %v592 = vld [vmem:[%s459 + $0x214] sm:$0xff]
        %v593 = vld [vmem:[%s459 + $0x21c] sm:$0xff]
        %v594 = vld [vmem:[%s459 + $0x224] sm:$0xff]
        %v595 = vld [vmem:[%s459 + $0x22c] sm:$0xff]
        %v596 = vld [vmem:[%s459 + $0x234] sm:$0xff]
        %v597 = vld [vmem:[%s459 + $0x23c] sm:$0xff]
        %v598 = vld [vmem:[%s459 + $0x244] sm:$0xff]
        %v599 = vld [vmem:[%s459 + $0x24c] sm:$0xf]
        %v600 = vld [vmem:[%s459 + $0x250] sm:$0xff]
        %v601 = vld [vmem:[%s459 + $0x258] sm:$0xff]
        %v602 = vld [vmem:[%s459 + $0x260] sm:$0xff]
        %v603 = vld [vmem:[%s459 + $0x268] sm:$0xff]
        %v604 = vld [vmem:[%s459 + $0x270] sm:$0xff]
        %v605 = vld [vmem:[%s459 + $0x278] sm:$0xff]
        %v606 = vld [vmem:[%s459 + $0x280] sm:$0xff]
        %v607 = vld [vmem:[%s459 + $0x288] sm:$0xff]
        %v608 = vld [vmem:[%s459 + $0x290] sm:$0xff]
        %v609 = vld [vmem:[%s459 + $0x298] sm:$0xff]
        %v610 = vld [vmem:[%s459 + $0x2a0] sm:$0xff]
        %v611 = vld [vmem:[%s459 + $0x2a8] sm:$0xff]
        %v612 = vld [vmem:[%s459 + $0x2b0] sm:$0xff]
        %v613 = vld [vmem:[%s459 + $0x2b8] sm:$0xff]
        %v614 = vld [vmem:[%s459 + $0x2c0] sm:$0xff]
        %v615 = vld [vmem:[%s459 + $0x2c8] sm:$0xff]
        %v616 = vld [vmem:[%s459 + $0x2d0] sm:$0xff]
        %v617 = vld [vmem:[%s459 + $0x2d8] sm:$0xff]
        %v618 = vld [vmem:[%s459 + $0x2e0] sm:$0xf]
        %v619 = vld [vmem:[%s459 + $0x2e4] sm:$0xff]
        %v620 = vld [vmem:[%s459 + $0x2ec] sm:$0xff]
        %v621 = vld [vmem:[%s459 + $0x2f4] sm:$0xff]
        %v622 = vld [vmem:[%s459 + $0x2fc] sm:$0xff]
        %v623 = vld [vmem:[%s459 + $0x304] sm:$0xff]
        %v624 = vld [vmem:[%s459 + $0x30c] sm:$0xff]
        %v625 = vld [vmem:[%s459 + $0x314] sm:$0xff]
        %v626 = vld [vmem:[%s459 + $0x31c] sm:$0xff]
        %v627 = vld [vmem:[%s459 + $0x324] sm:$0xff]
        %v628 = vld [vmem:[%s459 + $0x32c] sm:$0xff]
        %v629 = vld [vmem:[%s459 + $0x334] sm:$0xff]
        %v630 = vld [vmem:[%s459 + $0x33c] sm:$0xff]
        %v631 = vld [vmem:[%s459 + $0x344] sm:$0xff]
        %v632 = vld [vmem:[%s459 + $0x34c] sm:$0xff]
        %v633 = vld [vmem:[%s459 + $0x354] sm:$0xff]
        %v634 = vld [vmem:[%s459 + $0x35c] sm:$0xff]
        %v635 = vld [vmem:[%s459 + $0x364] sm:$0xff]
        %v636 = vld [vmem:[%s459 + $0x36c] sm:$0xff]
        %v637 = vld [vmem:[%s459 + $0x374] sm:$0xf]
        %v638 = vld [vmem:[%s459 + $0x378] sm:$0xff]
        %v639 = vld [vmem:[%s459 + $0x380] sm:$0xff]
        %v640 = vld [vmem:[%s459 + $0x388] sm:$0xff]
        %v641 = vld [vmem:[%s459 + $0x390] sm:$0xff]
        %v642 = vld [vmem:[%s459 + $0x398] sm:$0xff]
        %v643 = vld [vmem:[%s459 + $0x3a0] sm:$0xff]
        %v644 = vld [vmem:[%s459 + $0x3a8] sm:$0xff]
        %v645 = vld [vmem:[%s459 + $0x3b0] sm:$0xff]
        %v646 = vld [vmem:[%s459 + $0x3b8] sm:$0xff]
        %v647 = vld [vmem:[%s459 + $0x3c0] sm:$0xff]
        %v648 = vld [vmem:[%s459 + $0x3c8] sm:$0xff]
        %v649 = vld [vmem:[%s459 + $0x3d0] sm:$0xff]
        %v650 = vld [vmem:[%s459 + $0x3d8] sm:$0xff]
        %v651 = vld [vmem:[%s459 + $0x3e0] sm:$0xff]
        %v652 = vld [vmem:[%s459 + $0x3e8] sm:$0xff]
        %v653 = vld [vmem:[%s459 + $0x3f0] sm:$0xff]
        %v654 = vld [vmem:[%s459 + $0x3f8] sm:$0xff]
        %v655 = vld [vmem:[%s459 + $0x400] sm:$0xff]
        %v656 = vld [vmem:[%s459 + $0x408] sm:$0xf]
        %v657 = vld [vmem:[%s459 + $0x40c] sm:$0xff]
        %v658 = vld [vmem:[%s459 + $0x414] sm:$0xff]
        %v659 = vld [vmem:[%s459 + $0x41c] sm:$0xff]
        %v660 = vld [vmem:[%s459 + $0x424] sm:$0xff]
        %v661 = vld [vmem:[%s459 + $0x42c] sm:$0xff]
        %v662 = vld [vmem:[%s459 + $0x434] sm:$0xff]
        %v663 = vld [vmem:[%s459 + $0x43c] sm:$0xff]
        %v664 = vld [vmem:[%s459 + $0x444] sm:$0xff]
        %v665 = vld [vmem:[%s459 + $0x44c] sm:$0xff]
        %v666 = vld [vmem:[%s459 + $0x454] sm:$0xff]
        %v667 = vld [vmem:[%s459 + $0x45c] sm:$0xff]
        %v668 = vld [vmem:[%s459 + $0x464] sm:$0xff]
        %v669 = vld [vmem:[%s459 + $0x46c] sm:$0xff]
        %v670 = vld [vmem:[%s459 + $0x474] sm:$0xff]
        %v671 = vld [vmem:[%s459 + $0x47c] sm:$0xff]
        %v672 = vld [vmem:[%s459 + $0x484] sm:$0xff]
        %v673 = vld [vmem:[%s459 + $0x48c] sm:$0xff]
        %v674 = vld [vmem:[%s459 + $0x494] sm:$0xff]
        %v675 = vld [vmem:[%s459 + $0x49c] sm:$0xf]
        %v676 = vld [vmem:[%s485] sm:$0xff]
        %v677 = vld [vmem:[%s485 + $0x8] sm:$0xff]
        %v678 = vld [vmem:[%s485 + $0x10] sm:$0xff]
        %v679 = vld [vmem:[%s485 + $0x18] sm:$0xff]
        %v680 = vld [vmem:[%s485 + $0x20] sm:$0xff]
        %v681 = vld [vmem:[%s485 + $0x28] sm:$0xff]
        %v682 = vld [vmem:[%s485 + $0x30] sm:$0xff]
        %v683 = vld [vmem:[%s485 + $0x38] sm:$0xff]
        %v684 = vld [vmem:[%s485 + $0x40] sm:$0xff]
        %v685 = vld [vmem:[%s485 + $0x48] sm:$0xff]
        %v686 = vld [vmem:[%s485 + $0x50] sm:$0xff]
        %v687 = vld [vmem:[%s485 + $0x58] sm:$0xff]
        %v688 = vld [vmem:[%s485 + $0x60] sm:$0xff]
        %v689 = vld [vmem:[%s485 + $0x68] sm:$0xff]
        %v690 = vld [vmem:[%s485 + $0x70] sm:$0xff]
        %v691 = vld [vmem:[%s485 + $0x78] sm:$0xff]
        %v692 = vld [vmem:[%s485 + $0x80] sm:$0xff]
        %v693 = vld [vmem:[%s485 + $0x88] sm:$0xff]
        %v694 = vld [vmem:[%s485 + $0x90] sm:$0xff]
        %v695 = vld [vmem:[%s485 + $0x98] sm:$0xff]
        %v696 = vld [vmem:[%s485 + $0xa0] sm:$0xff]
        %v697 = vld [vmem:[%s485 + $0xa8] sm:$0xff]
        %v698 = vld [vmem:[%s485 + $0xb0] sm:$0xff]
        %v699 = vld [vmem:[%s485 + $0xb8] sm:$0xff]
        %v700 = vld [vmem:[%s485 + $0xc0] sm:$0xff]
        %v701 = vld [vmem:[%s485 + $0xc8] sm:$0xff]
        %v702 = vld [vmem:[%s485 + $0xd0] sm:$0xff]
        %v703 = vld [vmem:[%s485 + $0xd8] sm:$0xff]
        %v704 = vld [vmem:[%s485 + $0xe0] sm:$0xff]
        %v705 = vld [vmem:[%s485 + $0xe8] sm:$0xff]
        %v706 = vld [vmem:[%s485 + $0xf0] sm:$0xff]
        %v707 = vld [vmem:[%s485 + $0xf8] sm:$0xff]
        %v708 = vld [vmem:[%s485 + $0x100] sm:$0xff]
        %v709 = vld [vmem:[%s485 + $0x108] sm:$0xff]
        %v710 = vld [vmem:[%s485 + $0x110] sm:$0xff]
        %v711 = vld [vmem:[%s485 + $0x118] sm:$0xff]
        %v712 = vld [vmem:[%s485 + $0x120] sm:$0xff]
        %v713 = vld [vmem:[%s485 + $0x128] sm:$0xff]
        %v714 = vld [vmem:[%s485 + $0x130] sm:$0xff]
        %v715 = vld [vmem:[%s485 + $0x138] sm:$0xff]
        %v716 = vld [vmem:[%s485 + $0x140] sm:$0xff]
        %v717 = vld [vmem:[%s485 + $0x148] sm:$0xff]
        %v718 = vld [vmem:[%s485 + $0x150] sm:$0xff]
        %v719 = vld [vmem:[%s485 + $0x158] sm:$0xff]
        %v720 = vld [vmem:[%s485 + $0x160] sm:$0xff]
        %v721 = vld [vmem:[%s485 + $0x168] sm:$0xff]
        %v722 = vld [vmem:[%s485 + $0x170] sm:$0xff]
        %v723 = vld [vmem:[%s485 + $0x178] sm:$0xff]
        %v724 = vld [vmem:[%s485 + $0x180] sm:$0xff]
        %v725 = vld [vmem:[%s485 + $0x188] sm:$0xff]
        %v726 = vld [vmem:[%s485 + $0x190] sm:$0xff]
        %v727 = vld [vmem:[%s485 + $0x198] sm:$0xff]
        %v728 = vld [vmem:[%s485 + $0x1a0] sm:$0xff]
        %v729 = vld [vmem:[%s485 + $0x1a8] sm:$0xff]
        %v730 = vld [vmem:[%s485 + $0x1b0] sm:$0xff]
        %v731 = vld [vmem:[%s485 + $0x1b8] sm:$0xff]
        %v732 = vld [vmem:[%s485 + $0x1c0] sm:$0xff]
        %v733 = vld [vmem:[%s485 + $0x1c8] sm:$0xff]
        %v734 = vld [vmem:[%s485 + $0x1d0] sm:$0xff]
        %v735 = vld [vmem:[%s485 + $0x1d8] sm:$0xff]
        %v736 = vld [vmem:[%s485 + $0x1e0] sm:$0xff]
        %v737 = vld [vmem:[%s485 + $0x1e8] sm:$0xff]
        %v738 = vld [vmem:[%s485 + $0x1f0] sm:$0xff]
        %v739 = vld [vmem:[%s485 + $0x1f8] sm:$0xff]
        %v740 = vld [vmem:[%s485 + $0x200] sm:$0xff]
        %v741 = vld [vmem:[%s485 + $0x208] sm:$0xff]
        %v742 = vld [vmem:[%s485 + $0x210] sm:$0xff]
        %v743 = vld [vmem:[%s485 + $0x218] sm:$0xff]
        %v744 = vld [vmem:[%s485 + $0x220] sm:$0xff]
        %v745 = vld [vmem:[%s485 + $0x228] sm:$0xff]
        %v746 = vld [vmem:[%s485 + $0x230] sm:$0xff]
        %v747 = vld [vmem:[%s485 + $0x238] sm:$0xff]
        %v748 = vld [vmem:[%s485 + $0x240] sm:$0xff]
        %v749 = vld [vmem:[%s485 + $0x248] sm:$0xff]
        %v750 = vld [vmem:[%s485 + $0x250] sm:$0xff]
        %v751 = vld [vmem:[%s485 + $0x258] sm:$0xff]
        %v752 = vld [vmem:[%s485 + $0x260] sm:$0xff]
        %v753 = vld [vmem:[%s485 + $0x268] sm:$0xff]
        %v754 = vld [vmem:[%s485 + $0x270] sm:$0xff]
        %v755 = vld [vmem:[%s485 + $0x278] sm:$0xff]
        %v756 = vld [vmem:[%s485 + $0x280] sm:$0xff]
        %v757 = vld [vmem:[%s485 + $0x288] sm:$0xff]
        %v758 = vld [vmem:[%s485 + $0x290] sm:$0xff]
        %v759 = vld [vmem:[%s485 + $0x298] sm:$0xff]
        %v760 = vld [vmem:[%s485 + $0x2a0] sm:$0xff]
        %v761 = vld [vmem:[%s485 + $0x2a8] sm:$0xff]
        %v762 = vld [vmem:[%s485 + $0x2b0] sm:$0xff]
        %v763 = vld [vmem:[%s485 + $0x2b8] sm:$0xff]
        %v764 = vld [vmem:[%s485 + $0x2c0] sm:$0xff]
        %v765 = vld [vmem:[%s485 + $0x2c8] sm:$0xff]
        %v766 = vld [vmem:[%s485 + $0x2d0] sm:$0xff]
        %v767 = vld [vmem:[%s485 + $0x2d8] sm:$0xff]
        %v768 = vld [vmem:[%s485 + $0x2e0] sm:$0xff]
        %v769 = vld [vmem:[%s485 + $0x2e8] sm:$0xff]
        %v770 = vld [vmem:[%s485 + $0x2f0] sm:$0xff]
        %v771 = vld [vmem:[%s485 + $0x2f8] sm:$0xff]
        %v772 = vld [vmem:[%s485 + $0x300] sm:$0xff]
        %v773 = vld [vmem:[%s485 + $0x308] sm:$0xff]
        %v774 = vld [vmem:[%s485 + $0x310] sm:$0xff]
        %v775 = vld [vmem:[%s485 + $0x318] sm:$0xff]
        %v776 = vld [vmem:[%s485 + $0x320] sm:$0xff]
        %v777 = vld [vmem:[%s485 + $0x328] sm:$0xff]
        %v778 = vld [vmem:[%s485 + $0x330] sm:$0xff]
        %v779 = vld [vmem:[%s485 + $0x338] sm:$0xff]
        %v780 = vld [vmem:[%s485 + $0x340] sm:$0xff]
        %v781 = vld [vmem:[%s485 + $0x348] sm:$0xff]
        %v782 = vld [vmem:[%s485 + $0x350] sm:$0xff]
        %v783 = vld [vmem:[%s485 + $0x358] sm:$0xff]
        %v784 = vld [vmem:[%s485 + $0x360] sm:$0xff]
        %v785 = vld [vmem:[%s485 + $0x368] sm:$0xff]
        %v786 = vld [vmem:[%s485 + $0x370] sm:$0xff]
        %v787 = vld [vmem:[%s485 + $0x378] sm:$0xff]
        %v788 = vld [vmem:[%s485 + $0x380] sm:$0xff]
        %v789 = vld [vmem:[%s485 + $0x388] sm:$0xff]
        %v790 = vld [vmem:[%s485 + $0x390] sm:$0xff]
        %v791 = vld [vmem:[%s485 + $0x398] sm:$0xff]
        %v792 = vld [vmem:[%s485 + $0x3a0] sm:$0xff]
        %v793 = vld [vmem:[%s485 + $0x3a8] sm:$0xff]
        %v794 = vld [vmem:[%s485 + $0x3b0] sm:$0xff]
        %v795 = vld [vmem:[%s485 + $0x3b8] sm:$0xff]
        %v796 = vld [vmem:[%s485 + $0x3c0] sm:$0xff]
        %v797 = vld [vmem:[%s485 + $0x3c8] sm:$0xff]
        %v798 = vld [vmem:[%s485 + $0x3d0] sm:$0xff]
        %v799 = vld [vmem:[%s485 + $0x3d8] sm:$0xff]
        %v800 = vld [vmem:[%s485 + $0x3e0] sm:$0xff]
        %v801 = vld [vmem:[%s485 + $0x3e8] sm:$0xff]
        %v802 = vld [vmem:[%s485 + $0x3f0] sm:$0xff]
        %v803 = vld [vmem:[%s485 + $0x3f8] sm:$0xff]
        %v804 = vld [vmem:[%s485 + $0x400] sm:$0xff]
        %v805 = vld [vmem:[%s485 + $0x408] sm:$0xff]
        %v806 = vld [vmem:[%s485 + $0x410] sm:$0xff]
        %v807 = vld [vmem:[%s485 + $0x418] sm:$0xff]
        %v808 = vld [vmem:[%s485 + $0x420] sm:$0xff]
        %v809 = vld [vmem:[%s485 + $0x428] sm:$0xff]
        %v810 = vld [vmem:[%s485 + $0x430] sm:$0xff]
        %v811 = vld [vmem:[%s485 + $0x438] sm:$0xff]
        %v812 = vld [vmem:[%s485 + $0x440] sm:$0xff]
        %v813 = vld [vmem:[%s485 + $0x448] sm:$0xff]
        %v814 = vld [vmem:[%s485 + $0x450] sm:$0xff]
        %v815 = vld [vmem:[%s485 + $0x458] sm:$0xff]
        %v816 = vld [vmem:[%s485 + $0x460] sm:$0xff]
        %v817 = vld [vmem:[%s485 + $0x468] sm:$0xff]
        %v818 = vld [vmem:[%s485 + $0x470] sm:$0xff]
        %v819 = vld [vmem:[%s485 + $0x478] sm:$0xff]
        %v820 = vld [vmem:[%s485 + $0x480] sm:$0xff]
        %v821 = vld [vmem:[%s485 + $0x488] sm:$0xff]
        %v822 = vld [vmem:[%s485 + $0x490] sm:$0xff]
        %v823 = vld [vmem:[%s485 + $0x498] sm:$0xff]
        %v824 = vld [vmem:[%s485 + $0x4a0] sm:$0xff]
        %v825 = vld [vmem:[%s485 + $0x4a8] sm:$0xff]
        %v826 = vld [vmem:[%s485 + $0x4b0] sm:$0xff]
        %v827 = vld [vmem:[%s485 + $0x4b8] sm:$0xff]
        %v828 = vld [vmem:[%s485 + $0x4c0] sm:$0xff]
        %v829 = vld [vmem:[%s485 + $0x4c8] sm:$0xff]
        %v830 = vld [vmem:[%s485 + $0x4d0] sm:$0xff]
        %v831 = vld [vmem:[%s485 + $0x4d8] sm:$0xff]
        %v832 = vld [vmem:[%s485 + $0x4e0] sm:$0xff]
        %v833 = vld [vmem:[%s485 + $0x4e8] sm:$0xff]
        %v834 = vld [vmem:[%s485 + $0x4f0] sm:$0xff]
        %v835 = vld [vmem:[%s485 + $0x4f8] sm:$0xff]
        %v836 = vld [vmem:[%s485 + $0x500] sm:$0xff]
        %v837 = vld [vmem:[%s485 + $0x508] sm:$0xff]
        %v838 = vld [vmem:[%s485 + $0x510] sm:$0xff]
        %v839 = vld [vmem:[%s485 + $0x518] sm:$0xff]
        %v840 = vld [vmem:[%s485 + $0x520] sm:$0xff]
        %v841 = vld [vmem:[%s485 + $0x528] sm:$0xff]
        %v842 = vld [vmem:[%s485 + $0x530] sm:$0xff]
        %v843 = vld [vmem:[%s485 + $0x538] sm:$0xff]
        %v844 = vld [vmem:[%s485 + $0x540] sm:$0xff]
        %v845 = vld [vmem:[%s485 + $0x548] sm:$0xff]
        %v846 = vld [vmem:[%s485 + $0x550] sm:$0xff]
        %v847 = vld [vmem:[%s485 + $0x558] sm:$0xff]
        %v848 = vld [vmem:[%s485 + $0x560] sm:$0xff]
        %v849 = vld [vmem:[%s485 + $0x568] sm:$0xff]
        %v850 = vld [vmem:[%s485 + $0x570] sm:$0xff]
        %v851 = vld [vmem:[%s485 + $0x578] sm:$0xff]
        %v852 = vld [vmem:[%s485 + $0x580] sm:$0xff]
        %v853 = vld [vmem:[%s485 + $0x588] sm:$0xff]
        %v854 = vld [vmem:[%s485 + $0x590] sm:$0xff]
        %v855 = vld [vmem:[%s485 + $0x598] sm:$0xff]
        %v856 = vld [vmem:[%s485 + $0x5a0] sm:$0xff]
        %v857 = vld [vmem:[%s485 + $0x5a8] sm:$0xff]
        %v858 = vld [vmem:[%s485 + $0x5b0] sm:$0xff]
        %v859 = vld [vmem:[%s485 + $0x5b8] sm:$0xff]
        %v860 = vld [vmem:[%s485 + $0x5c0] sm:$0xff]
        %v861 = vld [vmem:[%s485 + $0x5c8] sm:$0xff]
        %v862 = vld [vmem:[%s485 + $0x5d0] sm:$0xff]
        %v863 = vld [vmem:[%s485 + $0x5d8] sm:$0xff]
        %v864 = vld [vmem:[%s485 + $0x5e0] sm:$0xff]
        %v865 = vld [vmem:[%s485 + $0x5e8] sm:$0xff]
        %v866 = vld [vmem:[%s485 + $0x5f0] sm:$0xff]
        %v867 = vld [vmem:[%s485 + $0x5f8] sm:$0xff]
        %v868 = vld [vmem:[%s485 + $0x600] sm:$0xff]
        %v869 = vld [vmem:[%s485 + $0x608] sm:$0xff]
        %v870 = vld [vmem:[%s485 + $0x610] sm:$0xff]
        %v871 = vld [vmem:[%s485 + $0x618] sm:$0xff]
        %v872 = vld [vmem:[%s485 + $0x620] sm:$0xff]
        %v873 = vld [vmem:[%s485 + $0x628] sm:$0xff]
        %v874 = vld [vmem:[%s485 + $0x630] sm:$0xff]
        %v875 = vld [vmem:[%s485 + $0x638] sm:$0xff]
        %v876 = vld [vmem:[%s485 + $0x640] sm:$0xff]
        %v877 = vld [vmem:[%s485 + $0x648] sm:$0xff]
        %v878 = vld [vmem:[%s485 + $0x650] sm:$0xff]
        %v879 = vld [vmem:[%s485 + $0x658] sm:$0xff]
        %v880 = vld [vmem:[%s485 + $0x660] sm:$0xff]
        %v881 = vld [vmem:[%s485 + $0x668] sm:$0xff]
        %v882 = vld [vmem:[%s485 + $0x670] sm:$0xff]
        %v883 = vld [vmem:[%s485 + $0x678] sm:$0xff]
        %v884 = vld [vmem:[%s485 + $0x680] sm:$0xff]
        %v885 = vld [vmem:[%s485 + $0x688] sm:$0xff]
        %v886 = vld [vmem:[%s485 + $0x690] sm:$0xff]
        %v887 = vld [vmem:[%s485 + $0x698] sm:$0xff]
        %v888 = vld [vmem:[%s485 + $0x6a0] sm:$0xff]
        %v889 = vld [vmem:[%s485 + $0x6a8] sm:$0xff]
        %v890 = vld [vmem:[%s485 + $0x6b0] sm:$0xff]
        %v891 = vld [vmem:[%s485 + $0x6b8] sm:$0xff]
        %v892 = vld [vmem:[%s485 + $0x6c0] sm:$0xff]
        %v893 = vld [vmem:[%s485 + $0x6c8] sm:$0xff]
        %v894 = vld [vmem:[%s485 + $0x6d0] sm:$0xff]
        %v895 = vld [vmem:[%s485 + $0x6d8] sm:$0xff]
        %v896 = vld [vmem:[%s485 + $0x6e0] sm:$0xff]
        %v897 = vld [vmem:[%s485 + $0x6e8] sm:$0xff]
        %v898 = vld [vmem:[%s485 + $0x6f0] sm:$0xff]
        %v899 = vld [vmem:[%s485 + $0x6f8] sm:$0xff]
        %v900 = vld [vmem:[%s485 + $0x700] sm:$0xff]
        %v901 = vld [vmem:[%s485 + $0x708] sm:$0xff]
        %v902 = vld [vmem:[%s485 + $0x710] sm:$0xff]
        %v903 = vld [vmem:[%s485 + $0x718] sm:$0xff]
        %v904 = vld [vmem:[%s485 + $0x720] sm:$0xff]
        %v905 = vld [vmem:[%s485 + $0x728] sm:$0xff]
        %v906 = vld [vmem:[%s485 + $0x730] sm:$0xff]
        %v907 = vld [vmem:[%s485 + $0x738] sm:$0xff]
        %v908 = vld [vmem:[%s485 + $0x740] sm:$0xff]
        %v909 = vld [vmem:[%s485 + $0x748] sm:$0xff]
        %v910 = vld [vmem:[%s485 + $0x750] sm:$0xff]
        %v911 = vld [vmem:[%s485 + $0x758] sm:$0xff]
        %v912 = vld [vmem:[%s485 + $0x760] sm:$0xff]
        %v913 = vld [vmem:[%s485 + $0x768] sm:$0xff]
        %v914 = vld [vmem:[%s485 + $0x770] sm:$0xff]
        %v915 = vld [vmem:[%s485 + $0x778] sm:$0xff]
        %v916 = vld [vmem:[%s485 + $0x780] sm:$0xff]
        %v917 = vld [vmem:[%s485 + $0x788] sm:$0xff]
        %v918 = vld [vmem:[%s485 + $0x790] sm:$0xff]
        %v919 = vld [vmem:[%s485 + $0x798] sm:$0xff]
        %v920 = vld [vmem:[%s485 + $0x7a0] sm:$0xff]
        %v921 = vld [vmem:[%s485 + $0x7a8] sm:$0xff]
        %v922 = vld [vmem:[%s485 + $0x7b0] sm:$0xff]
        %v923 = vld [vmem:[%s485 + $0x7b8] sm:$0xff]
        %v924 = vld [vmem:[%s485 + $0x7c0] sm:$0xff]
        %v925 = vld [vmem:[%s485 + $0x7c8] sm:$0xff]
        %v926 = vld [vmem:[%s485 + $0x7d0] sm:$0xff]
        %v927 = vld [vmem:[%s485 + $0x7d8] sm:$0xff]
        %v928 = vld [vmem:[%s485 + $0x7e0] sm:$0xff]
        %v929 = vld [vmem:[%s485 + $0x7e8] sm:$0xff]
        %v930 = vld [vmem:[%s485 + $0x7f0] sm:$0xff]
        %v931 = vld [vmem:[%s485 + $0x7f8] sm:$0xff]
        %v932 = vld [vmem:[%s485 + $0x800] sm:$0xff]
        %v933 = vld [vmem:[%s485 + $0x808] sm:$0xff]
        %v934 = vld [vmem:[%s485 + $0x810] sm:$0xff]
        %v935 = vld [vmem:[%s485 + $0x818] sm:$0xff]
        %v936 = vld [vmem:[%s485 + $0x820] sm:$0xff]
        %v937 = vld [vmem:[%s485 + $0x828] sm:$0xff]
        %v938 = vld [vmem:[%s485 + $0x830] sm:$0xff]
        %v939 = vld [vmem:[%s485 + $0x838] sm:$0xff]
        %v940 = vld [vmem:[%s485 + $0x840] sm:$0xff]
        %v941 = vld [vmem:[%s485 + $0x848] sm:$0xff]
        %v942 = vld [vmem:[%s485 + $0x850] sm:$0xff]
        %v943 = vld [vmem:[%s485 + $0x858] sm:$0xff]
        %v944 = vld [vmem:[%s485 + $0x860] sm:$0xff]
        %v945 = vld [vmem:[%s485 + $0x868] sm:$0xff]
        %v946 = vld [vmem:[%s485 + $0x870] sm:$0xff]
        %v947 = vld [vmem:[%s485 + $0x878] sm:$0xff]
        %v948 = vld [vmem:[%s485 + $0x880] sm:$0xff]
        %v949 = vld [vmem:[%s485 + $0x888] sm:$0xff]
        %v950 = vld [vmem:[%s485 + $0x890] sm:$0xff]
        %v951 = vld [vmem:[%s485 + $0x898] sm:$0xff]
        %v952 = vld [vmem:[%s485 + $0x8a0] sm:$0xff]
        %v953 = vld [vmem:[%s485 + $0x8a8] sm:$0xff]
        %v954 = vld [vmem:[%s485 + $0x8b0] sm:$0xff]
        %v955 = vld [vmem:[%s485 + $0x8b8] sm:$0xff]
        %v956 = vld [vmem:[%s485 + $0x8c0] sm:$0xff]
        %v957 = vld [vmem:[%s485 + $0x8c8] sm:$0xff]
        %v958 = vld [vmem:[%s485 + $0x8d0] sm:$0xff]
        %v959 = vld [vmem:[%s485 + $0x8d8] sm:$0xff]
        %v960 = vld [vmem:[%s485 + $0x8e0] sm:$0xff]
        %v961 = vld [vmem:[%s485 + $0x8e8] sm:$0xff]
        %v962 = vld [vmem:[%s485 + $0x8f0] sm:$0xff]
        %v963 = vld [vmem:[%s485 + $0x8f8] sm:$0xff]
        %v964 = vld [vmem:[%s485 + $0x900] sm:$0xff]
        %v965 = vld [vmem:[%s485 + $0x908] sm:$0xff]
        %v966 = vld [vmem:[%s485 + $0x910] sm:$0xff]
        %v967 = vld [vmem:[%s485 + $0x918] sm:$0xff]
        %v968 = vld [vmem:[%s485 + $0x920] sm:$0xff]
        %v969 = vld [vmem:[%s485 + $0x928] sm:$0xff]
        %v970 = vld [vmem:[%s485 + $0x930] sm:$0xff]
        %v971 = vld [vmem:[%s485 + $0x938] sm:$0xff]
        %v972 = vld [vmem:[%s485 + $0x940] sm:$0xff]
        %v973 = vld [vmem:[%s485 + $0x948] sm:$0xff]
        %v974 = vld [vmem:[%s485 + $0x950] sm:$0xff]
        %v975 = vld [vmem:[%s485 + $0x958] sm:$0xff]
        %v976 = vld [vmem:[%s485 + $0x960] sm:$0xff]
        %v977 = vld [vmem:[%s485 + $0x968] sm:$0xff]
        %v978 = vld [vmem:[%s485 + $0x970] sm:$0xff]
        %v979 = vld [vmem:[%s485 + $0x978] sm:$0xff]
        %v980 = vld [vmem:[%s485 + $0x980] sm:$0xff]
        %v981 = vld [vmem:[%s485 + $0x988] sm:$0xff]
        %v982 = vld [vmem:[%s485 + $0x990] sm:$0xff]
        %v983 = vld [vmem:[%s485 + $0x998] sm:$0xff]
        %v984 = vld [vmem:[%s485 + $0x9a0] sm:$0xff]
        %v985 = vld [vmem:[%s485 + $0x9a8] sm:$0xff]
        %v986 = vld [vmem:[%s485 + $0x9b0] sm:$0xff]
        %v987 = vld [vmem:[%s485 + $0x9b8] sm:$0xff]
        %v988 = vld [vmem:[%s485 + $0x9c0] sm:$0xff]
        %v989 = vld [vmem:[%s485 + $0x9c8] sm:$0xff]
        %v990 = vld [vmem:[%s485 + $0x9d0] sm:$0xff]
        %v991 = vld [vmem:[%s485 + $0x9d8] sm:$0xff]
        %v992 = vld [vmem:[%s485 + $0x9e0] sm:$0xff]
        %v993 = vld [vmem:[%s485 + $0x9e8] sm:$0xff]
        %v994 = vld [vmem:[%s485 + $0x9f0] sm:$0xff]
        %v995 = vld [vmem:[%s485 + $0x9f8] sm:$0xff]
        %v996 = vld [vmem:[%s485 + $0xa00] sm:$0xff]
        %v997 = vld [vmem:[%s485 + $0xa08] sm:$0xff]
        %v998 = vld [vmem:[%s485 + $0xa10] sm:$0xff]
        %v999 = vld [vmem:[%s485 + $0xa18] sm:$0xff]
        %v1000 = vld [vmem:[%s485 + $0xa20] sm:$0xff]
        %v1001 = vld [vmem:[%s485 + $0xa28] sm:$0xff]
        %v1002 = vld [vmem:[%s485 + $0xa30] sm:$0xff]
        %v1003 = vld [vmem:[%s485 + $0xa38] sm:$0xff]
        %v1004 = vld [vmem:[%s485 + $0xa40] sm:$0xff]
        %v1005 = vld [vmem:[%s485 + $0xa48] sm:$0xff]
        %v1006 = vld [vmem:[%s485 + $0xa50] sm:$0xff]
        %v1007 = vld [vmem:[%s485 + $0xa58] sm:$0xff]
        %v1008 = vld [vmem:[%s485 + $0xa60] sm:$0xff]
        %v1009 = vld [vmem:[%s485 + $0xa68] sm:$0xff]
        %v1010 = vld [vmem:[%s485 + $0xa70] sm:$0xff]
        %v1011 = vld [vmem:[%s485 + $0xa78] sm:$0xff]
        %v1012 = vld [vmem:[%s485 + $0xa80] sm:$0xff]
        %v1013 = vld [vmem:[%s485 + $0xa88] sm:$0xff]
        %v1014 = vld [vmem:[%s485 + $0xa90] sm:$0xff]
        %v1015 = vld [vmem:[%s485 + $0xa98] sm:$0xff]
        %v1016 = vld [vmem:[%s485 + $0xaa0] sm:$0xff]
        %v1017 = vld [vmem:[%s485 + $0xaa8] sm:$0xff]
        %v1018 = vld [vmem:[%s485 + $0xab0] sm:$0xff]
        %v1019 = vld [vmem:[%s485 + $0xab8] sm:$0xff]
        %v1020 = vld [vmem:[%s485 + $0xac0] sm:$0xff]
        %v1021 = vld [vmem:[%s485 + $0xac8] sm:$0xff]
        %v1022 = vld [vmem:[%s485 + $0xad0] sm:$0xff]
        %v1023 = vld [vmem:[%s485 + $0xad8] sm:$0xff]
        %v1024 = vld [vmem:[%s485 + $0xae0] sm:$0xff]
        %v1025 = vld [vmem:[%s485 + $0xae8] sm:$0xff]
        %v1026 = vld [vmem:[%s485 + $0xaf0] sm:$0xff]
        %v1027 = vld [vmem:[%s485 + $0xaf8] sm:$0xff]
        %v1028 = vld [vmem:[%s485 + $0xb00] sm:$0xff]
        %v1029 = vld [vmem:[%s485 + $0xb08] sm:$0xff]
        %v1030 = vld [vmem:[%s485 + $0xb10] sm:$0xff]
        %v1031 = vld [vmem:[%s485 + $0xb18] sm:$0xff]
        %v1032 = vld [vmem:[%s485 + $0xb20] sm:$0xff]
        %v1033 = vld [vmem:[%s485 + $0xb28] sm:$0xff]
        %v1034 = vld [vmem:[%s485 + $0xb30] sm:$0xff]
        %v1035 = vld [vmem:[%s485 + $0xb38] sm:$0xff]
        %v1036 = vld [vmem:[%s485 + $0xb40] sm:$0xff]
        %v1037 = vld [vmem:[%s485 + $0xb48] sm:$0xff]
        %v1038 = vld [vmem:[%s485 + $0xb50] sm:$0xff]
        %v1039 = vld [vmem:[%s485 + $0xb58] sm:$0xff]
        %v1040 = vld [vmem:[%s485 + $0xb60] sm:$0xff]
        %v1041 = vld [vmem:[%s485 + $0xb68] sm:$0xff]
        %v1042 = vld [vmem:[%s485 + $0xb70] sm:$0xff]
        %v1043 = vld [vmem:[%s485 + $0xb78] sm:$0xff]
        %v1044 = vld [vmem:[%s485 + $0xb80] sm:$0xff]
        %v1045 = vld [vmem:[%s485 + $0xb88] sm:$0xff]
        %v1046 = vld [vmem:[%s485 + $0xb90] sm:$0xff]
        %v1047 = vld [vmem:[%s485 + $0xb98] sm:$0xff]
        %v1048 = vld [vmem:[%s485 + $0xba0] sm:$0xff]
        %v1049 = vld [vmem:[%s485 + $0xba8] sm:$0xff]
        %v1050 = vld [vmem:[%s485 + $0xbb0] sm:$0xff]
        %v1051 = vld [vmem:[%s485 + $0xbb8] sm:$0xff]
        %v1052 = vld [vmem:[%s485 + $0xbc0] sm:$0xff]
        %v1053 = vld [vmem:[%s485 + $0xbc8] sm:$0xff]
        %v1054 = vld [vmem:[%s485 + $0xbd0] sm:$0xff]
        %v1055 = vld [vmem:[%s485 + $0xbd8] sm:$0xff]
        %v1056 = vld [vmem:[%s485 + $0xbe0] sm:$0xff]
        %v1057 = vld [vmem:[%s485 + $0xbe8] sm:$0xff]
        %v1058 = vld [vmem:[%s485 + $0xbf0] sm:$0xff]
        %v1059 = vld [vmem:[%s485 + $0xbf8] sm:$0xff]
        %v1060 = vld [vmem:[%s485 + $0xc00] sm:$0xff]
        %v1061 = vld [vmem:[%s485 + $0xc08] sm:$0xff]
        %v1062 = vld [vmem:[%s485 + $0xc10] sm:$0xff]
        %v1063 = vld [vmem:[%s485 + $0xc18] sm:$0xff]
        %v1064 = vld [vmem:[%s485 + $0xc20] sm:$0xff]
        %v1065 = vld [vmem:[%s485 + $0xc28] sm:$0xff]
        %v1066 = vld [vmem:[%s485 + $0xc30] sm:$0xff]
        %v1067 = vld [vmem:[%s485 + $0xc38] sm:$0xff]
        %v1068 = vld [vmem:[%s485 + $0xc40] sm:$0xff]
        %v1069 = vld [vmem:[%s485 + $0xc48] sm:$0xff]
        %v1070 = vld [vmem:[%s485 + $0xc50] sm:$0xff]
        %v1071 = vld [vmem:[%s485 + $0xc58] sm:$0xff]
        %v1072 = vld [vmem:[%s485 + $0xc60] sm:$0xff]
        %v1073 = vld [vmem:[%s485 + $0xc68] sm:$0xff]
        %v1074 = vld [vmem:[%s485 + $0xc70] sm:$0xff]
        %v1075 = vld [vmem:[%s485 + $0xc78] sm:$0xff]
        %v1076 = vld [vmem:[%s485 + $0xc80] sm:$0xff]
        %v1077 = vld [vmem:[%s485 + $0xc88] sm:$0xff]
        %v1078 = vld [vmem:[%s485 + $0xc90] sm:$0xff]
        %v1079 = vld [vmem:[%s485 + $0xc98] sm:$0xff]
        %v1080 = vld [vmem:[%s485 + $0xca0] sm:$0xff]
        %v1081 = vld [vmem:[%s485 + $0xca8] sm:$0xff]
        %v1082 = vld [vmem:[%s485 + $0xcb0] sm:$0xff]
        %v1083 = vld [vmem:[%s485 + $0xcb8] sm:$0xff]
        %v1084 = vld [vmem:[%s485 + $0xcc0] sm:$0xff]
        %v1085 = vld [vmem:[%s485 + $0xcc8] sm:$0xff]
        %v1086 = vld [vmem:[%s485 + $0xcd0] sm:$0xff]
        %v1087 = vld [vmem:[%s485 + $0xcd8] sm:$0xff]
        %v1088 = vld [vmem:[%s485 + $0xce0] sm:$0xff]
        %v1089 = vld [vmem:[%s485 + $0xce8] sm:$0xff]
        %v1090 = vld [vmem:[%s485 + $0xcf0] sm:$0xff]
        %v1091 = vld [vmem:[%s485 + $0xcf8] sm:$0xff]
        %v1092 = vld [vmem:[%s485 + $0xd00] sm:$0xff]
        %v1093 = vld [vmem:[%s485 + $0xd08] sm:$0xff]
        %v1094 = vld [vmem:[%s485 + $0xd10] sm:$0xff]
        %v1095 = vld [vmem:[%s485 + $0xd18] sm:$0xff]
        %v1096 = vld [vmem:[%s485 + $0xd20] sm:$0xff]
        %v1097 = vld [vmem:[%s485 + $0xd28] sm:$0xff]
        %v1098 = vld [vmem:[%s485 + $0xd30] sm:$0xff]
        %v1099 = vld [vmem:[%s485 + $0xd38] sm:$0xff]
        %v1100 = vld [vmem:[%s485 + $0xd40] sm:$0xff]
        %v1101 = vld [vmem:[%s485 + $0xd48] sm:$0xff]
        %v1102 = vld [vmem:[%s485 + $0xd50] sm:$0xff]
        %v1103 = vld [vmem:[%s485 + $0xd58] sm:$0xff]
        %v1104 = vld [vmem:[%s485 + $0xd60] sm:$0xff]
        %v1105 = vld [vmem:[%s485 + $0xd68] sm:$0xff]
        %v1106 = vld [vmem:[%s485 + $0xd70] sm:$0xff]
        %v1107 = vld [vmem:[%s485 + $0xd78] sm:$0xff]
        %v1108 = vld [vmem:[%s485 + $0xd80] sm:$0xff]
        %v1109 = vld [vmem:[%s485 + $0xd88] sm:$0xff]
        %v1110 = vld [vmem:[%s485 + $0xd90] sm:$0xff]
        %v1111 = vld [vmem:[%s485 + $0xd98] sm:$0xff]
        %v1112 = vld [vmem:[%s485 + $0xda0] sm:$0xff]
        %v1113 = vld [vmem:[%s485 + $0xda8] sm:$0xff]
        %v1114 = vld [vmem:[%s485 + $0xdb0] sm:$0xff]
        %v1115 = vld [vmem:[%s485 + $0xdb8] sm:$0xff]
        %v1116 = vld [vmem:[%s485 + $0xdc0] sm:$0xff]
        %v1117 = vld [vmem:[%s485 + $0xdc8] sm:$0xff]
        %v1118 = vld [vmem:[%s485 + $0xdd0] sm:$0xff]
        %v1119 = vld [vmem:[%s485 + $0xdd8] sm:$0xff]
        %v1120 = vld [vmem:[%s485 + $0xde0] sm:$0xff]
        %v1121 = vld [vmem:[%s485 + $0xde8] sm:$0xff]
        %v1122 = vld [vmem:[%s485 + $0xdf0] sm:$0xff]
        %v1123 = vld [vmem:[%s485 + $0xdf8] sm:$0xff]
        %v1124 = vld [vmem:[%s485 + $0xe00] sm:$0xff]
        %v1125 = vld [vmem:[%s485 + $0xe08] sm:$0xff]
        %v1126 = vld [vmem:[%s485 + $0xe10] sm:$0xff]
        %v1127 = vld [vmem:[%s485 + $0xe18] sm:$0xff]
        %v1128 = vld [vmem:[%s485 + $0xe20] sm:$0xff]
        %v1129 = vld [vmem:[%s485 + $0xe28] sm:$0xff]
        %v1130 = vld [vmem:[%s485 + $0xe30] sm:$0xff]
        %v1131 = vld [vmem:[%s485 + $0xe38] sm:$0xff]
        %v1132 = vld [vmem:[%s485 + $0xe40] sm:$0xff]
        %v1133 = vld [vmem:[%s485 + $0xe48] sm:$0xff]
        %v1134 = vld [vmem:[%s485 + $0xe50] sm:$0xff]
        %v1135 = vld [vmem:[%s485 + $0xe58] sm:$0xff]
        %v1136 = vld [vmem:[%s485 + $0xe60] sm:$0xff]
        %v1137 = vld [vmem:[%s485 + $0xe68] sm:$0xff]
        %v1138 = vld [vmem:[%s485 + $0xe70] sm:$0xff]
        %v1139 = vld [vmem:[%s485 + $0xe78] sm:$0xff]
        %v1140 = vld [vmem:[%s485 + $0xe80] sm:$0xff]
        %v1141 = vld [vmem:[%s485 + $0xe88] sm:$0xff]
        %v1142 = vld [vmem:[%s485 + $0xe90] sm:$0xff]
        %v1143 = vld [vmem:[%s485 + $0xe98] sm:$0xff]
        %v1144 = vld [vmem:[%s485 + $0xea0] sm:$0xff]
        %v1145 = vld [vmem:[%s485 + $0xea8] sm:$0xff]
        %v1146 = vld [vmem:[%s485 + $0xeb0] sm:$0xff]
        %v1147 = vld [vmem:[%s485 + $0xeb8] sm:$0xff]
        %v1148 = vld [vmem:[%s485 + $0xec0] sm:$0xff]
        %v1149 = vld [vmem:[%s485 + $0xec8] sm:$0xff]
        %v1150 = vld [vmem:[%s485 + $0xed0] sm:$0xff]
        %v1151 = vld [vmem:[%s485 + $0xed8] sm:$0xff]
        %v1152 = vld [vmem:[%s485 + $0xee0] sm:$0xff]
        %v1153 = vld [vmem:[%s485 + $0xee8] sm:$0xff]
        %v1154 = vld [vmem:[%s485 + $0xef0] sm:$0xff]
        %v1155 = vld [vmem:[%s485 + $0xef8] sm:$0xff]
        %v1156 = vld [vmem:[%s485 + $0xf00] sm:$0xff]
        %v1157 = vld [vmem:[%s485 + $0xf08] sm:$0xff]
        %v1158 = vld [vmem:[%s485 + $0xf10] sm:$0xff]
        %v1159 = vld [vmem:[%s485 + $0xf18] sm:$0xff]
        %v1160 = vld [vmem:[%s485 + $0xf20] sm:$0xff]
        %v1161 = vld [vmem:[%s485 + $0xf28] sm:$0xff]
        %v1162 = vld [vmem:[%s485 + $0xf30] sm:$0xff]
        %v1163 = vld [vmem:[%s485 + $0xf38] sm:$0xff]
        %v1164 = vld [vmem:[%s485 + $0xf40] sm:$0xff]
        %v1165 = vld [vmem:[%s485 + $0xf48] sm:$0xff]
        %v1166 = vld [vmem:[%s485 + $0xf50] sm:$0xff]
        %v1167 = vld [vmem:[%s485 + $0xf58] sm:$0xff]
        %v1168 = vld [vmem:[%s485 + $0xf60] sm:$0xff]
        %v1169 = vld [vmem:[%s485 + $0xf68] sm:$0xff]
        %v1170 = vld [vmem:[%s485 + $0xf70] sm:$0xff]
        %v1171 = vld [vmem:[%s485 + $0xf78] sm:$0xff]
        %v1172 = vld [vmem:[%s485 + $0xf80] sm:$0xff]
        %v1173 = vld [vmem:[%s485 + $0xf88] sm:$0xff]
        %v1174 = vld [vmem:[%s485 + $0xf90] sm:$0xff]
        %v1175 = vld [vmem:[%s485 + $0xf98] sm:$0xff]
        %v1176 = vld [vmem:[%s485 + $0xfa0] sm:$0xff]
        %v1177 = vld [vmem:[%s485 + $0xfa8] sm:$0xff]
        %v1178 = vld [vmem:[%s485 + $0xfb0] sm:$0xff]
        %v1179 = vld [vmem:[%s485 + $0xfb8] sm:$0xff]
        %v1180 = vld [vmem:[%s485 + $0xfc0] sm:$0xff]
        %v1181 = vld [vmem:[%s485 + $0xfc8] sm:$0xff]
        %v1182 = vld [vmem:[%s485 + $0xfd0] sm:$0xff]
        %v1183 = vld [vmem:[%s485 + $0xfd8] sm:$0xff]
        %v1184 = vld [vmem:[%s485 + $0xfe0] sm:$0xff]
        %v1185 = vld [vmem:[%s485 + $0xfe8] sm:$0xff]
        %v1186 = vld [vmem:[%s485 + $0xff0] sm:$0xff]
        %v1187 = vld [vmem:[%s485 + $0xff8] sm:$0xff]
        %v1188 = vld [vmem:[%s485 + $0x1000] sm:$0xff]
        %v1189 = vld [vmem:[%s485 + $0x1008] sm:$0xff]
        %v1190 = vld [vmem:[%s485 + $0x1010] sm:$0xff]
        %v1191 = vld [vmem:[%s485 + $0x1018] sm:$0xff]
        %v1192 = vld [vmem:[%s485 + $0x1020] sm:$0xff]
        %v1193 = vld [vmem:[%s485 + $0x1028] sm:$0xff]
        %v1194 = vld [vmem:[%s485 + $0x1030] sm:$0xff]
        %v1195 = vld [vmem:[%s485 + $0x1038] sm:$0xff]
        %v1196 = vld [vmem:[%s485 + $0x1040] sm:$0xff]
        %v1197 = vld [vmem:[%s485 + $0x1048] sm:$0xff]
        %v1198 = vld [vmem:[%s485 + $0x1050] sm:$0xff]
        %v1199 = vld [vmem:[%s485 + $0x1058] sm:$0xff]
        %v1200 = vld [vmem:[%s485 + $0x1060] sm:$0xff]
        %v1201 = vld [vmem:[%s485 + $0x1068] sm:$0xff]
        %v1202 = vld [vmem:[%s485 + $0x1070] sm:$0xff]
        %v1203 = vld [vmem:[%s485 + $0x1078] sm:$0xff]
        %v1204 = vld [vmem:[%s485 + $0x1080] sm:$0xff]
        %v1205 = vld [vmem:[%s485 + $0x1088] sm:$0xff]
        %v1206 = vld [vmem:[%s485 + $0x1090] sm:$0xff]
        %v1207 = vld [vmem:[%s485 + $0x1098] sm:$0xff]
        %v1208 = vld [vmem:[%s485 + $0x10a0] sm:$0xff]
        %v1209 = vld [vmem:[%s485 + $0x10a8] sm:$0xff]
        %v1210 = vld [vmem:[%s485 + $0x10b0] sm:$0xff]
        %v1211 = vld [vmem:[%s485 + $0x10b8] sm:$0xff]
        %v1212 = vld [vmem:[%s485 + $0x10c0] sm:$0xff]
        %v1213 = vld [vmem:[%s485 + $0x10c8] sm:$0xff]
        %v1214 = vld [vmem:[%s485 + $0x10d0] sm:$0xff]
        %v1215 = vld [vmem:[%s485 + $0x10d8] sm:$0xff]
        %v1216 = vld [vmem:[%s485 + $0x10e0] sm:$0xff]
        %v1217 = vld [vmem:[%s485 + $0x10e8] sm:$0xff]
        %v1218 = vld [vmem:[%s485 + $0x10f0] sm:$0xff]
        %v1219 = vld [vmem:[%s485 + $0x10f8] sm:$0xff]
        %v1220 = vld [vmem:[%s485 + $0x1100] sm:$0xff]
        %v1221 = vld [vmem:[%s485 + $0x1108] sm:$0xff]
        %v1222 = vld [vmem:[%s485 + $0x1110] sm:$0xff]
        %v1223 = vld [vmem:[%s485 + $0x1118] sm:$0xff]
        %v1224 = vld [vmem:[%s485 + $0x1120] sm:$0xff]
        %v1225 = vld [vmem:[%s485 + $0x1128] sm:$0xff]
        %v1226 = vld [vmem:[%s485 + $0x1130] sm:$0xff]
        %v1227 = vld [vmem:[%s485 + $0x1138] sm:$0xff]
        %v1228 = vld [vmem:[%s485 + $0x1140] sm:$0xff]
        %v1229 = vld [vmem:[%s485 + $0x1148] sm:$0xff]
        %v1230 = vld [vmem:[%s485 + $0x1150] sm:$0xff]
        %v1231 = vld [vmem:[%s485 + $0x1158] sm:$0xff]
        %v1232 = vld [vmem:[%s485 + $0x1160] sm:$0xff]
        %v1233 = vld [vmem:[%s485 + $0x1168] sm:$0xff]
        %v1234 = vld [vmem:[%s485 + $0x1170] sm:$0xff]
        %v1235 = vld [vmem:[%s485 + $0x1178] sm:$0xff]
        %v1236 = vld [vmem:[%s485 + $0x1180] sm:$0xff]
        %v1237 = vld [vmem:[%s485 + $0x1188] sm:$0xff]
        %v1238 = vld [vmem:[%s485 + $0x1190] sm:$0xff]
        %v1239 = vld [vmem:[%s485 + $0x1198] sm:$0xff]
        %v1240 = vld [vmem:[%s485 + $0x11a0] sm:$0xff]
        %v1241 = vld [vmem:[%s485 + $0x11a8] sm:$0xff]
        %v1242 = vld [vmem:[%s485 + $0x11b0] sm:$0xff]
        %v1243 = vld [vmem:[%s485 + $0x11b8] sm:$0xff]
        %v1244 = vld [vmem:[%s485 + $0x11c0] sm:$0xff]
        %v1245 = vld [vmem:[%s485 + $0x11c8] sm:$0xff]
        %v1246 = vld [vmem:[%s485 + $0x11d0] sm:$0xff]
        %v1247 = vld [vmem:[%s485 + $0x11d8] sm:$0xff]
        %v1248 = vld [vmem:[%s485 + $0x11e0] sm:$0xff]
        %v1249 = vld [vmem:[%s485 + $0x11e8] sm:$0xff]
        %v1250 = vld [vmem:[%s485 + $0x11f0] sm:$0xff]
        %v1251 = vld [vmem:[%s485 + $0x11f8] sm:$0xff]
        %v1252 = vld [vmem:[%s485 + $0x1200] sm:$0xff]
        %v1253 = vld [vmem:[%s485 + $0x1208] sm:$0xff]
        %v1254 = vld [vmem:[%s485 + $0x1210] sm:$0xff]
        %v1255 = vld [vmem:[%s485 + $0x1218] sm:$0xff]
        %v1256 = vld [vmem:[%s485 + $0x1220] sm:$0xff]
        %v1257 = vld [vmem:[%s485 + $0x1228] sm:$0xff]
        %v1258 = vld [vmem:[%s485 + $0x1230] sm:$0xff]
        %v1259 = vld [vmem:[%s485 + $0x1238] sm:$0xff]
        %v1260 = vld [vmem:[%s485 + $0x1240] sm:$0xff]
        %v1261 = vld [vmem:[%s485 + $0x1248] sm:$0xff]
        %v1262 = vld [vmem:[%s485 + $0x1250] sm:$0xff]
        %v1263 = vld [vmem:[%s485 + $0x1258] sm:$0xff]
        %v1264 = vld [vmem:[%s485 + $0x1260] sm:$0xff]
        %v1265 = vld [vmem:[%s485 + $0x1268] sm:$0xff]
        %v1266 = vld [vmem:[%s485 + $0x1270] sm:$0xff]
        %v1267 = vld [vmem:[%s485 + $0x1278] sm:$0xff]
        %v1420 = vunpack.c.l.b16 %v524
        %v1421 = vunpack.c.h.b16 %v524
        %v1422 = vunpack.c.l.b16 %v525
        %v1423 = vunpack.c.h.b16 %v525
        %v1424 = vunpack.c.l.b16 %v526
        %v1425 = vunpack.c.h.b16 %v526
        %v1426 = vunpack.c.l.b16 %v527
        %v1427 = vunpack.c.h.b16 %v527
        %v1428 = vunpack.c.l.b16 %v528
        %v1429 = vunpack.c.h.b16 %v528
        %v1430 = vunpack.c.l.b16 %v529
        %v1431 = vunpack.c.h.b16 %v529
        %v1432 = vunpack.c.l.b16 %v530
        %v1433 = vunpack.c.h.b16 %v530
        %v1434 = vunpack.c.l.b16 %v531
        %v1435 = vunpack.c.h.b16 %v531
        %v1436 = vunpack.c.l.b16 %v532
        %v1437 = vunpack.c.h.b16 %v532
        %v1438 = vunpack.c.l.b16 %v533
        %v1439 = vunpack.c.h.b16 %v533
        %v1440 = vunpack.c.l.b16 %v534
        %v1441 = vunpack.c.h.b16 %v534
        %v1442 = vunpack.c.l.b16 %v535
        %v1443 = vunpack.c.h.b16 %v535
        %v1444 = vunpack.c.l.b16 %v536
        %v1445 = vunpack.c.h.b16 %v536
        %v1446 = vunpack.c.l.b16 %v537
        %v1447 = vunpack.c.h.b16 %v537
        %v1448 = vunpack.c.l.b16 %v538
        %v1449 = vunpack.c.h.b16 %v538
        %v1450 = vunpack.c.l.b16 %v539
        %v1451 = vunpack.c.h.b16 %v539
        %v1452 = vunpack.c.l.b16 %v540
        %v1453 = vunpack.c.h.b16 %v540
        %v1454 = vunpack.c.l.b16 %v541
        %v1455 = vunpack.c.h.b16 %v541
        %v1456 = vunpack.c.l.b16 %v542
        %v1457 = vunpack.c.l.b16 %v543
        %v1458 = vunpack.c.h.b16 %v543
        %v1459 = vunpack.c.l.b16 %v544
        %v1460 = vunpack.c.h.b16 %v544
        %v1461 = vunpack.c.l.b16 %v545
        %v1462 = vunpack.c.h.b16 %v545
        %v1463 = vunpack.c.l.b16 %v546
        %v1464 = vunpack.c.h.b16 %v546
        %v1465 = vunpack.c.l.b16 %v547
        %v1466 = vunpack.c.h.b16 %v547
        %v1467 = vunpack.c.l.b16 %v548
        %v1468 = vunpack.c.h.b16 %v548
        %v1469 = vunpack.c.l.b16 %v549
        %v1470 = vunpack.c.h.b16 %v549
        %v1471 = vunpack.c.l.b16 %v550
        %v1472 = vunpack.c.h.b16 %v550
        %v1473 = vunpack.c.l.b16 %v551
        %v1474 = vunpack.c.h.b16 %v551
        %v1475 = vunpack.c.l.b16 %v552
        %v1476 = vunpack.c.h.b16 %v552
        %v1477 = vunpack.c.l.b16 %v553
        %v1478 = vunpack.c.h.b16 %v553
        %v1479 = vunpack.c.l.b16 %v554
        %v1480 = vunpack.c.h.b16 %v554
        %v1481 = vunpack.c.l.b16 %v555
        %v1482 = vunpack.c.h.b16 %v555
        %v1483 = vunpack.c.l.b16 %v556
        %v1484 = vunpack.c.h.b16 %v556
        %v1485 = vunpack.c.l.b16 %v557
        %v1486 = vunpack.c.h.b16 %v557
        %v1487 = vunpack.c.l.b16 %v558
        %v1488 = vunpack.c.h.b16 %v558
        %v1489 = vunpack.c.l.b16 %v559
        %v1490 = vunpack.c.h.b16 %v559
        %v1491 = vunpack.c.l.b16 %v560
        %v1492 = vunpack.c.h.b16 %v560
        %v1493 = vunpack.c.l.b16 %v561
        %v1494 = vunpack.c.l.b16 %v562
        %v1495 = vunpack.c.h.b16 %v562
        %v1496 = vunpack.c.l.b16 %v563
        %v1497 = vunpack.c.h.b16 %v563
        %v1498 = vunpack.c.l.b16 %v564
        %v1499 = vunpack.c.h.b16 %v564
        %v1500 = vunpack.c.l.b16 %v565
        %v1501 = vunpack.c.h.b16 %v565
        %v1502 = vunpack.c.l.b16 %v566
        %v1503 = vunpack.c.h.b16 %v566
        %v1504 = vunpack.c.l.b16 %v567
        %v1505 = vunpack.c.h.b16 %v567
        %v1506 = vunpack.c.l.b16 %v568
        %v1507 = vunpack.c.h.b16 %v568
        %v1508 = vunpack.c.l.b16 %v569
        %v1509 = vunpack.c.h.b16 %v569
        %v1510 = vunpack.c.l.b16 %v570
        %v1511 = vunpack.c.h.b16 %v570
        %v1512 = vunpack.c.l.b16 %v571
        %v1513 = vunpack.c.h.b16 %v571
        %v1514 = vunpack.c.l.b16 %v572
        %v1515 = vunpack.c.h.b16 %v572
        %v1516 = vunpack.c.l.b16 %v573
        %v1517 = vunpack.c.h.b16 %v573
        %v1518 = vunpack.c.l.b16 %v574
        %v1519 = vunpack.c.h.b16 %v574
        %v1520 = vunpack.c.l.b16 %v575
        %v1521 = vunpack.c.h.b16 %v575
        %v1522 = vunpack.c.l.b16 %v576
        %v1523 = vunpack.c.h.b16 %v576
        %v1524 = vunpack.c.l.b16 %v577
        %v1525 = vunpack.c.h.b16 %v577
        %v1526 = vunpack.c.l.b16 %v578
        %v1527 = vunpack.c.h.b16 %v578
        %v1528 = vunpack.c.l.b16 %v579
        %v1529 = vunpack.c.h.b16 %v579
        %v1530 = vunpack.c.l.b16 %v580
        %v1531 = vunpack.c.l.b16 %v581
        %v1532 = vunpack.c.h.b16 %v581
        %v1533 = vunpack.c.l.b16 %v582
        %v1534 = vunpack.c.h.b16 %v582
        %v1535 = vunpack.c.l.b16 %v583
        %v1536 = vunpack.c.h.b16 %v583
        %v1537 = vunpack.c.l.b16 %v584
        %v1538 = vunpack.c.h.b16 %v584
        %v1539 = vunpack.c.l.b16 %v585
        %v1540 = vunpack.c.h.b16 %v585
        %v1541 = vunpack.c.l.b16 %v586
        %v1542 = vunpack.c.h.b16 %v586
        %v1543 = vunpack.c.l.b16 %v587
        %v1544 = vunpack.c.h.b16 %v587
        %v1545 = vunpack.c.l.b16 %v588
        %v1546 = vunpack.c.h.b16 %v588
        %v1547 = vunpack.c.l.b16 %v589
        %v1548 = vunpack.c.h.b16 %v589
        %v1549 = vunpack.c.l.b16 %v590
        %v1550 = vunpack.c.h.b16 %v590
        %v1551 = vunpack.c.l.b16 %v591
        %v1552 = vunpack.c.h.b16 %v591
        %v1553 = vunpack.c.l.b16 %v592
        %v1554 = vunpack.c.h.b16 %v592
        %v1555 = vunpack.c.l.b16 %v593
        %v1556 = vunpack.c.h.b16 %v593
        %v1557 = vunpack.c.l.b16 %v594
        %v1558 = vunpack.c.h.b16 %v594
        %v1559 = vunpack.c.l.b16 %v595
        %v1560 = vunpack.c.h.b16 %v595
        %v1561 = vunpack.c.l.b16 %v596
        %v1562 = vunpack.c.h.b16 %v596
        %v1563 = vunpack.c.l.b16 %v597
        %v1564 = vunpack.c.h.b16 %v597
        %v1565 = vunpack.c.l.b16 %v598
        %v1566 = vunpack.c.h.b16 %v598
        %v1567 = vunpack.c.l.b16 %v599
        %v1568 = vunpack.c.l.b16 %v600
        %v1569 = vunpack.c.h.b16 %v600
        %v1570 = vunpack.c.l.b16 %v601
        %v1571 = vunpack.c.h.b16 %v601
        %v1572 = vunpack.c.l.b16 %v602
        %v1573 = vunpack.c.h.b16 %v602
        %v1574 = vunpack.c.l.b16 %v603
        %v1575 = vunpack.c.h.b16 %v603
        %v1576 = vunpack.c.l.b16 %v604
        %v1577 = vunpack.c.h.b16 %v604
        %v1578 = vunpack.c.l.b16 %v605
        %v1579 = vunpack.c.h.b16 %v605
        %v1580 = vunpack.c.l.b16 %v606
        %v1581 = vunpack.c.h.b16 %v606
        %v1582 = vunpack.c.l.b16 %v607
        %v1583 = vunpack.c.h.b16 %v607
        %v1584 = vunpack.c.l.b16 %v608
        %v1585 = vunpack.c.h.b16 %v608
        %v1586 = vunpack.c.l.b16 %v609
        %v1587 = vunpack.c.h.b16 %v609
        %v1588 = vunpack.c.l.b16 %v610
        %v1589 = vunpack.c.h.b16 %v610
        %v1590 = vunpack.c.l.b16 %v611
        %v1591 = vunpack.c.h.b16 %v611
        %v1592 = vunpack.c.l.b16 %v612
        %v1593 = vunpack.c.h.b16 %v612
        %v1594 = vunpack.c.l.b16 %v613
        %v1595 = vunpack.c.h.b16 %v613
        %v1596 = vunpack.c.l.b16 %v614
        %v1597 = vunpack.c.h.b16 %v614
        %v1598 = vunpack.c.l.b16 %v615
        %v1599 = vunpack.c.h.b16 %v615
        %v1600 = vunpack.c.l.b16 %v616
        %v1601 = vunpack.c.h.b16 %v616
        %v1602 = vunpack.c.l.b16 %v617
        %v1603 = vunpack.c.h.b16 %v617
        %v1604 = vunpack.c.l.b16 %v618
        %v1605 = vunpack.c.l.b16 %v619
        %v1606 = vunpack.c.h.b16 %v619
        %v1607 = vunpack.c.l.b16 %v620
        %v1608 = vunpack.c.h.b16 %v620
        %v1609 = vunpack.c.l.b16 %v621
        %v1610 = vunpack.c.h.b16 %v621
        %v1611 = vunpack.c.l.b16 %v622
        %v1612 = vunpack.c.h.b16 %v622
        %v1613 = vunpack.c.l.b16 %v623
        %v1614 = vunpack.c.h.b16 %v623
        %v1615 = vunpack.c.l.b16 %v624
        %v1616 = vunpack.c.h.b16 %v624
        %v1617 = vunpack.c.l.b16 %v625
        %v1618 = vunpack.c.h.b16 %v625
        %v1619 = vunpack.c.l.b16 %v626
        %v1620 = vunpack.c.h.b16 %v626
        %v1621 = vunpack.c.l.b16 %v627
        %v1622 = vunpack.c.h.b16 %v627
        %v1623 = vunpack.c.l.b16 %v628
        %v1624 = vunpack.c.h.b16 %v628
        %v1625 = vunpack.c.l.b16 %v629
        %v1626 = vunpack.c.h.b16 %v629
        %v1627 = vunpack.c.l.b16 %v630
        %v1628 = vunpack.c.h.b16 %v630
        %v1629 = vunpack.c.l.b16 %v631
        %v1630 = vunpack.c.h.b16 %v631
        %v1631 = vunpack.c.l.b16 %v632
        %v1632 = vunpack.c.h.b16 %v632
        %v1633 = vunpack.c.l.b16 %v633
        %v1634 = vunpack.c.h.b16 %v633
        %v1635 = vunpack.c.l.b16 %v634
        %v1636 = vunpack.c.h.b16 %v634
        %v1637 = vunpack.c.l.b16 %v635
        %v1638 = vunpack.c.h.b16 %v635
        %v1639 = vunpack.c.l.b16 %v636
        %v1640 = vunpack.c.h.b16 %v636
        %v1641 = vunpack.c.l.b16 %v637
        %v1642 = vunpack.c.l.b16 %v638
        %v1643 = vunpack.c.h.b16 %v638
        %v1644 = vunpack.c.l.b16 %v639
        %v1645 = vunpack.c.h.b16 %v639
        %v1646 = vunpack.c.l.b16 %v640
        %v1647 = vunpack.c.h.b16 %v640
        %v1648 = vunpack.c.l.b16 %v641
        %v1649 = vunpack.c.h.b16 %v641
        %v1650 = vunpack.c.l.b16 %v642
        %v1651 = vunpack.c.h.b16 %v642
        %v1652 = vunpack.c.l.b16 %v643
        %v1653 = vunpack.c.h.b16 %v643
        %v1654 = vunpack.c.l.b16 %v644
        %v1655 = vunpack.c.h.b16 %v644
        %v1656 = vunpack.c.l.b16 %v645
        %v1657 = vunpack.c.h.b16 %v645
        %v1658 = vunpack.c.l.b16 %v646
        %v1659 = vunpack.c.h.b16 %v646
        %v1660 = vunpack.c.l.b16 %v647
        %v1661 = vunpack.c.h.b16 %v647
        %v1662 = vunpack.c.l.b16 %v648
        %v1663 = vunpack.c.h.b16 %v648
        %v1664 = vunpack.c.l.b16 %v649
        %v1665 = vunpack.c.h.b16 %v649
        %v1666 = vunpack.c.l.b16 %v650
        %v1667 = vunpack.c.h.b16 %v650
        %v1668 = vunpack.c.l.b16 %v651
        %v1669 = vunpack.c.h.b16 %v651
        %v1670 = vunpack.c.l.b16 %v652
        %v1671 = vunpack.c.h.b16 %v652
        %v1672 = vunpack.c.l.b16 %v653
        %v1673 = vunpack.c.h.b16 %v653
        %v1674 = vunpack.c.l.b16 %v654
        %v1675 = vunpack.c.h.b16 %v654
        %v1676 = vunpack.c.l.b16 %v655
        %v1677 = vunpack.c.h.b16 %v655
        %v1678 = vunpack.c.l.b16 %v656
        %v1679 = vunpack.c.l.b16 %v657
        %v1680 = vunpack.c.h.b16 %v657
        %v1681 = vunpack.c.l.b16 %v658
        %v1682 = vunpack.c.h.b16 %v658
        %v1683 = vunpack.c.l.b16 %v659
        %v1684 = vunpack.c.h.b16 %v659
        %v1685 = vunpack.c.l.b16 %v660
        %v1686 = vunpack.c.h.b16 %v660
        %v1687 = vunpack.c.l.b16 %v661
        %v1688 = vunpack.c.h.b16 %v661
        %v1689 = vunpack.c.l.b16 %v662
        %v1690 = vunpack.c.h.b16 %v662
        %v1691 = vunpack.c.l.b16 %v663
        %v1692 = vunpack.c.h.b16 %v663
        %v1693 = vunpack.c.l.b16 %v664
        %v1694 = vunpack.c.h.b16 %v664
        %v1695 = vunpack.c.l.b16 %v665
        %v1696 = vunpack.c.h.b16 %v665
        %v1697 = vunpack.c.l.b16 %v666
        %v1698 = vunpack.c.h.b16 %v666
        %v1699 = vunpack.c.l.b16 %v667
        %v1700 = vunpack.c.h.b16 %v667
        %v1701 = vunpack.c.l.b16 %v668
        %v1702 = vunpack.c.h.b16 %v668
        %v1703 = vunpack.c.l.b16 %v669
        %v1704 = vunpack.c.h.b16 %v669
        %v1705 = vunpack.c.l.b16 %v670
        %v1706 = vunpack.c.h.b16 %v670
        %v1707 = vunpack.c.l.b16 %v671
        %v1708 = vunpack.c.h.b16 %v671
        %v1709 = vunpack.c.l.b16 %v672
        %v1710 = vunpack.c.h.b16 %v672
        %v1711 = vunpack.c.l.b16 %v673
        %v1712 = vunpack.c.h.b16 %v673
        %v1713 = vunpack.c.l.b16 %v674
        %v1714 = vunpack.c.h.b16 %v674
        %v1715 = vunpack.c.l.b16 %v675
        %v1716 = vpack.c.b16 %v1457, %v1420
        %v1717 = vpack.c.b16 %v1458, %v1421
        %v1718 = vpack.c.b16 %v1459, %v1422
        %v1719 = vpack.c.b16 %v1460, %v1423
        %v1720 = vpack.c.b16 %v1461, %v1424
        %v1721 = vpack.c.b16 %v1462, %v1425
        %v1722 = vpack.c.b16 %v1463, %v1426
        %v1723 = vpack.c.b16 %v1464, %v1427
        %v1724 = vpack.c.b16 %v1465, %v1428
        %v1725 = vpack.c.b16 %v1466, %v1429
        %v1726 = vpack.c.b16 %v1467, %v1430
        %v1727 = vpack.c.b16 %v1468, %v1431
        %v1728 = vpack.c.b16 %v1469, %v1432
        %v1729 = vpack.c.b16 %v1470, %v1433
        %v1730 = vpack.c.b16 %v1471, %v1434
        %v1731 = vpack.c.b16 %v1472, %v1435
        %v1732 = vpack.c.b16 %v1473, %v1436
        %v1733 = vpack.c.b16 %v1474, %v1437
        %v1734 = vpack.c.b16 %v1475, %v1438
        %v1735 = vpack.c.b16 %v1476, %v1439
        %v1736 = vpack.c.b16 %v1477, %v1440
        %v1737 = vpack.c.b16 %v1478, %v1441
        %v1738 = vpack.c.b16 %v1479, %v1442
        %v1739 = vpack.c.b16 %v1480, %v1443
        %v1740 = vpack.c.b16 %v1481, %v1444
        %v1741 = vpack.c.b16 %v1482, %v1445
        %v1742 = vpack.c.b16 %v1483, %v1446
        %v1743 = vpack.c.b16 %v1484, %v1447
        %v1744 = vpack.c.b16 %v1485, %v1448
        %v1745 = vpack.c.b16 %v1486, %v1449
        %v1746 = vpack.c.b16 %v1487, %v1450
        %v1747 = vpack.c.b16 %v1488, %v1451
        %v1748 = vpack.c.b16 %v1489, %v1452
        %v1749 = vpack.c.b16 %v1490, %v1453
        %v1750 = vpack.c.b16 %v1491, %v1454
        %v1751 = vpack.c.b16 %v1492, %v1455
        %v1752 = vpack.c.b16 %v1493, %v1456
        %v1753 = vpack.c.b16 %v1531, %v1494
        %v1754 = vpack.c.b16 %v1532, %v1495
        %v1755 = vpack.c.b16 %v1533, %v1496
        %v1756 = vpack.c.b16 %v1534, %v1497
        %v1757 = vpack.c.b16 %v1535, %v1498
        %v1758 = vpack.c.b16 %v1536, %v1499
        %v1759 = vpack.c.b16 %v1537, %v1500
        %v1760 = vpack.c.b16 %v1538, %v1501
        %v1761 = vpack.c.b16 %v1539, %v1502
        %v1762 = vpack.c.b16 %v1540, %v1503
        %v1763 = vpack.c.b16 %v1541, %v1504
        %v1764 = vpack.c.b16 %v1542, %v1505
        %v1765 = vpack.c.b16 %v1543, %v1506
        %v1766 = vpack.c.b16 %v1544, %v1507
        %v1767 = vpack.c.b16 %v1545, %v1508
        %v1768 = vpack.c.b16 %v1546, %v1509
        %v1769 = vpack.c.b16 %v1547, %v1510
        %v1770 = vpack.c.b16 %v1548, %v1511
        %v1771 = vpack.c.b16 %v1549, %v1512
        %v1772 = vpack.c.b16 %v1550, %v1513
        %v1773 = vpack.c.b16 %v1551, %v1514
        %v1774 = vpack.c.b16 %v1552, %v1515
        %v1775 = vpack.c.b16 %v1553, %v1516
        %v1776 = vpack.c.b16 %v1554, %v1517
        %v1777 = vpack.c.b16 %v1555, %v1518
        %v1778 = vpack.c.b16 %v1556, %v1519
        %v1779 = vpack.c.b16 %v1557, %v1520
        %v1780 = vpack.c.b16 %v1558, %v1521
        %v1781 = vpack.c.b16 %v1559, %v1522
        %v1782 = vpack.c.b16 %v1560, %v1523
        %v1783 = vpack.c.b16 %v1561, %v1524
        %v1784 = vpack.c.b16 %v1562, %v1525
        %v1785 = vpack.c.b16 %v1563, %v1526
        %v1786 = vpack.c.b16 %v1564, %v1527
        %v1787 = vpack.c.b16 %v1565, %v1528
        %v1788 = vpack.c.b16 %v1566, %v1529
        %v1789 = vpack.c.b16 %v1567, %v1530
        %v1790 = vpack.c.b16 %v1605, %v1568
        %v1791 = vpack.c.b16 %v1606, %v1569
        %v1792 = vpack.c.b16 %v1607, %v1570
        %v1793 = vpack.c.b16 %v1608, %v1571
        %v1794 = vpack.c.b16 %v1609, %v1572
        %v1795 = vpack.c.b16 %v1610, %v1573
        %v1796 = vpack.c.b16 %v1611, %v1574
        %v1797 = vpack.c.b16 %v1612, %v1575
        %v1798 = vpack.c.b16 %v1613, %v1576
        %v1799 = vpack.c.b16 %v1614, %v1577
        %v1800 = vpack.c.b16 %v1615, %v1578
        %v1801 = vpack.c.b16 %v1616, %v1579
        %v1802 = vpack.c.b16 %v1617, %v1580
        %v1803 = vpack.c.b16 %v1618, %v1581
        %v1804 = vpack.c.b16 %v1619, %v1582
        %v1805 = vpack.c.b16 %v1620, %v1583
        %v1806 = vpack.c.b16 %v1621, %v1584
        %v1807 = vpack.c.b16 %v1622, %v1585
        %v1808 = vpack.c.b16 %v1623, %v1586
        %v1809 = vpack.c.b16 %v1624, %v1587
        %v1810 = vpack.c.b16 %v1625, %v1588
        %v1811 = vpack.c.b16 %v1626, %v1589
        %v1812 = vpack.c.b16 %v1627, %v1590
        %v1813 = vpack.c.b16 %v1628, %v1591
        %v1814 = vpack.c.b16 %v1629, %v1592
        %v1815 = vpack.c.b16 %v1630, %v1593
        %v1816 = vpack.c.b16 %v1631, %v1594
        %v1817 = vpack.c.b16 %v1632, %v1595
        %v1818 = vpack.c.b16 %v1633, %v1596
        %v1819 = vpack.c.b16 %v1634, %v1597
        %v1820 = vpack.c.b16 %v1635, %v1598
        %v1821 = vpack.c.b16 %v1636, %v1599
        %v1822 = vpack.c.b16 %v1637, %v1600
        %v1823 = vpack.c.b16 %v1638, %v1601
        %v1824 = vpack.c.b16 %v1639, %v1602
        %v1825 = vpack.c.b16 %v1640, %v1603
        %v1826 = vpack.c.b16 %v1641, %v1604
        %v1827 = vpack.c.b16 %v1679, %v1642
        %v1828 = vpack.c.b16 %v1680, %v1643
        %v1829 = vpack.c.b16 %v1681, %v1644
        %v1830 = vpack.c.b16 %v1682, %v1645
        %v1831 = vpack.c.b16 %v1683, %v1646
        %v1832 = vpack.c.b16 %v1684, %v1647
        %v1833 = vpack.c.b16 %v1685, %v1648
        %v1834 = vpack.c.b16 %v1686, %v1649
        %v1835 = vpack.c.b16 %v1687, %v1650
        %v1836 = vpack.c.b16 %v1688, %v1651
        %v1837 = vpack.c.b16 %v1689, %v1652
        %v1838 = vpack.c.b16 %v1690, %v1653
        %v1839 = vpack.c.b16 %v1691, %v1654
        %v1840 = vpack.c.b16 %v1692, %v1655
        %v1841 = vpack.c.b16 %v1693, %v1656
        %v1842 = vpack.c.b16 %v1694, %v1657
        %v1843 = vpack.c.b16 %v1695, %v1658
        %v1844 = vpack.c.b16 %v1696, %v1659
        %v1845 = vpack.c.b16 %v1697, %v1660
        %v1846 = vpack.c.b16 %v1698, %v1661
        %v1847 = vpack.c.b16 %v1699, %v1662
        %v1848 = vpack.c.b16 %v1700, %v1663
        %v1849 = vpack.c.b16 %v1701, %v1664
        %v1850 = vpack.c.b16 %v1702, %v1665
        %v1851 = vpack.c.b16 %v1703, %v1666
        %v1852 = vpack.c.b16 %v1704, %v1667
        %v1853 = vpack.c.b16 %v1705, %v1668
        %v1854 = vpack.c.b16 %v1706, %v1669
        %v1855 = vpack.c.b16 %v1707, %v1670
        %v1856 = vpack.c.b16 %v1708, %v1671
        %v1857 = vpack.c.b16 %v1709, %v1672
        %v1858 = vpack.c.b16 %v1710, %v1673
        %v1859 = vpack.c.b16 %v1711, %v1674
        %v1860 = vpack.c.b16 %v1712, %v1675
        %v1861 = vpack.c.b16 %v1713, %v1676
        %v1862 = vpack.c.b16 %v1714, %v1677
        %v1863 = vpack.c.b16 %v1715, %v1678
        %v2604 = vunpack.c.l.b16 %v676
        %v2605 = vunpack.c.h.b16 %v676
        %v2606 = vunpack.c.l.b16 %v677
        %v2607 = vunpack.c.h.b16 %v677
        %v2608 = vunpack.c.l.b16 %v678
        %v2609 = vunpack.c.h.b16 %v678
        %v2610 = vunpack.c.l.b16 %v679
        %v2611 = vunpack.c.h.b16 %v679
        %v2612 = vunpack.c.l.b16 %v680
        %v2613 = vunpack.c.h.b16 %v680
        %v2614 = vunpack.c.l.b16 %v681
        %v2615 = vunpack.c.h.b16 %v681
        %v2616 = vunpack.c.l.b16 %v682
        %v2617 = vunpack.c.h.b16 %v682
        %v2618 = vunpack.c.l.b16 %v683
        %v2619 = vunpack.c.h.b16 %v683
        %v2620 = vunpack.c.l.b16 %v684
        %v2621 = vunpack.c.h.b16 %v684
        %v2622 = vunpack.c.l.b16 %v685
        %v2623 = vunpack.c.h.b16 %v685
        %v2624 = vunpack.c.l.b16 %v686
        %v2625 = vunpack.c.h.b16 %v686
        %v2626 = vunpack.c.l.b16 %v687
        %v2627 = vunpack.c.h.b16 %v687
        %v2628 = vunpack.c.l.b16 %v688
        %v2629 = vunpack.c.h.b16 %v688
        %v2630 = vunpack.c.l.b16 %v689
        %v2631 = vunpack.c.h.b16 %v689
        %v2632 = vunpack.c.l.b16 %v690
        %v2633 = vunpack.c.h.b16 %v690
        %v2634 = vunpack.c.l.b16 %v691
        %v2635 = vunpack.c.h.b16 %v691
        %v2636 = vunpack.c.l.b16 %v692
        %v2637 = vunpack.c.h.b16 %v692
        %v2638 = vunpack.c.l.b16 %v693
        %v2639 = vunpack.c.h.b16 %v693
        %v2640 = vunpack.c.l.b16 %v694
        %v2641 = vunpack.c.h.b16 %v694
        %v2642 = vunpack.c.l.b16 %v695
        %v2643 = vunpack.c.h.b16 %v695
        %v2644 = vunpack.c.l.b16 %v696
        %v2645 = vunpack.c.h.b16 %v696
        %v2646 = vunpack.c.l.b16 %v697
        %v2647 = vunpack.c.h.b16 %v697
        %v2648 = vunpack.c.l.b16 %v698
        %v2649 = vunpack.c.h.b16 %v698
        %v2650 = vunpack.c.l.b16 %v699
        %v2651 = vunpack.c.h.b16 %v699
        %v2652 = vunpack.c.l.b16 %v700
        %v2653 = vunpack.c.h.b16 %v700
        %v2654 = vunpack.c.l.b16 %v701
        %v2655 = vunpack.c.h.b16 %v701
        %v2656 = vunpack.c.l.b16 %v702
        %v2657 = vunpack.c.h.b16 %v702
        %v2658 = vunpack.c.l.b16 %v703
        %v2659 = vunpack.c.h.b16 %v703
        %v2660 = vunpack.c.l.b16 %v704
        %v2661 = vunpack.c.h.b16 %v704
        %v2662 = vunpack.c.l.b16 %v705
        %v2663 = vunpack.c.h.b16 %v705
        %v2664 = vunpack.c.l.b16 %v706
        %v2665 = vunpack.c.h.b16 %v706
        %v2666 = vunpack.c.l.b16 %v707
        %v2667 = vunpack.c.h.b16 %v707
        %v2668 = vunpack.c.l.b16 %v708
        %v2669 = vunpack.c.h.b16 %v708
        %v2670 = vunpack.c.l.b16 %v709
        %v2671 = vunpack.c.h.b16 %v709
        %v2672 = vunpack.c.l.b16 %v710
        %v2673 = vunpack.c.h.b16 %v710
        %v2674 = vunpack.c.l.b16 %v711
        %v2675 = vunpack.c.h.b16 %v711
        %v2676 = vunpack.c.l.b16 %v712
        %v2677 = vunpack.c.h.b16 %v712
        %v2678 = vunpack.c.l.b16 %v713
        %v2679 = vunpack.c.h.b16 %v713
        %v2680 = vunpack.c.l.b16 %v714
        %v2681 = vunpack.c.h.b16 %v714
        %v2682 = vunpack.c.l.b16 %v715
        %v2683 = vunpack.c.h.b16 %v715
        %v2684 = vunpack.c.l.b16 %v716
        %v2685 = vunpack.c.h.b16 %v716
        %v2686 = vunpack.c.l.b16 %v717
        %v2687 = vunpack.c.h.b16 %v717
        %v2688 = vunpack.c.l.b16 %v718
        %v2689 = vunpack.c.h.b16 %v718
        %v2690 = vunpack.c.l.b16 %v719
        %v2691 = vunpack.c.h.b16 %v719
        %v2692 = vunpack.c.l.b16 %v720
        %v2693 = vunpack.c.h.b16 %v720
        %v2694 = vunpack.c.l.b16 %v721
        %v2695 = vunpack.c.h.b16 %v721
        %v2696 = vunpack.c.l.b16 %v722
        %v2697 = vunpack.c.h.b16 %v722
        %v2698 = vunpack.c.l.b16 %v723
        %v2699 = vunpack.c.h.b16 %v723
        %v2700 = vunpack.c.l.b16 %v724
        %v2701 = vunpack.c.h.b16 %v724
        %v2702 = vunpack.c.l.b16 %v725
        %v2703 = vunpack.c.h.b16 %v725
        %v2704 = vunpack.c.l.b16 %v726
        %v2705 = vunpack.c.h.b16 %v726
        %v2706 = vunpack.c.l.b16 %v727
        %v2707 = vunpack.c.h.b16 %v727
        %v2708 = vunpack.c.l.b16 %v728
        %v2709 = vunpack.c.h.b16 %v728
        %v2710 = vunpack.c.l.b16 %v729
        %v2711 = vunpack.c.h.b16 %v729
        %v2712 = vunpack.c.l.b16 %v730
        %v2713 = vunpack.c.h.b16 %v730
        %v2714 = vunpack.c.l.b16 %v731
        %v2715 = vunpack.c.h.b16 %v731
        %v2716 = vunpack.c.l.b16 %v732
        %v2717 = vunpack.c.h.b16 %v732
        %v2718 = vunpack.c.l.b16 %v733
        %v2719 = vunpack.c.h.b16 %v733
        %v2720 = vunpack.c.l.b16 %v734
        %v2721 = vunpack.c.h.b16 %v734
        %v2722 = vunpack.c.l.b16 %v735
        %v2723 = vunpack.c.h.b16 %v735
        %v2724 = vunpack.c.l.b16 %v736
        %v2725 = vunpack.c.h.b16 %v736
        %v2726 = vunpack.c.l.b16 %v737
        %v2727 = vunpack.c.h.b16 %v737
        %v2728 = vunpack.c.l.b16 %v738
        %v2729 = vunpack.c.h.b16 %v738
        %v2730 = vunpack.c.l.b16 %v739
        %v2731 = vunpack.c.h.b16 %v739
        %v2732 = vunpack.c.l.b16 %v740
        %v2733 = vunpack.c.h.b16 %v740
        %v2734 = vunpack.c.l.b16 %v741
        %v2735 = vunpack.c.h.b16 %v741
        %v2736 = vunpack.c.l.b16 %v742
        %v2737 = vunpack.c.h.b16 %v742
        %v2738 = vunpack.c.l.b16 %v743
        %v2739 = vunpack.c.h.b16 %v743
        %v2740 = vunpack.c.l.b16 %v744
        %v2741 = vunpack.c.h.b16 %v744
        %v2742 = vunpack.c.l.b16 %v745
        %v2743 = vunpack.c.h.b16 %v745
        %v2744 = vunpack.c.l.b16 %v746
        %v2745 = vunpack.c.h.b16 %v746
        %v2746 = vunpack.c.l.b16 %v747
        %v2747 = vunpack.c.h.b16 %v747
        %v2748 = vunpack.c.l.b16 %v748
        %v2749 = vunpack.c.h.b16 %v748
        %v2750 = vunpack.c.l.b16 %v749
        %v2751 = vunpack.c.h.b16 %v749
        %v2752 = vunpack.c.l.b16 %v750
        %v2753 = vunpack.c.h.b16 %v750
        %v2754 = vunpack.c.l.b16 %v751
        %v2755 = vunpack.c.h.b16 %v751
        %v2756 = vunpack.c.l.b16 %v752
        %v2757 = vunpack.c.h.b16 %v752
        %v2758 = vunpack.c.l.b16 %v753
        %v2759 = vunpack.c.h.b16 %v753
        %v2760 = vunpack.c.l.b16 %v754
        %v2761 = vunpack.c.h.b16 %v754
        %v2762 = vunpack.c.l.b16 %v755
        %v2763 = vunpack.c.h.b16 %v755
        %v2764 = vunpack.c.l.b16 %v756
        %v2765 = vunpack.c.h.b16 %v756
        %v2766 = vunpack.c.l.b16 %v757
        %v2767 = vunpack.c.h.b16 %v757
        %v2768 = vunpack.c.l.b16 %v758
        %v2769 = vunpack.c.h.b16 %v758
        %v2770 = vunpack.c.l.b16 %v759
        %v2771 = vunpack.c.h.b16 %v759
        %v2772 = vunpack.c.l.b16 %v760
        %v2773 = vunpack.c.h.b16 %v760
        %v2774 = vunpack.c.l.b16 %v761
        %v2775 = vunpack.c.h.b16 %v761
        %v2776 = vunpack.c.l.b16 %v762
        %v2777 = vunpack.c.h.b16 %v762
        %v2778 = vunpack.c.l.b16 %v763
        %v2779 = vunpack.c.h.b16 %v763
        %v2780 = vunpack.c.l.b16 %v764
        %v2781 = vunpack.c.h.b16 %v764
        %v2782 = vunpack.c.l.b16 %v765
        %v2783 = vunpack.c.h.b16 %v765
        %v2784 = vunpack.c.l.b16 %v766
        %v2785 = vunpack.c.h.b16 %v766
        %v2786 = vunpack.c.l.b16 %v767
        %v2787 = vunpack.c.h.b16 %v767
        %v2788 = vunpack.c.l.b16 %v768
        %v2789 = vunpack.c.h.b16 %v768
        %v2790 = vunpack.c.l.b16 %v769
        %v2791 = vunpack.c.h.b16 %v769
        %v2792 = vunpack.c.l.b16 %v770
        %v2793 = vunpack.c.h.b16 %v770
        %v2794 = vunpack.c.l.b16 %v771
        %v2795 = vunpack.c.h.b16 %v771
        %v2796 = vunpack.c.l.b16 %v772
        %v2797 = vunpack.c.h.b16 %v772
        %v2798 = vunpack.c.l.b16 %v773
        %v2799 = vunpack.c.h.b16 %v773
        %v2800 = vunpack.c.l.b16 %v774
        %v2801 = vunpack.c.h.b16 %v774
        %v2802 = vunpack.c.l.b16 %v775
        %v2803 = vunpack.c.h.b16 %v775
        %v2804 = vunpack.c.l.b16 %v776
        %v2805 = vunpack.c.h.b16 %v776
        %v2806 = vunpack.c.l.b16 %v777
        %v2807 = vunpack.c.h.b16 %v777
        %v2808 = vunpack.c.l.b16 %v778
        %v2809 = vunpack.c.h.b16 %v778
        %v2810 = vunpack.c.l.b16 %v779
        %v2811 = vunpack.c.h.b16 %v779
        %v2812 = vunpack.c.l.b16 %v780
        %v2813 = vunpack.c.h.b16 %v780
        %v2814 = vunpack.c.l.b16 %v781
        %v2815 = vunpack.c.h.b16 %v781
        %v2816 = vunpack.c.l.b16 %v782
        %v2817 = vunpack.c.h.b16 %v782
        %v2818 = vunpack.c.l.b16 %v783
        %v2819 = vunpack.c.h.b16 %v783
        %v2820 = vunpack.c.l.b16 %v784
        %v2821 = vunpack.c.h.b16 %v784
        %v2822 = vunpack.c.l.b16 %v785
        %v2823 = vunpack.c.h.b16 %v785
        %v2824 = vunpack.c.l.b16 %v786
        %v2825 = vunpack.c.h.b16 %v786
        %v2826 = vunpack.c.l.b16 %v787
        %v2827 = vunpack.c.h.b16 %v787
        %v2828 = vunpack.c.l.b16 %v788
        %v2829 = vunpack.c.h.b16 %v788
        %v2830 = vunpack.c.l.b16 %v789
        %v2831 = vunpack.c.h.b16 %v789
        %v2832 = vunpack.c.l.b16 %v790
        %v2833 = vunpack.c.h.b16 %v790
        %v2834 = vunpack.c.l.b16 %v791
        %v2835 = vunpack.c.h.b16 %v791
        %v2836 = vunpack.c.l.b16 %v792
        %v2837 = vunpack.c.h.b16 %v792
        %v2838 = vunpack.c.l.b16 %v793
        %v2839 = vunpack.c.h.b16 %v793
        %v2840 = vunpack.c.l.b16 %v794
        %v2841 = vunpack.c.h.b16 %v794
        %v2842 = vunpack.c.l.b16 %v795
        %v2843 = vunpack.c.h.b16 %v795
        %v2844 = vunpack.c.l.b16 %v796
        %v2845 = vunpack.c.h.b16 %v796
        %v2846 = vunpack.c.l.b16 %v797
        %v2847 = vunpack.c.h.b16 %v797
        %v2848 = vunpack.c.l.b16 %v798
        %v2849 = vunpack.c.h.b16 %v798
        %v2850 = vunpack.c.l.b16 %v799
        %v2851 = vunpack.c.h.b16 %v799
        %v2852 = vunpack.c.l.b16 %v800
        %v2853 = vunpack.c.h.b16 %v800
        %v2854 = vunpack.c.l.b16 %v801
        %v2855 = vunpack.c.h.b16 %v801
        %v2856 = vunpack.c.l.b16 %v802
        %v2857 = vunpack.c.h.b16 %v802
        %v2858 = vunpack.c.l.b16 %v803
        %v2859 = vunpack.c.h.b16 %v803
        %v2860 = vunpack.c.l.b16 %v804
        %v2861 = vunpack.c.h.b16 %v804
        %v2862 = vunpack.c.l.b16 %v805
        %v2863 = vunpack.c.h.b16 %v805
        %v2864 = vunpack.c.l.b16 %v806
        %v2865 = vunpack.c.h.b16 %v806
        %v2866 = vunpack.c.l.b16 %v807
        %v2867 = vunpack.c.h.b16 %v807
        %v2868 = vunpack.c.l.b16 %v808
        %v2869 = vunpack.c.h.b16 %v808
        %v2870 = vunpack.c.l.b16 %v809
        %v2871 = vunpack.c.h.b16 %v809
        %v2872 = vunpack.c.l.b16 %v810
        %v2873 = vunpack.c.h.b16 %v810
        %v2874 = vunpack.c.l.b16 %v811
        %v2875 = vunpack.c.h.b16 %v811
        %v2876 = vunpack.c.l.b16 %v812
        %v2877 = vunpack.c.h.b16 %v812
        %v2878 = vunpack.c.l.b16 %v813
        %v2879 = vunpack.c.h.b16 %v813
        %v2880 = vunpack.c.l.b16 %v814
        %v2881 = vunpack.c.h.b16 %v814
        %v2882 = vunpack.c.l.b16 %v815
        %v2883 = vunpack.c.h.b16 %v815
        %v2884 = vunpack.c.l.b16 %v816
        %v2885 = vunpack.c.h.b16 %v816
        %v2886 = vunpack.c.l.b16 %v817
        %v2887 = vunpack.c.h.b16 %v817
        %v2888 = vunpack.c.l.b16 %v818
        %v2889 = vunpack.c.h.b16 %v818
        %v2890 = vunpack.c.l.b16 %v819
        %v2891 = vunpack.c.h.b16 %v819
        %v2892 = vunpack.c.l.b16 %v820
        %v2893 = vunpack.c.h.b16 %v820
        %v2894 = vunpack.c.l.b16 %v821
        %v2895 = vunpack.c.h.b16 %v821
        %v2896 = vunpack.c.l.b16 %v822
        %v2897 = vunpack.c.h.b16 %v822
        %v2898 = vunpack.c.l.b16 %v823
        %v2899 = vunpack.c.h.b16 %v823
        %v2900 = vunpack.c.l.b16 %v824
        %v2901 = vunpack.c.h.b16 %v824
        %v2902 = vunpack.c.l.b16 %v825
        %v2903 = vunpack.c.h.b16 %v825
        %v2904 = vunpack.c.l.b16 %v826
        %v2905 = vunpack.c.h.b16 %v826
        %v2906 = vunpack.c.l.b16 %v827
        %v2907 = vunpack.c.h.b16 %v827
        %v2908 = vunpack.c.l.b16 %v828
        %v2909 = vunpack.c.h.b16 %v828
        %v2910 = vunpack.c.l.b16 %v829
        %v2911 = vunpack.c.h.b16 %v829
        %v2912 = vunpack.c.l.b16 %v830
        %v2913 = vunpack.c.h.b16 %v830
        %v2914 = vunpack.c.l.b16 %v831
        %v2915 = vunpack.c.h.b16 %v831
        %v2916 = vunpack.c.l.b16 %v832
        %v2917 = vunpack.c.h.b16 %v832
        %v2918 = vunpack.c.l.b16 %v833
        %v2919 = vunpack.c.h.b16 %v833
        %v2920 = vunpack.c.l.b16 %v834
        %v2921 = vunpack.c.h.b16 %v834
        %v2922 = vunpack.c.l.b16 %v835
        %v2923 = vunpack.c.h.b16 %v835
        %v2924 = vunpack.c.l.b16 %v836
        %v2925 = vunpack.c.h.b16 %v836
        %v2926 = vunpack.c.l.b16 %v837
        %v2927 = vunpack.c.h.b16 %v837
        %v2928 = vunpack.c.l.b16 %v838
        %v2929 = vunpack.c.h.b16 %v838
        %v2930 = vunpack.c.l.b16 %v839
        %v2931 = vunpack.c.h.b16 %v839
        %v2932 = vunpack.c.l.b16 %v840
        %v2933 = vunpack.c.h.b16 %v840
        %v2934 = vunpack.c.l.b16 %v841
        %v2935 = vunpack.c.h.b16 %v841
        %v2936 = vunpack.c.l.b16 %v842
        %v2937 = vunpack.c.h.b16 %v842
        %v2938 = vunpack.c.l.b16 %v843
        %v2939 = vunpack.c.h.b16 %v843
        %v2940 = vunpack.c.l.b16 %v844
        %v2941 = vunpack.c.h.b16 %v844
        %v2942 = vunpack.c.l.b16 %v845
        %v2943 = vunpack.c.h.b16 %v845
        %v2944 = vunpack.c.l.b16 %v846
        %v2945 = vunpack.c.h.b16 %v846
        %v2946 = vunpack.c.l.b16 %v847
        %v2947 = vunpack.c.h.b16 %v847
        %v2948 = vunpack.c.l.b16 %v848
        %v2949 = vunpack.c.h.b16 %v848
        %v2950 = vunpack.c.l.b16 %v849
        %v2951 = vunpack.c.h.b16 %v849
        %v2952 = vunpack.c.l.b16 %v850
        %v2953 = vunpack.c.h.b16 %v850
        %v2954 = vunpack.c.l.b16 %v851
        %v2955 = vunpack.c.h.b16 %v851
        %v2956 = vunpack.c.l.b16 %v852
        %v2957 = vunpack.c.h.b16 %v852
        %v2958 = vunpack.c.l.b16 %v853
        %v2959 = vunpack.c.h.b16 %v853
        %v2960 = vunpack.c.l.b16 %v854
        %v2961 = vunpack.c.h.b16 %v854
        %v2962 = vunpack.c.l.b16 %v855
        %v2963 = vunpack.c.h.b16 %v855
        %v2964 = vunpack.c.l.b16 %v856
        %v2965 = vunpack.c.h.b16 %v856
        %v2966 = vunpack.c.l.b16 %v857
        %v2967 = vunpack.c.h.b16 %v857
        %v2968 = vunpack.c.l.b16 %v858
        %v2969 = vunpack.c.h.b16 %v858
        %v2970 = vunpack.c.l.b16 %v859
        %v2971 = vunpack.c.h.b16 %v859
        %v2972 = vunpack.c.l.b16 %v860
        %v2973 = vunpack.c.h.b16 %v860
        %v2974 = vunpack.c.l.b16 %v861
        %v2975 = vunpack.c.h.b16 %v861
        %v2976 = vunpack.c.l.b16 %v862
        %v2977 = vunpack.c.h.b16 %v862
        %v2978 = vunpack.c.l.b16 %v863
        %v2979 = vunpack.c.h.b16 %v863
        %v2980 = vunpack.c.l.b16 %v864
        %v2981 = vunpack.c.h.b16 %v864
        %v2982 = vunpack.c.l.b16 %v865
        %v2983 = vunpack.c.h.b16 %v865
        %v2984 = vunpack.c.l.b16 %v866
        %v2985 = vunpack.c.h.b16 %v866
        %v2986 = vunpack.c.l.b16 %v867
        %v2987 = vunpack.c.h.b16 %v867
        %v2988 = vunpack.c.l.b16 %v868
        %v2989 = vunpack.c.h.b16 %v868
        %v2990 = vunpack.c.l.b16 %v869
        %v2991 = vunpack.c.h.b16 %v869
        %v2992 = vunpack.c.l.b16 %v870
        %v2993 = vunpack.c.h.b16 %v870
        %v2994 = vunpack.c.l.b16 %v871
        %v2995 = vunpack.c.h.b16 %v871
        %v2996 = vunpack.c.l.b16 %v872
        %v2997 = vunpack.c.h.b16 %v872
        %v2998 = vunpack.c.l.b16 %v873
        %v2999 = vunpack.c.h.b16 %v873
        %v3000 = vunpack.c.l.b16 %v874
        %v3001 = vunpack.c.h.b16 %v874
        %v3002 = vunpack.c.l.b16 %v875
        %v3003 = vunpack.c.h.b16 %v875
        %v3004 = vunpack.c.l.b16 %v876
        %v3005 = vunpack.c.h.b16 %v876
        %v3006 = vunpack.c.l.b16 %v877
        %v3007 = vunpack.c.h.b16 %v877
        %v3008 = vunpack.c.l.b16 %v878
        %v3009 = vunpack.c.h.b16 %v878
        %v3010 = vunpack.c.l.b16 %v879
        %v3011 = vunpack.c.h.b16 %v879
        %v3012 = vunpack.c.l.b16 %v880
        %v3013 = vunpack.c.h.b16 %v880
        %v3014 = vunpack.c.l.b16 %v881
        %v3015 = vunpack.c.h.b16 %v881
        %v3016 = vunpack.c.l.b16 %v882
        %v3017 = vunpack.c.h.b16 %v882
        %v3018 = vunpack.c.l.b16 %v883
        %v3019 = vunpack.c.h.b16 %v883
        %v3020 = vunpack.c.l.b16 %v884
        %v3021 = vunpack.c.h.b16 %v884
        %v3022 = vunpack.c.l.b16 %v885
        %v3023 = vunpack.c.h.b16 %v885
        %v3024 = vunpack.c.l.b16 %v886
        %v3025 = vunpack.c.h.b16 %v886
        %v3026 = vunpack.c.l.b16 %v887
        %v3027 = vunpack.c.h.b16 %v887
        %v3028 = vunpack.c.l.b16 %v888
        %v3029 = vunpack.c.h.b16 %v888
        %v3030 = vunpack.c.l.b16 %v889
        %v3031 = vunpack.c.h.b16 %v889
        %v3032 = vunpack.c.l.b16 %v890
        %v3033 = vunpack.c.h.b16 %v890
        %v3034 = vunpack.c.l.b16 %v891
        %v3035 = vunpack.c.h.b16 %v891
        %v3036 = vunpack.c.l.b16 %v892
        %v3037 = vunpack.c.h.b16 %v892
        %v3038 = vunpack.c.l.b16 %v893
        %v3039 = vunpack.c.h.b16 %v893
        %v3040 = vunpack.c.l.b16 %v894
        %v3041 = vunpack.c.h.b16 %v894
        %v3042 = vunpack.c.l.b16 %v895
        %v3043 = vunpack.c.h.b16 %v895
        %v3044 = vunpack.c.l.b16 %v896
        %v3045 = vunpack.c.h.b16 %v896
        %v3046 = vunpack.c.l.b16 %v897
        %v3047 = vunpack.c.h.b16 %v897
        %v3048 = vunpack.c.l.b16 %v898
        %v3049 = vunpack.c.h.b16 %v898
        %v3050 = vunpack.c.l.b16 %v899
        %v3051 = vunpack.c.h.b16 %v899
        %v3052 = vunpack.c.l.b16 %v900
        %v3053 = vunpack.c.h.b16 %v900
        %v3054 = vunpack.c.l.b16 %v901
        %v3055 = vunpack.c.h.b16 %v901
        %v3056 = vunpack.c.l.b16 %v902
        %v3057 = vunpack.c.h.b16 %v902
        %v3058 = vunpack.c.l.b16 %v903
        %v3059 = vunpack.c.h.b16 %v903
        %v3060 = vunpack.c.l.b16 %v904
        %v3061 = vunpack.c.h.b16 %v904
        %v3062 = vunpack.c.l.b16 %v905
        %v3063 = vunpack.c.h.b16 %v905
        %v3064 = vunpack.c.l.b16 %v906
        %v3065 = vunpack.c.h.b16 %v906
        %v3066 = vunpack.c.l.b16 %v907
        %v3067 = vunpack.c.h.b16 %v907
        %v3068 = vunpack.c.l.b16 %v908
        %v3069 = vunpack.c.h.b16 %v908
        %v3070 = vunpack.c.l.b16 %v909
        %v3071 = vunpack.c.h.b16 %v909
        %v3072 = vunpack.c.l.b16 %v910
        %v3073 = vunpack.c.h.b16 %v910
        %v3074 = vunpack.c.l.b16 %v911
        %v3075 = vunpack.c.h.b16 %v911
        %v3076 = vunpack.c.l.b16 %v912
        %v3077 = vunpack.c.h.b16 %v912
        %v3078 = vunpack.c.l.b16 %v913
        %v3079 = vunpack.c.h.b16 %v913
        %v3080 = vunpack.c.l.b16 %v914
        %v3081 = vunpack.c.h.b16 %v914
        %v3082 = vunpack.c.l.b16 %v915
        %v3083 = vunpack.c.h.b16 %v915
        %v3084 = vunpack.c.l.b16 %v916
        %v3085 = vunpack.c.h.b16 %v916
        %v3086 = vunpack.c.l.b16 %v917
        %v3087 = vunpack.c.h.b16 %v917
        %v3088 = vunpack.c.l.b16 %v918
        %v3089 = vunpack.c.h.b16 %v918
        %v3090 = vunpack.c.l.b16 %v919
        %v3091 = vunpack.c.h.b16 %v919
        %v3092 = vunpack.c.l.b16 %v920
        %v3093 = vunpack.c.h.b16 %v920
        %v3094 = vunpack.c.l.b16 %v921
        %v3095 = vunpack.c.h.b16 %v921
        %v3096 = vunpack.c.l.b16 %v922
        %v3097 = vunpack.c.h.b16 %v922
        %v3098 = vunpack.c.l.b16 %v923
        %v3099 = vunpack.c.h.b16 %v923
        %v3100 = vunpack.c.l.b16 %v924
        %v3101 = vunpack.c.h.b16 %v924
        %v3102 = vunpack.c.l.b16 %v925
        %v3103 = vunpack.c.h.b16 %v925
        %v3104 = vunpack.c.l.b16 %v926
        %v3105 = vunpack.c.h.b16 %v926
        %v3106 = vunpack.c.l.b16 %v927
        %v3107 = vunpack.c.h.b16 %v927
        %v3108 = vunpack.c.l.b16 %v928
        %v3109 = vunpack.c.h.b16 %v928
        %v3110 = vunpack.c.l.b16 %v929
        %v3111 = vunpack.c.h.b16 %v929
        %v3112 = vunpack.c.l.b16 %v930
        %v3113 = vunpack.c.h.b16 %v930
        %v3114 = vunpack.c.l.b16 %v931
        %v3115 = vunpack.c.h.b16 %v931
        %v3116 = vunpack.c.l.b16 %v932
        %v3117 = vunpack.c.h.b16 %v932
        %v3118 = vunpack.c.l.b16 %v933
        %v3119 = vunpack.c.h.b16 %v933
        %v3120 = vunpack.c.l.b16 %v934
        %v3121 = vunpack.c.h.b16 %v934
        %v3122 = vunpack.c.l.b16 %v935
        %v3123 = vunpack.c.h.b16 %v935
        %v3124 = vunpack.c.l.b16 %v936
        %v3125 = vunpack.c.h.b16 %v936
        %v3126 = vunpack.c.l.b16 %v937
        %v3127 = vunpack.c.h.b16 %v937
        %v3128 = vunpack.c.l.b16 %v938
        %v3129 = vunpack.c.h.b16 %v938
        %v3130 = vunpack.c.l.b16 %v939
        %v3131 = vunpack.c.h.b16 %v939
        %v3132 = vunpack.c.l.b16 %v940
        %v3133 = vunpack.c.h.b16 %v940
        %v3134 = vunpack.c.l.b16 %v941
        %v3135 = vunpack.c.h.b16 %v941
        %v3136 = vunpack.c.l.b16 %v942
        %v3137 = vunpack.c.h.b16 %v942
        %v3138 = vunpack.c.l.b16 %v943
        %v3139 = vunpack.c.h.b16 %v943
        %v3140 = vunpack.c.l.b16 %v944
        %v3141 = vunpack.c.h.b16 %v944
        %v3142 = vunpack.c.l.b16 %v945
        %v3143 = vunpack.c.h.b16 %v945
        %v3144 = vunpack.c.l.b16 %v946
        %v3145 = vunpack.c.h.b16 %v946
        %v3146 = vunpack.c.l.b16 %v947
        %v3147 = vunpack.c.h.b16 %v947
        %v3148 = vunpack.c.l.b16 %v948
        %v3149 = vunpack.c.h.b16 %v948
        %v3150 = vunpack.c.l.b16 %v949
        %v3151 = vunpack.c.h.b16 %v949
        %v3152 = vunpack.c.l.b16 %v950
        %v3153 = vunpack.c.h.b16 %v950
        %v3154 = vunpack.c.l.b16 %v951
        %v3155 = vunpack.c.h.b16 %v951
        %v3156 = vunpack.c.l.b16 %v952
        %v3157 = vunpack.c.h.b16 %v952
        %v3158 = vunpack.c.l.b16 %v953
        %v3159 = vunpack.c.h.b16 %v953
        %v3160 = vunpack.c.l.b16 %v954
        %v3161 = vunpack.c.h.b16 %v954
        %v3162 = vunpack.c.l.b16 %v955
        %v3163 = vunpack.c.h.b16 %v955
        %v3164 = vunpack.c.l.b16 %v956
        %v3165 = vunpack.c.h.b16 %v956
        %v3166 = vunpack.c.l.b16 %v957
        %v3167 = vunpack.c.h.b16 %v957
        %v3168 = vunpack.c.l.b16 %v958
        %v3169 = vunpack.c.h.b16 %v958
        %v3170 = vunpack.c.l.b16 %v959
        %v3171 = vunpack.c.h.b16 %v959
        %v3172 = vunpack.c.l.b16 %v960
        %v3173 = vunpack.c.h.b16 %v960
        %v3174 = vunpack.c.l.b16 %v961
        %v3175 = vunpack.c.h.b16 %v961
        %v3176 = vunpack.c.l.b16 %v962
        %v3177 = vunpack.c.h.b16 %v962
        %v3178 = vunpack.c.l.b16 %v963
        %v3179 = vunpack.c.h.b16 %v963
        %v3180 = vunpack.c.l.b16 %v964
        %v3181 = vunpack.c.h.b16 %v964
        %v3182 = vunpack.c.l.b16 %v965
        %v3183 = vunpack.c.h.b16 %v965
        %v3184 = vunpack.c.l.b16 %v966
        %v3185 = vunpack.c.h.b16 %v966
        %v3186 = vunpack.c.l.b16 %v967
        %v3187 = vunpack.c.h.b16 %v967
        %v3188 = vunpack.c.l.b16 %v968
        %v3189 = vunpack.c.h.b16 %v968
        %v3190 = vunpack.c.l.b16 %v969
        %v3191 = vunpack.c.h.b16 %v969
        %v3192 = vunpack.c.l.b16 %v970
        %v3193 = vunpack.c.h.b16 %v970
        %v3194 = vunpack.c.l.b16 %v971
        %v3195 = vunpack.c.h.b16 %v971
        %v3196 = vunpack.c.l.b16 %v972
        %v3197 = vunpack.c.h.b16 %v972
        %v3198 = vunpack.c.l.b16 %v973
        %v3199 = vunpack.c.h.b16 %v973
        %v3200 = vunpack.c.l.b16 %v974
        %v3201 = vunpack.c.h.b16 %v974
        %v3202 = vunpack.c.l.b16 %v975
        %v3203 = vunpack.c.h.b16 %v975
        %v3204 = vunpack.c.l.b16 %v976
        %v3205 = vunpack.c.h.b16 %v976
        %v3206 = vunpack.c.l.b16 %v977
        %v3207 = vunpack.c.h.b16 %v977
        %v3208 = vunpack.c.l.b16 %v978
        %v3209 = vunpack.c.h.b16 %v978
        %v3210 = vunpack.c.l.b16 %v979
        %v3211 = vunpack.c.h.b16 %v979
        %v3212 = vunpack.c.l.b16 %v980
        %v3213 = vunpack.c.h.b16 %v980
        %v3214 = vunpack.c.l.b16 %v981
        %v3215 = vunpack.c.h.b16 %v981
        %v3216 = vunpack.c.l.b16 %v982
        %v3217 = vunpack.c.h.b16 %v982
        %v3218 = vunpack.c.l.b16 %v983
        %v3219 = vunpack.c.h.b16 %v983
        %v3220 = vunpack.c.l.b16 %v984
        %v3221 = vunpack.c.h.b16 %v984
        %v3222 = vunpack.c.l.b16 %v985
        %v3223 = vunpack.c.h.b16 %v985
        %v3224 = vunpack.c.l.b16 %v986
        %v3225 = vunpack.c.h.b16 %v986
        %v3226 = vunpack.c.l.b16 %v987
        %v3227 = vunpack.c.h.b16 %v987
        %v3228 = vunpack.c.l.b16 %v988
        %v3229 = vunpack.c.h.b16 %v988
        %v3230 = vunpack.c.l.b16 %v989
        %v3231 = vunpack.c.h.b16 %v989
        %v3232 = vunpack.c.l.b16 %v990
        %v3233 = vunpack.c.h.b16 %v990
        %v3234 = vunpack.c.l.b16 %v991
        %v3235 = vunpack.c.h.b16 %v991
        %v3236 = vunpack.c.l.b16 %v992
        %v3237 = vunpack.c.h.b16 %v992
        %v3238 = vunpack.c.l.b16 %v993
        %v3239 = vunpack.c.h.b16 %v993
        %v3240 = vunpack.c.l.b16 %v994
        %v3241 = vunpack.c.h.b16 %v994
        %v3242 = vunpack.c.l.b16 %v995
        %v3243 = vunpack.c.h.b16 %v995
        %v3244 = vunpack.c.l.b16 %v996
        %v3245 = vunpack.c.h.b16 %v996
        %v3246 = vunpack.c.l.b16 %v997
        %v3247 = vunpack.c.h.b16 %v997
        %v3248 = vunpack.c.l.b16 %v998
        %v3249 = vunpack.c.h.b16 %v998
        %v3250 = vunpack.c.l.b16 %v999
        %v3251 = vunpack.c.h.b16 %v999
        %v3252 = vunpack.c.l.b16 %v1000
        %v3253 = vunpack.c.h.b16 %v1000
        %v3254 = vunpack.c.l.b16 %v1001
        %v3255 = vunpack.c.h.b16 %v1001
        %v3256 = vunpack.c.l.b16 %v1002
        %v3257 = vunpack.c.h.b16 %v1002
        %v3258 = vunpack.c.l.b16 %v1003
        %v3259 = vunpack.c.h.b16 %v1003
        %v3260 = vunpack.c.l.b16 %v1004
        %v3261 = vunpack.c.h.b16 %v1004
        %v3262 = vunpack.c.l.b16 %v1005
        %v3263 = vunpack.c.h.b16 %v1005
        %v3264 = vunpack.c.l.b16 %v1006
        %v3265 = vunpack.c.h.b16 %v1006
        %v3266 = vunpack.c.l.b16 %v1007
        %v3267 = vunpack.c.h.b16 %v1007
        %v3268 = vunpack.c.l.b16 %v1008
        %v3269 = vunpack.c.h.b16 %v1008
        %v3270 = vunpack.c.l.b16 %v1009
        %v3271 = vunpack.c.h.b16 %v1009
        %v3272 = vunpack.c.l.b16 %v1010
        %v3273 = vunpack.c.h.b16 %v1010
        %v3274 = vunpack.c.l.b16 %v1011
        %v3275 = vunpack.c.h.b16 %v1011
        %v3276 = vunpack.c.l.b16 %v1012
        %v3277 = vunpack.c.h.b16 %v1012
        %v3278 = vunpack.c.l.b16 %v1013
        %v3279 = vunpack.c.h.b16 %v1013
        %v3280 = vunpack.c.l.b16 %v1014
        %v3281 = vunpack.c.h.b16 %v1014
        %v3282 = vunpack.c.l.b16 %v1015
        %v3283 = vunpack.c.h.b16 %v1015
        %v3284 = vunpack.c.l.b16 %v1016
        %v3285 = vunpack.c.h.b16 %v1016
        %v3286 = vunpack.c.l.b16 %v1017
        %v3287 = vunpack.c.h.b16 %v1017
        %v3288 = vunpack.c.l.b16 %v1018
        %v3289 = vunpack.c.h.b16 %v1018
        %v3290 = vunpack.c.l.b16 %v1019
        %v3291 = vunpack.c.h.b16 %v1019
        %v3292 = vunpack.c.l.b16 %v1020
        %v3293 = vunpack.c.h.b16 %v1020
        %v3294 = vunpack.c.l.b16 %v1021
        %v3295 = vunpack.c.h.b16 %v1021
        %v3296 = vunpack.c.l.b16 %v1022
        %v3297 = vunpack.c.h.b16 %v1022
        %v3298 = vunpack.c.l.b16 %v1023
        %v3299 = vunpack.c.h.b16 %v1023
        %v3300 = vunpack.c.l.b16 %v1024
        %v3301 = vunpack.c.h.b16 %v1024
        %v3302 = vunpack.c.l.b16 %v1025
        %v3303 = vunpack.c.h.b16 %v1025
        %v3304 = vunpack.c.l.b16 %v1026
        %v3305 = vunpack.c.h.b16 %v1026
        %v3306 = vunpack.c.l.b16 %v1027
        %v3307 = vunpack.c.h.b16 %v1027
        %v3308 = vunpack.c.l.b16 %v1028
        %v3309 = vunpack.c.h.b16 %v1028
        %v3310 = vunpack.c.l.b16 %v1029
        %v3311 = vunpack.c.h.b16 %v1029
        %v3312 = vunpack.c.l.b16 %v1030
        %v3313 = vunpack.c.h.b16 %v1030
        %v3314 = vunpack.c.l.b16 %v1031
        %v3315 = vunpack.c.h.b16 %v1031
        %v3316 = vunpack.c.l.b16 %v1032
        %v3317 = vunpack.c.h.b16 %v1032
        %v3318 = vunpack.c.l.b16 %v1033
        %v3319 = vunpack.c.h.b16 %v1033
        %v3320 = vunpack.c.l.b16 %v1034
        %v3321 = vunpack.c.h.b16 %v1034
        %v3322 = vunpack.c.l.b16 %v1035
        %v3323 = vunpack.c.h.b16 %v1035
        %v3324 = vunpack.c.l.b16 %v1036
        %v3325 = vunpack.c.h.b16 %v1036
        %v3326 = vunpack.c.l.b16 %v1037
        %v3327 = vunpack.c.h.b16 %v1037
        %v3328 = vunpack.c.l.b16 %v1038
        %v3329 = vunpack.c.h.b16 %v1038
        %v3330 = vunpack.c.l.b16 %v1039
        %v3331 = vunpack.c.h.b16 %v1039
        %v3332 = vunpack.c.l.b16 %v1040
        %v3333 = vunpack.c.h.b16 %v1040
        %v3334 = vunpack.c.l.b16 %v1041
        %v3335 = vunpack.c.h.b16 %v1041
        %v3336 = vunpack.c.l.b16 %v1042
        %v3337 = vunpack.c.h.b16 %v1042
        %v3338 = vunpack.c.l.b16 %v1043
        %v3339 = vunpack.c.h.b16 %v1043
        %v3340 = vunpack.c.l.b16 %v1044
        %v3341 = vunpack.c.h.b16 %v1044
        %v3342 = vunpack.c.l.b16 %v1045
        %v3343 = vunpack.c.h.b16 %v1045
        %v3344 = vunpack.c.l.b16 %v1046
        %v3345 = vunpack.c.h.b16 %v1046
        %v3346 = vunpack.c.l.b16 %v1047
        %v3347 = vunpack.c.h.b16 %v1047
        %v3348 = vunpack.c.l.b16 %v1048
        %v3349 = vunpack.c.h.b16 %v1048
        %v3350 = vunpack.c.l.b16 %v1049
        %v3351 = vunpack.c.h.b16 %v1049
        %v3352 = vunpack.c.l.b16 %v1050
        %v3353 = vunpack.c.h.b16 %v1050
        %v3354 = vunpack.c.l.b16 %v1051
        %v3355 = vunpack.c.h.b16 %v1051
        %v3356 = vunpack.c.l.b16 %v1052
        %v3357 = vunpack.c.h.b16 %v1052
        %v3358 = vunpack.c.l.b16 %v1053
        %v3359 = vunpack.c.h.b16 %v1053
        %v3360 = vunpack.c.l.b16 %v1054
        %v3361 = vunpack.c.h.b16 %v1054
        %v3362 = vunpack.c.l.b16 %v1055
        %v3363 = vunpack.c.h.b16 %v1055
        %v3364 = vunpack.c.l.b16 %v1056
        %v3365 = vunpack.c.h.b16 %v1056
        %v3366 = vunpack.c.l.b16 %v1057
        %v3367 = vunpack.c.h.b16 %v1057
        %v3368 = vunpack.c.l.b16 %v1058
        %v3369 = vunpack.c.h.b16 %v1058
        %v3370 = vunpack.c.l.b16 %v1059
        %v3371 = vunpack.c.h.b16 %v1059
        %v3372 = vunpack.c.l.b16 %v1060
        %v3373 = vunpack.c.h.b16 %v1060
        %v3374 = vunpack.c.l.b16 %v1061
        %v3375 = vunpack.c.h.b16 %v1061
        %v3376 = vunpack.c.l.b16 %v1062
        %v3377 = vunpack.c.h.b16 %v1062
        %v3378 = vunpack.c.l.b16 %v1063
        %v3379 = vunpack.c.h.b16 %v1063
        %v3380 = vunpack.c.l.b16 %v1064
        %v3381 = vunpack.c.h.b16 %v1064
        %v3382 = vunpack.c.l.b16 %v1065
        %v3383 = vunpack.c.h.b16 %v1065
        %v3384 = vunpack.c.l.b16 %v1066
        %v3385 = vunpack.c.h.b16 %v1066
        %v3386 = vunpack.c.l.b16 %v1067
        %v3387 = vunpack.c.h.b16 %v1067
        %v3388 = vunpack.c.l.b16 %v1068
        %v3389 = vunpack.c.h.b16 %v1068
        %v3390 = vunpack.c.l.b16 %v1069
        %v3391 = vunpack.c.h.b16 %v1069
        %v3392 = vunpack.c.l.b16 %v1070
        %v3393 = vunpack.c.h.b16 %v1070
        %v3394 = vunpack.c.l.b16 %v1071
        %v3395 = vunpack.c.h.b16 %v1071
        %v3396 = vunpack.c.l.b16 %v1072
        %v3397 = vunpack.c.h.b16 %v1072
        %v3398 = vunpack.c.l.b16 %v1073
        %v3399 = vunpack.c.h.b16 %v1073
        %v3400 = vunpack.c.l.b16 %v1074
        %v3401 = vunpack.c.h.b16 %v1074
        %v3402 = vunpack.c.l.b16 %v1075
        %v3403 = vunpack.c.h.b16 %v1075
        %v3404 = vunpack.c.l.b16 %v1076
        %v3405 = vunpack.c.h.b16 %v1076
        %v3406 = vunpack.c.l.b16 %v1077
        %v3407 = vunpack.c.h.b16 %v1077
        %v3408 = vunpack.c.l.b16 %v1078
        %v3409 = vunpack.c.h.b16 %v1078
        %v3410 = vunpack.c.l.b16 %v1079
        %v3411 = vunpack.c.h.b16 %v1079
        %v3412 = vunpack.c.l.b16 %v1080
        %v3413 = vunpack.c.h.b16 %v1080
        %v3414 = vunpack.c.l.b16 %v1081
        %v3415 = vunpack.c.h.b16 %v1081
        %v3416 = vunpack.c.l.b16 %v1082
        %v3417 = vunpack.c.h.b16 %v1082
        %v3418 = vunpack.c.l.b16 %v1083
        %v3419 = vunpack.c.h.b16 %v1083
        %v3420 = vunpack.c.l.b16 %v1084
        %v3421 = vunpack.c.h.b16 %v1084
        %v3422 = vunpack.c.l.b16 %v1085
        %v3423 = vunpack.c.h.b16 %v1085
        %v3424 = vunpack.c.l.b16 %v1086
        %v3425 = vunpack.c.h.b16 %v1086
        %v3426 = vunpack.c.l.b16 %v1087
        %v3427 = vunpack.c.h.b16 %v1087
        %v3428 = vunpack.c.l.b16 %v1088
        %v3429 = vunpack.c.h.b16 %v1088
        %v3430 = vunpack.c.l.b16 %v1089
        %v3431 = vunpack.c.h.b16 %v1089
        %v3432 = vunpack.c.l.b16 %v1090
        %v3433 = vunpack.c.h.b16 %v1090
        %v3434 = vunpack.c.l.b16 %v1091
        %v3435 = vunpack.c.h.b16 %v1091
        %v3436 = vunpack.c.l.b16 %v1092
        %v3437 = vunpack.c.h.b16 %v1092
        %v3438 = vunpack.c.l.b16 %v1093
        %v3439 = vunpack.c.h.b16 %v1093
        %v3440 = vunpack.c.l.b16 %v1094
        %v3441 = vunpack.c.h.b16 %v1094
        %v3442 = vunpack.c.l.b16 %v1095
        %v3443 = vunpack.c.h.b16 %v1095
        %v3444 = vunpack.c.l.b16 %v1096
        %v3445 = vunpack.c.h.b16 %v1096
        %v3446 = vunpack.c.l.b16 %v1097
        %v3447 = vunpack.c.h.b16 %v1097
        %v3448 = vunpack.c.l.b16 %v1098
        %v3449 = vunpack.c.h.b16 %v1098
        %v3450 = vunpack.c.l.b16 %v1099
        %v3451 = vunpack.c.h.b16 %v1099
        %v3452 = vunpack.c.l.b16 %v1100
        %v3453 = vunpack.c.h.b16 %v1100
        %v3454 = vunpack.c.l.b16 %v1101
        %v3455 = vunpack.c.h.b16 %v1101
        %v3456 = vunpack.c.l.b16 %v1102
        %v3457 = vunpack.c.h.b16 %v1102
        %v3458 = vunpack.c.l.b16 %v1103
        %v3459 = vunpack.c.h.b16 %v1103
        %v3460 = vunpack.c.l.b16 %v1104
        %v3461 = vunpack.c.h.b16 %v1104
        %v3462 = vunpack.c.l.b16 %v1105
        %v3463 = vunpack.c.h.b16 %v1105
        %v3464 = vunpack.c.l.b16 %v1106
        %v3465 = vunpack.c.h.b16 %v1106
        %v3466 = vunpack.c.l.b16 %v1107
        %v3467 = vunpack.c.h.b16 %v1107
        %v3468 = vunpack.c.l.b16 %v1108
        %v3469 = vunpack.c.h.b16 %v1108
        %v3470 = vunpack.c.l.b16 %v1109
        %v3471 = vunpack.c.h.b16 %v1109
        %v3472 = vunpack.c.l.b16 %v1110
        %v3473 = vunpack.c.h.b16 %v1110
        %v3474 = vunpack.c.l.b16 %v1111
        %v3475 = vunpack.c.h.b16 %v1111
        %v3476 = vunpack.c.l.b16 %v1112
        %v3477 = vunpack.c.h.b16 %v1112
        %v3478 = vunpack.c.l.b16 %v1113
        %v3479 = vunpack.c.h.b16 %v1113
        %v3480 = vunpack.c.l.b16 %v1114
        %v3481 = vunpack.c.h.b16 %v1114
        %v3482 = vunpack.c.l.b16 %v1115
        %v3483 = vunpack.c.h.b16 %v1115
        %v3484 = vunpack.c.l.b16 %v1116
        %v3485 = vunpack.c.h.b16 %v1116
        %v3486 = vunpack.c.l.b16 %v1117
        %v3487 = vunpack.c.h.b16 %v1117
        %v3488 = vunpack.c.l.b16 %v1118
        %v3489 = vunpack.c.h.b16 %v1118
        %v3490 = vunpack.c.l.b16 %v1119
        %v3491 = vunpack.c.h.b16 %v1119
        %v3492 = vunpack.c.l.b16 %v1120
        %v3493 = vunpack.c.h.b16 %v1120
        %v3494 = vunpack.c.l.b16 %v1121
        %v3495 = vunpack.c.h.b16 %v1121
        %v3496 = vunpack.c.l.b16 %v1122
        %v3497 = vunpack.c.h.b16 %v1122
        %v3498 = vunpack.c.l.b16 %v1123
        %v3499 = vunpack.c.h.b16 %v1123
        %v3500 = vunpack.c.l.b16 %v1124
        %v3501 = vunpack.c.h.b16 %v1124
        %v3502 = vunpack.c.l.b16 %v1125
        %v3503 = vunpack.c.h.b16 %v1125
        %v3504 = vunpack.c.l.b16 %v1126
        %v3505 = vunpack.c.h.b16 %v1126
        %v3506 = vunpack.c.l.b16 %v1127
        %v3507 = vunpack.c.h.b16 %v1127
        %v3508 = vunpack.c.l.b16 %v1128
        %v3509 = vunpack.c.h.b16 %v1128
        %v3510 = vunpack.c.l.b16 %v1129
        %v3511 = vunpack.c.h.b16 %v1129
        %v3512 = vunpack.c.l.b16 %v1130
        %v3513 = vunpack.c.h.b16 %v1130
        %v3514 = vunpack.c.l.b16 %v1131
        %v3515 = vunpack.c.h.b16 %v1131
        %v3516 = vunpack.c.l.b16 %v1132
        %v3517 = vunpack.c.h.b16 %v1132
        %v3518 = vunpack.c.l.b16 %v1133
        %v3519 = vunpack.c.h.b16 %v1133
        %v3520 = vunpack.c.l.b16 %v1134
        %v3521 = vunpack.c.h.b16 %v1134
        %v3522 = vunpack.c.l.b16 %v1135
        %v3523 = vunpack.c.h.b16 %v1135
        %v3524 = vunpack.c.l.b16 %v1136
        %v3525 = vunpack.c.h.b16 %v1136
        %v3526 = vunpack.c.l.b16 %v1137
        %v3527 = vunpack.c.h.b16 %v1137
        %v3528 = vunpack.c.l.b16 %v1138
        %v3529 = vunpack.c.h.b16 %v1138
        %v3530 = vunpack.c.l.b16 %v1139
        %v3531 = vunpack.c.h.b16 %v1139
        %v3532 = vunpack.c.l.b16 %v1140
        %v3533 = vunpack.c.h.b16 %v1140
        %v3534 = vunpack.c.l.b16 %v1141
        %v3535 = vunpack.c.h.b16 %v1141
        %v3536 = vunpack.c.l.b16 %v1142
        %v3537 = vunpack.c.h.b16 %v1142
        %v3538 = vunpack.c.l.b16 %v1143
        %v3539 = vunpack.c.h.b16 %v1143
        %v3540 = vunpack.c.l.b16 %v1144
        %v3541 = vunpack.c.h.b16 %v1144
        %v3542 = vunpack.c.l.b16 %v1145
        %v3543 = vunpack.c.h.b16 %v1145
        %v3544 = vunpack.c.l.b16 %v1146
        %v3545 = vunpack.c.h.b16 %v1146
        %v3546 = vunpack.c.l.b16 %v1147
        %v3547 = vunpack.c.h.b16 %v1147
        %v3548 = vunpack.c.l.b16 %v1148
        %v3549 = vunpack.c.h.b16 %v1148
        %v3550 = vunpack.c.l.b16 %v1149
        %v3551 = vunpack.c.h.b16 %v1149
        %v3552 = vunpack.c.l.b16 %v1150
        %v3553 = vunpack.c.h.b16 %v1150
        %v3554 = vunpack.c.l.b16 %v1151
        %v3555 = vunpack.c.h.b16 %v1151
        %v3556 = vunpack.c.l.b16 %v1152
        %v3557 = vunpack.c.h.b16 %v1152
        %v3558 = vunpack.c.l.b16 %v1153
        %v3559 = vunpack.c.h.b16 %v1153
        %v3560 = vunpack.c.l.b16 %v1154
        %v3561 = vunpack.c.h.b16 %v1154
        %v3562 = vunpack.c.l.b16 %v1155
        %v3563 = vunpack.c.h.b16 %v1155
        %v3564 = vunpack.c.l.b16 %v1156
        %v3565 = vunpack.c.h.b16 %v1156
        %v3566 = vunpack.c.l.b16 %v1157
        %v3567 = vunpack.c.h.b16 %v1157
        %v3568 = vunpack.c.l.b16 %v1158
        %v3569 = vunpack.c.h.b16 %v1158
        %v3570 = vunpack.c.l.b16 %v1159
        %v3571 = vunpack.c.h.b16 %v1159
        %v3572 = vunpack.c.l.b16 %v1160
        %v3573 = vunpack.c.h.b16 %v1160
        %v3574 = vunpack.c.l.b16 %v1161
        %v3575 = vunpack.c.h.b16 %v1161
        %v3576 = vunpack.c.l.b16 %v1162
        %v3577 = vunpack.c.h.b16 %v1162
        %v3578 = vunpack.c.l.b16 %v1163
        %v3579 = vunpack.c.h.b16 %v1163
        %v3580 = vunpack.c.l.b16 %v1164
        %v3581 = vunpack.c.h.b16 %v1164
        %v3582 = vunpack.c.l.b16 %v1165
        %v3583 = vunpack.c.h.b16 %v1165
        %v3584 = vunpack.c.l.b16 %v1166
        %v3585 = vunpack.c.h.b16 %v1166
        %v3586 = vunpack.c.l.b16 %v1167
        %v3587 = vunpack.c.h.b16 %v1167
        %v3588 = vunpack.c.l.b16 %v1168
        %v3589 = vunpack.c.h.b16 %v1168
        %v3590 = vunpack.c.l.b16 %v1169
        %v3591 = vunpack.c.h.b16 %v1169
        %v3592 = vunpack.c.l.b16 %v1170
        %v3593 = vunpack.c.h.b16 %v1170
        %v3594 = vunpack.c.l.b16 %v1171
        %v3595 = vunpack.c.h.b16 %v1171
        %v3596 = vunpack.c.l.b16 %v1172
        %v3597 = vunpack.c.h.b16 %v1172
        %v3598 = vunpack.c.l.b16 %v1173
        %v3599 = vunpack.c.h.b16 %v1173
        %v3600 = vunpack.c.l.b16 %v1174
        %v3601 = vunpack.c.h.b16 %v1174
        %v3602 = vunpack.c.l.b16 %v1175
        %v3603 = vunpack.c.h.b16 %v1175
        %v3604 = vunpack.c.l.b16 %v1176
        %v3605 = vunpack.c.h.b16 %v1176
        %v3606 = vunpack.c.l.b16 %v1177
        %v3607 = vunpack.c.h.b16 %v1177
        %v3608 = vunpack.c.l.b16 %v1178
        %v3609 = vunpack.c.h.b16 %v1178
        %v3610 = vunpack.c.l.b16 %v1179
        %v3611 = vunpack.c.h.b16 %v1179
        %v3612 = vunpack.c.l.b16 %v1180
        %v3613 = vunpack.c.h.b16 %v1180
        %v3614 = vunpack.c.l.b16 %v1181
        %v3615 = vunpack.c.h.b16 %v1181
        %v3616 = vunpack.c.l.b16 %v1182
        %v3617 = vunpack.c.h.b16 %v1182
        %v3618 = vunpack.c.l.b16 %v1183
        %v3619 = vunpack.c.h.b16 %v1183
        %v3620 = vunpack.c.l.b16 %v1184
        %v3621 = vunpack.c.h.b16 %v1184
        %v3622 = vunpack.c.l.b16 %v1185
        %v3623 = vunpack.c.h.b16 %v1185
        %v3624 = vunpack.c.l.b16 %v1186
        %v3625 = vunpack.c.h.b16 %v1186
        %v3626 = vunpack.c.l.b16 %v1187
        %v3627 = vunpack.c.h.b16 %v1187
        %v3628 = vunpack.c.l.b16 %v1188
        %v3629 = vunpack.c.h.b16 %v1188
        %v3630 = vunpack.c.l.b16 %v1189
        %v3631 = vunpack.c.h.b16 %v1189
        %v3632 = vunpack.c.l.b16 %v1190
        %v3633 = vunpack.c.h.b16 %v1190
        %v3634 = vunpack.c.l.b16 %v1191
        %v3635 = vunpack.c.h.b16 %v1191
        %v3636 = vunpack.c.l.b16 %v1192
        %v3637 = vunpack.c.h.b16 %v1192
        %v3638 = vunpack.c.l.b16 %v1193
        %v3639 = vunpack.c.h.b16 %v1193
        %v3640 = vunpack.c.l.b16 %v1194
        %v3641 = vunpack.c.h.b16 %v1194
        %v3642 = vunpack.c.l.b16 %v1195
        %v3643 = vunpack.c.h.b16 %v1195
        %v3644 = vunpack.c.l.b16 %v1196
        %v3645 = vunpack.c.h.b16 %v1196
        %v3646 = vunpack.c.l.b16 %v1197
        %v3647 = vunpack.c.h.b16 %v1197
        %v3648 = vunpack.c.l.b16 %v1198
        %v3649 = vunpack.c.h.b16 %v1198
        %v3650 = vunpack.c.l.b16 %v1199
        %v3651 = vunpack.c.h.b16 %v1199
        %v3652 = vunpack.c.l.b16 %v1200
        %v3653 = vunpack.c.h.b16 %v1200
        %v3654 = vunpack.c.l.b16 %v1201
        %v3655 = vunpack.c.h.b16 %v1201
        %v3656 = vunpack.c.l.b16 %v1202
        %v3657 = vunpack.c.h.b16 %v1202
        %v3658 = vunpack.c.l.b16 %v1203
        %v3659 = vunpack.c.h.b16 %v1203
        %v3660 = vunpack.c.l.b16 %v1204
        %v3661 = vunpack.c.h.b16 %v1204
        %v3662 = vunpack.c.l.b16 %v1205
        %v3663 = vunpack.c.h.b16 %v1205
        %v3664 = vunpack.c.l.b16 %v1206
        %v3665 = vunpack.c.h.b16 %v1206
        %v3666 = vunpack.c.l.b16 %v1207
        %v3667 = vunpack.c.h.b16 %v1207
        %v3668 = vunpack.c.l.b16 %v1208
        %v3669 = vunpack.c.h.b16 %v1208
        %v3670 = vunpack.c.l.b16 %v1209
        %v3671 = vunpack.c.h.b16 %v1209
        %v3672 = vunpack.c.l.b16 %v1210
        %v3673 = vunpack.c.h.b16 %v1210
        %v3674 = vunpack.c.l.b16 %v1211
        %v3675 = vunpack.c.h.b16 %v1211
        %v3676 = vunpack.c.l.b16 %v1212
        %v3677 = vunpack.c.h.b16 %v1212
        %v3678 = vunpack.c.l.b16 %v1213
        %v3679 = vunpack.c.h.b16 %v1213
        %v3680 = vunpack.c.l.b16 %v1214
        %v3681 = vunpack.c.h.b16 %v1214
        %v3682 = vunpack.c.l.b16 %v1215
        %v3683 = vunpack.c.h.b16 %v1215
        %v3684 = vunpack.c.l.b16 %v1216
        %v3685 = vunpack.c.h.b16 %v1216
        %v3686 = vunpack.c.l.b16 %v1217
        %v3687 = vunpack.c.h.b16 %v1217
        %v3688 = vunpack.c.l.b16 %v1218
        %v3689 = vunpack.c.h.b16 %v1218
        %v3690 = vunpack.c.l.b16 %v1219
        %v3691 = vunpack.c.h.b16 %v1219
        %v3692 = vunpack.c.l.b16 %v1220
        %v3693 = vunpack.c.h.b16 %v1220
        %v3694 = vunpack.c.l.b16 %v1221
        %v3695 = vunpack.c.h.b16 %v1221
        %v3696 = vunpack.c.l.b16 %v1222
        %v3697 = vunpack.c.h.b16 %v1222
        %v3698 = vunpack.c.l.b16 %v1223
        %v3699 = vunpack.c.h.b16 %v1223
        %v3700 = vunpack.c.l.b16 %v1224
        %v3701 = vunpack.c.h.b16 %v1224
        %v3702 = vunpack.c.l.b16 %v1225
        %v3703 = vunpack.c.h.b16 %v1225
        %v3704 = vunpack.c.l.b16 %v1226
        %v3705 = vunpack.c.h.b16 %v1226
        %v3706 = vunpack.c.l.b16 %v1227
        %v3707 = vunpack.c.h.b16 %v1227
        %v3708 = vunpack.c.l.b16 %v1228
        %v3709 = vunpack.c.h.b16 %v1228
        %v3710 = vunpack.c.l.b16 %v1229
        %v3711 = vunpack.c.h.b16 %v1229
        %v3712 = vunpack.c.l.b16 %v1230
        %v3713 = vunpack.c.h.b16 %v1230
        %v3714 = vunpack.c.l.b16 %v1231
        %v3715 = vunpack.c.h.b16 %v1231
        %v3716 = vunpack.c.l.b16 %v1232
        %v3717 = vunpack.c.h.b16 %v1232
        %v3718 = vunpack.c.l.b16 %v1233
        %v3719 = vunpack.c.h.b16 %v1233
        %v3720 = vunpack.c.l.b16 %v1234
        %v3721 = vunpack.c.h.b16 %v1234
        %v3722 = vunpack.c.l.b16 %v1235
        %v3723 = vunpack.c.h.b16 %v1235
        %v3724 = vunpack.c.l.b16 %v1236
        %v3725 = vunpack.c.h.b16 %v1236
        %v3726 = vunpack.c.l.b16 %v1237
        %v3727 = vunpack.c.h.b16 %v1237
        %v3728 = vunpack.c.l.b16 %v1238
        %v3729 = vunpack.c.h.b16 %v1238
        %v3730 = vunpack.c.l.b16 %v1239
        %v3731 = vunpack.c.h.b16 %v1239
        %v3732 = vunpack.c.l.b16 %v1240
        %v3733 = vunpack.c.h.b16 %v1240
        %v3734 = vunpack.c.l.b16 %v1241
        %v3735 = vunpack.c.h.b16 %v1241
        %v3736 = vunpack.c.l.b16 %v1242
        %v3737 = vunpack.c.h.b16 %v1242
        %v3738 = vunpack.c.l.b16 %v1243
        %v3739 = vunpack.c.h.b16 %v1243
        %v3740 = vunpack.c.l.b16 %v1244
        %v3741 = vunpack.c.h.b16 %v1244
        %v3742 = vunpack.c.l.b16 %v1245
        %v3743 = vunpack.c.h.b16 %v1245
        %v3744 = vunpack.c.l.b16 %v1246
        %v3745 = vunpack.c.h.b16 %v1246
        %v3746 = vunpack.c.l.b16 %v1247
        %v3747 = vunpack.c.h.b16 %v1247
        %v3748 = vunpack.c.l.b16 %v1248
        %v3749 = vunpack.c.h.b16 %v1248
        %v3750 = vunpack.c.l.b16 %v1249
        %v3751 = vunpack.c.h.b16 %v1249
        %v3752 = vunpack.c.l.b16 %v1250
        %v3753 = vunpack.c.h.b16 %v1250
        %v3754 = vunpack.c.l.b16 %v1251
        %v3755 = vunpack.c.h.b16 %v1251
        %v3756 = vunpack.c.l.b16 %v1252
        %v3757 = vunpack.c.h.b16 %v1252
        %v3758 = vunpack.c.l.b16 %v1253
        %v3759 = vunpack.c.h.b16 %v1253
        %v3760 = vunpack.c.l.b16 %v1254
        %v3761 = vunpack.c.h.b16 %v1254
        %v3762 = vunpack.c.l.b16 %v1255
        %v3763 = vunpack.c.h.b16 %v1255
        %v3764 = vunpack.c.l.b16 %v1256
        %v3765 = vunpack.c.h.b16 %v1256
        %v3766 = vunpack.c.l.b16 %v1257
        %v3767 = vunpack.c.h.b16 %v1257
        %v3768 = vunpack.c.l.b16 %v1258
        %v3769 = vunpack.c.h.b16 %v1258
        %v3770 = vunpack.c.l.b16 %v1259
        %v3771 = vunpack.c.h.b16 %v1259
        %v3772 = vunpack.c.l.b16 %v1260
        %v3773 = vunpack.c.h.b16 %v1260
        %v3774 = vunpack.c.l.b16 %v1261
        %v3775 = vunpack.c.h.b16 %v1261
        %v3776 = vunpack.c.l.b16 %v1262
        %v3777 = vunpack.c.h.b16 %v1262
        %v3778 = vunpack.c.l.b16 %v1263
        %v3779 = vunpack.c.h.b16 %v1263
        %v3780 = vunpack.c.l.b16 %v1264
        %v3781 = vunpack.c.h.b16 %v1264
        %v3782 = vunpack.c.l.b16 %v1265
        %v3783 = vunpack.c.h.b16 %v1265
        %v3784 = vunpack.c.l.b16 %v1266
        %v3785 = vunpack.c.h.b16 %v1266
        %v3786 = vunpack.c.l.b16 %v1267
        %v3787 = vunpack.c.h.b16 %v1267
        %v3788 = vpack.c.b16 %v2606, %v2604
        %v3789 = vpack.c.b16 %v2607, %v2605
        %v3790 = vpack.c.b16 %v2610, %v2608
        %v3791 = vpack.c.b16 %v2611, %v2609
        %v3792 = vpack.c.b16 %v2614, %v2612
        %v3793 = vpack.c.b16 %v2615, %v2613
        %v3794 = vpack.c.b16 %v2618, %v2616
        %v3795 = vpack.c.b16 %v2619, %v2617
        %v3796 = vpack.c.b16 %v2622, %v2620
        %v3797 = vpack.c.b16 %v2623, %v2621
        %v3798 = vpack.c.b16 %v2626, %v2624
        %v3799 = vpack.c.b16 %v2627, %v2625
        %v3800 = vpack.c.b16 %v2630, %v2628
        %v3801 = vpack.c.b16 %v2631, %v2629
        %v3802 = vpack.c.b16 %v2634, %v2632
        %v3803 = vpack.c.b16 %v2635, %v2633
        %v3804 = vpack.c.b16 %v2638, %v2636
        %v3805 = vpack.c.b16 %v2639, %v2637
        %v3806 = vpack.c.b16 %v2642, %v2640
        %v3807 = vpack.c.b16 %v2643, %v2641
        %v3808 = vpack.c.b16 %v2646, %v2644
        %v3809 = vpack.c.b16 %v2647, %v2645
        %v3810 = vpack.c.b16 %v2650, %v2648
        %v3811 = vpack.c.b16 %v2651, %v2649
        %v3812 = vpack.c.b16 %v2654, %v2652
        %v3813 = vpack.c.b16 %v2655, %v2653
        %v3814 = vpack.c.b16 %v2658, %v2656
        %v3815 = vpack.c.b16 %v2659, %v2657
        %v3816 = vpack.c.b16 %v2662, %v2660
        %v3817 = vpack.c.b16 %v2663, %v2661
        %v3818 = vpack.c.b16 %v2666, %v2664
        %v3819 = vpack.c.b16 %v2667, %v2665
        %v3820 = vpack.c.b16 %v2670, %v2668
        %v3821 = vpack.c.b16 %v2671, %v2669
        %v3822 = vpack.c.b16 %v2674, %v2672
        %v3823 = vpack.c.b16 %v2675, %v2673
        %v3824 = vpack.c.b16 %v2678, %v2676
        %v3825 = vpack.c.b16 %v2679, %v2677
        %v3826 = vpack.c.b16 %v2682, %v2680
        %v3827 = vpack.c.b16 %v2683, %v2681
        %v3828 = vpack.c.b16 %v2686, %v2684
        %v3829 = vpack.c.b16 %v2687, %v2685
        %v3830 = vpack.c.b16 %v2690, %v2688
        %v3831 = vpack.c.b16 %v2691, %v2689
        %v3832 = vpack.c.b16 %v2694, %v2692
        %v3833 = vpack.c.b16 %v2695, %v2693
        %v3834 = vpack.c.b16 %v2698, %v2696
        %v3835 = vpack.c.b16 %v2699, %v2697
        %v3836 = vpack.c.b16 %v2702, %v2700
        %v3837 = vpack.c.b16 %v2703, %v2701
        %v3838 = vpack.c.b16 %v2706, %v2704
        %v3839 = vpack.c.b16 %v2707, %v2705
        %v3840 = vpack.c.b16 %v2710, %v2708
        %v3841 = vpack.c.b16 %v2711, %v2709
        %v3842 = vpack.c.b16 %v2714, %v2712
        %v3843 = vpack.c.b16 %v2715, %v2713
        %v3844 = vpack.c.b16 %v2718, %v2716
        %v3845 = vpack.c.b16 %v2719, %v2717
        %v3846 = vpack.c.b16 %v2722, %v2720
        %v3847 = vpack.c.b16 %v2723, %v2721
        %v3848 = vpack.c.b16 %v2726, %v2724
        %v3849 = vpack.c.b16 %v2727, %v2725
        %v3850 = vpack.c.b16 %v2730, %v2728
        %v3851 = vpack.c.b16 %v2731, %v2729
        %v3852 = vpack.c.b16 %v2734, %v2732
        %v3853 = vpack.c.b16 %v2735, %v2733
        %v3854 = vpack.c.b16 %v2738, %v2736
        %v3855 = vpack.c.b16 %v2739, %v2737
        %v3856 = vpack.c.b16 %v2742, %v2740
        %v3857 = vpack.c.b16 %v2743, %v2741
        %v3858 = vpack.c.b16 %v2746, %v2744
        %v3859 = vpack.c.b16 %v2747, %v2745
        %v3860 = vpack.c.b16 %v2750, %v2748
        %v3861 = vpack.c.b16 %v2751, %v2749
        %v3862 = vpack.c.b16 %v2754, %v2752
        %v3863 = vpack.c.b16 %v2755, %v2753
        %v3864 = vpack.c.b16 %v2758, %v2756
        %v3865 = vpack.c.b16 %v2759, %v2757
        %v3866 = vpack.c.b16 %v2762, %v2760
        %v3867 = vpack.c.b16 %v2763, %v2761
        %v3868 = vpack.c.b16 %v2766, %v2764
        %v3869 = vpack.c.b16 %v2767, %v2765
        %v3870 = vpack.c.b16 %v2770, %v2768
        %v3871 = vpack.c.b16 %v2771, %v2769
        %v3872 = vpack.c.b16 %v2774, %v2772
        %v3873 = vpack.c.b16 %v2775, %v2773
        %v3874 = vpack.c.b16 %v2778, %v2776
        %v3875 = vpack.c.b16 %v2779, %v2777
        %v3876 = vpack.c.b16 %v2782, %v2780
        %v3877 = vpack.c.b16 %v2783, %v2781
        %v3878 = vpack.c.b16 %v2786, %v2784
        %v3879 = vpack.c.b16 %v2787, %v2785
        %v3880 = vpack.c.b16 %v2790, %v2788
        %v3881 = vpack.c.b16 %v2791, %v2789
        %v3882 = vpack.c.b16 %v2794, %v2792
        %v3883 = vpack.c.b16 %v2795, %v2793
        %v3884 = vpack.c.b16 %v2798, %v2796
        %v3885 = vpack.c.b16 %v2799, %v2797
        %v3886 = vpack.c.b16 %v2802, %v2800
        %v3887 = vpack.c.b16 %v2803, %v2801
        %v3888 = vpack.c.b16 %v2806, %v2804
        %v3889 = vpack.c.b16 %v2807, %v2805
        %v3890 = vpack.c.b16 %v2810, %v2808
        %v3891 = vpack.c.b16 %v2811, %v2809
        %v3892 = vpack.c.b16 %v2814, %v2812
        %v3893 = vpack.c.b16 %v2815, %v2813
        %v3894 = vpack.c.b16 %v2818, %v2816
        %v3895 = vpack.c.b16 %v2819, %v2817
        %v3896 = vpack.c.b16 %v2822, %v2820
        %v3897 = vpack.c.b16 %v2823, %v2821
        %v3898 = vpack.c.b16 %v2826, %v2824
        %v3899 = vpack.c.b16 %v2827, %v2825
        %v3900 = vpack.c.b16 %v2830, %v2828
        %v3901 = vpack.c.b16 %v2831, %v2829
        %v3902 = vpack.c.b16 %v2834, %v2832
        %v3903 = vpack.c.b16 %v2835, %v2833
        %v3904 = vpack.c.b16 %v2838, %v2836
        %v3905 = vpack.c.b16 %v2839, %v2837
        %v3906 = vpack.c.b16 %v2842, %v2840
        %v3907 = vpack.c.b16 %v2843, %v2841
        %v3908 = vpack.c.b16 %v2846, %v2844
        %v3909 = vpack.c.b16 %v2847, %v2845
        %v3910 = vpack.c.b16 %v2850, %v2848
        %v3911 = vpack.c.b16 %v2851, %v2849
        %v3912 = vpack.c.b16 %v2854, %v2852
        %v3913 = vpack.c.b16 %v2855, %v2853
        %v3914 = vpack.c.b16 %v2858, %v2856
        %v3915 = vpack.c.b16 %v2859, %v2857
        %v3916 = vpack.c.b16 %v2862, %v2860
        %v3917 = vpack.c.b16 %v2863, %v2861
        %v3918 = vpack.c.b16 %v2866, %v2864
        %v3919 = vpack.c.b16 %v2867, %v2865
        %v3920 = vpack.c.b16 %v2870, %v2868
        %v3921 = vpack.c.b16 %v2871, %v2869
        %v3922 = vpack.c.b16 %v2874, %v2872
        %v3923 = vpack.c.b16 %v2875, %v2873
        %v3924 = vpack.c.b16 %v2878, %v2876
        %v3925 = vpack.c.b16 %v2879, %v2877
        %v3926 = vpack.c.b16 %v2882, %v2880
        %v3927 = vpack.c.b16 %v2883, %v2881
        %v3928 = vpack.c.b16 %v2886, %v2884
        %v3929 = vpack.c.b16 %v2887, %v2885
        %v3930 = vpack.c.b16 %v2890, %v2888
        %v3931 = vpack.c.b16 %v2891, %v2889
        %v3932 = vpack.c.b16 %v2894, %v2892
        %v3933 = vpack.c.b16 %v2895, %v2893
        %v3934 = vpack.c.b16 %v2898, %v2896
        %v3935 = vpack.c.b16 %v2899, %v2897
        %v3936 = vpack.c.b16 %v2902, %v2900
        %v3937 = vpack.c.b16 %v2903, %v2901
        %v3938 = vpack.c.b16 %v2906, %v2904
        %v3939 = vpack.c.b16 %v2907, %v2905
        %v3940 = vpack.c.b16 %v2910, %v2908
        %v3941 = vpack.c.b16 %v2911, %v2909
        %v3942 = vpack.c.b16 %v2914, %v2912
        %v3943 = vpack.c.b16 %v2915, %v2913
        %v3944 = vpack.c.b16 %v2918, %v2916
        %v3945 = vpack.c.b16 %v2919, %v2917
        %v3946 = vpack.c.b16 %v2922, %v2920
        %v3947 = vpack.c.b16 %v2923, %v2921
        %v3948 = vpack.c.b16 %v2926, %v2924
        %v3949 = vpack.c.b16 %v2927, %v2925
        %v3950 = vpack.c.b16 %v2930, %v2928
        %v3951 = vpack.c.b16 %v2931, %v2929
        %v3952 = vpack.c.b16 %v2934, %v2932
        %v3953 = vpack.c.b16 %v2935, %v2933
        %v3954 = vpack.c.b16 %v2938, %v2936
        %v3955 = vpack.c.b16 %v2939, %v2937
        %v3956 = vpack.c.b16 %v2942, %v2940
        %v3957 = vpack.c.b16 %v2943, %v2941
        %v3958 = vpack.c.b16 %v2946, %v2944
        %v3959 = vpack.c.b16 %v2947, %v2945
        %v3960 = vpack.c.b16 %v2950, %v2948
        %v3961 = vpack.c.b16 %v2951, %v2949
        %v3962 = vpack.c.b16 %v2954, %v2952
        %v3963 = vpack.c.b16 %v2955, %v2953
        %v3964 = vpack.c.b16 %v2958, %v2956
        %v3965 = vpack.c.b16 %v2959, %v2957
        %v3966 = vpack.c.b16 %v2962, %v2960
        %v3967 = vpack.c.b16 %v2963, %v2961
        %v3968 = vpack.c.b16 %v2966, %v2964
        %v3969 = vpack.c.b16 %v2967, %v2965
        %v3970 = vpack.c.b16 %v2970, %v2968
        %v3971 = vpack.c.b16 %v2971, %v2969
        %v3972 = vpack.c.b16 %v2974, %v2972
        %v3973 = vpack.c.b16 %v2975, %v2973
        %v3974 = vpack.c.b16 %v2978, %v2976
        %v3975 = vpack.c.b16 %v2979, %v2977
        %v3976 = vpack.c.b16 %v2982, %v2980
        %v3977 = vpack.c.b16 %v2983, %v2981
        %v3978 = vpack.c.b16 %v2986, %v2984
        %v3979 = vpack.c.b16 %v2987, %v2985
        %v3980 = vpack.c.b16 %v2990, %v2988
        %v3981 = vpack.c.b16 %v2991, %v2989
        %v3982 = vpack.c.b16 %v2994, %v2992
        %v3983 = vpack.c.b16 %v2995, %v2993
        %v3984 = vpack.c.b16 %v2998, %v2996
        %v3985 = vpack.c.b16 %v2999, %v2997
        %v3986 = vpack.c.b16 %v3002, %v3000
        %v3987 = vpack.c.b16 %v3003, %v3001
        %v3988 = vpack.c.b16 %v3006, %v3004
        %v3989 = vpack.c.b16 %v3007, %v3005
        %v3990 = vpack.c.b16 %v3010, %v3008
        %v3991 = vpack.c.b16 %v3011, %v3009
        %v3992 = vpack.c.b16 %v3014, %v3012
        %v3993 = vpack.c.b16 %v3015, %v3013
        %v3994 = vpack.c.b16 %v3018, %v3016
        %v3995 = vpack.c.b16 %v3019, %v3017
        %v3996 = vpack.c.b16 %v3022, %v3020
        %v3997 = vpack.c.b16 %v3023, %v3021
        %v3998 = vpack.c.b16 %v3026, %v3024
        %v3999 = vpack.c.b16 %v3027, %v3025
        %v4000 = vpack.c.b16 %v3030, %v3028
        %v4001 = vpack.c.b16 %v3031, %v3029
        %v4002 = vpack.c.b16 %v3034, %v3032
        %v4003 = vpack.c.b16 %v3035, %v3033
        %v4004 = vpack.c.b16 %v3038, %v3036
        %v4005 = vpack.c.b16 %v3039, %v3037
        %v4006 = vpack.c.b16 %v3042, %v3040
        %v4007 = vpack.c.b16 %v3043, %v3041
        %v4008 = vpack.c.b16 %v3046, %v3044
        %v4009 = vpack.c.b16 %v3047, %v3045
        %v4010 = vpack.c.b16 %v3050, %v3048
        %v4011 = vpack.c.b16 %v3051, %v3049
        %v4012 = vpack.c.b16 %v3054, %v3052
        %v4013 = vpack.c.b16 %v3055, %v3053
        %v4014 = vpack.c.b16 %v3058, %v3056
        %v4015 = vpack.c.b16 %v3059, %v3057
        %v4016 = vpack.c.b16 %v3062, %v3060
        %v4017 = vpack.c.b16 %v3063, %v3061
        %v4018 = vpack.c.b16 %v3066, %v3064
        %v4019 = vpack.c.b16 %v3067, %v3065
        %v4020 = vpack.c.b16 %v3070, %v3068
        %v4021 = vpack.c.b16 %v3071, %v3069
        %v4022 = vpack.c.b16 %v3074, %v3072
        %v4023 = vpack.c.b16 %v3075, %v3073
        %v4024 = vpack.c.b16 %v3078, %v3076
        %v4025 = vpack.c.b16 %v3079, %v3077
        %v4026 = vpack.c.b16 %v3082, %v3080
        %v4027 = vpack.c.b16 %v3083, %v3081
        %v4028 = vpack.c.b16 %v3086, %v3084
        %v4029 = vpack.c.b16 %v3087, %v3085
        %v4030 = vpack.c.b16 %v3090, %v3088
        %v4031 = vpack.c.b16 %v3091, %v3089
        %v4032 = vpack.c.b16 %v3094, %v3092
        %v4033 = vpack.c.b16 %v3095, %v3093
        %v4034 = vpack.c.b16 %v3098, %v3096
        %v4035 = vpack.c.b16 %v3099, %v3097
        %v4036 = vpack.c.b16 %v3102, %v3100
        %v4037 = vpack.c.b16 %v3103, %v3101
        %v4038 = vpack.c.b16 %v3106, %v3104
        %v4039 = vpack.c.b16 %v3107, %v3105
        %v4040 = vpack.c.b16 %v3110, %v3108
        %v4041 = vpack.c.b16 %v3111, %v3109
        %v4042 = vpack.c.b16 %v3114, %v3112
        %v4043 = vpack.c.b16 %v3115, %v3113
        %v4044 = vpack.c.b16 %v3118, %v3116
        %v4045 = vpack.c.b16 %v3119, %v3117
        %v4046 = vpack.c.b16 %v3122, %v3120
        %v4047 = vpack.c.b16 %v3123, %v3121
        %v4048 = vpack.c.b16 %v3126, %v3124
        %v4049 = vpack.c.b16 %v3127, %v3125
        %v4050 = vpack.c.b16 %v3130, %v3128
        %v4051 = vpack.c.b16 %v3131, %v3129
        %v4052 = vpack.c.b16 %v3134, %v3132
        %v4053 = vpack.c.b16 %v3135, %v3133
        %v4054 = vpack.c.b16 %v3138, %v3136
        %v4055 = vpack.c.b16 %v3139, %v3137
        %v4056 = vpack.c.b16 %v3142, %v3140
        %v4057 = vpack.c.b16 %v3143, %v3141
        %v4058 = vpack.c.b16 %v3146, %v3144
        %v4059 = vpack.c.b16 %v3147, %v3145
        %v4060 = vpack.c.b16 %v3150, %v3148
        %v4061 = vpack.c.b16 %v3151, %v3149
        %v4062 = vpack.c.b16 %v3154, %v3152
        %v4063 = vpack.c.b16 %v3155, %v3153
        %v4064 = vpack.c.b16 %v3158, %v3156
        %v4065 = vpack.c.b16 %v3159, %v3157
        %v4066 = vpack.c.b16 %v3162, %v3160
        %v4067 = vpack.c.b16 %v3163, %v3161
        %v4068 = vpack.c.b16 %v3166, %v3164
        %v4069 = vpack.c.b16 %v3167, %v3165
        %v4070 = vpack.c.b16 %v3170, %v3168
        %v4071 = vpack.c.b16 %v3171, %v3169
        %v4072 = vpack.c.b16 %v3174, %v3172
        %v4073 = vpack.c.b16 %v3175, %v3173
        %v4074 = vpack.c.b16 %v3178, %v3176
        %v4075 = vpack.c.b16 %v3179, %v3177
        %v4076 = vpack.c.b16 %v3182, %v3180
        %v4077 = vpack.c.b16 %v3183, %v3181
        %v4078 = vpack.c.b16 %v3186, %v3184
        %v4079 = vpack.c.b16 %v3187, %v3185
        %v4080 = vpack.c.b16 %v3190, %v3188
        %v4081 = vpack.c.b16 %v3191, %v3189
        %v4082 = vpack.c.b16 %v3194, %v3192
        %v4083 = vpack.c.b16 %v3195, %v3193
        %v4084 = vpack.c.b16 %v3198, %v3196
        %v4085 = vpack.c.b16 %v3199, %v3197
        %v4086 = vpack.c.b16 %v3202, %v3200
        %v4087 = vpack.c.b16 %v3203, %v3201
        %v4088 = vpack.c.b16 %v3206, %v3204
        %v4089 = vpack.c.b16 %v3207, %v3205
        %v4090 = vpack.c.b16 %v3210, %v3208
        %v4091 = vpack.c.b16 %v3211, %v3209
        %v4092 = vpack.c.b16 %v3214, %v3212
        %v4093 = vpack.c.b16 %v3215, %v3213
        %v4094 = vpack.c.b16 %v3218, %v3216
        %v4095 = vpack.c.b16 %v3219, %v3217
        %v4096 = vpack.c.b16 %v3222, %v3220
        %v4097 = vpack.c.b16 %v3223, %v3221
        %v4098 = vpack.c.b16 %v3226, %v3224
        %v4099 = vpack.c.b16 %v3227, %v3225
        %v4100 = vpack.c.b16 %v3230, %v3228
        %v4101 = vpack.c.b16 %v3231, %v3229
        %v4102 = vpack.c.b16 %v3234, %v3232
        %v4103 = vpack.c.b16 %v3235, %v3233
        %v4104 = vpack.c.b16 %v3238, %v3236
        %v4105 = vpack.c.b16 %v3239, %v3237
        %v4106 = vpack.c.b16 %v3242, %v3240
        %v4107 = vpack.c.b16 %v3243, %v3241
        %v4108 = vpack.c.b16 %v3246, %v3244
        %v4109 = vpack.c.b16 %v3247, %v3245
        %v4110 = vpack.c.b16 %v3250, %v3248
        %v4111 = vpack.c.b16 %v3251, %v3249
        %v4112 = vpack.c.b16 %v3254, %v3252
        %v4113 = vpack.c.b16 %v3255, %v3253
        %v4114 = vpack.c.b16 %v3258, %v3256
        %v4115 = vpack.c.b16 %v3259, %v3257
        %v4116 = vpack.c.b16 %v3262, %v3260
        %v4117 = vpack.c.b16 %v3263, %v3261
        %v4118 = vpack.c.b16 %v3266, %v3264
        %v4119 = vpack.c.b16 %v3267, %v3265
        %v4120 = vpack.c.b16 %v3270, %v3268
        %v4121 = vpack.c.b16 %v3271, %v3269
        %v4122 = vpack.c.b16 %v3274, %v3272
        %v4123 = vpack.c.b16 %v3275, %v3273
        %v4124 = vpack.c.b16 %v3278, %v3276
        %v4125 = vpack.c.b16 %v3279, %v3277
        %v4126 = vpack.c.b16 %v3282, %v3280
        %v4127 = vpack.c.b16 %v3283, %v3281
        %v4128 = vpack.c.b16 %v3286, %v3284
        %v4129 = vpack.c.b16 %v3287, %v3285
        %v4130 = vpack.c.b16 %v3290, %v3288
        %v4131 = vpack.c.b16 %v3291, %v3289
        %v4132 = vpack.c.b16 %v3294, %v3292
        %v4133 = vpack.c.b16 %v3295, %v3293
        %v4134 = vpack.c.b16 %v3298, %v3296
        %v4135 = vpack.c.b16 %v3299, %v3297
        %v4136 = vpack.c.b16 %v3302, %v3300
        %v4137 = vpack.c.b16 %v3303, %v3301
        %v4138 = vpack.c.b16 %v3306, %v3304
        %v4139 = vpack.c.b16 %v3307, %v3305
        %v4140 = vpack.c.b16 %v3310, %v3308
        %v4141 = vpack.c.b16 %v3311, %v3309
        %v4142 = vpack.c.b16 %v3314, %v3312
        %v4143 = vpack.c.b16 %v3315, %v3313
        %v4144 = vpack.c.b16 %v3318, %v3316
        %v4145 = vpack.c.b16 %v3319, %v3317
        %v4146 = vpack.c.b16 %v3322, %v3320
        %v4147 = vpack.c.b16 %v3323, %v3321
        %v4148 = vpack.c.b16 %v3326, %v3324
        %v4149 = vpack.c.b16 %v3327, %v3325
        %v4150 = vpack.c.b16 %v3330, %v3328
        %v4151 = vpack.c.b16 %v3331, %v3329
        %v4152 = vpack.c.b16 %v3334, %v3332
        %v4153 = vpack.c.b16 %v3335, %v3333
        %v4154 = vpack.c.b16 %v3338, %v3336
        %v4155 = vpack.c.b16 %v3339, %v3337
        %v4156 = vpack.c.b16 %v3342, %v3340
        %v4157 = vpack.c.b16 %v3343, %v3341
        %v4158 = vpack.c.b16 %v3346, %v3344
        %v4159 = vpack.c.b16 %v3347, %v3345
        %v4160 = vpack.c.b16 %v3350, %v3348
        %v4161 = vpack.c.b16 %v3351, %v3349
        %v4162 = vpack.c.b16 %v3354, %v3352
        %v4163 = vpack.c.b16 %v3355, %v3353
        %v4164 = vpack.c.b16 %v3358, %v3356
        %v4165 = vpack.c.b16 %v3359, %v3357
        %v4166 = vpack.c.b16 %v3362, %v3360
        %v4167 = vpack.c.b16 %v3363, %v3361
        %v4168 = vpack.c.b16 %v3366, %v3364
        %v4169 = vpack.c.b16 %v3367, %v3365
        %v4170 = vpack.c.b16 %v3370, %v3368
        %v4171 = vpack.c.b16 %v3371, %v3369
        %v4172 = vpack.c.b16 %v3374, %v3372
        %v4173 = vpack.c.b16 %v3375, %v3373
        %v4174 = vpack.c.b16 %v3378, %v3376
        %v4175 = vpack.c.b16 %v3379, %v3377
        %v4176 = vpack.c.b16 %v3382, %v3380
        %v4177 = vpack.c.b16 %v3383, %v3381
        %v4178 = vpack.c.b16 %v3386, %v3384
        %v4179 = vpack.c.b16 %v3387, %v3385
        %v4180 = vpack.c.b16 %v3390, %v3388
        %v4181 = vpack.c.b16 %v3391, %v3389
        %v4182 = vpack.c.b16 %v3394, %v3392
        %v4183 = vpack.c.b16 %v3395, %v3393
        %v4184 = vpack.c.b16 %v3398, %v3396
        %v4185 = vpack.c.b16 %v3399, %v3397
        %v4186 = vpack.c.b16 %v3402, %v3400
        %v4187 = vpack.c.b16 %v3403, %v3401
        %v4188 = vpack.c.b16 %v3406, %v3404
        %v4189 = vpack.c.b16 %v3407, %v3405
        %v4190 = vpack.c.b16 %v3410, %v3408
        %v4191 = vpack.c.b16 %v3411, %v3409
        %v4192 = vpack.c.b16 %v3414, %v3412
        %v4193 = vpack.c.b16 %v3415, %v3413
        %v4194 = vpack.c.b16 %v3418, %v3416
        %v4195 = vpack.c.b16 %v3419, %v3417
        %v4196 = vpack.c.b16 %v3422, %v3420
        %v4197 = vpack.c.b16 %v3423, %v3421
        %v4198 = vpack.c.b16 %v3426, %v3424
        %v4199 = vpack.c.b16 %v3427, %v3425
        %v4200 = vpack.c.b16 %v3430, %v3428
        %v4201 = vpack.c.b16 %v3431, %v3429
        %v4202 = vpack.c.b16 %v3434, %v3432
        %v4203 = vpack.c.b16 %v3435, %v3433
        %v4204 = vpack.c.b16 %v3438, %v3436
        %v4205 = vpack.c.b16 %v3439, %v3437
        %v4206 = vpack.c.b16 %v3442, %v3440
        %v4207 = vpack.c.b16 %v3443, %v3441
        %v4208 = vpack.c.b16 %v3446, %v3444
        %v4209 = vpack.c.b16 %v3447, %v3445
        %v4210 = vpack.c.b16 %v3450, %v3448
        %v4211 = vpack.c.b16 %v3451, %v3449
        %v4212 = vpack.c.b16 %v3454, %v3452
        %v4213 = vpack.c.b16 %v3455, %v3453
        %v4214 = vpack.c.b16 %v3458, %v3456
        %v4215 = vpack.c.b16 %v3459, %v3457
        %v4216 = vpack.c.b16 %v3462, %v3460
        %v4217 = vpack.c.b16 %v3463, %v3461
        %v4218 = vpack.c.b16 %v3466, %v3464
        %v4219 = vpack.c.b16 %v3467, %v3465
        %v4220 = vpack.c.b16 %v3470, %v3468
        %v4221 = vpack.c.b16 %v3471, %v3469
        %v4222 = vpack.c.b16 %v3474, %v3472
        %v4223 = vpack.c.b16 %v3475, %v3473
        %v4224 = vpack.c.b16 %v3478, %v3476
        %v4225 = vpack.c.b16 %v3479, %v3477
        %v4226 = vpack.c.b16 %v3482, %v3480
        %v4227 = vpack.c.b16 %v3483, %v3481
        %v4228 = vpack.c.b16 %v3486, %v3484
        %v4229 = vpack.c.b16 %v3487, %v3485
        %v4230 = vpack.c.b16 %v3490, %v3488
        %v4231 = vpack.c.b16 %v3491, %v3489
        %v4232 = vpack.c.b16 %v3494, %v3492
        %v4233 = vpack.c.b16 %v3495, %v3493
        %v4234 = vpack.c.b16 %v3498, %v3496
        %v4235 = vpack.c.b16 %v3499, %v3497
        %v4236 = vpack.c.b16 %v3502, %v3500
        %v4237 = vpack.c.b16 %v3503, %v3501
        %v4238 = vpack.c.b16 %v3506, %v3504
        %v4239 = vpack.c.b16 %v3507, %v3505
        %v4240 = vpack.c.b16 %v3510, %v3508
        %v4241 = vpack.c.b16 %v3511, %v3509
        %v4242 = vpack.c.b16 %v3514, %v3512
        %v4243 = vpack.c.b16 %v3515, %v3513
        %v4244 = vpack.c.b16 %v3518, %v3516
        %v4245 = vpack.c.b16 %v3519, %v3517
        %v4246 = vpack.c.b16 %v3522, %v3520
        %v4247 = vpack.c.b16 %v3523, %v3521
        %v4248 = vpack.c.b16 %v3526, %v3524
        %v4249 = vpack.c.b16 %v3527, %v3525
        %v4250 = vpack.c.b16 %v3530, %v3528
        %v4251 = vpack.c.b16 %v3531, %v3529
        %v4252 = vpack.c.b16 %v3534, %v3532
        %v4253 = vpack.c.b16 %v3535, %v3533
        %v4254 = vpack.c.b16 %v3538, %v3536
        %v4255 = vpack.c.b16 %v3539, %v3537
        %v4256 = vpack.c.b16 %v3542, %v3540
        %v4257 = vpack.c.b16 %v3543, %v3541
        %v4258 = vpack.c.b16 %v3546, %v3544
        %v4259 = vpack.c.b16 %v3547, %v3545
        %v4260 = vpack.c.b16 %v3550, %v3548
        %v4261 = vpack.c.b16 %v3551, %v3549
        %v4262 = vpack.c.b16 %v3554, %v3552
        %v4263 = vpack.c.b16 %v3555, %v3553
        %v4264 = vpack.c.b16 %v3558, %v3556
        %v4265 = vpack.c.b16 %v3559, %v3557
        %v4266 = vpack.c.b16 %v3562, %v3560
        %v4267 = vpack.c.b16 %v3563, %v3561
        %v4268 = vpack.c.b16 %v3566, %v3564
        %v4269 = vpack.c.b16 %v3567, %v3565
        %v4270 = vpack.c.b16 %v3570, %v3568
        %v4271 = vpack.c.b16 %v3571, %v3569
        %v4272 = vpack.c.b16 %v3574, %v3572
        %v4273 = vpack.c.b16 %v3575, %v3573
        %v4274 = vpack.c.b16 %v3578, %v3576
        %v4275 = vpack.c.b16 %v3579, %v3577
        %v4276 = vpack.c.b16 %v3582, %v3580
        %v4277 = vpack.c.b16 %v3583, %v3581
        %v4278 = vpack.c.b16 %v3586, %v3584
        %v4279 = vpack.c.b16 %v3587, %v3585
        %v4280 = vpack.c.b16 %v3590, %v3588
        %v4281 = vpack.c.b16 %v3591, %v3589
        %v4282 = vpack.c.b16 %v3594, %v3592
        %v4283 = vpack.c.b16 %v3595, %v3593
        %v4284 = vpack.c.b16 %v3598, %v3596
        %v4285 = vpack.c.b16 %v3599, %v3597
        %v4286 = vpack.c.b16 %v3602, %v3600
        %v4287 = vpack.c.b16 %v3603, %v3601
        %v4288 = vpack.c.b16 %v3606, %v3604
        %v4289 = vpack.c.b16 %v3607, %v3605
        %v4290 = vpack.c.b16 %v3610, %v3608
        %v4291 = vpack.c.b16 %v3611, %v3609
        %v4292 = vpack.c.b16 %v3614, %v3612
        %v4293 = vpack.c.b16 %v3615, %v3613
        %v4294 = vpack.c.b16 %v3618, %v3616
        %v4295 = vpack.c.b16 %v3619, %v3617
        %v4296 = vpack.c.b16 %v3622, %v3620
        %v4297 = vpack.c.b16 %v3623, %v3621
        %v4298 = vpack.c.b16 %v3626, %v3624
        %v4299 = vpack.c.b16 %v3627, %v3625
        %v4300 = vpack.c.b16 %v3630, %v3628
        %v4301 = vpack.c.b16 %v3631, %v3629
        %v4302 = vpack.c.b16 %v3634, %v3632
        %v4303 = vpack.c.b16 %v3635, %v3633
        %v4304 = vpack.c.b16 %v3638, %v3636
        %v4305 = vpack.c.b16 %v3639, %v3637
        %v4306 = vpack.c.b16 %v3642, %v3640
        %v4307 = vpack.c.b16 %v3643, %v3641
        %v4308 = vpack.c.b16 %v3646, %v3644
        %v4309 = vpack.c.b16 %v3647, %v3645
        %v4310 = vpack.c.b16 %v3650, %v3648
        %v4311 = vpack.c.b16 %v3651, %v3649
        %v4312 = vpack.c.b16 %v3654, %v3652
        %v4313 = vpack.c.b16 %v3655, %v3653
        %v4314 = vpack.c.b16 %v3658, %v3656
        %v4315 = vpack.c.b16 %v3659, %v3657
        %v4316 = vpack.c.b16 %v3662, %v3660
        %v4317 = vpack.c.b16 %v3663, %v3661
        %v4318 = vpack.c.b16 %v3666, %v3664
        %v4319 = vpack.c.b16 %v3667, %v3665
        %v4320 = vpack.c.b16 %v3670, %v3668
        %v4321 = vpack.c.b16 %v3671, %v3669
        %v4322 = vpack.c.b16 %v3674, %v3672
        %v4323 = vpack.c.b16 %v3675, %v3673
        %v4324 = vpack.c.b16 %v3678, %v3676
        %v4325 = vpack.c.b16 %v3679, %v3677
        %v4326 = vpack.c.b16 %v3682, %v3680
        %v4327 = vpack.c.b16 %v3683, %v3681
        %v4328 = vpack.c.b16 %v3686, %v3684
        %v4329 = vpack.c.b16 %v3687, %v3685
        %v4330 = vpack.c.b16 %v3690, %v3688
        %v4331 = vpack.c.b16 %v3691, %v3689
        %v4332 = vpack.c.b16 %v3694, %v3692
        %v4333 = vpack.c.b16 %v3695, %v3693
        %v4334 = vpack.c.b16 %v3698, %v3696
        %v4335 = vpack.c.b16 %v3699, %v3697
        %v4336 = vpack.c.b16 %v3702, %v3700
        %v4337 = vpack.c.b16 %v3703, %v3701
        %v4338 = vpack.c.b16 %v3706, %v3704
        %v4339 = vpack.c.b16 %v3707, %v3705
        %v4340 = vpack.c.b16 %v3710, %v3708
        %v4341 = vpack.c.b16 %v3711, %v3709
        %v4342 = vpack.c.b16 %v3714, %v3712
        %v4343 = vpack.c.b16 %v3715, %v3713
        %v4344 = vpack.c.b16 %v3718, %v3716
        %v4345 = vpack.c.b16 %v3719, %v3717
        %v4346 = vpack.c.b16 %v3722, %v3720
        %v4347 = vpack.c.b16 %v3723, %v3721
        %v4348 = vpack.c.b16 %v3726, %v3724
        %v4349 = vpack.c.b16 %v3727, %v3725
        %v4350 = vpack.c.b16 %v3730, %v3728
        %v4351 = vpack.c.b16 %v3731, %v3729
        %v4352 = vpack.c.b16 %v3734, %v3732
        %v4353 = vpack.c.b16 %v3735, %v3733
        %v4354 = vpack.c.b16 %v3738, %v3736
        %v4355 = vpack.c.b16 %v3739, %v3737
        %v4356 = vpack.c.b16 %v3742, %v3740
        %v4357 = vpack.c.b16 %v3743, %v3741
        %v4358 = vpack.c.b16 %v3746, %v3744
        %v4359 = vpack.c.b16 %v3747, %v3745
        %v4360 = vpack.c.b16 %v3750, %v3748
        %v4361 = vpack.c.b16 %v3751, %v3749
        %v4362 = vpack.c.b16 %v3754, %v3752
        %v4363 = vpack.c.b16 %v3755, %v3753
        %v4364 = vpack.c.b16 %v3758, %v3756
        %v4365 = vpack.c.b16 %v3759, %v3757
        %v4366 = vpack.c.b16 %v3762, %v3760
        %v4367 = vpack.c.b16 %v3763, %v3761
        %v4368 = vpack.c.b16 %v3766, %v3764
        %v4369 = vpack.c.b16 %v3767, %v3765
        %v4370 = vpack.c.b16 %v3770, %v3768
        %v4371 = vpack.c.b16 %v3771, %v3769
        %v4372 = vpack.c.b16 %v3774, %v3772
        %v4373 = vpack.c.b16 %v3775, %v3773
        %v4374 = vpack.c.b16 %v3778, %v3776
        %v4375 = vpack.c.b16 %v3779, %v3777
        %v4376 = vpack.c.b16 %v3782, %v3780
        %v4377 = vpack.c.b16 %v3783, %v3781
        %v4378 = vpack.c.b16 %v3786, %v3784
        %v4379 = vpack.c.b16 %v3787, %v3785
        %4972 = vmatprep.subr.bf16.mxu0 %v3803
        %4973 = vmatpush1.bf16.msra.mxu0 %v3802
        %4974 = vmatprep.subr.bf16.mxu0 %v3801
        %4975 = vmatpush1.bf16.msra.mxu0 %v3800
        %4976 = vmatprep.subr.bf16.mxu0 %v3799
        %4977 = vmatpush1.bf16.msra.mxu0 %v3798
        %4978 = vmatprep.subr.bf16.mxu0 %v3797
        %4979 = vmatpush1.bf16.msra.mxu0 %v3796
        %4980 = vmatprep.subr.bf16.mxu0 %v3795
        %4981 = vmatpush1.bf16.msra.mxu0 %v3794
        %4982 = vmatprep.subr.bf16.mxu0 %v3793
        %4983 = vmatpush1.bf16.msra.mxu0 %v3792
        %4984 = vmatprep.subr.bf16.mxu0 %v3791
        %4985 = vmatpush1.bf16.msra.mxu0 %v3790
        %4986 = vmatprep.subr.bf16.mxu0 %v3789
        %4987 = vmatpush1.bf16.msra.mxu0 %v3788
        %4988 = vmatprep.subr.bf16.mxu0 %v3819
        %4989 = vmatpush2.bf16.msra.mxu0 %v3818
        %4990 = vmatprep.subr.bf16.mxu0 %v3817
        %4991 = vmatpush2.bf16.msra.mxu0 %v3816
        %4992 = vmatprep.subr.bf16.mxu0 %v3815
        %4993 = vmatpush2.bf16.msra.mxu0 %v3814
        %4994 = vmatprep.subr.bf16.mxu0 %v3813
        %4995 = vmatpush2.bf16.msra.mxu0 %v3812
        %4996 = vmatprep.subr.bf16.mxu0 %v3811
        %4997 = vmatpush2.bf16.msra.mxu0 %v3810
        %4998 = vmatprep.subr.bf16.mxu0 %v3809
        %4999 = vmatpush2.bf16.msra.mxu0 %v3808
        %5000 = vmatprep.subr.bf16.mxu0 %v3807
        %5001 = vmatpush2.bf16.msra.mxu0 %v3806
        %5002 = vmatprep.subr.bf16.mxu0 %v3805
        %5003 = vmatpush2.bf16.msra.mxu0 %v3804
        %5004 = vmatprep.mubr.bf16.mxu0 %v1717
        %5005 = vmatmul.mubr.bf16.gmra.mxu0 %v1716
        %v5006 = vpop.f32.mrf.mxu0
        %v5007 = vadd.f32 0.0, %v5006
        %v5008 = vpop.f32.mrf.mxu0
        %v5009 = vadd.f32 0.0, %v5008
        %v5010 = vpop.f32.mrf.mxu0
        %v5011 = vadd.f32 0.0, %v5010
        %v5012 = vpop.f32.mrf.mxu0
        %v5013 = vadd.f32 0.0, %v5012
        %5014 = vmatprep.mubr.bf16.mxu0 %v1754
        %5015 = vmatmul.mubr.bf16.gmra.mxu0 %v1753
        %v5016 = vpop.f32.mrf.mxu0
        %v5017 = vadd.f32 0.0, %v5016
        %v5018 = vpop.f32.mrf.mxu0
        %v5019 = vadd.f32 0.0, %v5018
        %v5020 = vpop.f32.mrf.mxu0
        %v5021 = vadd.f32 0.0, %v5020
        %v5022 = vpop.f32.mrf.mxu0
        %v5023 = vadd.f32 0.0, %v5022
        %5024 = vmatprep.mubr.bf16.mxu0 %v1791
        %5025 = vmatmul.mubr.bf16.gmra.mxu0 %v1790
        %v5026 = vpop.f32.mrf.mxu0
        %v5027 = vadd.f32 0.0, %v5026
        %v5028 = vpop.f32.mrf.mxu0
        %v5029 = vadd.f32 0.0, %v5028
        %v5030 = vpop.f32.mrf.mxu0
        %v5031 = vadd.f32 0.0, %v5030
        %v5032 = vpop.f32.mrf.mxu0
        %v5033 = vadd.f32 0.0, %v5032
        %5034 = vmatprep.mubr.bf16.mxu0 %v1828
        %5035 = vmatmul.mubr.bf16.gmra.mxu0 %v1827
        %v5036 = vpop.f32.mrf.mxu0
        %v5037 = vadd.f32 0.0, %v5036
        %v5038 = vpop.f32.mrf.mxu0
        %v5039 = vadd.f32 0.0, %v5038
        %v5040 = vpop.f32.mrf.mxu0
        %v5041 = vadd.f32 0.0, %v5040
        %v5042 = vpop.f32.mrf.mxu0
        %v5043 = vadd.f32 0.0, %v5042
        %5044 = vdwg.mxu0
        %5045 = vmatprep.subr.bf16.mxu0 %v3835
        %5046 = vmatpush1.bf16.msra.mxu0 %v3834
        %5047 = vmatprep.subr.bf16.mxu0 %v3833
        %5048 = vmatpush1.bf16.msra.mxu0 %v3832
        %5049 = vmatprep.subr.bf16.mxu0 %v3831
        %5050 = vmatpush1.bf16.msra.mxu0 %v3830
        %5051 = vmatprep.subr.bf16.mxu0 %v3829
        %5052 = vmatpush1.bf16.msra.mxu0 %v3828
        %5053 = vmatprep.subr.bf16.mxu0 %v3827
        %5054 = vmatpush1.bf16.msra.mxu0 %v3826
        %5055 = vmatprep.subr.bf16.mxu0 %v3825
        %5056 = vmatpush1.bf16.msra.mxu0 %v3824
        %5057 = vmatprep.subr.bf16.mxu0 %v3823
        %5058 = vmatpush1.bf16.msra.mxu0 %v3822
        %5059 = vmatprep.subr.bf16.mxu0 %v3821
        %5060 = vmatpush1.bf16.msra.mxu0 %v3820
        %5061 = vmatprep.subr.bf16.mxu0 %v3851
        %5062 = vmatpush2.bf16.msra.mxu0 %v3850
        %5063 = vmatprep.subr.bf16.mxu0 %v3849
        %5064 = vmatpush2.bf16.msra.mxu0 %v3848
        %5065 = vmatprep.subr.bf16.mxu0 %v3847
        %5066 = vmatpush2.bf16.msra.mxu0 %v3846
        %5067 = vmatprep.subr.bf16.mxu0 %v3845
        %5068 = vmatpush2.bf16.msra.mxu0 %v3844
        %5069 = vmatprep.subr.bf16.mxu0 %v3843
        %5070 = vmatpush2.bf16.msra.mxu0 %v3842
        %5071 = vmatprep.subr.bf16.mxu0 %v3841
        %5072 = vmatpush2.bf16.msra.mxu0 %v3840
        %5073 = vmatprep.subr.bf16.mxu0 %v3839
        %5074 = vmatpush2.bf16.msra.mxu0 %v3838
        %5075 = vmatprep.subr.bf16.mxu0 %v3837
        %5076 = vmatpush2.bf16.msra.mxu0 %v3836
        %5077 = vmatprep.mubr.bf16.mxu0 %v1719
        %5078 = vmatmul.mubr.bf16.gmra.mxu0 %v1718
        %v5079 = vpop.f32.mrf.mxu0
        %v5080 = vadd.f32 %v5007, %v5079
        %v5081 = vpop.f32.mrf.mxu0
        %v5082 = vadd.f32 %v5009, %v5081
        %v5083 = vpop.f32.mrf.mxu0
        %v5084 = vadd.f32 %v5011, %v5083
        %v5085 = vpop.f32.mrf.mxu0
        %v5086 = vadd.f32 %v5013, %v5085
        %5087 = vmatprep.mubr.bf16.mxu0 %v1756
        %5088 = vmatmul.mubr.bf16.gmra.mxu0 %v1755
        %v5089 = vpop.f32.mrf.mxu0
        %v5090 = vadd.f32 %v5017, %v5089
        %v5091 = vpop.f32.mrf.mxu0
        %v5092 = vadd.f32 %v5019, %v5091
        %v5093 = vpop.f32.mrf.mxu0
        %v5094 = vadd.f32 %v5021, %v5093
        %v5095 = vpop.f32.mrf.mxu0
        %v5096 = vadd.f32 %v5023, %v5095
        %5097 = vmatprep.mubr.bf16.mxu0 %v1793
        %5098 = vmatmul.mubr.bf16.gmra.mxu0 %v1792
        %v5099 = vpop.f32.mrf.mxu0
        %v5100 = vadd.f32 %v5027, %v5099
        %v5101 = vpop.f32.mrf.mxu0
        %v5102 = vadd.f32 %v5029, %v5101
        %v5103 = vpop.f32.mrf.mxu0
        %v5104 = vadd.f32 %v5031, %v5103
        %v5105 = vpop.f32.mrf.mxu0
        %v5106 = vadd.f32 %v5033, %v5105
        %5107 = vmatprep.mubr.bf16.mxu0 %v1830
        %5108 = vmatmul.mubr.bf16.gmra.mxu0 %v1829
        %v5109 = vpop.f32.mrf.mxu0
        %v5110 = vadd.f32 %v5037, %v5109
        %v5111 = vpop.f32.mrf.mxu0
        %v5112 = vadd.f32 %v5039, %v5111
        %v5113 = vpop.f32.mrf.mxu0
        %v5114 = vadd.f32 %v5041, %v5113
        %v5115 = vpop.f32.mrf.mxu0
        %v5116 = vadd.f32 %v5043, %v5115
        %5117 = vdwg.mxu0
        %5118 = vmatprep.subr.bf16.mxu0 %v3867
        %5119 = vmatpush1.bf16.msra.mxu0 %v3866
        %5120 = vmatprep.subr.bf16.mxu0 %v3865
        %5121 = vmatpush1.bf16.msra.mxu0 %v3864
        %5122 = vmatprep.subr.bf16.mxu0 %v3863
        %5123 = vmatpush1.bf16.msra.mxu0 %v3862
        %5124 = vmatprep.subr.bf16.mxu0 %v3861
        %5125 = vmatpush1.bf16.msra.mxu0 %v3860
        %5126 = vmatprep.subr.bf16.mxu0 %v3859
        %5127 = vmatpush1.bf16.msra.mxu0 %v3858
        %5128 = vmatprep.subr.bf16.mxu0 %v3857
        %5129 = vmatpush1.bf16.msra.mxu0 %v3856
        %5130 = vmatprep.subr.bf16.mxu0 %v3855
        %5131 = vmatpush1.bf16.msra.mxu0 %v3854
        %5132 = vmatprep.subr.bf16.mxu0 %v3853
        %5133 = vmatpush1.bf16.msra.mxu0 %v3852
        %5134 = vmatprep.subr.bf16.mxu0 %v3883
        %5135 = vmatpush2.bf16.msra.mxu0 %v3882
        %5136 = vmatprep.subr.bf16.mxu0 %v3881
        %5137 = vmatpush2.bf16.msra.mxu0 %v3880
        %5138 = vmatprep.subr.bf16.mxu0 %v3879
        %5139 = vmatpush2.bf16.msra.mxu0 %v3878
        %5140 = vmatprep.subr.bf16.mxu0 %v3877
        %5141 = vmatpush2.bf16.msra.mxu0 %v3876
        %5142 = vmatprep.subr.bf16.mxu0 %v3875
        %5143 = vmatpush2.bf16.msra.mxu0 %v3874
        %5144 = vmatprep.subr.bf16.mxu0 %v3873
        %5145 = vmatpush2.bf16.msra.mxu0 %v3872
        %5146 = vmatprep.subr.bf16.mxu0 %v3871
        %5147 = vmatpush2.bf16.msra.mxu0 %v3870
        %5148 = vmatprep.subr.bf16.mxu0 %v3869
        %5149 = vmatpush2.bf16.msra.mxu0 %v3868
        %5150 = vmatprep.mubr.bf16.mxu0 %v1721
        %5151 = vmatmul.mubr.bf16.gmra.mxu0 %v1720
        %v5152 = vpop.f32.mrf.mxu0
        %v5153 = vadd.f32 %v5080, %v5152
        %v5154 = vpop.f32.mrf.mxu0
        %v5155 = vadd.f32 %v5082, %v5154
        %v5156 = vpop.f32.mrf.mxu0
        %v5157 = vadd.f32 %v5084, %v5156
        %v5158 = vpop.f32.mrf.mxu0
        %v5159 = vadd.f32 %v5086, %v5158
        %5160 = vmatprep.mubr.bf16.mxu0 %v1758
        %5161 = vmatmul.mubr.bf16.gmra.mxu0 %v1757
        %v5162 = vpop.f32.mrf.mxu0
        %v5163 = vadd.f32 %v5090, %v5162
        %v5164 = vpop.f32.mrf.mxu0
        %v5165 = vadd.f32 %v5092, %v5164
        %v5166 = vpop.f32.mrf.mxu0
        %v5167 = vadd.f32 %v5094, %v5166
        %v5168 = vpop.f32.mrf.mxu0
        %v5169 = vadd.f32 %v5096, %v5168
        %5170 = vmatprep.mubr.bf16.mxu0 %v1795
        %5171 = vmatmul.mubr.bf16.gmra.mxu0 %v1794
        %v5172 = vpop.f32.mrf.mxu0
        %v5173 = vadd.f32 %v5100, %v5172
        %v5174 = vpop.f32.mrf.mxu0
        %v5175 = vadd.f32 %v5102, %v5174
        %v5176 = vpop.f32.mrf.mxu0
        %v5177 = vadd.f32 %v5104, %v5176
        %v5178 = vpop.f32.mrf.mxu0
        %v5179 = vadd.f32 %v5106, %v5178
        %5180 = vmatprep.mubr.bf16.mxu0 %v1832
        %5181 = vmatmul.mubr.bf16.gmra.mxu0 %v1831
        %v5182 = vpop.f32.mrf.mxu0
        %v5183 = vadd.f32 %v5110, %v5182
        %v5184 = vpop.f32.mrf.mxu0
        %v5185 = vadd.f32 %v5112, %v5184
        %v5186 = vpop.f32.mrf.mxu0
        %v5187 = vadd.f32 %v5114, %v5186
        %v5188 = vpop.f32.mrf.mxu0
        %v5189 = vadd.f32 %v5116, %v5188
        %5190 = vdwg.mxu0
        %5191 = vmatprep.subr.bf16.mxu0 %v3899
        %5192 = vmatpush1.bf16.msra.mxu0 %v3898
        %5193 = vmatprep.subr.bf16.mxu0 %v3897
        %5194 = vmatpush1.bf16.msra.mxu0 %v3896
        %5195 = vmatprep.subr.bf16.mxu0 %v3895
        %5196 = vmatpush1.bf16.msra.mxu0 %v3894
        %5197 = vmatprep.subr.bf16.mxu0 %v3893
        %5198 = vmatpush1.bf16.msra.mxu0 %v3892
        %5199 = vmatprep.subr.bf16.mxu0 %v3891
        %5200 = vmatpush1.bf16.msra.mxu0 %v3890
        %5201 = vmatprep.subr.bf16.mxu0 %v3889
        %5202 = vmatpush1.bf16.msra.mxu0 %v3888
        %5203 = vmatprep.subr.bf16.mxu0 %v3887
        %5204 = vmatpush1.bf16.msra.mxu0 %v3886
        %5205 = vmatprep.subr.bf16.mxu0 %v3885
        %5206 = vmatpush1.bf16.msra.mxu0 %v3884
        %5207 = vmatprep.subr.bf16.mxu0 %v3915
        %5208 = vmatpush2.bf16.msra.mxu0 %v3914
        %5209 = vmatprep.subr.bf16.mxu0 %v3913
        %5210 = vmatpush2.bf16.msra.mxu0 %v3912
        %5211 = vmatprep.subr.bf16.mxu0 %v3911
        %5212 = vmatpush2.bf16.msra.mxu0 %v3910
        %5213 = vmatprep.subr.bf16.mxu0 %v3909
        %5214 = vmatpush2.bf16.msra.mxu0 %v3908
        %5215 = vmatprep.subr.bf16.mxu0 %v3907
        %5216 = vmatpush2.bf16.msra.mxu0 %v3906
        %5217 = vmatprep.subr.bf16.mxu0 %v3905
        %5218 = vmatpush2.bf16.msra.mxu0 %v3904
        %5219 = vmatprep.subr.bf16.mxu0 %v3903
        %5220 = vmatpush2.bf16.msra.mxu0 %v3902
        %5221 = vmatprep.subr.bf16.mxu0 %v3901
        %5222 = vmatpush2.bf16.msra.mxu0 %v3900
        %5223 = vmatprep.mubr.bf16.mxu0 %v1723
        %5224 = vmatmul.mubr.bf16.gmra.mxu0 %v1722
        %v5225 = vpop.f32.mrf.mxu0
        %v5226 = vadd.f32 %v5153, %v5225
        %v5227 = vpop.f32.mrf.mxu0
        %v5228 = vadd.f32 %v5155, %v5227
        %v5229 = vpop.f32.mrf.mxu0
        %v5230 = vadd.f32 %v5157, %v5229
        %v5231 = vpop.f32.mrf.mxu0
        %v5232 = vadd.f32 %v5159, %v5231
        %5233 = vmatprep.mubr.bf16.mxu0 %v1760
        %5234 = vmatmul.mubr.bf16.gmra.mxu0 %v1759
        %v5235 = vpop.f32.mrf.mxu0
        %v5236 = vadd.f32 %v5163, %v5235
        %v5237 = vpop.f32.mrf.mxu0
        %v5238 = vadd.f32 %v5165, %v5237
        %v5239 = vpop.f32.mrf.mxu0
        %v5240 = vadd.f32 %v5167, %v5239
        %v5241 = vpop.f32.mrf.mxu0
        %v5242 = vadd.f32 %v5169, %v5241
        %5243 = vmatprep.mubr.bf16.mxu0 %v1797
        %5244 = vmatmul.mubr.bf16.gmra.mxu0 %v1796
        %v5245 = vpop.f32.mrf.mxu0
        %v5246 = vadd.f32 %v5173, %v5245
        %v5247 = vpop.f32.mrf.mxu0
        %v5248 = vadd.f32 %v5175, %v5247
        %v5249 = vpop.f32.mrf.mxu0
        %v5250 = vadd.f32 %v5177, %v5249
        %v5251 = vpop.f32.mrf.mxu0
        %v5252 = vadd.f32 %v5179, %v5251
        %5253 = vmatprep.mubr.bf16.mxu0 %v1834
        %5254 = vmatmul.mubr.bf16.gmra.mxu0 %v1833
        %v5255 = vpop.f32.mrf.mxu0
        %v5256 = vadd.f32 %v5183, %v5255
        %v5257 = vpop.f32.mrf.mxu0
        %v5258 = vadd.f32 %v5185, %v5257
        %v5259 = vpop.f32.mrf.mxu0
        %v5260 = vadd.f32 %v5187, %v5259
        %v5261 = vpop.f32.mrf.mxu0
        %v5262 = vadd.f32 %v5189, %v5261
        %5263 = vdwg.mxu0
        %5264 = vmatprep.subr.bf16.mxu0 %v3931
        %5265 = vmatpush1.bf16.msra.mxu0 %v3930
        %5266 = vmatprep.subr.bf16.mxu0 %v3929
        %5267 = vmatpush1.bf16.msra.mxu0 %v3928
        %5268 = vmatprep.subr.bf16.mxu0 %v3927
        %5269 = vmatpush1.bf16.msra.mxu0 %v3926
        %5270 = vmatprep.subr.bf16.mxu0 %v3925
        %5271 = vmatpush1.bf16.msra.mxu0 %v3924
        %5272 = vmatprep.subr.bf16.mxu0 %v3923
        %5273 = vmatpush1.bf16.msra.mxu0 %v3922
        %5274 = vmatprep.subr.bf16.mxu0 %v3921
        %5275 = vmatpush1.bf16.msra.mxu0 %v3920
        %5276 = vmatprep.subr.bf16.mxu0 %v3919
        %5277 = vmatpush1.bf16.msra.mxu0 %v3918
        %5278 = vmatprep.subr.bf16.mxu0 %v3917
        %5279 = vmatpush1.bf16.msra.mxu0 %v3916
        %5280 = vmatprep.subr.bf16.mxu0 %v3947
        %5281 = vmatpush2.bf16.msra.mxu0 %v3946
        %5282 = vmatprep.subr.bf16.mxu0 %v3945
        %5283 = vmatpush2.bf16.msra.mxu0 %v3944
        %5284 = vmatprep.subr.bf16.mxu0 %v3943
        %5285 = vmatpush2.bf16.msra.mxu0 %v3942
        %5286 = vmatprep.subr.bf16.mxu0 %v3941
        %5287 = vmatpush2.bf16.msra.mxu0 %v3940
        %5288 = vmatprep.subr.bf16.mxu0 %v3939
        %5289 = vmatpush2.bf16.msra.mxu0 %v3938
        %5290 = vmatprep.subr.bf16.mxu0 %v3937
        %5291 = vmatpush2.bf16.msra.mxu0 %v3936
        %5292 = vmatprep.subr.bf16.mxu0 %v3935
        %5293 = vmatpush2.bf16.msra.mxu0 %v3934
        %5294 = vmatprep.subr.bf16.mxu0 %v3933
        %5295 = vmatpush2.bf16.msra.mxu0 %v3932
        %5296 = vmatprep.mubr.bf16.mxu0 %v1725
        %5297 = vmatmul.mubr.bf16.gmra.mxu0 %v1724
        %v5298 = vpop.f32.mrf.mxu0
        %v5299 = vadd.f32 %v5226, %v5298
        %v5300 = vpop.f32.mrf.mxu0
        %v5301 = vadd.f32 %v5228, %v5300
        %v5302 = vpop.f32.mrf.mxu0
        %v5303 = vadd.f32 %v5230, %v5302
        %v5304 = vpop.f32.mrf.mxu0
        %v5305 = vadd.f32 %v5232, %v5304
        %5306 = vmatprep.mubr.bf16.mxu0 %v1762
        %5307 = vmatmul.mubr.bf16.gmra.mxu0 %v1761
        %v5308 = vpop.f32.mrf.mxu0
        %v5309 = vadd.f32 %v5236, %v5308
        %v5310 = vpop.f32.mrf.mxu0
        %v5311 = vadd.f32 %v5238, %v5310
        %v5312 = vpop.f32.mrf.mxu0
        %v5313 = vadd.f32 %v5240, %v5312
        %v5314 = vpop.f32.mrf.mxu0
        %v5315 = vadd.f32 %v5242, %v5314
        %5316 = vmatprep.mubr.bf16.mxu0 %v1799
        %5317 = vmatmul.mubr.bf16.gmra.mxu0 %v1798
        %v5318 = vpop.f32.mrf.mxu0
        %v5319 = vadd.f32 %v5246, %v5318
        %v5320 = vpop.f32.mrf.mxu0
        %v5321 = vadd.f32 %v5248, %v5320
        %v5322 = vpop.f32.mrf.mxu0
        %v5323 = vadd.f32 %v5250, %v5322
        %v5324 = vpop.f32.mrf.mxu0
        %v5325 = vadd.f32 %v5252, %v5324
        %5326 = vmatprep.mubr.bf16.mxu0 %v1836
        %5327 = vmatmul.mubr.bf16.gmra.mxu0 %v1835
        %v5328 = vpop.f32.mrf.mxu0
        %v5329 = vadd.f32 %v5256, %v5328
        %v5330 = vpop.f32.mrf.mxu0
        %v5331 = vadd.f32 %v5258, %v5330
        %v5332 = vpop.f32.mrf.mxu0
        %v5333 = vadd.f32 %v5260, %v5332
        %v5334 = vpop.f32.mrf.mxu0
        %v5335 = vadd.f32 %v5262, %v5334
        %5336 = vdwg.mxu0
        %5337 = vmatprep.subr.bf16.mxu0 %v3963
        %5338 = vmatpush1.bf16.msra.mxu0 %v3962
        %5339 = vmatprep.subr.bf16.mxu0 %v3961
        %5340 = vmatpush1.bf16.msra.mxu0 %v3960
        %5341 = vmatprep.subr.bf16.mxu0 %v3959
        %5342 = vmatpush1.bf16.msra.mxu0 %v3958
        %5343 = vmatprep.subr.bf16.mxu0 %v3957
        %5344 = vmatpush1.bf16.msra.mxu0 %v3956
        %5345 = vmatprep.subr.bf16.mxu0 %v3955
        %5346 = vmatpush1.bf16.msra.mxu0 %v3954
        %5347 = vmatprep.subr.bf16.mxu0 %v3953
        %5348 = vmatpush1.bf16.msra.mxu0 %v3952
        %5349 = vmatprep.subr.bf16.mxu0 %v3951
        %5350 = vmatpush1.bf16.msra.mxu0 %v3950
        %5351 = vmatprep.subr.bf16.mxu0 %v3949
        %5352 = vmatpush1.bf16.msra.mxu0 %v3948
        %5353 = vmatprep.subr.bf16.mxu0 %v3979
        %5354 = vmatpush2.bf16.msra.mxu0 %v3978
        %5355 = vmatprep.subr.bf16.mxu0 %v3977
        %5356 = vmatpush2.bf16.msra.mxu0 %v3976
        %5357 = vmatprep.subr.bf16.mxu0 %v3975
        %5358 = vmatpush2.bf16.msra.mxu0 %v3974
        %5359 = vmatprep.subr.bf16.mxu0 %v3973
        %5360 = vmatpush2.bf16.msra.mxu0 %v3972
        %5361 = vmatprep.subr.bf16.mxu0 %v3971
        %5362 = vmatpush2.bf16.msra.mxu0 %v3970
        %5363 = vmatprep.subr.bf16.mxu0 %v3969
        %5364 = vmatpush2.bf16.msra.mxu0 %v3968
        %5365 = vmatprep.subr.bf16.mxu0 %v3967
        %5366 = vmatpush2.bf16.msra.mxu0 %v3966
        %5367 = vmatprep.subr.bf16.mxu0 %v3965
        %5368 = vmatpush2.bf16.msra.mxu0 %v3964
        %5369 = vmatprep.mubr.bf16.mxu0 %v1727
        %5370 = vmatmul.mubr.bf16.gmra.mxu0 %v1726
        %v5371 = vpop.f32.mrf.mxu0
        %v5372 = vadd.f32 %v5299, %v5371
        %v5373 = vpop.f32.mrf.mxu0
        %v5374 = vadd.f32 %v5301, %v5373
        %v5375 = vpop.f32.mrf.mxu0
        %v5376 = vadd.f32 %v5303, %v5375
        %v5377 = vpop.f32.mrf.mxu0
        %v5378 = vadd.f32 %v5305, %v5377
        %5379 = vmatprep.mubr.bf16.mxu0 %v1764
        %5380 = vmatmul.mubr.bf16.gmra.mxu0 %v1763
        %v5381 = vpop.f32.mrf.mxu0
        %v5382 = vadd.f32 %v5309, %v5381
        %v5383 = vpop.f32.mrf.mxu0
        %v5384 = vadd.f32 %v5311, %v5383
        %v5385 = vpop.f32.mrf.mxu0
        %v5386 = vadd.f32 %v5313, %v5385
        %v5387 = vpop.f32.mrf.mxu0
        %v5388 = vadd.f32 %v5315, %v5387
        %5389 = vmatprep.mubr.bf16.mxu0 %v1801
        %5390 = vmatmul.mubr.bf16.gmra.mxu0 %v1800
        %v5391 = vpop.f32.mrf.mxu0
        %v5392 = vadd.f32 %v5319, %v5391
        %v5393 = vpop.f32.mrf.mxu0
        %v5394 = vadd.f32 %v5321, %v5393
        %v5395 = vpop.f32.mrf.mxu0
        %v5396 = vadd.f32 %v5323, %v5395
        %v5397 = vpop.f32.mrf.mxu0
        %v5398 = vadd.f32 %v5325, %v5397
        %5399 = vmatprep.mubr.bf16.mxu0 %v1838
        %5400 = vmatmul.mubr.bf16.gmra.mxu0 %v1837
        %v5401 = vpop.f32.mrf.mxu0
        %v5402 = vadd.f32 %v5329, %v5401
        %v5403 = vpop.f32.mrf.mxu0
        %v5404 = vadd.f32 %v5331, %v5403
        %v5405 = vpop.f32.mrf.mxu0
        %v5406 = vadd.f32 %v5333, %v5405
        %v5407 = vpop.f32.mrf.mxu0
        %v5408 = vadd.f32 %v5335, %v5407
        %5409 = vdwg.mxu0
        %5410 = vmatprep.subr.bf16.mxu0 %v3995
        %5411 = vmatpush1.bf16.msra.mxu0 %v3994
        %5412 = vmatprep.subr.bf16.mxu0 %v3993
        %5413 = vmatpush1.bf16.msra.mxu0 %v3992
        %5414 = vmatprep.subr.bf16.mxu0 %v3991
        %5415 = vmatpush1.bf16.msra.mxu0 %v3990
        %5416 = vmatprep.subr.bf16.mxu0 %v3989
        %5417 = vmatpush1.bf16.msra.mxu0 %v3988
        %5418 = vmatprep.subr.bf16.mxu0 %v3987
        %5419 = vmatpush1.bf16.msra.mxu0 %v3986
        %5420 = vmatprep.subr.bf16.mxu0 %v3985
        %5421 = vmatpush1.bf16.msra.mxu0 %v3984
        %5422 = vmatprep.subr.bf16.mxu0 %v3983
        %5423 = vmatpush1.bf16.msra.mxu0 %v3982
        %5424 = vmatprep.subr.bf16.mxu0 %v3981
        %5425 = vmatpush1.bf16.msra.mxu0 %v3980
        %5426 = vmatprep.subr.bf16.mxu0 %v4011
        %5427 = vmatpush2.bf16.msra.mxu0 %v4010
        %5428 = vmatprep.subr.bf16.mxu0 %v4009
        %5429 = vmatpush2.bf16.msra.mxu0 %v4008
        %5430 = vmatprep.subr.bf16.mxu0 %v4007
        %5431 = vmatpush2.bf16.msra.mxu0 %v4006
        %5432 = vmatprep.subr.bf16.mxu0 %v4005
        %5433 = vmatpush2.bf16.msra.mxu0 %v4004
        %5434 = vmatprep.subr.bf16.mxu0 %v4003
        %5435 = vmatpush2.bf16.msra.mxu0 %v4002
        %5436 = vmatprep.subr.bf16.mxu0 %v4001
        %5437 = vmatpush2.bf16.msra.mxu0 %v4000
        %5438 = vmatprep.subr.bf16.mxu0 %v3999
        %5439 = vmatpush2.bf16.msra.mxu0 %v3998
        %5440 = vmatprep.subr.bf16.mxu0 %v3997
        %5441 = vmatpush2.bf16.msra.mxu0 %v3996
        %5442 = vmatprep.mubr.bf16.mxu0 %v1729
        %5443 = vmatmul.mubr.bf16.gmra.mxu0 %v1728
        %v5444 = vpop.f32.mrf.mxu0
        %v5445 = vadd.f32 %v5372, %v5444
        %v5446 = vpop.f32.mrf.mxu0
        %v5447 = vadd.f32 %v5374, %v5446
        %v5448 = vpop.f32.mrf.mxu0
        %v5449 = vadd.f32 %v5376, %v5448
        %v5450 = vpop.f32.mrf.mxu0
        %v5451 = vadd.f32 %v5378, %v5450
        %5452 = vmatprep.mubr.bf16.mxu0 %v1766
        %5453 = vmatmul.mubr.bf16.gmra.mxu0 %v1765
        %v5454 = vpop.f32.mrf.mxu0
        %v5455 = vadd.f32 %v5382, %v5454
        %v5456 = vpop.f32.mrf.mxu0
        %v5457 = vadd.f32 %v5384, %v5456
        %v5458 = vpop.f32.mrf.mxu0
        %v5459 = vadd.f32 %v5386, %v5458
        %v5460 = vpop.f32.mrf.mxu0
        %v5461 = vadd.f32 %v5388, %v5460
        %5462 = vmatprep.mubr.bf16.mxu0 %v1803
        %5463 = vmatmul.mubr.bf16.gmra.mxu0 %v1802
        %v5464 = vpop.f32.mrf.mxu0
        %v5465 = vadd.f32 %v5392, %v5464
        %v5466 = vpop.f32.mrf.mxu0
        %v5467 = vadd.f32 %v5394, %v5466
        %v5468 = vpop.f32.mrf.mxu0
        %v5469 = vadd.f32 %v5396, %v5468
        %v5470 = vpop.f32.mrf.mxu0
        %v5471 = vadd.f32 %v5398, %v5470
        %5472 = vmatprep.mubr.bf16.mxu0 %v1840
        %5473 = vmatmul.mubr.bf16.gmra.mxu0 %v1839
        %v5474 = vpop.f32.mrf.mxu0
        %v5475 = vadd.f32 %v5402, %v5474
        %v5476 = vpop.f32.mrf.mxu0
        %v5477 = vadd.f32 %v5404, %v5476
        %v5478 = vpop.f32.mrf.mxu0
        %v5479 = vadd.f32 %v5406, %v5478
        %v5480 = vpop.f32.mrf.mxu0
        %v5481 = vadd.f32 %v5408, %v5480
        %5482 = vdwg.mxu0
        %5483 = vmatprep.subr.bf16.mxu0 %v4027
        %5484 = vmatpush1.bf16.msra.mxu0 %v4026
        %5485 = vmatprep.subr.bf16.mxu0 %v4025
        %5486 = vmatpush1.bf16.msra.mxu0 %v4024
        %5487 = vmatprep.subr.bf16.mxu0 %v4023
        %5488 = vmatpush1.bf16.msra.mxu0 %v4022
        %5489 = vmatprep.subr.bf16.mxu0 %v4021
        %5490 = vmatpush1.bf16.msra.mxu0 %v4020
        %5491 = vmatprep.subr.bf16.mxu0 %v4019
        %5492 = vmatpush1.bf16.msra.mxu0 %v4018
        %5493 = vmatprep.subr.bf16.mxu0 %v4017
        %5494 = vmatpush1.bf16.msra.mxu0 %v4016
        %5495 = vmatprep.subr.bf16.mxu0 %v4015
        %5496 = vmatpush1.bf16.msra.mxu0 %v4014
        %5497 = vmatprep.subr.bf16.mxu0 %v4013
        %5498 = vmatpush1.bf16.msra.mxu0 %v4012
        %5499 = vmatprep.subr.bf16.mxu0 %v4043
        %5500 = vmatpush2.bf16.msra.mxu0 %v4042
        %5501 = vmatprep.subr.bf16.mxu0 %v4041
        %5502 = vmatpush2.bf16.msra.mxu0 %v4040
        %5503 = vmatprep.subr.bf16.mxu0 %v4039
        %5504 = vmatpush2.bf16.msra.mxu0 %v4038
        %5505 = vmatprep.subr.bf16.mxu0 %v4037
        %5506 = vmatpush2.bf16.msra.mxu0 %v4036
        %5507 = vmatprep.subr.bf16.mxu0 %v4035
        %5508 = vmatpush2.bf16.msra.mxu0 %v4034
        %5509 = vmatprep.subr.bf16.mxu0 %v4033
        %5510 = vmatpush2.bf16.msra.mxu0 %v4032
        %5511 = vmatprep.subr.bf16.mxu0 %v4031
        %5512 = vmatpush2.bf16.msra.mxu0 %v4030
        %5513 = vmatprep.subr.bf16.mxu0 %v4029
        %5514 = vmatpush2.bf16.msra.mxu0 %v4028
        %5515 = vmatprep.mubr.bf16.mxu0 %v1731
        %5516 = vmatmul.mubr.bf16.gmra.mxu0 %v1730
        %v5517 = vpop.f32.mrf.mxu0
        %v5518 = vadd.f32 %v5445, %v5517
        %v5519 = vpop.f32.mrf.mxu0
        %v5520 = vadd.f32 %v5447, %v5519
        %v5521 = vpop.f32.mrf.mxu0
        %v5522 = vadd.f32 %v5449, %v5521
        %v5523 = vpop.f32.mrf.mxu0
        %v5524 = vadd.f32 %v5451, %v5523
        %5525 = vmatprep.mubr.bf16.mxu0 %v1768
        %5526 = vmatmul.mubr.bf16.gmra.mxu0 %v1767
        %v5527 = vpop.f32.mrf.mxu0
        %v5528 = vadd.f32 %v5455, %v5527
        %v5529 = vpop.f32.mrf.mxu0
        %v5530 = vadd.f32 %v5457, %v5529
        %v5531 = vpop.f32.mrf.mxu0
        %v5532 = vadd.f32 %v5459, %v5531
        %v5533 = vpop.f32.mrf.mxu0
        %v5534 = vadd.f32 %v5461, %v5533
        %5535 = vmatprep.mubr.bf16.mxu0 %v1805
        %5536 = vmatmul.mubr.bf16.gmra.mxu0 %v1804
        %v5537 = vpop.f32.mrf.mxu0
        %v5538 = vadd.f32 %v5465, %v5537
        %v5539 = vpop.f32.mrf.mxu0
        %v5540 = vadd.f32 %v5467, %v5539
        %v5541 = vpop.f32.mrf.mxu0
        %v5542 = vadd.f32 %v5469, %v5541
        %v5543 = vpop.f32.mrf.mxu0
        %v5544 = vadd.f32 %v5471, %v5543
        %5545 = vmatprep.mubr.bf16.mxu0 %v1842
        %5546 = vmatmul.mubr.bf16.gmra.mxu0 %v1841
        %v5547 = vpop.f32.mrf.mxu0
        %v5548 = vadd.f32 %v5475, %v5547
        %v5549 = vpop.f32.mrf.mxu0
        %v5550 = vadd.f32 %v5477, %v5549
        %v5551 = vpop.f32.mrf.mxu0
        %v5552 = vadd.f32 %v5479, %v5551
        %v5553 = vpop.f32.mrf.mxu0
        %v5554 = vadd.f32 %v5481, %v5553
        %5555 = vdwg.mxu0
        %5556 = vmatprep.subr.bf16.mxu0 %v4059
        %5557 = vmatpush1.bf16.msra.mxu0 %v4058
        %5558 = vmatprep.subr.bf16.mxu0 %v4057
        %5559 = vmatpush1.bf16.msra.mxu0 %v4056
        %5560 = vmatprep.subr.bf16.mxu0 %v4055
        %5561 = vmatpush1.bf16.msra.mxu0 %v4054
        %5562 = vmatprep.subr.bf16.mxu0 %v4053
        %5563 = vmatpush1.bf16.msra.mxu0 %v4052
        %5564 = vmatprep.subr.bf16.mxu0 %v4051
        %5565 = vmatpush1.bf16.msra.mxu0 %v4050
        %5566 = vmatprep.subr.bf16.mxu0 %v4049
        %5567 = vmatpush1.bf16.msra.mxu0 %v4048
        %5568 = vmatprep.subr.bf16.mxu0 %v4047
        %5569 = vmatpush1.bf16.msra.mxu0 %v4046
        %5570 = vmatprep.subr.bf16.mxu0 %v4045
        %5571 = vmatpush1.bf16.msra.mxu0 %v4044
        %5572 = vmatprep.subr.bf16.mxu0 %v4075
        %5573 = vmatpush2.bf16.msra.mxu0 %v4074
        %5574 = vmatprep.subr.bf16.mxu0 %v4073
        %5575 = vmatpush2.bf16.msra.mxu0 %v4072
        %5576 = vmatprep.subr.bf16.mxu0 %v4071
        %5577 = vmatpush2.bf16.msra.mxu0 %v4070
        %5578 = vmatprep.subr.bf16.mxu0 %v4069
        %5579 = vmatpush2.bf16.msra.mxu0 %v4068
        %5580 = vmatprep.subr.bf16.mxu0 %v4067
        %5581 = vmatpush2.bf16.msra.mxu0 %v4066
        %5582 = vmatprep.subr.bf16.mxu0 %v4065
        %5583 = vmatpush2.bf16.msra.mxu0 %v4064
        %5584 = vmatprep.subr.bf16.mxu0 %v4063
        %5585 = vmatpush2.bf16.msra.mxu0 %v4062
        %5586 = vmatprep.subr.bf16.mxu0 %v4061
        %5587 = vmatpush2.bf16.msra.mxu0 %v4060
        %5588 = vmatprep.mubr.bf16.mxu0 %v1733
        %5589 = vmatmul.mubr.bf16.gmra.mxu0 %v1732
        %v5590 = vpop.f32.mrf.mxu0
        %v5591 = vadd.f32 %v5518, %v5590
        %v5592 = vpop.f32.mrf.mxu0
        %v5593 = vadd.f32 %v5520, %v5592
        %v5594 = vpop.f32.mrf.mxu0
        %v5595 = vadd.f32 %v5522, %v5594
        %v5596 = vpop.f32.mrf.mxu0
        %v5597 = vadd.f32 %v5524, %v5596
        %5598 = vmatprep.mubr.bf16.mxu0 %v1770
        %5599 = vmatmul.mubr.bf16.gmra.mxu0 %v1769
        %v5600 = vpop.f32.mrf.mxu0
        %v5601 = vadd.f32 %v5528, %v5600
        %v5602 = vpop.f32.mrf.mxu0
        %v5603 = vadd.f32 %v5530, %v5602
        %v5604 = vpop.f32.mrf.mxu0
        %v5605 = vadd.f32 %v5532, %v5604
        %v5606 = vpop.f32.mrf.mxu0
        %v5607 = vadd.f32 %v5534, %v5606
        %5608 = vmatprep.mubr.bf16.mxu0 %v1807
        %5609 = vmatmul.mubr.bf16.gmra.mxu0 %v1806
        %v5610 = vpop.f32.mrf.mxu0
        %v5611 = vadd.f32 %v5538, %v5610
        %v5612 = vpop.f32.mrf.mxu0
        %v5613 = vadd.f32 %v5540, %v5612
        %v5614 = vpop.f32.mrf.mxu0
        %v5615 = vadd.f32 %v5542, %v5614
        %v5616 = vpop.f32.mrf.mxu0
        %v5617 = vadd.f32 %v5544, %v5616
        %5618 = vmatprep.mubr.bf16.mxu0 %v1844
        %5619 = vmatmul.mubr.bf16.gmra.mxu0 %v1843
        %v5620 = vpop.f32.mrf.mxu0
        %v5621 = vadd.f32 %v5548, %v5620
        %v5622 = vpop.f32.mrf.mxu0
        %v5623 = vadd.f32 %v5550, %v5622
        %v5624 = vpop.f32.mrf.mxu0
        %v5625 = vadd.f32 %v5552, %v5624
        %v5626 = vpop.f32.mrf.mxu0
        %v5627 = vadd.f32 %v5554, %v5626
        %5628 = vdwg.mxu0
        %5629 = vmatprep.subr.bf16.mxu0 %v4091
        %5630 = vmatpush1.bf16.msra.mxu0 %v4090
        %5631 = vmatprep.subr.bf16.mxu0 %v4089
        %5632 = vmatpush1.bf16.msra.mxu0 %v4088
        %5633 = vmatprep.subr.bf16.mxu0 %v4087
        %5634 = vmatpush1.bf16.msra.mxu0 %v4086
        %5635 = vmatprep.subr.bf16.mxu0 %v4085
        %5636 = vmatpush1.bf16.msra.mxu0 %v4084
        %5637 = vmatprep.subr.bf16.mxu0 %v4083
        %5638 = vmatpush1.bf16.msra.mxu0 %v4082
        %5639 = vmatprep.subr.bf16.mxu0 %v4081
        %5640 = vmatpush1.bf16.msra.mxu0 %v4080
        %5641 = vmatprep.subr.bf16.mxu0 %v4079
        %5642 = vmatpush1.bf16.msra.mxu0 %v4078
        %5643 = vmatprep.subr.bf16.mxu0 %v4077
        %5644 = vmatpush1.bf16.msra.mxu0 %v4076
        %5645 = vmatprep.subr.bf16.mxu0 %v4107
        %5646 = vmatpush2.bf16.msra.mxu0 %v4106
        %5647 = vmatprep.subr.bf16.mxu0 %v4105
        %5648 = vmatpush2.bf16.msra.mxu0 %v4104
        %5649 = vmatprep.subr.bf16.mxu0 %v4103
        %5650 = vmatpush2.bf16.msra.mxu0 %v4102
        %5651 = vmatprep.subr.bf16.mxu0 %v4101
        %5652 = vmatpush2.bf16.msra.mxu0 %v4100
        %5653 = vmatprep.subr.bf16.mxu0 %v4099
        %5654 = vmatpush2.bf16.msra.mxu0 %v4098
        %5655 = vmatprep.subr.bf16.mxu0 %v4097
        %5656 = vmatpush2.bf16.msra.mxu0 %v4096
        %5657 = vmatprep.subr.bf16.mxu0 %v4095
        %5658 = vmatpush2.bf16.msra.mxu0 %v4094
        %5659 = vmatprep.subr.bf16.mxu0 %v4093
        %5660 = vmatpush2.bf16.msra.mxu0 %v4092
        %5661 = vmatprep.mubr.bf16.mxu0 %v1735
        %5662 = vmatmul.mubr.bf16.gmra.mxu0 %v1734
        %v5663 = vpop.f32.mrf.mxu0
        %v5664 = vadd.f32 %v5591, %v5663
        %v5665 = vpop.f32.mrf.mxu0
        %v5666 = vadd.f32 %v5593, %v5665
        %v5667 = vpop.f32.mrf.mxu0
        %v5668 = vadd.f32 %v5595, %v5667
        %v5669 = vpop.f32.mrf.mxu0
        %v5670 = vadd.f32 %v5597, %v5669
        %5671 = vmatprep.mubr.bf16.mxu0 %v1772
        %5672 = vmatmul.mubr.bf16.gmra.mxu0 %v1771
        %v5673 = vpop.f32.mrf.mxu0
        %v5674 = vadd.f32 %v5601, %v5673
        %v5675 = vpop.f32.mrf.mxu0
        %v5676 = vadd.f32 %v5603, %v5675
        %v5677 = vpop.f32.mrf.mxu0
        %v5678 = vadd.f32 %v5605, %v5677
        %v5679 = vpop.f32.mrf.mxu0
        %v5680 = vadd.f32 %v5607, %v5679
        %5681 = vmatprep.mubr.bf16.mxu0 %v1809
        %5682 = vmatmul.mubr.bf16.gmra.mxu0 %v1808
        %v5683 = vpop.f32.mrf.mxu0
        %v5684 = vadd.f32 %v5611, %v5683
        %v5685 = vpop.f32.mrf.mxu0
        %v5686 = vadd.f32 %v5613, %v5685
        %v5687 = vpop.f32.mrf.mxu0
        %v5688 = vadd.f32 %v5615, %v5687
        %v5689 = vpop.f32.mrf.mxu0
        %v5690 = vadd.f32 %v5617, %v5689
        %5691 = vmatprep.mubr.bf16.mxu0 %v1846
        %5692 = vmatmul.mubr.bf16.gmra.mxu0 %v1845
        %v5693 = vpop.f32.mrf.mxu0
        %v5694 = vadd.f32 %v5621, %v5693
        %v5695 = vpop.f32.mrf.mxu0
        %v5696 = vadd.f32 %v5623, %v5695
        %v5697 = vpop.f32.mrf.mxu0
        %v5698 = vadd.f32 %v5625, %v5697
        %v5699 = vpop.f32.mrf.mxu0
        %v5700 = vadd.f32 %v5627, %v5699
        %5701 = vdwg.mxu0
        %5702 = vmatprep.subr.bf16.mxu0 %v4123
        %5703 = vmatpush1.bf16.msra.mxu0 %v4122
        %5704 = vmatprep.subr.bf16.mxu0 %v4121
        %5705 = vmatpush1.bf16.msra.mxu0 %v4120
        %5706 = vmatprep.subr.bf16.mxu0 %v4119
        %5707 = vmatpush1.bf16.msra.mxu0 %v4118
        %5708 = vmatprep.subr.bf16.mxu0 %v4117
        %5709 = vmatpush1.bf16.msra.mxu0 %v4116
        %5710 = vmatprep.subr.bf16.mxu0 %v4115
        %5711 = vmatpush1.bf16.msra.mxu0 %v4114
        %5712 = vmatprep.subr.bf16.mxu0 %v4113
        %5713 = vmatpush1.bf16.msra.mxu0 %v4112
        %5714 = vmatprep.subr.bf16.mxu0 %v4111
        %5715 = vmatpush1.bf16.msra.mxu0 %v4110
        %5716 = vmatprep.subr.bf16.mxu0 %v4109
        %5717 = vmatpush1.bf16.msra.mxu0 %v4108
        %5718 = vmatprep.subr.bf16.mxu0 %v4139
        %5719 = vmatpush2.bf16.msra.mxu0 %v4138
        %5720 = vmatprep.subr.bf16.mxu0 %v4137
        %5721 = vmatpush2.bf16.msra.mxu0 %v4136
        %5722 = vmatprep.subr.bf16.mxu0 %v4135
        %5723 = vmatpush2.bf16.msra.mxu0 %v4134
        %5724 = vmatprep.subr.bf16.mxu0 %v4133
        %5725 = vmatpush2.bf16.msra.mxu0 %v4132
        %5726 = vmatprep.subr.bf16.mxu0 %v4131
        %5727 = vmatpush2.bf16.msra.mxu0 %v4130
        %5728 = vmatprep.subr.bf16.mxu0 %v4129
        %5729 = vmatpush2.bf16.msra.mxu0 %v4128
        %5730 = vmatprep.subr.bf16.mxu0 %v4127
        %5731 = vmatpush2.bf16.msra.mxu0 %v4126
        %5732 = vmatprep.subr.bf16.mxu0 %v4125
        %5733 = vmatpush2.bf16.msra.mxu0 %v4124
        %5734 = vmatprep.mubr.bf16.mxu0 %v1737
        %5735 = vmatmul.mubr.bf16.gmra.mxu0 %v1736
        %v5736 = vpop.f32.mrf.mxu0
        %v5737 = vadd.f32 %v5664, %v5736
        %v5738 = vpop.f32.mrf.mxu0
        %v5739 = vadd.f32 %v5666, %v5738
        %v5740 = vpop.f32.mrf.mxu0
        %v5741 = vadd.f32 %v5668, %v5740
        %v5742 = vpop.f32.mrf.mxu0
        %v5743 = vadd.f32 %v5670, %v5742
        %5744 = vmatprep.mubr.bf16.mxu0 %v1774
        %5745 = vmatmul.mubr.bf16.gmra.mxu0 %v1773
        %v5746 = vpop.f32.mrf.mxu0
        %v5747 = vadd.f32 %v5674, %v5746
        %v5748 = vpop.f32.mrf.mxu0
        %v5749 = vadd.f32 %v5676, %v5748
        %v5750 = vpop.f32.mrf.mxu0
        %v5751 = vadd.f32 %v5678, %v5750
        %v5752 = vpop.f32.mrf.mxu0
        %v5753 = vadd.f32 %v5680, %v5752
        %5754 = vmatprep.mubr.bf16.mxu0 %v1811
        %5755 = vmatmul.mubr.bf16.gmra.mxu0 %v1810
        %v5756 = vpop.f32.mrf.mxu0
        %v5757 = vadd.f32 %v5684, %v5756
        %v5758 = vpop.f32.mrf.mxu0
        %v5759 = vadd.f32 %v5686, %v5758
        %v5760 = vpop.f32.mrf.mxu0
        %v5761 = vadd.f32 %v5688, %v5760
        %v5762 = vpop.f32.mrf.mxu0
        %v5763 = vadd.f32 %v5690, %v5762
        %5764 = vmatprep.mubr.bf16.mxu0 %v1848
        %5765 = vmatmul.mubr.bf16.gmra.mxu0 %v1847
        %v5766 = vpop.f32.mrf.mxu0
        %v5767 = vadd.f32 %v5694, %v5766
        %v5768 = vpop.f32.mrf.mxu0
        %v5769 = vadd.f32 %v5696, %v5768
        %v5770 = vpop.f32.mrf.mxu0
        %v5771 = vadd.f32 %v5698, %v5770
        %v5772 = vpop.f32.mrf.mxu0
        %v5773 = vadd.f32 %v5700, %v5772
        %5774 = vdwg.mxu0
        %5775 = vmatprep.subr.bf16.mxu0 %v4155
        %5776 = vmatpush1.bf16.msra.mxu0 %v4154
        %5777 = vmatprep.subr.bf16.mxu0 %v4153
        %5778 = vmatpush1.bf16.msra.mxu0 %v4152
        %5779 = vmatprep.subr.bf16.mxu0 %v4151
        %5780 = vmatpush1.bf16.msra.mxu0 %v4150
        %5781 = vmatprep.subr.bf16.mxu0 %v4149
        %5782 = vmatpush1.bf16.msra.mxu0 %v4148
        %5783 = vmatprep.subr.bf16.mxu0 %v4147
        %5784 = vmatpush1.bf16.msra.mxu0 %v4146
        %5785 = vmatprep.subr.bf16.mxu0 %v4145
        %5786 = vmatpush1.bf16.msra.mxu0 %v4144
        %5787 = vmatprep.subr.bf16.mxu0 %v4143
        %5788 = vmatpush1.bf16.msra.mxu0 %v4142
        %5789 = vmatprep.subr.bf16.mxu0 %v4141
        %5790 = vmatpush1.bf16.msra.mxu0 %v4140
        %5791 = vmatprep.subr.bf16.mxu0 %v4171
        %5792 = vmatpush2.bf16.msra.mxu0 %v4170
        %5793 = vmatprep.subr.bf16.mxu0 %v4169
        %5794 = vmatpush2.bf16.msra.mxu0 %v4168
        %5795 = vmatprep.subr.bf16.mxu0 %v4167
        %5796 = vmatpush2.bf16.msra.mxu0 %v4166
        %5797 = vmatprep.subr.bf16.mxu0 %v4165
        %5798 = vmatpush2.bf16.msra.mxu0 %v4164
        %5799 = vmatprep.subr.bf16.mxu0 %v4163
        %5800 = vmatpush2.bf16.msra.mxu0 %v4162
        %5801 = vmatprep.subr.bf16.mxu0 %v4161
        %5802 = vmatpush2.bf16.msra.mxu0 %v4160
        %5803 = vmatprep.subr.bf16.mxu0 %v4159
        %5804 = vmatpush2.bf16.msra.mxu0 %v4158
        %5805 = vmatprep.subr.bf16.mxu0 %v4157
        %5806 = vmatpush2.bf16.msra.mxu0 %v4156
        %5807 = vmatprep.mubr.bf16.mxu0 %v1739
        %5808 = vmatmul.mubr.bf16.gmra.mxu0 %v1738
        %v5809 = vpop.f32.mrf.mxu0
        %v5810 = vadd.f32 %v5737, %v5809
        %v5811 = vpop.f32.mrf.mxu0
        %v5812 = vadd.f32 %v5739, %v5811
        %v5813 = vpop.f32.mrf.mxu0
        %v5814 = vadd.f32 %v5741, %v5813
        %v5815 = vpop.f32.mrf.mxu0
        %v5816 = vadd.f32 %v5743, %v5815
        %5817 = vmatprep.mubr.bf16.mxu0 %v1776
        %5818 = vmatmul.mubr.bf16.gmra.mxu0 %v1775
        %v5819 = vpop.f32.mrf.mxu0
        %v5820 = vadd.f32 %v5747, %v5819
        %v5821 = vpop.f32.mrf.mxu0
        %v5822 = vadd.f32 %v5749, %v5821
        %v5823 = vpop.f32.mrf.mxu0
        %v5824 = vadd.f32 %v5751, %v5823
        %v5825 = vpop.f32.mrf.mxu0
        %v5826 = vadd.f32 %v5753, %v5825
        %5827 = vmatprep.mubr.bf16.mxu0 %v1813
        %5828 = vmatmul.mubr.bf16.gmra.mxu0 %v1812
        %v5829 = vpop.f32.mrf.mxu0
        %v5830 = vadd.f32 %v5757, %v5829
        %v5831 = vpop.f32.mrf.mxu0
        %v5832 = vadd.f32 %v5759, %v5831
        %v5833 = vpop.f32.mrf.mxu0
        %v5834 = vadd.f32 %v5761, %v5833
        %v5835 = vpop.f32.mrf.mxu0
        %v5836 = vadd.f32 %v5763, %v5835
        %5837 = vmatprep.mubr.bf16.mxu0 %v1850
        %5838 = vmatmul.mubr.bf16.gmra.mxu0 %v1849
        %v5839 = vpop.f32.mrf.mxu0
        %v5840 = vadd.f32 %v5767, %v5839
        %v5841 = vpop.f32.mrf.mxu0
        %v5842 = vadd.f32 %v5769, %v5841
        %v5843 = vpop.f32.mrf.mxu0
        %v5844 = vadd.f32 %v5771, %v5843
        %v5845 = vpop.f32.mrf.mxu0
        %v5846 = vadd.f32 %v5773, %v5845
        %5847 = vdwg.mxu0
        %5848 = vmatprep.subr.bf16.mxu0 %v4187
        %5849 = vmatpush1.bf16.msra.mxu0 %v4186
        %5850 = vmatprep.subr.bf16.mxu0 %v4185
        %5851 = vmatpush1.bf16.msra.mxu0 %v4184
        %5852 = vmatprep.subr.bf16.mxu0 %v4183
        %5853 = vmatpush1.bf16.msra.mxu0 %v4182
        %5854 = vmatprep.subr.bf16.mxu0 %v4181
        %5855 = vmatpush1.bf16.msra.mxu0 %v4180
        %5856 = vmatprep.subr.bf16.mxu0 %v4179
        %5857 = vmatpush1.bf16.msra.mxu0 %v4178
        %5858 = vmatprep.subr.bf16.mxu0 %v4177
        %5859 = vmatpush1.bf16.msra.mxu0 %v4176
        %5860 = vmatprep.subr.bf16.mxu0 %v4175
        %5861 = vmatpush1.bf16.msra.mxu0 %v4174
        %5862 = vmatprep.subr.bf16.mxu0 %v4173
        %5863 = vmatpush1.bf16.msra.mxu0 %v4172
        %5864 = vmatprep.subr.bf16.mxu0 %v4203
        %5865 = vmatpush2.bf16.msra.mxu0 %v4202
        %5866 = vmatprep.subr.bf16.mxu0 %v4201
        %5867 = vmatpush2.bf16.msra.mxu0 %v4200
        %5868 = vmatprep.subr.bf16.mxu0 %v4199
        %5869 = vmatpush2.bf16.msra.mxu0 %v4198
        %5870 = vmatprep.subr.bf16.mxu0 %v4197
        %5871 = vmatpush2.bf16.msra.mxu0 %v4196
        %5872 = vmatprep.subr.bf16.mxu0 %v4195
        %5873 = vmatpush2.bf16.msra.mxu0 %v4194
        %5874 = vmatprep.subr.bf16.mxu0 %v4193
        %5875 = vmatpush2.bf16.msra.mxu0 %v4192
        %5876 = vmatprep.subr.bf16.mxu0 %v4191
        %5877 = vmatpush2.bf16.msra.mxu0 %v4190
        %5878 = vmatprep.subr.bf16.mxu0 %v4189
        %5879 = vmatpush2.bf16.msra.mxu0 %v4188
        %5880 = vmatprep.mubr.bf16.mxu0 %v1741
        %5881 = vmatmul.mubr.bf16.gmra.mxu0 %v1740
        %v5882 = vpop.f32.mrf.mxu0
        %v5883 = vadd.f32 %v5810, %v5882
        %v5884 = vpop.f32.mrf.mxu0
        %v5885 = vadd.f32 %v5812, %v5884
        %v5886 = vpop.f32.mrf.mxu0
        %v5887 = vadd.f32 %v5814, %v5886
        %v5888 = vpop.f32.mrf.mxu0
        %v5889 = vadd.f32 %v5816, %v5888
        %5890 = vmatprep.mubr.bf16.mxu0 %v1778
        %5891 = vmatmul.mubr.bf16.gmra.mxu0 %v1777
        %v5892 = vpop.f32.mrf.mxu0
        %v5893 = vadd.f32 %v5820, %v5892
        %v5894 = vpop.f32.mrf.mxu0
        %v5895 = vadd.f32 %v5822, %v5894
        %v5896 = vpop.f32.mrf.mxu0
        %v5897 = vadd.f32 %v5824, %v5896
        %v5898 = vpop.f32.mrf.mxu0
        %v5899 = vadd.f32 %v5826, %v5898
        %5900 = vmatprep.mubr.bf16.mxu0 %v1815
        %5901 = vmatmul.mubr.bf16.gmra.mxu0 %v1814
        %v5902 = vpop.f32.mrf.mxu0
        %v5903 = vadd.f32 %v5830, %v5902
        %v5904 = vpop.f32.mrf.mxu0
        %v5905 = vadd.f32 %v5832, %v5904
        %v5906 = vpop.f32.mrf.mxu0
        %v5907 = vadd.f32 %v5834, %v5906
        %v5908 = vpop.f32.mrf.mxu0
        %v5909 = vadd.f32 %v5836, %v5908
        %5910 = vmatprep.mubr.bf16.mxu0 %v1852
        %5911 = vmatmul.mubr.bf16.gmra.mxu0 %v1851
        %v5912 = vpop.f32.mrf.mxu0
        %v5913 = vadd.f32 %v5840, %v5912
        %v5914 = vpop.f32.mrf.mxu0
        %v5915 = vadd.f32 %v5842, %v5914
        %v5916 = vpop.f32.mrf.mxu0
        %v5917 = vadd.f32 %v5844, %v5916
        %v5918 = vpop.f32.mrf.mxu0
        %v5919 = vadd.f32 %v5846, %v5918
        %5920 = vdwg.mxu0
        %5921 = vmatprep.subr.bf16.mxu0 %v4219
        %5922 = vmatpush1.bf16.msra.mxu0 %v4218
        %5923 = vmatprep.subr.bf16.mxu0 %v4217
        %5924 = vmatpush1.bf16.msra.mxu0 %v4216
        %5925 = vmatprep.subr.bf16.mxu0 %v4215
        %5926 = vmatpush1.bf16.msra.mxu0 %v4214
        %5927 = vmatprep.subr.bf16.mxu0 %v4213
        %5928 = vmatpush1.bf16.msra.mxu0 %v4212
        %5929 = vmatprep.subr.bf16.mxu0 %v4211
        %5930 = vmatpush1.bf16.msra.mxu0 %v4210
        %5931 = vmatprep.subr.bf16.mxu0 %v4209
        %5932 = vmatpush1.bf16.msra.mxu0 %v4208
        %5933 = vmatprep.subr.bf16.mxu0 %v4207
        %5934 = vmatpush1.bf16.msra.mxu0 %v4206
        %5935 = vmatprep.subr.bf16.mxu0 %v4205
        %5936 = vmatpush1.bf16.msra.mxu0 %v4204
        %5937 = vmatprep.subr.bf16.mxu0 %v4235
        %5938 = vmatpush2.bf16.msra.mxu0 %v4234
        %5939 = vmatprep.subr.bf16.mxu0 %v4233
        %5940 = vmatpush2.bf16.msra.mxu0 %v4232
        %5941 = vmatprep.subr.bf16.mxu0 %v4231
        %5942 = vmatpush2.bf16.msra.mxu0 %v4230
        %5943 = vmatprep.subr.bf16.mxu0 %v4229
        %5944 = vmatpush2.bf16.msra.mxu0 %v4228
        %5945 = vmatprep.subr.bf16.mxu0 %v4227
        %5946 = vmatpush2.bf16.msra.mxu0 %v4226
        %5947 = vmatprep.subr.bf16.mxu0 %v4225
        %5948 = vmatpush2.bf16.msra.mxu0 %v4224
        %5949 = vmatprep.subr.bf16.mxu0 %v4223
        %5950 = vmatpush2.bf16.msra.mxu0 %v4222
        %5951 = vmatprep.subr.bf16.mxu0 %v4221
        %5952 = vmatpush2.bf16.msra.mxu0 %v4220
        %5953 = vmatprep.mubr.bf16.mxu0 %v1743
        %5954 = vmatmul.mubr.bf16.gmra.mxu0 %v1742
        %v5955 = vpop.f32.mrf.mxu0
        %v5956 = vadd.f32 %v5883, %v5955
        %v5957 = vpop.f32.mrf.mxu0
        %v5958 = vadd.f32 %v5885, %v5957
        %v5959 = vpop.f32.mrf.mxu0
        %v5960 = vadd.f32 %v5887, %v5959
        %v5961 = vpop.f32.mrf.mxu0
        %v5962 = vadd.f32 %v5889, %v5961
        %5963 = vmatprep.mubr.bf16.mxu0 %v1780
        %5964 = vmatmul.mubr.bf16.gmra.mxu0 %v1779
        %v5965 = vpop.f32.mrf.mxu0
        %v5966 = vadd.f32 %v5893, %v5965
        %v5967 = vpop.f32.mrf.mxu0
        %v5968 = vadd.f32 %v5895, %v5967
        %v5969 = vpop.f32.mrf.mxu0
        %v5970 = vadd.f32 %v5897, %v5969
        %v5971 = vpop.f32.mrf.mxu0
        %v5972 = vadd.f32 %v5899, %v5971
        %5973 = vmatprep.mubr.bf16.mxu0 %v1817
        %5974 = vmatmul.mubr.bf16.gmra.mxu0 %v1816
        %v5975 = vpop.f32.mrf.mxu0
        %v5976 = vadd.f32 %v5903, %v5975
        %v5977 = vpop.f32.mrf.mxu0
        %v5978 = vadd.f32 %v5905, %v5977
        %v5979 = vpop.f32.mrf.mxu0
        %v5980 = vadd.f32 %v5907, %v5979
        %v5981 = vpop.f32.mrf.mxu0
        %v5982 = vadd.f32 %v5909, %v5981
        %5983 = vmatprep.mubr.bf16.mxu0 %v1854
        %5984 = vmatmul.mubr.bf16.gmra.mxu0 %v1853
        %v5985 = vpop.f32.mrf.mxu0
        %v5986 = vadd.f32 %v5913, %v5985
        %v5987 = vpop.f32.mrf.mxu0
        %v5988 = vadd.f32 %v5915, %v5987
        %v5989 = vpop.f32.mrf.mxu0
        %v5990 = vadd.f32 %v5917, %v5989
        %v5991 = vpop.f32.mrf.mxu0
        %v5992 = vadd.f32 %v5919, %v5991
        %5993 = vdwg.mxu0
        %5994 = vmatprep.subr.bf16.mxu0 %v4251
        %5995 = vmatpush1.bf16.msra.mxu0 %v4250
        %5996 = vmatprep.subr.bf16.mxu0 %v4249
        %5997 = vmatpush1.bf16.msra.mxu0 %v4248
        %5998 = vmatprep.subr.bf16.mxu0 %v4247
        %5999 = vmatpush1.bf16.msra.mxu0 %v4246
        %6000 = vmatprep.subr.bf16.mxu0 %v4245
        %6001 = vmatpush1.bf16.msra.mxu0 %v4244
        %6002 = vmatprep.subr.bf16.mxu0 %v4243
        %6003 = vmatpush1.bf16.msra.mxu0 %v4242
        %6004 = vmatprep.subr.bf16.mxu0 %v4241
        %6005 = vmatpush1.bf16.msra.mxu0 %v4240
        %6006 = vmatprep.subr.bf16.mxu0 %v4239
        %6007 = vmatpush1.bf16.msra.mxu0 %v4238
        %6008 = vmatprep.subr.bf16.mxu0 %v4237
        %6009 = vmatpush1.bf16.msra.mxu0 %v4236
        %6010 = vmatprep.subr.bf16.mxu0 %v4267
        %6011 = vmatpush2.bf16.msra.mxu0 %v4266
        %6012 = vmatprep.subr.bf16.mxu0 %v4265
        %6013 = vmatpush2.bf16.msra.mxu0 %v4264
        %6014 = vmatprep.subr.bf16.mxu0 %v4263
        %6015 = vmatpush2.bf16.msra.mxu0 %v4262
        %6016 = vmatprep.subr.bf16.mxu0 %v4261
        %6017 = vmatpush2.bf16.msra.mxu0 %v4260
        %6018 = vmatprep.subr.bf16.mxu0 %v4259
        %6019 = vmatpush2.bf16.msra.mxu0 %v4258
        %6020 = vmatprep.subr.bf16.mxu0 %v4257
        %6021 = vmatpush2.bf16.msra.mxu0 %v4256
        %6022 = vmatprep.subr.bf16.mxu0 %v4255
        %6023 = vmatpush2.bf16.msra.mxu0 %v4254
        %6024 = vmatprep.subr.bf16.mxu0 %v4253
        %6025 = vmatpush2.bf16.msra.mxu0 %v4252
        %6026 = vmatprep.mubr.bf16.mxu0 %v1745
        %6027 = vmatmul.mubr.bf16.gmra.mxu0 %v1744
        %v6028 = vpop.f32.mrf.mxu0
        %v6029 = vadd.f32 %v5956, %v6028
        %v6030 = vpop.f32.mrf.mxu0
        %v6031 = vadd.f32 %v5958, %v6030
        %v6032 = vpop.f32.mrf.mxu0
        %v6033 = vadd.f32 %v5960, %v6032
        %v6034 = vpop.f32.mrf.mxu0
        %v6035 = vadd.f32 %v5962, %v6034
        %6036 = vmatprep.mubr.bf16.mxu0 %v1782
        %6037 = vmatmul.mubr.bf16.gmra.mxu0 %v1781
        %v6038 = vpop.f32.mrf.mxu0
        %v6039 = vadd.f32 %v5966, %v6038
        %v6040 = vpop.f32.mrf.mxu0
        %v6041 = vadd.f32 %v5968, %v6040
        %v6042 = vpop.f32.mrf.mxu0
        %v6043 = vadd.f32 %v5970, %v6042
        %v6044 = vpop.f32.mrf.mxu0
        %v6045 = vadd.f32 %v5972, %v6044
        %6046 = vmatprep.mubr.bf16.mxu0 %v1819
        %6047 = vmatmul.mubr.bf16.gmra.mxu0 %v1818
        %v6048 = vpop.f32.mrf.mxu0
        %v6049 = vadd.f32 %v5976, %v6048
        %v6050 = vpop.f32.mrf.mxu0
        %v6051 = vadd.f32 %v5978, %v6050
        %v6052 = vpop.f32.mrf.mxu0
        %v6053 = vadd.f32 %v5980, %v6052
        %v6054 = vpop.f32.mrf.mxu0
        %v6055 = vadd.f32 %v5982, %v6054
        %6056 = vmatprep.mubr.bf16.mxu0 %v1856
        %6057 = vmatmul.mubr.bf16.gmra.mxu0 %v1855
        %v6058 = vpop.f32.mrf.mxu0
        %v6059 = vadd.f32 %v5986, %v6058
        %v6060 = vpop.f32.mrf.mxu0
        %v6061 = vadd.f32 %v5988, %v6060
        %v6062 = vpop.f32.mrf.mxu0
        %v6063 = vadd.f32 %v5990, %v6062
        %v6064 = vpop.f32.mrf.mxu0
        %v6065 = vadd.f32 %v5992, %v6064
        %6066 = vdwg.mxu0
        %6067 = vmatprep.subr.bf16.mxu0 %v4283
        %6068 = vmatpush1.bf16.msra.mxu0 %v4282
        %6069 = vmatprep.subr.bf16.mxu0 %v4281
        %6070 = vmatpush1.bf16.msra.mxu0 %v4280
        %6071 = vmatprep.subr.bf16.mxu0 %v4279
        %6072 = vmatpush1.bf16.msra.mxu0 %v4278
        %6073 = vmatprep.subr.bf16.mxu0 %v4277
        %6074 = vmatpush1.bf16.msra.mxu0 %v4276
        %6075 = vmatprep.subr.bf16.mxu0 %v4275
        %6076 = vmatpush1.bf16.msra.mxu0 %v4274
        %6077 = vmatprep.subr.bf16.mxu0 %v4273
        %6078 = vmatpush1.bf16.msra.mxu0 %v4272
        %6079 = vmatprep.subr.bf16.mxu0 %v4271
        %6080 = vmatpush1.bf16.msra.mxu0 %v4270
        %6081 = vmatprep.subr.bf16.mxu0 %v4269
        %6082 = vmatpush1.bf16.msra.mxu0 %v4268
        %6083 = vmatprep.subr.bf16.mxu0 %v4299
        %6084 = vmatpush2.bf16.msra.mxu0 %v4298
        %6085 = vmatprep.subr.bf16.mxu0 %v4297
        %6086 = vmatpush2.bf16.msra.mxu0 %v4296
        %6087 = vmatprep.subr.bf16.mxu0 %v4295
        %6088 = vmatpush2.bf16.msra.mxu0 %v4294
        %6089 = vmatprep.subr.bf16.mxu0 %v4293
        %6090 = vmatpush2.bf16.msra.mxu0 %v4292
        %6091 = vmatprep.subr.bf16.mxu0 %v4291
        %6092 = vmatpush2.bf16.msra.mxu0 %v4290
        %6093 = vmatprep.subr.bf16.mxu0 %v4289
        %6094 = vmatpush2.bf16.msra.mxu0 %v4288
        %6095 = vmatprep.subr.bf16.mxu0 %v4287
        %6096 = vmatpush2.bf16.msra.mxu0 %v4286
        %6097 = vmatprep.subr.bf16.mxu0 %v4285
        %6098 = vmatpush2.bf16.msra.mxu0 %v4284
        %6099 = vmatprep.mubr.bf16.mxu0 %v1747
        %6100 = vmatmul.mubr.bf16.gmra.mxu0 %v1746
        %v6101 = vpop.f32.mrf.mxu0
        %v6102 = vadd.f32 %v6029, %v6101
        %v6103 = vpop.f32.mrf.mxu0
        %v6104 = vadd.f32 %v6031, %v6103
        %v6105 = vpop.f32.mrf.mxu0
        %v6106 = vadd.f32 %v6033, %v6105
        %v6107 = vpop.f32.mrf.mxu0
        %v6108 = vadd.f32 %v6035, %v6107
        %6109 = vmatprep.mubr.bf16.mxu0 %v1784
        %6110 = vmatmul.mubr.bf16.gmra.mxu0 %v1783
        %v6111 = vpop.f32.mrf.mxu0
        %v6112 = vadd.f32 %v6039, %v6111
        %v6113 = vpop.f32.mrf.mxu0
        %v6114 = vadd.f32 %v6041, %v6113
        %v6115 = vpop.f32.mrf.mxu0
        %v6116 = vadd.f32 %v6043, %v6115
        %v6117 = vpop.f32.mrf.mxu0
        %v6118 = vadd.f32 %v6045, %v6117
        %6119 = vmatprep.mubr.bf16.mxu0 %v1821
        %6120 = vmatmul.mubr.bf16.gmra.mxu0 %v1820
        %v6121 = vpop.f32.mrf.mxu0
        %v6122 = vadd.f32 %v6049, %v6121
        %v6123 = vpop.f32.mrf.mxu0
        %v6124 = vadd.f32 %v6051, %v6123
        %v6125 = vpop.f32.mrf.mxu0
        %v6126 = vadd.f32 %v6053, %v6125
        %v6127 = vpop.f32.mrf.mxu0
        %v6128 = vadd.f32 %v6055, %v6127
        %6129 = vmatprep.mubr.bf16.mxu0 %v1858
        %6130 = vmatmul.mubr.bf16.gmra.mxu0 %v1857
        %v6131 = vpop.f32.mrf.mxu0
        %v6132 = vadd.f32 %v6059, %v6131
        %v6133 = vpop.f32.mrf.mxu0
        %v6134 = vadd.f32 %v6061, %v6133
        %v6135 = vpop.f32.mrf.mxu0
        %v6136 = vadd.f32 %v6063, %v6135
        %v6137 = vpop.f32.mrf.mxu0
        %v6138 = vadd.f32 %v6065, %v6137
        %6139 = vdwg.mxu0
        %6140 = vmatprep.subr.bf16.mxu0 %v4315
        %6141 = vmatpush1.bf16.msra.mxu0 %v4314
        %6142 = vmatprep.subr.bf16.mxu0 %v4313
        %6143 = vmatpush1.bf16.msra.mxu0 %v4312
        %6144 = vmatprep.subr.bf16.mxu0 %v4311
        %6145 = vmatpush1.bf16.msra.mxu0 %v4310
        %6146 = vmatprep.subr.bf16.mxu0 %v4309
        %6147 = vmatpush1.bf16.msra.mxu0 %v4308
        %6148 = vmatprep.subr.bf16.mxu0 %v4307
        %6149 = vmatpush1.bf16.msra.mxu0 %v4306
        %6150 = vmatprep.subr.bf16.mxu0 %v4305
        %6151 = vmatpush1.bf16.msra.mxu0 %v4304
        %6152 = vmatprep.subr.bf16.mxu0 %v4303
        %6153 = vmatpush1.bf16.msra.mxu0 %v4302
        %6154 = vmatprep.subr.bf16.mxu0 %v4301
        %6155 = vmatpush1.bf16.msra.mxu0 %v4300
        %6156 = vmatprep.subr.bf16.mxu0 %v4331
        %6157 = vmatpush2.bf16.msra.mxu0 %v4330
        %6158 = vmatprep.subr.bf16.mxu0 %v4329
        %6159 = vmatpush2.bf16.msra.mxu0 %v4328
        %6160 = vmatprep.subr.bf16.mxu0 %v4327
        %6161 = vmatpush2.bf16.msra.mxu0 %v4326
        %6162 = vmatprep.subr.bf16.mxu0 %v4325
        %6163 = vmatpush2.bf16.msra.mxu0 %v4324
        %6164 = vmatprep.subr.bf16.mxu0 %v4323
        %6165 = vmatpush2.bf16.msra.mxu0 %v4322
        %6166 = vmatprep.subr.bf16.mxu0 %v4321
        %6167 = vmatpush2.bf16.msra.mxu0 %v4320
        %6168 = vmatprep.subr.bf16.mxu0 %v4319
        %6169 = vmatpush2.bf16.msra.mxu0 %v4318
        %6170 = vmatprep.subr.bf16.mxu0 %v4317
        %6171 = vmatpush2.bf16.msra.mxu0 %v4316
        %6172 = vmatprep.mubr.bf16.mxu0 %v1749
        %6173 = vmatmul.mubr.bf16.gmra.mxu0 %v1748
        %v6174 = vpop.f32.mrf.mxu0
        %v6175 = vadd.f32 %v6102, %v6174
        %v6176 = vpop.f32.mrf.mxu0
        %v6177 = vadd.f32 %v6104, %v6176
        %v6178 = vpop.f32.mrf.mxu0
        %v6179 = vadd.f32 %v6106, %v6178
        %v6180 = vpop.f32.mrf.mxu0
        %v6181 = vadd.f32 %v6108, %v6180
        %6182 = vmatprep.mubr.bf16.mxu0 %v1786
        %6183 = vmatmul.mubr.bf16.gmra.mxu0 %v1785
        %v6184 = vpop.f32.mrf.mxu0
        %v6185 = vadd.f32 %v6112, %v6184
        %v6186 = vpop.f32.mrf.mxu0
        %v6187 = vadd.f32 %v6114, %v6186
        %v6188 = vpop.f32.mrf.mxu0
        %v6189 = vadd.f32 %v6116, %v6188
        %v6190 = vpop.f32.mrf.mxu0
        %v6191 = vadd.f32 %v6118, %v6190
        %6192 = vmatprep.mubr.bf16.mxu0 %v1823
        %6193 = vmatmul.mubr.bf16.gmra.mxu0 %v1822
        %v6194 = vpop.f32.mrf.mxu0
        %v6195 = vadd.f32 %v6122, %v6194
        %v6196 = vpop.f32.mrf.mxu0
        %v6197 = vadd.f32 %v6124, %v6196
        %v6198 = vpop.f32.mrf.mxu0
        %v6199 = vadd.f32 %v6126, %v6198
        %v6200 = vpop.f32.mrf.mxu0
        %v6201 = vadd.f32 %v6128, %v6200
        %6202 = vmatprep.mubr.bf16.mxu0 %v1860
        %6203 = vmatmul.mubr.bf16.gmra.mxu0 %v1859
        %v6204 = vpop.f32.mrf.mxu0
        %v6205 = vadd.f32 %v6132, %v6204
        %v6206 = vpop.f32.mrf.mxu0
        %v6207 = vadd.f32 %v6134, %v6206
        %v6208 = vpop.f32.mrf.mxu0
        %v6209 = vadd.f32 %v6136, %v6208
        %v6210 = vpop.f32.mrf.mxu0
        %v6211 = vadd.f32 %v6138, %v6210
        %6212 = vdwg.mxu0
        %6213 = vmatprep.subr.bf16.mxu0 %v4347
        %6214 = vmatpush1.bf16.msra.mxu0 %v4346
        %6215 = vmatprep.subr.bf16.mxu0 %v4345
        %6216 = vmatpush1.bf16.msra.mxu0 %v4344
        %6217 = vmatprep.subr.bf16.mxu0 %v4343
        %6218 = vmatpush1.bf16.msra.mxu0 %v4342
        %6219 = vmatprep.subr.bf16.mxu0 %v4341
        %6220 = vmatpush1.bf16.msra.mxu0 %v4340
        %6221 = vmatprep.subr.bf16.mxu0 %v4339
        %6222 = vmatpush1.bf16.msra.mxu0 %v4338
        %6223 = vmatprep.subr.bf16.mxu0 %v4337
        %6224 = vmatpush1.bf16.msra.mxu0 %v4336
        %6225 = vmatprep.subr.bf16.mxu0 %v4335
        %6226 = vmatpush1.bf16.msra.mxu0 %v4334
        %6227 = vmatprep.subr.bf16.mxu0 %v4333
        %6228 = vmatpush1.bf16.msra.mxu0 %v4332
        %6229 = vmatprep.subr.bf16.mxu0 %v4363
        %6230 = vmatpush2.bf16.msra.mxu0 %v4362
        %6231 = vmatprep.subr.bf16.mxu0 %v4361
        %6232 = vmatpush2.bf16.msra.mxu0 %v4360
        %6233 = vmatprep.subr.bf16.mxu0 %v4359
        %6234 = vmatpush2.bf16.msra.mxu0 %v4358
        %6235 = vmatprep.subr.bf16.mxu0 %v4357
        %6236 = vmatpush2.bf16.msra.mxu0 %v4356
        %6237 = vmatprep.subr.bf16.mxu0 %v4355
        %6238 = vmatpush2.bf16.msra.mxu0 %v4354
        %6239 = vmatprep.subr.bf16.mxu0 %v4353
        %6240 = vmatpush2.bf16.msra.mxu0 %v4352
        %6241 = vmatprep.subr.bf16.mxu0 %v4351
        %6242 = vmatpush2.bf16.msra.mxu0 %v4350
        %6243 = vmatprep.subr.bf16.mxu0 %v4349
        %6244 = vmatpush2.bf16.msra.mxu0 %v4348
        %6245 = vmatprep.mubr.bf16.mxu0 %v1751
        %6246 = vmatmul.mubr.bf16.gmra.mxu0 %v1750
        %v6247 = vpop.f32.mrf.mxu0
        %v6248 = vadd.f32 %v6175, %v6247
        %v6249 = vpop.f32.mrf.mxu0
        %v6250 = vadd.f32 %v6177, %v6249
        %v6251 = vpop.f32.mrf.mxu0
        %v6252 = vadd.f32 %v6179, %v6251
        %v6253 = vpop.f32.mrf.mxu0
        %v6254 = vadd.f32 %v6181, %v6253
        %6255 = vmatprep.mubr.bf16.mxu0 %v1788
        %6256 = vmatmul.mubr.bf16.gmra.mxu0 %v1787
        %v6257 = vpop.f32.mrf.mxu0
        %v6258 = vadd.f32 %v6185, %v6257
        %v6259 = vpop.f32.mrf.mxu0
        %v6260 = vadd.f32 %v6187, %v6259
        %v6261 = vpop.f32.mrf.mxu0
        %v6262 = vadd.f32 %v6189, %v6261
        %v6263 = vpop.f32.mrf.mxu0
        %v6264 = vadd.f32 %v6191, %v6263
        %6265 = vmatprep.mubr.bf16.mxu0 %v1825
        %6266 = vmatmul.mubr.bf16.gmra.mxu0 %v1824
        %v6267 = vpop.f32.mrf.mxu0
        %v6268 = vadd.f32 %v6195, %v6267
        %v6269 = vpop.f32.mrf.mxu0
        %v6270 = vadd.f32 %v6197, %v6269
        %v6271 = vpop.f32.mrf.mxu0
        %v6272 = vadd.f32 %v6199, %v6271
        %v6273 = vpop.f32.mrf.mxu0
        %v6274 = vadd.f32 %v6201, %v6273
        %6275 = vmatprep.mubr.bf16.mxu0 %v1862
        %6276 = vmatmul.mubr.bf16.gmra.mxu0 %v1861
        %v6277 = vpop.f32.mrf.mxu0
        %v6278 = vadd.f32 %v6205, %v6277
        %v6279 = vpop.f32.mrf.mxu0
        %v6280 = vadd.f32 %v6207, %v6279
        %v6281 = vpop.f32.mrf.mxu0
        %v6282 = vadd.f32 %v6209, %v6281
        %v6283 = vpop.f32.mrf.mxu0
        %v6284 = vadd.f32 %v6211, %v6283
        %6285 = vdwg.mxu0
        %6286 = vmatprep.subr.bf16.mxu0 %v4379
        %6287 = vmatpush1.bf16.msra.mxu0 %v4378
        %6288 = vmatprep.subr.bf16.mxu0 %v4377
        %6289 = vmatpush1.bf16.msra.mxu0 %v4376
        %6290 = vmatprep.subr.bf16.mxu0 %v4375
        %6291 = vmatpush1.bf16.msra.mxu0 %v4374
        %6292 = vmatprep.subr.bf16.mxu0 %v4373
        %6293 = vmatpush1.bf16.msra.mxu0 %v4372
        %6294 = vmatprep.subr.bf16.mxu0 %v4371
        %6295 = vmatpush1.bf16.msra.mxu0 %v4370
        %6296 = vmatprep.subr.bf16.mxu0 %v4369
        %6297 = vmatpush1.bf16.msra.mxu0 %v4368
        %6298 = vmatprep.subr.bf16.mxu0 %v4367
        %6299 = vmatpush1.bf16.msra.mxu0 %v4366
        %6300 = vmatprep.subr.bf16.mxu0 %v4365
        %6301 = vmatpush1.bf16.msra.mxu0 %v4364
        %6302 = vmatprep.subr.bf16.mxu0 0
        %6303 = vmatpush2.bf16.msra.mxu0 0
        %6304 = vmatprep.subr.bf16.mxu0 0
        %6305 = vmatpush2.bf16.msra.mxu0 0
        %6306 = vmatprep.subr.bf16.mxu0 0
        %6307 = vmatpush2.bf16.msra.mxu0 0
        %6308 = vmatprep.subr.bf16.mxu0 0
        %6309 = vmatpush2.bf16.msra.mxu0 0
        %6310 = vmatprep.subr.bf16.mxu0 0
        %6311 = vmatpush2.bf16.msra.mxu0 0
        %6312 = vmatprep.subr.bf16.mxu0 0
        %6313 = vmatpush2.bf16.msra.mxu0 0
        %6314 = vmatprep.subr.bf16.mxu0 0
        %6315 = vmatpush2.bf16.msra.mxu0 0
        %6316 = vmatprep.subr.bf16.mxu0 0
        %6317 = vmatpush2.bf16.msra.mxu0 0
        %6318 = vmatprep.mubr.bf16.mxu0 0
        %6319 = vmatmul.mubr.bf16.gmra.mxu0 %v1752
        %v6320 = vpop.f32.mrf.mxu0
        %v6321 = vadd.f32 %v6248, %v6320
        %v6322 = vpop.f32.mrf.mxu0
        %v6323 = vadd.f32 %v6250, %v6322
        %v6324 = vpop.f32.mrf.mxu0
        %v6325 = vadd.f32 %v6252, %v6324
        %v6326 = vpop.f32.mrf.mxu0
        %v6327 = vadd.f32 %v6254, %v6326
        %6328 = vmatprep.mubr.bf16.mxu0 0
        %6329 = vmatmul.mubr.bf16.gmra.mxu0 %v1789
        %v6330 = vpop.f32.mrf.mxu0
        %v6331 = vadd.f32 %v6258, %v6330
        %v6332 = vpop.f32.mrf.mxu0
        %v6333 = vadd.f32 %v6260, %v6332
        %v6334 = vpop.f32.mrf.mxu0
        %v6335 = vadd.f32 %v6262, %v6334
        %v6336 = vpop.f32.mrf.mxu0
        %v6337 = vadd.f32 %v6264, %v6336
        %6338 = vmatprep.mubr.bf16.mxu0 0
        %6339 = vmatmul.mubr.bf16.gmra.mxu0 %v1826
        %v6340 = vpop.f32.mrf.mxu0
        %v6341 = vadd.f32 %v6268, %v6340
        %v6342 = vpop.f32.mrf.mxu0
        %v6343 = vadd.f32 %v6270, %v6342
        %v6344 = vpop.f32.mrf.mxu0
        %v6345 = vadd.f32 %v6272, %v6344
        %v6346 = vpop.f32.mrf.mxu0
        %v6347 = vadd.f32 %v6274, %v6346
        %6348 = vmatprep.mubr.bf16.mxu0 0
        %6349 = vmatmul.mubr.bf16.gmra.mxu0 %v1863
        %v6350 = vpop.f32.mrf.mxu0
        %v6351 = vadd.f32 %v6278, %v6350
        %v6352 = vpop.f32.mrf.mxu0
        %v6353 = vadd.f32 %v6280, %v6352
        %v6354 = vpop.f32.mrf.mxu0
        %v6355 = vadd.f32 %v6282, %v6354
        %v6356 = vpop.f32.mrf.mxu0
        %v6357 = vadd.f32 %v6284, %v6356
        %6358 = vdwg.mxu0
        %v6359 = vadd.f32 %v508, %v6321
        %v6360 = vadd.f32 %v509, %v6323
        %v6361 = vadd.f32 %v510, %v6325
        %v6362 = vadd.f32 %v511, %v6327
        %v6363 = vadd.f32 %v512, %v6331
        %v6364 = vadd.f32 %v513, %v6333
        %v6365 = vadd.f32 %v514, %v6335
        %v6366 = vadd.f32 %v515, %v6337
        %v6367 = vadd.f32 %v516, %v6341
        %v6368 = vadd.f32 %v517, %v6343
        %v6369 = vadd.f32 %v518, %v6345
        %v6370 = vadd.f32 %v519, %v6347
        %v6371 = vadd.f32 %v520, %v6351
        %v6372 = vadd.f32 %v521, %v6353
        %v6373 = vadd.f32 %v522, %v6355
        %v6374 = vadd.f32 %v523, %v6357
        %6375 = vst [vmem:[#allocation2] sm:$0xff] %v6359
        %6376 = vst [vmem:[#allocation2 + $0x8] sm:$0xff] %v6360
        %6377 = vst [vmem:[#allocation2 + $0x10] sm:$0xff] %v6361
        %6378 = vst [vmem:[#allocation2 + $0x18] sm:$0xff] %v6362
        %6379 = vst [vmem:[#allocation2 + $0x20] sm:$0xff] %v6363
        %6380 = vst [vmem:[#allocation2 + $0x28] sm:$0xff] %v6364
        %6381 = vst [vmem:[#allocation2 + $0x30] sm:$0xff] %v6365
        %6382 = vst [vmem:[#allocation2 + $0x38] sm:$0xff] %v6366
        %6383 = vst [vmem:[#allocation2 + $0x40] sm:$0xff] %v6367
        %6384 = vst [vmem:[#allocation2 + $0x48] sm:$0xff] %v6368
        %6385 = vst [vmem:[#allocation2 + $0x50] sm:$0xff] %v6369
        %6386 = vst [vmem:[#allocation2 + $0x58] sm:$0xff] %v6370
        %6387 = vst [vmem:[#allocation2 + $0x60] sm:$0xff] %v6371
        %6388 = vst [vmem:[#allocation2 + $0x68] sm:$0xff] %v6372
        %6389 = vst [vmem:[#allocation2 + $0x70] sm:$0xff] %v6373
        %6390 = vst [vmem:[#allocation2 + $0x78] sm:$0xff] %v6374
        %p6391 = scmp.eq.s32.totalorder %s13, 1
        // Predicated region
        $region59: #{_lambda_.2} parent=49 // pred_check
          %p6392 = pneg %p6391
        $region60: #{_lambda_.2} parent=49 // pred_check_branch
          %6394 = sbr.rel (%p6392) target = $region62
        $region61: #{_lambda_.2} parent=49 // pred_region
          %v6395 = vld [vmem:[#allocation2] sm:$0xff]
          %v6396 = vld [vmem:[#allocation2 + $0x8] sm:$0xff]
          %v6397 = vld [vmem:[#allocation2 + $0x10] sm:$0xff]
          %v6398 = vld [vmem:[#allocation2 + $0x18] sm:$0xff]
          %v6399 = vld [vmem:[#allocation2 + $0x20] sm:$0xff]
          %v6400 = vld [vmem:[#allocation2 + $0x28] sm:$0xff]
          %v6401 = vld [vmem:[#allocation2 + $0x30] sm:$0xff]
          %v6402 = vld [vmem:[#allocation2 + $0x38] sm:$0xff]
          %v6403 = vld [vmem:[#allocation2 + $0x40] sm:$0xff]
          %v6404 = vld [vmem:[#allocation2 + $0x48] sm:$0xff]
          %v6405 = vld [vmem:[#allocation2 + $0x50] sm:$0xff]
          %v6406 = vld [vmem:[#allocation2 + $0x58] sm:$0xff]
          %v6407 = vld [vmem:[#allocation2 + $0x60] sm:$0xff]
          %v6408 = vld [vmem:[#allocation2 + $0x68] sm:$0xff]
          %v6409 = vld [vmem:[#allocation2 + $0x70] sm:$0xff]
          %v6410 = vld [vmem:[#allocation2 + $0x78] sm:$0xff]
          %vm6411 = vcmp.gt.f32.partialorder %v6395, 0.0
          %vm6412 = vcmp.gt.f32.partialorder %v6396, 0.0
          %vm6413 = vcmp.gt.f32.partialorder %v6397, 0.0
          %vm6414 = vcmp.gt.f32.partialorder %v6398, 0.0
          %vm6415 = vcmp.gt.f32.partialorder %v6399, 0.0
          %vm6416 = vcmp.gt.f32.partialorder %v6400, 0.0
          %vm6417 = vcmp.gt.f32.partialorder %v6401, 0.0
          %vm6418 = vcmp.gt.f32.partialorder %v6402, 0.0
          %vm6419 = vcmp.gt.f32.partialorder %v6403, 0.0
          %vm6420 = vcmp.gt.f32.partialorder %v6404, 0.0
          %vm6421 = vcmp.gt.f32.partialorder %v6405, 0.0
          %vm6422 = vcmp.gt.f32.partialorder %v6406, 0.0
          %vm6423 = vcmp.gt.f32.partialorder %v6407, 0.0
          %vm6424 = vcmp.gt.f32.partialorder %v6408, 0.0
          %vm6425 = vcmp.gt.f32.partialorder %v6409, 0.0
          %vm6426 = vcmp.gt.f32.partialorder %v6410, 0.0
          %v6427 = vmul.f32 %v6395, 0.01
          %v6428 = vmul.f32 %v6396, 0.01
          %v6429 = vmul.f32 %v6397, 0.01
          %v6430 = vmul.f32 %v6398, 0.01
          %v6431 = vmul.f32 %v6399, 0.01
          %v6432 = vmul.f32 %v6400, 0.01
          %v6433 = vmul.f32 %v6401, 0.01
          %v6434 = vmul.f32 %v6402, 0.01
          %v6435 = vmul.f32 %v6403, 0.01
          %v6436 = vmul.f32 %v6404, 0.01
          %v6437 = vmul.f32 %v6405, 0.01
          %v6438 = vmul.f32 %v6406, 0.01
          %v6439 = vmul.f32 %v6407, 0.01
          %v6440 = vmul.f32 %v6408, 0.01
          %v6441 = vmul.f32 %v6409, 0.01
          %v6442 = vmul.f32 %v6410, 0.01
          %v6443 = vsel %vm6411, %v6395, %v6427
          %v6444 = vsel %vm6412, %v6396, %v6428
          %v6445 = vsel %vm6413, %v6397, %v6429
          %v6446 = vsel %vm6414, %v6398, %v6430
          %v6447 = vsel %vm6415, %v6399, %v6431
          %v6448 = vsel %vm6416, %v6400, %v6432
          %v6449 = vsel %vm6417, %v6401, %v6433
          %v6450 = vsel %vm6418, %v6402, %v6434
          %v6451 = vsel %vm6419, %v6403, %v6435
          %v6452 = vsel %vm6420, %v6404, %v6436
          %v6453 = vsel %vm6421, %v6405, %v6437
          %v6454 = vsel %vm6422, %v6406, %v6438
          %v6455 = vsel %vm6423, %v6407, %v6439
          %v6456 = vsel %vm6424, %v6408, %v6440
          %v6457 = vsel %vm6425, %v6409, %v6441
          %v6458 = vsel %vm6426, %v6410, %v6442
          %v6459 = vpack.c.bf16 %v6445, %v6443
          %v6460 = vpack.c.bf16 %v6446, %v6444
          %v6461 = vpack.c.bf16 %v6449, %v6447
          %v6462 = vpack.c.bf16 %v6450, %v6448
          %v6463 = vpack.c.bf16 %v6453, %v6451
          %v6464 = vpack.c.bf16 %v6454, %v6452
          %v6465 = vpack.c.bf16 %v6457, %v6455
          %v6466 = vpack.c.bf16 %v6458, %v6456
          %v6475 = vunpack.c.l.b16 %v6459
          %v6476 = vunpack.c.l.b16 %v6460
          %v6477 = vunpack.c.h.b16 %v6459
          %v6478 = vunpack.c.h.b16 %v6460
          %v6479 = vunpack.c.l.b16 %v6461
          %v6480 = vunpack.c.l.b16 %v6462
          %v6481 = vunpack.c.h.b16 %v6461
          %v6482 = vunpack.c.h.b16 %v6462
          %v6483 = vunpack.c.l.b16 %v6463
          %v6484 = vunpack.c.l.b16 %v6464
          %v6485 = vunpack.c.h.b16 %v6463
          %v6486 = vunpack.c.h.b16 %v6464
          %v6487 = vunpack.c.l.b16 %v6465
          %v6488 = vunpack.c.l.b16 %v6466
          %v6489 = vunpack.c.h.b16 %v6465
          %v6490 = vunpack.c.h.b16 %v6466
          %v6491 = vpack.c.b16 %v6476, %v6475
          %v6492 = vpack.c.b16 %v6478, %v6477
          %v6493 = vpack.c.b16 %v6480, %v6479
          %v6494 = vpack.c.b16 %v6482, %v6481
          %v6495 = vpack.c.b16 %v6484, %v6483
          %v6496 = vpack.c.b16 %v6486, %v6485
          %v6497 = vpack.c.b16 %v6488, %v6487
          %v6498 = vpack.c.b16 %v6490, %v6489
          %6507 = vst [vmem:[%s2] sm:$0xff] %v6491
          %6508 = vst [vmem:[%s2 + $0x8] sm:$0xff] %v6492
          %6509 = vst [vmem:[%s2 + $0x10] sm:$0xff] %v6493
          %6510 = vst [vmem:[%s2 + $0x18] sm:$0xff] %v6494
          %6511 = vst [vmem:[%s2 + $0x20] sm:$0xff] %v6495
          %6512 = vst [vmem:[%s2 + $0x28] sm:$0xff] %v6496
          %6513 = vst [vmem:[%s2 + $0x30] sm:$0xff] %v6497
          %6514 = vst [vmem:[%s2 + $0x38] sm:$0xff] %v6498
        $region62: #{_lambda_.2} parent=49 // pred_fallthru
          _
        // Predicated region
        $region63: #{_lambda_.2} parent=49 // pred_check
          %p6515 = pneg %p78
        $region64: #{_lambda_.2} parent=49 // pred_check_branch
          %6517 = sbr.rel (%p6515) target = $region66
        $region65: #{_lambda_.2} parent=49 // pred_region
          _
        $region66: #{_lambda_.2} parent=49 // pred_fallthru
          _
        // Predicated region
        $region67: #{_lambda_.2} parent=49 // pred_check
          %p6518 = pneg %p78
        $region68: #{_lambda_.2} parent=49 // pred_check_branch
          %6520 = sbr.rel (%p6518) target = $region70
        $region69: #{_lambda_.2} parent=49 // pred_region
          _
        $region70: #{_lambda_.2} parent=49 // pred_fallthru
          _
      $region50: #{_lambda_.2} parent=5 // pred_fallthru
        _
      %p6521 = scmp.le.s32.totalorder 2, %s8
      // Predicated region
      $region71: #{_lambda_.2} parent=5 // pred_check
        %p6522 = pneg %p6521
      $region72: #{_lambda_.2} parent=5 // pred_check_branch
        %6524 = sbr.rel (%p6522) target = $region74
      $region73: #{_lambda_.2} parent=5 // pred_region
        %s6525 = ssub.s32 %s8, 2
      $region74: #{_lambda_.2} parent=5 // pred_fallthru
        _
    $region6: #{_lambda_.2} parent=1 // loop_footer
      %s12 = sadd.s32 1, %s8
    $region7: #{_lambda_.2} parent=1 // loop_footer_branch
      %7 = sbr.rel target = $region3
    $region8: #{_lambda_.2} parent=1 // loop_exit
      _

// kernel: _lambda_.3
$region0: #{_lambda_.3}
  #allocation0 [shape = 'u32[]', space=smem, size = 0x4, offset = 0x4, fixed_abs, tag = 'smem constant byte address 0x4 - core index']
  #allocation1 [shape = 'u32[144,128]{1,0:T(1,128)}', space=vmem, size = 0x12000, scoped, tag = 'internal scratch']
  #allocation2 [shape = 'f32[16,256]{1,0:T(8,128)}', space=vmem, size = 0x4000, scoped, tag = 'scratch operand']
  %s0 = inlined_call_operand.vmem [shape: bf16[16,6912], index: 0, kind: input, shape index: {}]
  %s1 = inlined_call_operand.vmem [shape: bf16[6912,256], index: 1, kind: input, shape index: {}]
  %s2 = inlined_call_operand.vmem [shape: bf16[256,512], index: 2, kind: input, shape index: {}]
  %s3 = inlined_call_operand.vmem [shape: f32[1,512], index: 3, kind: input, shape index: {}]
  %s4 = inlined_call_operand.vmem [shape: bf16[512,512], index: 4, kind: input, shape index: {}]
  %s5 = inlined_call_operand.vmem [shape: f32[1,512], index: 5, kind: input, shape index: {}]
  %s6 = inlined_call_operand.vmem [shape: bf16[512,256], index: 6, kind: input, shape index: {}]
  %s7 = inlined_call_operand.vmem [shape: f32[1,256], index: 7, kind: input, shape index: {}]
  %s8 = inlined_call_operand.vmem [shape: bf16[256,128], index: 8, kind: input, shape index: {}]
  %s9 = inlined_call_operand.vmem [shape: f32[1,128], index: 9, kind: input, shape index: {}]
  %s10 = inlined_call_operand.vmem [shape: f32[16,128], index: 10, kind: output, shape index: {}]
  %s11 = sld [smem:[#allocation0]]
  $region107: #{_lambda_.3} parent=0
    _
  %s13 = ssub.s32 1, %s11
  %s14 = scalar_select 0, %s13, %s11
  $region1: #{_lambda_.3} parent=0
    #allocation3 [shape = 'u8[221184]{0}', space=vmem, size = 0x36000, scoped, tag = 'input window, operand 0']
    loop: start=0, step=1, limit=4
    $region2: #{_lambda_.3} parent=1 // loop_pre_header
      _
    $region3: #{_lambda_.3} parent=1 // loop_header
      %s16 = sphi 0, %s20
      %p17 = scmp.ge.s32.totalorder %s16, 4
      %s26 = sphi 0, %s28
      %s29 = sphi 0, %s26
      %s30 = sphi 0, %s29
      %s46 = sphi 0, %s30
      %s52 = sphi 0, %s54
      %s55 = sphi 0, %s52
      %s56 = sphi 0, %s55
      %s72 = sphi 0, %s56
      %s76 = sphi 0, %s76
      %s78 = sphi 0, %s76
      %s79 = sphi 0, %s78
      %s93 = sphi 0, %s79
      %s97 = sphi 0, %s97
      %s99 = sphi 0, %s97
      %s100 = sphi 0, %s99
      %s114 = sphi 0, %s100
      %s118 = sphi 0, %s118
      %s120 = sphi 0, %s118
      %s121 = sphi 0, %s120
      %s135 = sphi 0, %s121
      %s139 = sphi 0, %s139
      %s141 = sphi 0, %s139
      %s142 = sphi 0, %s141
      %s156 = sphi 0, %s142
      %s160 = sphi 0, %s160
      %s162 = sphi 0, %s160
      %s163 = sphi 0, %s162
      %s177 = sphi 0, %s163
      %s181 = sphi 0, %s181
      %s183 = sphi 0, %s181
      %s184 = sphi 0, %s183
      %s198 = sphi 0, %s184
      %s202 = sphi 0, %s202
      %s204 = sphi 0, %s202
      %s205 = sphi 0, %s204
      %s219 = sphi 0, %s205
      %s223 = sphi 0, %s223
      %s225 = sphi 0, %s223
      %s226 = sphi 0, %s225
      %s240 = sphi 0, %s226
      %s244 = sphi 0, %s244
      %s246 = sphi 0, %s244
      %s247 = sphi 0, %s246
      %s261 = sphi 0, %s247
    $region4: #{_lambda_.3} parent=1 // loop_header_branch
      %19 = sbr.rel (%p17) target = $region8
    $region5: #{_lambda_.3} parent=1 // loop_body
      %s21 = ssub.s32 %s16, 1
      %s22 = ssub.s32 %s16, 2
      %s23 = sadd.s32 %s16, 1
      %s24 = ssub.s32 %s16, %s23
      %p25 = scmp.eq.s32.totalorder %s24, 0
      %s27 = sadd.s32 %s26, 1
      %s28 = scalar_select %p25, %s26, %s27
      %p31 = pneg %p25
      %p32 = scmp.eq.s32.totalorder %s16, 1
      %p33 = por %p31, %p32
      %p34 = scmp.ne.s32.totalorder %s26, %s29
      %p35 = scmp.eq.s32.totalorder %s16, 0
      %p36 = por %p34, %p35
      %p37 = scmp.ne.s32.totalorder %s26, %s29
      %p38 = scmp.eq.s32.totalorder %s21, 1
      %p39 = por %p37, %p38
      %p40 = scmp.ne.s32.totalorder %s29, %s30
      %p41 = scmp.eq.s32.totalorder %s21, 0
      %p42 = por %p40, %p41
      %p43 = scmp.ne.s32.totalorder %s29, %s30
      %p44 = scmp.eq.s32.totalorder %s22, 1
      %p45 = por %p43, %p44
      %p47 = scmp.ne.s32.totalorder %s30, %s46
      %p48 = scmp.eq.s32.totalorder %s22, 0
      %p49 = por %p47, %p48
      %s50 = ssub.s32 %s16, %s23
      %p51 = scmp.eq.s32.totalorder %s50, 0
      %s53 = sadd.s32 %s52, 1
      %s54 = scalar_select %p51, %s52, %s53
      %p57 = pneg %p51
      %p58 = scmp.eq.s32.totalorder %s16, 1
      %p59 = por %p57, %p58
      %p60 = scmp.ne.s32.totalorder %s52, %s55
      %p61 = scmp.eq.s32.totalorder %s16, 0
      %p62 = por %p60, %p61
      %p63 = scmp.ne.s32.totalorder %s52, %s55
      %p64 = scmp.eq.s32.totalorder %s21, 1
      %p65 = por %p63, %p64
      %p66 = scmp.ne.s32.totalorder %s55, %s56
      %p67 = scmp.eq.s32.totalorder %s21, 0
      %p68 = por %p66, %p67
      %p69 = scmp.ne.s32.totalorder %s55, %s56
      %p70 = scmp.eq.s32.totalorder %s22, 1
      %p71 = por %p69, %p70
      %p73 = scmp.ne.s32.totalorder %s56, %s72
      %p74 = scmp.eq.s32.totalorder %s22, 0
      %p75 = por %p73, %p74
      %s77 = sadd.s32 %s76, 1
      %p80 = scmp.eq.s32.totalorder %s16, 1
      %p81 = scmp.ne.s32.totalorder %s76, %s78
      %p82 = scmp.eq.s32.totalorder %s16, 0
      %p83 = por %p81, %p82
      %p84 = scmp.ne.s32.totalorder %s76, %s78
      %p85 = scmp.eq.s32.totalorder %s21, 1
      %p86 = por %p84, %p85
      %p87 = scmp.ne.s32.totalorder %s78, %s79
      %p88 = scmp.eq.s32.totalorder %s21, 0
      %p89 = por %p87, %p88
      %p90 = scmp.ne.s32.totalorder %s78, %s79
      %p91 = scmp.eq.s32.totalorder %s22, 1
      %p92 = por %p90, %p91
      %p94 = scmp.ne.s32.totalorder %s79, %s93
      %p95 = scmp.eq.s32.totalorder %s22, 0
      %p96 = por %p94, %p95
      %s98 = sadd.s32 %s97, 1
      %p101 = scmp.eq.s32.totalorder %s16, 1
      %p102 = scmp.ne.s32.totalorder %s97, %s99
      %p103 = scmp.eq.s32.totalorder %s16, 0
      %p104 = por %p102, %p103
      %p105 = scmp.ne.s32.totalorder %s97, %s99
      %p106 = scmp.eq.s32.totalorder %s21, 1
      %p107 = por %p105, %p106
      %p108 = scmp.ne.s32.totalorder %s99, %s100
      %p109 = scmp.eq.s32.totalorder %s21, 0
      %p110 = por %p108, %p109
      %p111 = scmp.ne.s32.totalorder %s99, %s100
      %p112 = scmp.eq.s32.totalorder %s22, 1
      %p113 = por %p111, %p112
      %p115 = scmp.ne.s32.totalorder %s100, %s114
      %p116 = scmp.eq.s32.totalorder %s22, 0
      %p117 = por %p115, %p116
      %s119 = sadd.s32 %s118, 1
      %p122 = scmp.eq.s32.totalorder %s16, 1
      %p123 = scmp.ne.s32.totalorder %s118, %s120
      %p124 = scmp.eq.s32.totalorder %s16, 0
      %p125 = por %p123, %p124
      %p126 = scmp.ne.s32.totalorder %s118, %s120
      %p127 = scmp.eq.s32.totalorder %s21, 1
      %p128 = por %p126, %p127
      %p129 = scmp.ne.s32.totalorder %s120, %s121
      %p130 = scmp.eq.s32.totalorder %s21, 0
      %p131 = por %p129, %p130
      %p132 = scmp.ne.s32.totalorder %s120, %s121
      %p133 = scmp.eq.s32.totalorder %s22, 1
      %p134 = por %p132, %p133
      %p136 = scmp.ne.s32.totalorder %s121, %s135
      %p137 = scmp.eq.s32.totalorder %s22, 0
      %p138 = por %p136, %p137
      %s140 = sadd.s32 %s139, 1
      %p143 = scmp.eq.s32.totalorder %s16, 1
      %p144 = scmp.ne.s32.totalorder %s139, %s141
      %p145 = scmp.eq.s32.totalorder %s16, 0
      %p146 = por %p144, %p145
      %p147 = scmp.ne.s32.totalorder %s139, %s141
      %p148 = scmp.eq.s32.totalorder %s21, 1
      %p149 = por %p147, %p148
      %p150 = scmp.ne.s32.totalorder %s141, %s142
      %p151 = scmp.eq.s32.totalorder %s21, 0
      %p152 = por %p150, %p151
      %p153 = scmp.ne.s32.totalorder %s141, %s142
      %p154 = scmp.eq.s32.totalorder %s22, 1
      %p155 = por %p153, %p154
      %p157 = scmp.ne.s32.totalorder %s142, %s156
      %p158 = scmp.eq.s32.totalorder %s22, 0
      %p159 = por %p157, %p158
      %s161 = sadd.s32 %s160, 1
      %p164 = scmp.eq.s32.totalorder %s16, 1
      %p165 = scmp.ne.s32.totalorder %s160, %s162
      %p166 = scmp.eq.s32.totalorder %s16, 0
      %p167 = por %p165, %p166
      %p168 = scmp.ne.s32.totalorder %s160, %s162
      %p169 = scmp.eq.s32.totalorder %s21, 1
      %p170 = por %p168, %p169
      %p171 = scmp.ne.s32.totalorder %s162, %s163
      %p172 = scmp.eq.s32.totalorder %s21, 0
      %p173 = por %p171, %p172
      %p174 = scmp.ne.s32.totalorder %s162, %s163
      %p175 = scmp.eq.s32.totalorder %s22, 1
      %p176 = por %p174, %p175
      %p178 = scmp.ne.s32.totalorder %s163, %s177
      %p179 = scmp.eq.s32.totalorder %s22, 0
      %p180 = por %p178, %p179
      %s182 = sadd.s32 %s181, 1
      %p185 = scmp.eq.s32.totalorder %s16, 1
      %p186 = scmp.ne.s32.totalorder %s181, %s183
      %p187 = scmp.eq.s32.totalorder %s16, 0
      %p188 = por %p186, %p187
      %p189 = scmp.ne.s32.totalorder %s181, %s183
      %p190 = scmp.eq.s32.totalorder %s21, 1
      %p191 = por %p189, %p190
      %p192 = scmp.ne.s32.totalorder %s183, %s184
      %p193 = scmp.eq.s32.totalorder %s21, 0
      %p194 = por %p192, %p193
      %p195 = scmp.ne.s32.totalorder %s183, %s184
      %p196 = scmp.eq.s32.totalorder %s22, 1
      %p197 = por %p195, %p196
      %p199 = scmp.ne.s32.totalorder %s184, %s198
      %p200 = scmp.eq.s32.totalorder %s22, 0
      %p201 = por %p199, %p200
      %s203 = sadd.s32 %s202, 1
      %p206 = scmp.eq.s32.totalorder %s16, 1
      %p207 = scmp.ne.s32.totalorder %s202, %s204
      %p208 = scmp.eq.s32.totalorder %s16, 0
      %p209 = por %p207, %p208
      %p210 = scmp.ne.s32.totalorder %s202, %s204
      %p211 = scmp.eq.s32.totalorder %s21, 1
      %p212 = por %p210, %p211
      %p213 = scmp.ne.s32.totalorder %s204, %s205
      %p214 = scmp.eq.s32.totalorder %s21, 0
      %p215 = por %p213, %p214
      %p216 = scmp.ne.s32.totalorder %s204, %s205
      %p217 = scmp.eq.s32.totalorder %s22, 1
      %p218 = por %p216, %p217
      %p220 = scmp.ne.s32.totalorder %s205, %s219
      %p221 = scmp.eq.s32.totalorder %s22, 0
      %p222 = por %p220, %p221
      %s224 = sadd.s32 %s223, 1
      %p227 = scmp.eq.s32.totalorder %s16, 1
      %p228 = scmp.ne.s32.totalorder %s223, %s225
      %p229 = scmp.eq.s32.totalorder %s16, 0
      %p230 = por %p228, %p229
      %p231 = scmp.ne.s32.totalorder %s223, %s225
      %p232 = scmp.eq.s32.totalorder %s21, 1
      %p233 = por %p231, %p232
      %p234 = scmp.ne.s32.totalorder %s225, %s226
      %p235 = scmp.eq.s32.totalorder %s21, 0
      %p236 = por %p234, %p235
      %p237 = scmp.ne.s32.totalorder %s225, %s226
      %p238 = scmp.eq.s32.totalorder %s22, 1
      %p239 = por %p237, %p238
      %p241 = scmp.ne.s32.totalorder %s226, %s240
      %p242 = scmp.eq.s32.totalorder %s22, 0
      %p243 = por %p241, %p242
      %s245 = sadd.s32 %s244, 1
      %p248 = scmp.eq.s32.totalorder %s16, 1
      %p249 = scmp.ne.s32.totalorder %s244, %s246
      %p250 = scmp.eq.s32.totalorder %s16, 0
      %p251 = por %p249, %p250
      %p252 = scmp.ne.s32.totalorder %s244, %s246
      %p253 = scmp.eq.s32.totalorder %s21, 1
      %p254 = por %p252, %p253
      %p255 = scmp.ne.s32.totalorder %s246, %s247
      %p256 = scmp.eq.s32.totalorder %s21, 0
      %p257 = por %p255, %p256
      %p258 = scmp.ne.s32.totalorder %s246, %s247
      %p259 = scmp.eq.s32.totalorder %s22, 1
      %p260 = por %p258, %p259
      %p262 = scmp.ne.s32.totalorder %s247, %s261
      %p263 = scmp.eq.s32.totalorder %s22, 0
      %p264 = por %p262, %p263
      %p265 = scmp.le.s32.totalorder 1, %s16
      %p266 = scmp.lt.s32.totalorder %s16, 3
      %p267 = pnand %p265, %p266
      %p268 = pneg %p267
      // Predicated region
      $region9: #{_lambda_.3} parent=5 // pred_check
        _
      $region10: #{_lambda_.3} parent=5 // pred_check_branch
        %270 = sbr.rel (%p267) target = $region12
      $region11: #{_lambda_.3} parent=5 // pred_region
        %s271 = ssub.s32 %s16, 1
        // Predicated region
        $region13: #{_lambda_.3} parent=11 // pred_check
          %p272 = pneg %p89
        $region14: #{_lambda_.3} parent=11 // pred_check_branch
          %274 = sbr.rel (%p272) target = $region16
        $region15: #{_lambda_.3} parent=11 // pred_region
          _
        $region16: #{_lambda_.3} parent=11 // pred_fallthru
          _
        // Predicated region
        $region17: #{_lambda_.3} parent=11 // pred_check
          %p275 = pneg %p110
        $region18: #{_lambda_.3} parent=11 // pred_check_branch
          %277 = sbr.rel (%p275) target = $region20
        $region19: #{_lambda_.3} parent=11 // pred_region
          _
        $region20: #{_lambda_.3} parent=11 // pred_fallthru
          _
        // Predicated region
        $region21: #{_lambda_.3} parent=11 // pred_check
          %p278 = pneg %p131
        $region22: #{_lambda_.3} parent=11 // pred_check_branch
          %280 = sbr.rel (%p278) target = $region24
        $region23: #{_lambda_.3} parent=11 // pred_region
          _
        $region24: #{_lambda_.3} parent=11 // pred_fallthru
          _
        // Predicated region
        $region25: #{_lambda_.3} parent=11 // pred_check
          %p281 = pneg %p152
        $region26: #{_lambda_.3} parent=11 // pred_check_branch
          %283 = sbr.rel (%p281) target = $region28
        $region27: #{_lambda_.3} parent=11 // pred_region
          _
        $region28: #{_lambda_.3} parent=11 // pred_fallthru
          _
        // Predicated region
        $region29: #{_lambda_.3} parent=11 // pred_check
          %p284 = pneg %p173
        $region30: #{_lambda_.3} parent=11 // pred_check_branch
          %286 = sbr.rel (%p284) target = $region32
        $region31: #{_lambda_.3} parent=11 // pred_region
          _
        $region32: #{_lambda_.3} parent=11 // pred_fallthru
          _
        // Predicated region
        $region33: #{_lambda_.3} parent=11 // pred_check
          %p287 = pneg %p194
        $region34: #{_lambda_.3} parent=11 // pred_check_branch
          %289 = sbr.rel (%p287) target = $region36
        $region35: #{_lambda_.3} parent=11 // pred_region
          _
        $region36: #{_lambda_.3} parent=11 // pred_fallthru
          _
        // Predicated region
        $region37: #{_lambda_.3} parent=11 // pred_check
          %p290 = pneg %p215
        $region38: #{_lambda_.3} parent=11 // pred_check_branch
          %292 = sbr.rel (%p290) target = $region40
        $region39: #{_lambda_.3} parent=11 // pred_region
          _
        $region40: #{_lambda_.3} parent=11 // pred_fallthru
          _
        // Predicated region
        $region41: #{_lambda_.3} parent=11 // pred_check
          %p293 = pneg %p236
        $region42: #{_lambda_.3} parent=11 // pred_check_branch
          %295 = sbr.rel (%p293) target = $region44
        $region43: #{_lambda_.3} parent=11 // pred_region
          _
        $region44: #{_lambda_.3} parent=11 // pred_fallthru
          _
      $region12: #{_lambda_.3} parent=5 // pred_fallthru
        _
      %p296 = scmp.lt.s32.totalorder %s16, 2
      // Predicated region
      $region45: #{_lambda_.3} parent=5 // pred_check
        %p297 = pneg %p296
      $region46: #{_lambda_.3} parent=5 // pred_check_branch
        %299 = sbr.rel (%p297) target = $region48
      $region47: #{_lambda_.3} parent=5 // pred_region
        // Predicated region
        $region49: #{_lambda_.3} parent=47 // pred_check
          %p300 = pneg %p36
        $region50: #{_lambda_.3} parent=47 // pred_check_branch
          %302 = sbr.rel (%p300) target = $region52
        $region51: #{_lambda_.3} parent=47 // pred_region
          %s303 = sand.u32 %s26, 1
          %s304 = sand.u32 %s26, 1
          %s305 = smul.addr %s304, 216
          %s306 = scalar_lea.vmem [#allocation3], %s305
          %s307 = smul.u32 27, %s16
          %s308 = smul.addr %s307, 4
          %s309 = scalar_lea.vmem %s0, %s308
          // Predicated region
          $region53: #{_lambda_.3} parent=51 // pred_check
            _
          $region54: #{_lambda_.3} parent=51 // pred_check_branch
            %311 = sbr.rel (0) target = $region56
          $region55: #{_lambda_.3} parent=51 // pred_region
            // Predicated region
            $region57: #{_lambda_.3} parent=55 // pred_check
              _
            $region58: #{_lambda_.3} parent=55 // pred_check_branch
              %313 = sbr.rel (0) target = $region60
            $region59: #{_lambda_.3} parent=55 // pred_region
              %s314 = scalar_lea.vmem %s309, 104
              %s315 = scalar_lea.vmem %s306, 104 [#allocation3]
              loop: start=0, step=1, limit=1
              $region61: #{_lambda_.3} parent=59 // loop_pre_header
                _
              $region62: #{_lambda_.3} parent=59 // loop_header
                %s317 = sphi 0, %s321
                %p318 = scmp.ge.s32.totalorder %s317, 1
                %s322 = sphi %s309, %s309
                %s323 = sphi %s306, %s306
              $region63: #{_lambda_.3} parent=59 // loop_header_branch
                %320 = sbr.rel (%p318) target = $region67
              $region64: #{_lambda_.3} parent=59 // loop_body
                %v324 = vld [vmem:[%s322] sm:$0xff]
                %325 = vst [vmem:[%s323] sm:$0xff] %v324
                %v326 = vld [vmem:[%s322 + $0x8] sm:$0xff]
                %327 = vst [vmem:[%s323 + $0x8] sm:$0xff] %v326
                %v328 = vld [vmem:[%s322 + $0x10] sm:$0xff]
                %329 = vst [vmem:[%s323 + $0x10] sm:$0xff] %v328
                %v330 = vld [vmem:[%s322 + $0x18] sm:$0xff]
                %331 = vst [vmem:[%s323 + $0x18] sm:$0xff] %v330
                %v332 = vld [vmem:[%s322 + $0x20] sm:$0xff]
                %333 = vst [vmem:[%s323 + $0x20] sm:$0xff] %v332
                %v334 = vld [vmem:[%s322 + $0x28] sm:$0xff]
                %335 = vst [vmem:[%s323 + $0x28] sm:$0xff] %v334
                %v336 = vld [vmem:[%s322 + $0x30] sm:$0xff]
                %337 = vst [vmem:[%s323 + $0x30] sm:$0xff] %v336
                %v338 = vld [vmem:[%s322 + $0x38] sm:$0xff]
                %339 = vst [vmem:[%s323 + $0x38] sm:$0xff] %v338
                %v340 = vld [vmem:[%s322 + $0x40] sm:$0xff]
                %341 = vst [vmem:[%s323 + $0x40] sm:$0xff] %v340
                %v342 = vld [vmem:[%s322 + $0x48] sm:$0xff]
                %343 = vst [vmem:[%s323 + $0x48] sm:$0xff] %v342
                %v344 = vld [vmem:[%s322 + $0x50] sm:$0xff]
                %345 = vst [vmem:[%s323 + $0x50] sm:$0xff] %v344
                %v346 = vld [vmem:[%s322 + $0x58] sm:$0xff]
                %347 = vst [vmem:[%s323 + $0x58] sm:$0xff] %v346
                %v348 = vld [vmem:[%s322 + $0x60] sm:$0xff]
                %349 = vst [vmem:[%s323 + $0x60] sm:$0xff] %v348
                %v350 = vld [vmem:[%s322 + $0xd8] sm:$0xff]
                %351 = vst [vmem:[%s323 + $0x6c] sm:$0xff] %v350
                %v352 = vld [vmem:[%s322 + $0xe0] sm:$0xff]
                %353 = vst [vmem:[%s323 + $0x74] sm:$0xff] %v352
                %v354 = vld [vmem:[%s322 + $0xe8] sm:$0xff]
                %355 = vst [vmem:[%s323 + $0x7c] sm:$0xff] %v354
                %v356 = vld [vmem:[%s322 + $0xf0] sm:$0xff]
                %357 = vst [vmem:[%s323 + $0x84] sm:$0xff] %v356
                %v358 = vld [vmem:[%s322 + $0xf8] sm:$0xff]
                %359 = vst [vmem:[%s323 + $0x8c] sm:$0xff] %v358
                %v360 = vld [vmem:[%s322 + $0x100] sm:$0xff]
                %361 = vst [vmem:[%s323 + $0x94] sm:$0xff] %v360
                %v362 = vld [vmem:[%s322 + $0x108] sm:$0xff]
                %363 = vst [vmem:[%s323 + $0x9c] sm:$0xff] %v362
                %v364 = vld [vmem:[%s322 + $0x110] sm:$0xff]
                %365 = vst [vmem:[%s323 + $0xa4] sm:$0xff] %v364
                %v366 = vld [vmem:[%s322 + $0x118] sm:$0xff]
                %367 = vst [vmem:[%s323 + $0xac] sm:$0xff] %v366
                %v368 = vld [vmem:[%s322 + $0x120] sm:$0xff]
                %369 = vst [vmem:[%s323 + $0xb4] sm:$0xff] %v368
                %v370 = vld [vmem:[%s322 + $0x128] sm:$0xff]
                %371 = vst [vmem:[%s323 + $0xbc] sm:$0xff] %v370
                %v372 = vld [vmem:[%s322 + $0x130] sm:$0xff]
                %373 = vst [vmem:[%s323 + $0xc4] sm:$0xff] %v372
                %v374 = vld [vmem:[%s322 + $0x138] sm:$0xff]
                %375 = vst [vmem:[%s323 + $0xcc] sm:$0xff] %v374
              $region65: #{_lambda_.3} parent=59 // loop_footer
                %s321 = sadd.s32 1, %s317
              $region66: #{_lambda_.3} parent=59 // loop_footer_branch
                %316 = sbr.rel target = $region62
              $region67: #{_lambda_.3} parent=59 // loop_exit
                _
              %s377 = ssub.s32 16, 1
              loop: start=0, step=1, limit=1
              $region68: #{_lambda_.3} parent=59 // loop_pre_header
                _
              $region69: #{_lambda_.3} parent=59 // loop_header
                %s379 = sphi 0, %s383
                %p380 = scmp.ge.s32.totalorder %s379, 1
                %s384 = sphi %s314, %s314
                %s385 = sphi %s315, %s315
              $region70: #{_lambda_.3} parent=59 // loop_header_branch
                %382 = sbr.rel (%p380) target = $region74
              $region71: #{_lambda_.3} parent=59 // loop_body
                %v386 = vld [vmem:[%s384] sm:%s377]
                %387 = vst [vmem:[%s385] sm:%s377] %v386
                %v388 = vld [vmem:[%s384 + $0xd8] sm:%s377]
                %389 = vst [vmem:[%s385 + $0x6c] sm:%s377] %v388
              $region72: #{_lambda_.3} parent=59 // loop_footer
                %s383 = sadd.s32 1, %s379
              $region73: #{_lambda_.3} parent=59 // loop_footer_branch
                %378 = sbr.rel target = $region69
              $region74: #{_lambda_.3} parent=59 // loop_exit
                _
            $region60: #{_lambda_.3} parent=55 // pred_fallthru
              _
          $region56: #{_lambda_.3} parent=51 // pred_fallthru
            _
          %390 = vnop
        $region52: #{_lambda_.3} parent=47 // pred_fallthru
          _
        // Predicated region
        $region75: #{_lambda_.3} parent=47 // pred_check
          %p391 = pneg %p62
        $region76: #{_lambda_.3} parent=47 // pred_check_branch
          %393 = sbr.rel (%p391) target = $region78
        $region77: #{_lambda_.3} parent=47 // pred_region
          %s394 = smul.u32 432, %s16
          %p395 = scmp.lt.s32.totalorder %s394, 863
          %s396 = scalar_select %p395, %s394, 863
          %s397 = smul.addr %s396, 2
          %s398 = smul.addr %s397, 4
          %s399 = scalar_lea.vmem %s1, %s398
          %s400 = smul.u32 432, %s16
        $region78: #{_lambda_.3} parent=47 // pred_fallthru
          _
      $region48: #{_lambda_.3} parent=5 // pred_fallthru
        _
      %p401 = scmp.le.s32.totalorder 1, %s16
      %p402 = scmp.lt.s32.totalorder %s16, 3
      %p403 = pnand %p401, %p402
      %p404 = pneg %p403
      // Predicated region
      $region79: #{_lambda_.3} parent=5 // pred_check
        _
      $region80: #{_lambda_.3} parent=5 // pred_check_branch
        %406 = sbr.rel (%p403) target = $region82
      $region81: #{_lambda_.3} parent=5 // pred_region
        %s407 = ssub.s32 %s16, 1
        %s408 = sand.u32 %s29, 1
        %s409 = sand.u32 %s29, 1
        %s410 = smul.addr %s409, 216
        %s411 = scalar_lea.vmem [#allocation3], %s410
        // Predicated region
        $region83: #{_lambda_.3} parent=81 // pred_check
          %p412 = pneg %p42
        $region84: #{_lambda_.3} parent=81 // pred_check_branch
          %414 = sbr.rel (%p412) target = $region86
        $region85: #{_lambda_.3} parent=81 // pred_region
          _
        $region86: #{_lambda_.3} parent=81 // pred_fallthru
          _
        %s415 = sand.u32 %s29, 1
        %s416 = sand.u32 %s29, 1
        %s417 = smul.addr %s416, 216
        %s418 = scalar_lea.vmem [#allocation3], %s417
        %p419 = pneg %p42
        %p420 = pneg %p39
        %s421 = smul.u32 432, %s21
        %p422 = scmp.lt.s32.totalorder %s421, 863
        %s423 = scalar_select %p422, %s421, 863
        %s424 = smul.addr %s423, 2
        %s425 = smul.addr %s424, 4
        %s426 = scalar_lea.vmem %s1, %s425
        %p427 = pneg %p68
        %p428 = pneg %p65
        %p429 = pneg %p89
        %p430 = pneg %p86
        %p431 = pneg %p110
        %p432 = pneg %p107
        %p433 = pneg %p131
        %p434 = pneg %p128
        %p435 = pneg %p152
        %p436 = pneg %p149
        %p437 = pneg %p173
        %p438 = pneg %p170
        %p439 = pneg %p194
        %p440 = pneg %p191
        %p441 = pneg %p215
        %p442 = pneg %p212
        %p443 = pneg %p236
        %p444 = pneg %p233
        %p445 = pneg %p257
        %p446 = pneg %p254
        %s447 = smul.u32 27, %s21
        %s448 = smul.u32 432, %s21
        %p449 = scmp.lt.s32.totalorder %s448, 863
        %s450 = scalar_select %p449, %s448, 863
        %s451 = smul.addr %s450, 2
        %s452 = smul.addr %s451, 4
        %s453 = scalar_lea.vmem %s1, %s452
        %s454 = smul.u32 432, %s21
        %p456 = scmp.eq.s32.totalorder %s21, 0
        // Predicated region
        $region87: #{_lambda_.3} parent=81 // pred_check
          %p457 = pneg %p456
        $region88: #{_lambda_.3} parent=81 // pred_check_branch
          %459 = sbr.rel (%p457) target = $region90
        $region89: #{_lambda_.3} parent=81 // pred_region
          %460 = vst [vmem:[#allocation2] sm:$0xff] 0.0
          %461 = vst [vmem:[#allocation2 + $0x8] sm:$0xff] 0.0
          %462 = vst [vmem:[#allocation2 + $0x10] sm:$0xff] 0.0
          %463 = vst [vmem:[#allocation2 + $0x18] sm:$0xff] 0.0
        $region90: #{_lambda_.3} parent=81 // pred_fallthru
          _
        %v464 = vld [vmem:[#allocation2] sm:$0xff]
        %v465 = vld [vmem:[#allocation2 + $0x8] sm:$0xff]
        %v466 = vld [vmem:[#allocation2 + $0x10] sm:$0xff]
        %v467 = vld [vmem:[#allocation2 + $0x18] sm:$0xff]
        %v468 = vld [vmem:[%s411] sm:$0xff]
        %v469 = vld [vmem:[%s411 + $0x8] sm:$0xff]
        %v470 = vld [vmem:[%s411 + $0x10] sm:$0xff]
        %v471 = vld [vmem:[%s411 + $0x18] sm:$0xff]
        %v472 = vld [vmem:[%s411 + $0x20] sm:$0xff]
        %v473 = vld [vmem:[%s411 + $0x28] sm:$0xff]
        %v474 = vld [vmem:[%s411 + $0x30] sm:$0xff]
        %v475 = vld [vmem:[%s411 + $0x38] sm:$0xff]
        %v476 = vld [vmem:[%s411 + $0x40] sm:$0xff]
        %v477 = vld [vmem:[%s411 + $0x48] sm:$0xff]
        %v478 = vld [vmem:[%s411 + $0x50] sm:$0xff]
        %v479 = vld [vmem:[%s411 + $0x58] sm:$0xff]
        %v480 = vld [vmem:[%s411 + $0x60] sm:$0xff]
        %v481 = vld [vmem:[%s411 + $0x68] sm:$0xf]
        %v482 = vld [vmem:[%s411 + $0x6c] sm:$0xff]
        %v483 = vld [vmem:[%s411 + $0x74] sm:$0xff]
        %v484 = vld [vmem:[%s411 + $0x7c] sm:$0xff]
        %v485 = vld [vmem:[%s411 + $0x84] sm:$0xff]
        %v486 = vld [vmem:[%s411 + $0x8c] sm:$0xff]
        %v487 = vld [vmem:[%s411 + $0x94] sm:$0xff]
        %v488 = vld [vmem:[%s411 + $0x9c] sm:$0xff]
        %v489 = vld [vmem:[%s411 + $0xa4] sm:$0xff]
        %v490 = vld [vmem:[%s411 + $0xac] sm:$0xff]
        %v491 = vld [vmem:[%s411 + $0xb4] sm:$0xff]
        %v492 = vld [vmem:[%s411 + $0xbc] sm:$0xff]
        %v493 = vld [vmem:[%s411 + $0xc4] sm:$0xff]
        %v494 = vld [vmem:[%s411 + $0xcc] sm:$0xff]
        %v495 = vld [vmem:[%s411 + $0xd4] sm:$0xf]
        %v496 = vld [vmem:[%s453] sm:$0xff]
        %v497 = vld [vmem:[%s453 + $0x8] sm:$0xff]
        %v498 = vld [vmem:[%s453 + $0x10] sm:$0xff]
        %v499 = vld [vmem:[%s453 + $0x18] sm:$0xff]
        %v500 = vld [vmem:[%s453 + $0x20] sm:$0xff]
        %v501 = vld [vmem:[%s453 + $0x28] sm:$0xff]
        %v502 = vld [vmem:[%s453 + $0x30] sm:$0xff]
        %v503 = vld [vmem:[%s453 + $0x38] sm:$0xff]
        %v504 = vld [vmem:[%s453 + $0x40] sm:$0xff]
        %v505 = vld [vmem:[%s453 + $0x48] sm:$0xff]
        %v506 = vld [vmem:[%s453 + $0x50] sm:$0xff]
        %v507 = vld [vmem:[%s453 + $0x58] sm:$0xff]
        %v508 = vld [vmem:[%s453 + $0x60] sm:$0xff]
        %v509 = vld [vmem:[%s453 + $0x68] sm:$0xff]
        %v510 = vld [vmem:[%s453 + $0x70] sm:$0xff]
        %v511 = vld [vmem:[%s453 + $0x78] sm:$0xff]
        %v512 = vld [vmem:[%s453 + $0x80] sm:$0xff]
        %v513 = vld [vmem:[%s453 + $0x88] sm:$0xff]
        %v514 = vld [vmem:[%s453 + $0x90] sm:$0xff]
        %v515 = vld [vmem:[%s453 + $0x98] sm:$0xff]
        %v516 = vld [vmem:[%s453 + $0xa0] sm:$0xff]
        %v517 = vld [vmem:[%s453 + $0xa8] sm:$0xff]
        %v518 = vld [vmem:[%s453 + $0xb0] sm:$0xff]
        %v519 = vld [vmem:[%s453 + $0xb8] sm:$0xff]
        %v520 = vld [vmem:[%s453 + $0xc0] sm:$0xff]
        %v521 = vld [vmem:[%s453 + $0xc8] sm:$0xff]
        %v522 = vld [vmem:[%s453 + $0xd0] sm:$0xff]
        %v523 = vld [vmem:[%s453 + $0xd8] sm:$0xff]
        %v524 = vld [vmem:[%s453 + $0xe0] sm:$0xff]
        %v525 = vld [vmem:[%s453 + $0xe8] sm:$0xff]
        %v526 = vld [vmem:[%s453 + $0xf0] sm:$0xff]
        %v527 = vld [vmem:[%s453 + $0xf8] sm:$0xff]
        %v528 = vld [vmem:[%s453 + $0x100] sm:$0xff]
        %v529 = vld [vmem:[%s453 + $0x108] sm:$0xff]
        %v530 = vld [vmem:[%s453 + $0x110] sm:$0xff]
        %v531 = vld [vmem:[%s453 + $0x118] sm:$0xff]
        %v532 = vld [vmem:[%s453 + $0x120] sm:$0xff]
        %v533 = vld [vmem:[%s453 + $0x128] sm:$0xff]
        %v534 = vld [vmem:[%s453 + $0x130] sm:$0xff]
        %v535 = vld [vmem:[%s453 + $0x138] sm:$0xff]
        %v536 = vld [vmem:[%s453 + $0x140] sm:$0xff]
        %v537 = vld [vmem:[%s453 + $0x148] sm:$0xff]
        %v538 = vld [vmem:[%s453 + $0x150] sm:$0xff]
        %v539 = vld [vmem:[%s453 + $0x158] sm:$0xff]
        %v540 = vld [vmem:[%s453 + $0x160] sm:$0xff]
        %v541 = vld [vmem:[%s453 + $0x168] sm:$0xff]
        %v542 = vld [vmem:[%s453 + $0x170] sm:$0xff]
        %v543 = vld [vmem:[%s453 + $0x178] sm:$0xff]
        %v544 = vld [vmem:[%s453 + $0x180] sm:$0xff]
        %v545 = vld [vmem:[%s453 + $0x188] sm:$0xff]
        %v546 = vld [vmem:[%s453 + $0x190] sm:$0xff]
        %v547 = vld [vmem:[%s453 + $0x198] sm:$0xff]
        %v548 = vld [vmem:[%s453 + $0x1a0] sm:$0xff]
        %v549 = vld [vmem:[%s453 + $0x1a8] sm:$0xff]
        %v550 = vld [vmem:[%s453 + $0x1b0] sm:$0xff]
        %v551 = vld [vmem:[%s453 + $0x1b8] sm:$0xff]
        %v552 = vld [vmem:[%s453 + $0x1c0] sm:$0xff]
        %v553 = vld [vmem:[%s453 + $0x1c8] sm:$0xff]
        %v554 = vld [vmem:[%s453 + $0x1d0] sm:$0xff]
        %v555 = vld [vmem:[%s453 + $0x1d8] sm:$0xff]
        %v556 = vld [vmem:[%s453 + $0x1e0] sm:$0xff]
        %v557 = vld [vmem:[%s453 + $0x1e8] sm:$0xff]
        %v558 = vld [vmem:[%s453 + $0x1f0] sm:$0xff]
        %v559 = vld [vmem:[%s453 + $0x1f8] sm:$0xff]
        %v560 = vld [vmem:[%s453 + $0x200] sm:$0xff]
        %v561 = vld [vmem:[%s453 + $0x208] sm:$0xff]
        %v562 = vld [vmem:[%s453 + $0x210] sm:$0xff]
        %v563 = vld [vmem:[%s453 + $0x218] sm:$0xff]
        %v564 = vld [vmem:[%s453 + $0x220] sm:$0xff]
        %v565 = vld [vmem:[%s453 + $0x228] sm:$0xff]
        %v566 = vld [vmem:[%s453 + $0x230] sm:$0xff]
        %v567 = vld [vmem:[%s453 + $0x238] sm:$0xff]
        %v568 = vld [vmem:[%s453 + $0x240] sm:$0xff]
        %v569 = vld [vmem:[%s453 + $0x248] sm:$0xff]
        %v570 = vld [vmem:[%s453 + $0x250] sm:$0xff]
        %v571 = vld [vmem:[%s453 + $0x258] sm:$0xff]
        %v572 = vld [vmem:[%s453 + $0x260] sm:$0xff]
        %v573 = vld [vmem:[%s453 + $0x268] sm:$0xff]
        %v574 = vld [vmem:[%s453 + $0x270] sm:$0xff]
        %v575 = vld [vmem:[%s453 + $0x278] sm:$0xff]
        %v576 = vld [vmem:[%s453 + $0x280] sm:$0xff]
        %v577 = vld [vmem:[%s453 + $0x288] sm:$0xff]
        %v578 = vld [vmem:[%s453 + $0x290] sm:$0xff]
        %v579 = vld [vmem:[%s453 + $0x298] sm:$0xff]
        %v580 = vld [vmem:[%s453 + $0x2a0] sm:$0xff]
        %v581 = vld [vmem:[%s453 + $0x2a8] sm:$0xff]
        %v582 = vld [vmem:[%s453 + $0x2b0] sm:$0xff]
        %v583 = vld [vmem:[%s453 + $0x2b8] sm:$0xff]
        %v584 = vld [vmem:[%s453 + $0x2c0] sm:$0xff]
        %v585 = vld [vmem:[%s453 + $0x2c8] sm:$0xff]
        %v586 = vld [vmem:[%s453 + $0x2d0] sm:$0xff]
        %v587 = vld [vmem:[%s453 + $0x2d8] sm:$0xff]
        %v588 = vld [vmem:[%s453 + $0x2e0] sm:$0xff]
        %v589 = vld [vmem:[%s453 + $0x2e8] sm:$0xff]
        %v590 = vld [vmem:[%s453 + $0x2f0] sm:$0xff]
        %v591 = vld [vmem:[%s453 + $0x2f8] sm:$0xff]
        %v592 = vld [vmem:[%s453 + $0x300] sm:$0xff]
        %v593 = vld [vmem:[%s453 + $0x308] sm:$0xff]
        %v594 = vld [vmem:[%s453 + $0x310] sm:$0xff]
        %v595 = vld [vmem:[%s453 + $0x318] sm:$0xff]
        %v596 = vld [vmem:[%s453 + $0x320] sm:$0xff]
        %v597 = vld [vmem:[%s453 + $0x328] sm:$0xff]
        %v598 = vld [vmem:[%s453 + $0x330] sm:$0xff]
        %v599 = vld [vmem:[%s453 + $0x338] sm:$0xff]
        %v600 = vld [vmem:[%s453 + $0x340] sm:$0xff]
        %v601 = vld [vmem:[%s453 + $0x348] sm:$0xff]
        %v602 = vld [vmem:[%s453 + $0x350] sm:$0xff]
        %v603 = vld [vmem:[%s453 + $0x358] sm:$0xff]
        %v604 = vld [vmem:[%s453 + $0x360] sm:$0xff]
        %v605 = vld [vmem:[%s453 + $0x368] sm:$0xff]
        %v606 = vld [vmem:[%s453 + $0x370] sm:$0xff]
        %v607 = vld [vmem:[%s453 + $0x378] sm:$0xff]
        %v608 = vld [vmem:[%s453 + $0x380] sm:$0xff]
        %v609 = vld [vmem:[%s453 + $0x388] sm:$0xff]
        %v610 = vld [vmem:[%s453 + $0x390] sm:$0xff]
        %v611 = vld [vmem:[%s453 + $0x398] sm:$0xff]
        %v612 = vld [vmem:[%s453 + $0x3a0] sm:$0xff]
        %v613 = vld [vmem:[%s453 + $0x3a8] sm:$0xff]
        %v614 = vld [vmem:[%s453 + $0x3b0] sm:$0xff]
        %v615 = vld [vmem:[%s453 + $0x3b8] sm:$0xff]
        %v616 = vld [vmem:[%s453 + $0x3c0] sm:$0xff]
        %v617 = vld [vmem:[%s453 + $0x3c8] sm:$0xff]
        %v618 = vld [vmem:[%s453 + $0x3d0] sm:$0xff]
        %v619 = vld [vmem:[%s453 + $0x3d8] sm:$0xff]
        %v620 = vld [vmem:[%s453 + $0x3e0] sm:$0xff]
        %v621 = vld [vmem:[%s453 + $0x3e8] sm:$0xff]
        %v622 = vld [vmem:[%s453 + $0x3f0] sm:$0xff]
        %v623 = vld [vmem:[%s453 + $0x3f8] sm:$0xff]
        %v624 = vld [vmem:[%s453 + $0x400] sm:$0xff]
        %v625 = vld [vmem:[%s453 + $0x408] sm:$0xff]
        %v626 = vld [vmem:[%s453 + $0x410] sm:$0xff]
        %v627 = vld [vmem:[%s453 + $0x418] sm:$0xff]
        %v628 = vld [vmem:[%s453 + $0x420] sm:$0xff]
        %v629 = vld [vmem:[%s453 + $0x428] sm:$0xff]
        %v630 = vld [vmem:[%s453 + $0x430] sm:$0xff]
        %v631 = vld [vmem:[%s453 + $0x438] sm:$0xff]
        %v632 = vld [vmem:[%s453 + $0x440] sm:$0xff]
        %v633 = vld [vmem:[%s453 + $0x448] sm:$0xff]
        %v634 = vld [vmem:[%s453 + $0x450] sm:$0xff]
        %v635 = vld [vmem:[%s453 + $0x458] sm:$0xff]
        %v636 = vld [vmem:[%s453 + $0x460] sm:$0xff]
        %v637 = vld [vmem:[%s453 + $0x468] sm:$0xff]
        %v638 = vld [vmem:[%s453 + $0x470] sm:$0xff]
        %v639 = vld [vmem:[%s453 + $0x478] sm:$0xff]
        %v640 = vld [vmem:[%s453 + $0x480] sm:$0xff]
        %v641 = vld [vmem:[%s453 + $0x488] sm:$0xff]
        %v642 = vld [vmem:[%s453 + $0x490] sm:$0xff]
        %v643 = vld [vmem:[%s453 + $0x498] sm:$0xff]
        %v644 = vld [vmem:[%s453 + $0x4a0] sm:$0xff]
        %v645 = vld [vmem:[%s453 + $0x4a8] sm:$0xff]
        %v646 = vld [vmem:[%s453 + $0x4b0] sm:$0xff]
        %v647 = vld [vmem:[%s453 + $0x4b8] sm:$0xff]
        %v648 = vld [vmem:[%s453 + $0x4c0] sm:$0xff]
        %v649 = vld [vmem:[%s453 + $0x4c8] sm:$0xff]
        %v650 = vld [vmem:[%s453 + $0x4d0] sm:$0xff]
        %v651 = vld [vmem:[%s453 + $0x4d8] sm:$0xff]
        %v652 = vld [vmem:[%s453 + $0x4e0] sm:$0xff]
        %v653 = vld [vmem:[%s453 + $0x4e8] sm:$0xff]
        %v654 = vld [vmem:[%s453 + $0x4f0] sm:$0xff]
        %v655 = vld [vmem:[%s453 + $0x4f8] sm:$0xff]
        %v656 = vld [vmem:[%s453 + $0x500] sm:$0xff]
        %v657 = vld [vmem:[%s453 + $0x508] sm:$0xff]
        %v658 = vld [vmem:[%s453 + $0x510] sm:$0xff]
        %v659 = vld [vmem:[%s453 + $0x518] sm:$0xff]
        %v660 = vld [vmem:[%s453 + $0x520] sm:$0xff]
        %v661 = vld [vmem:[%s453 + $0x528] sm:$0xff]
        %v662 = vld [vmem:[%s453 + $0x530] sm:$0xff]
        %v663 = vld [vmem:[%s453 + $0x538] sm:$0xff]
        %v664 = vld [vmem:[%s453 + $0x540] sm:$0xff]
        %v665 = vld [vmem:[%s453 + $0x548] sm:$0xff]
        %v666 = vld [vmem:[%s453 + $0x550] sm:$0xff]
        %v667 = vld [vmem:[%s453 + $0x558] sm:$0xff]
        %v668 = vld [vmem:[%s453 + $0x560] sm:$0xff]
        %v669 = vld [vmem:[%s453 + $0x568] sm:$0xff]
        %v670 = vld [vmem:[%s453 + $0x570] sm:$0xff]
        %v671 = vld [vmem:[%s453 + $0x578] sm:$0xff]
        %v672 = vld [vmem:[%s453 + $0x580] sm:$0xff]
        %v673 = vld [vmem:[%s453 + $0x588] sm:$0xff]
        %v674 = vld [vmem:[%s453 + $0x590] sm:$0xff]
        %v675 = vld [vmem:[%s453 + $0x598] sm:$0xff]
        %v676 = vld [vmem:[%s453 + $0x5a0] sm:$0xff]
        %v677 = vld [vmem:[%s453 + $0x5a8] sm:$0xff]
        %v678 = vld [vmem:[%s453 + $0x5b0] sm:$0xff]
        %v679 = vld [vmem:[%s453 + $0x5b8] sm:$0xff]
        %v680 = vld [vmem:[%s453 + $0x5c0] sm:$0xff]
        %v681 = vld [vmem:[%s453 + $0x5c8] sm:$0xff]
        %v682 = vld [vmem:[%s453 + $0x5d0] sm:$0xff]
        %v683 = vld [vmem:[%s453 + $0x5d8] sm:$0xff]
        %v684 = vld [vmem:[%s453 + $0x5e0] sm:$0xff]
        %v685 = vld [vmem:[%s453 + $0x5e8] sm:$0xff]
        %v686 = vld [vmem:[%s453 + $0x5f0] sm:$0xff]
        %v687 = vld [vmem:[%s453 + $0x5f8] sm:$0xff]
        %v688 = vld [vmem:[%s453 + $0x600] sm:$0xff]
        %v689 = vld [vmem:[%s453 + $0x608] sm:$0xff]
        %v690 = vld [vmem:[%s453 + $0x610] sm:$0xff]
        %v691 = vld [vmem:[%s453 + $0x618] sm:$0xff]
        %v692 = vld [vmem:[%s453 + $0x620] sm:$0xff]
        %v693 = vld [vmem:[%s453 + $0x628] sm:$0xff]
        %v694 = vld [vmem:[%s453 + $0x630] sm:$0xff]
        %v695 = vld [vmem:[%s453 + $0x638] sm:$0xff]
        %v696 = vld [vmem:[%s453 + $0x640] sm:$0xff]
        %v697 = vld [vmem:[%s453 + $0x648] sm:$0xff]
        %v698 = vld [vmem:[%s453 + $0x650] sm:$0xff]
        %v699 = vld [vmem:[%s453 + $0x658] sm:$0xff]
        %v700 = vld [vmem:[%s453 + $0x660] sm:$0xff]
        %v701 = vld [vmem:[%s453 + $0x668] sm:$0xff]
        %v702 = vld [vmem:[%s453 + $0x670] sm:$0xff]
        %v703 = vld [vmem:[%s453 + $0x678] sm:$0xff]
        %v704 = vld [vmem:[%s453 + $0x680] sm:$0xff]
        %v705 = vld [vmem:[%s453 + $0x688] sm:$0xff]
        %v706 = vld [vmem:[%s453 + $0x690] sm:$0xff]
        %v707 = vld [vmem:[%s453 + $0x698] sm:$0xff]
        %v708 = vld [vmem:[%s453 + $0x6a0] sm:$0xff]
        %v709 = vld [vmem:[%s453 + $0x6a8] sm:$0xff]
        %v710 = vld [vmem:[%s453 + $0x6b0] sm:$0xff]
        %v711 = vld [vmem:[%s453 + $0x6b8] sm:$0xff]
        %v712 = vld [vmem:[%s453 + $0x6c0] sm:$0xff]
        %v713 = vld [vmem:[%s453 + $0x6c8] sm:$0xff]
        %v714 = vld [vmem:[%s453 + $0x6d0] sm:$0xff]
        %v715 = vld [vmem:[%s453 + $0x6d8] sm:$0xff]
        %v716 = vld [vmem:[%s453 + $0x6e0] sm:$0xff]
        %v717 = vld [vmem:[%s453 + $0x6e8] sm:$0xff]
        %v718 = vld [vmem:[%s453 + $0x6f0] sm:$0xff]
        %v719 = vld [vmem:[%s453 + $0x6f8] sm:$0xff]
        %v720 = vld [vmem:[%s453 + $0x700] sm:$0xff]
        %v721 = vld [vmem:[%s453 + $0x708] sm:$0xff]
        %v722 = vld [vmem:[%s453 + $0x710] sm:$0xff]
        %v723 = vld [vmem:[%s453 + $0x718] sm:$0xff]
        %v724 = vld [vmem:[%s453 + $0x720] sm:$0xff]
        %v725 = vld [vmem:[%s453 + $0x728] sm:$0xff]
        %v726 = vld [vmem:[%s453 + $0x730] sm:$0xff]
        %v727 = vld [vmem:[%s453 + $0x738] sm:$0xff]
        %v728 = vld [vmem:[%s453 + $0x740] sm:$0xff]
        %v729 = vld [vmem:[%s453 + $0x748] sm:$0xff]
        %v730 = vld [vmem:[%s453 + $0x750] sm:$0xff]
        %v731 = vld [vmem:[%s453 + $0x758] sm:$0xff]
        %v732 = vld [vmem:[%s453 + $0x760] sm:$0xff]
        %v733 = vld [vmem:[%s453 + $0x768] sm:$0xff]
        %v734 = vld [vmem:[%s453 + $0x770] sm:$0xff]
        %v735 = vld [vmem:[%s453 + $0x778] sm:$0xff]
        %v736 = vld [vmem:[%s453 + $0x780] sm:$0xff]
        %v737 = vld [vmem:[%s453 + $0x788] sm:$0xff]
        %v738 = vld [vmem:[%s453 + $0x790] sm:$0xff]
        %v739 = vld [vmem:[%s453 + $0x798] sm:$0xff]
        %v740 = vld [vmem:[%s453 + $0x7a0] sm:$0xff]
        %v741 = vld [vmem:[%s453 + $0x7a8] sm:$0xff]
        %v742 = vld [vmem:[%s453 + $0x7b0] sm:$0xff]
        %v743 = vld [vmem:[%s453 + $0x7b8] sm:$0xff]
        %v744 = vld [vmem:[%s453 + $0x7c0] sm:$0xff]
        %v745 = vld [vmem:[%s453 + $0x7c8] sm:$0xff]
        %v746 = vld [vmem:[%s453 + $0x7d0] sm:$0xff]
        %v747 = vld [vmem:[%s453 + $0x7d8] sm:$0xff]
        %v748 = vld [vmem:[%s453 + $0x7e0] sm:$0xff]
        %v749 = vld [vmem:[%s453 + $0x7e8] sm:$0xff]
        %v750 = vld [vmem:[%s453 + $0x7f0] sm:$0xff]
        %v751 = vld [vmem:[%s453 + $0x7f8] sm:$0xff]
        %v752 = vld [vmem:[%s453 + $0x800] sm:$0xff]
        %v753 = vld [vmem:[%s453 + $0x808] sm:$0xff]
        %v754 = vld [vmem:[%s453 + $0x810] sm:$0xff]
        %v755 = vld [vmem:[%s453 + $0x818] sm:$0xff]
        %v756 = vld [vmem:[%s453 + $0x820] sm:$0xff]
        %v757 = vld [vmem:[%s453 + $0x828] sm:$0xff]
        %v758 = vld [vmem:[%s453 + $0x830] sm:$0xff]
        %v759 = vld [vmem:[%s453 + $0x838] sm:$0xff]
        %v760 = vld [vmem:[%s453 + $0x840] sm:$0xff]
        %v761 = vld [vmem:[%s453 + $0x848] sm:$0xff]
        %v762 = vld [vmem:[%s453 + $0x850] sm:$0xff]
        %v763 = vld [vmem:[%s453 + $0x858] sm:$0xff]
        %v764 = vld [vmem:[%s453 + $0x860] sm:$0xff]
        %v765 = vld [vmem:[%s453 + $0x868] sm:$0xff]
        %v766 = vld [vmem:[%s453 + $0x870] sm:$0xff]
        %v767 = vld [vmem:[%s453 + $0x878] sm:$0xff]
        %v768 = vld [vmem:[%s453 + $0x880] sm:$0xff]
        %v769 = vld [vmem:[%s453 + $0x888] sm:$0xff]
        %v770 = vld [vmem:[%s453 + $0x890] sm:$0xff]
        %v771 = vld [vmem:[%s453 + $0x898] sm:$0xff]
        %v772 = vld [vmem:[%s453 + $0x8a0] sm:$0xff]
        %v773 = vld [vmem:[%s453 + $0x8a8] sm:$0xff]
        %v774 = vld [vmem:[%s453 + $0x8b0] sm:$0xff]
        %v775 = vld [vmem:[%s453 + $0x8b8] sm:$0xff]
        %v776 = vld [vmem:[%s453 + $0x8c0] sm:$0xff]
        %v777 = vld [vmem:[%s453 + $0x8c8] sm:$0xff]
        %v778 = vld [vmem:[%s453 + $0x8d0] sm:$0xff]
        %v779 = vld [vmem:[%s453 + $0x8d8] sm:$0xff]
        %v780 = vld [vmem:[%s453 + $0x8e0] sm:$0xff]
        %v781 = vld [vmem:[%s453 + $0x8e8] sm:$0xff]
        %v782 = vld [vmem:[%s453 + $0x8f0] sm:$0xff]
        %v783 = vld [vmem:[%s453 + $0x8f8] sm:$0xff]
        %v784 = vld [vmem:[%s453 + $0x900] sm:$0xff]
        %v785 = vld [vmem:[%s453 + $0x908] sm:$0xff]
        %v786 = vld [vmem:[%s453 + $0x910] sm:$0xff]
        %v787 = vld [vmem:[%s453 + $0x918] sm:$0xff]
        %v788 = vld [vmem:[%s453 + $0x920] sm:$0xff]
        %v789 = vld [vmem:[%s453 + $0x928] sm:$0xff]
        %v790 = vld [vmem:[%s453 + $0x930] sm:$0xff]
        %v791 = vld [vmem:[%s453 + $0x938] sm:$0xff]
        %v792 = vld [vmem:[%s453 + $0x940] sm:$0xff]
        %v793 = vld [vmem:[%s453 + $0x948] sm:$0xff]
        %v794 = vld [vmem:[%s453 + $0x950] sm:$0xff]
        %v795 = vld [vmem:[%s453 + $0x958] sm:$0xff]
        %v796 = vld [vmem:[%s453 + $0x960] sm:$0xff]
        %v797 = vld [vmem:[%s453 + $0x968] sm:$0xff]
        %v798 = vld [vmem:[%s453 + $0x970] sm:$0xff]
        %v799 = vld [vmem:[%s453 + $0x978] sm:$0xff]
        %v800 = vld [vmem:[%s453 + $0x980] sm:$0xff]
        %v801 = vld [vmem:[%s453 + $0x988] sm:$0xff]
        %v802 = vld [vmem:[%s453 + $0x990] sm:$0xff]
        %v803 = vld [vmem:[%s453 + $0x998] sm:$0xff]
        %v804 = vld [vmem:[%s453 + $0x9a0] sm:$0xff]
        %v805 = vld [vmem:[%s453 + $0x9a8] sm:$0xff]
        %v806 = vld [vmem:[%s453 + $0x9b0] sm:$0xff]
        %v807 = vld [vmem:[%s453 + $0x9b8] sm:$0xff]
        %v808 = vld [vmem:[%s453 + $0x9c0] sm:$0xff]
        %v809 = vld [vmem:[%s453 + $0x9c8] sm:$0xff]
        %v810 = vld [vmem:[%s453 + $0x9d0] sm:$0xff]
        %v811 = vld [vmem:[%s453 + $0x9d8] sm:$0xff]
        %v812 = vld [vmem:[%s453 + $0x9e0] sm:$0xff]
        %v813 = vld [vmem:[%s453 + $0x9e8] sm:$0xff]
        %v814 = vld [vmem:[%s453 + $0x9f0] sm:$0xff]
        %v815 = vld [vmem:[%s453 + $0x9f8] sm:$0xff]
        %v816 = vld [vmem:[%s453 + $0xa00] sm:$0xff]
        %v817 = vld [vmem:[%s453 + $0xa08] sm:$0xff]
        %v818 = vld [vmem:[%s453 + $0xa10] sm:$0xff]
        %v819 = vld [vmem:[%s453 + $0xa18] sm:$0xff]
        %v820 = vld [vmem:[%s453 + $0xa20] sm:$0xff]
        %v821 = vld [vmem:[%s453 + $0xa28] sm:$0xff]
        %v822 = vld [vmem:[%s453 + $0xa30] sm:$0xff]
        %v823 = vld [vmem:[%s453 + $0xa38] sm:$0xff]
        %v824 = vld [vmem:[%s453 + $0xa40] sm:$0xff]
        %v825 = vld [vmem:[%s453 + $0xa48] sm:$0xff]
        %v826 = vld [vmem:[%s453 + $0xa50] sm:$0xff]
        %v827 = vld [vmem:[%s453 + $0xa58] sm:$0xff]
        %v828 = vld [vmem:[%s453 + $0xa60] sm:$0xff]
        %v829 = vld [vmem:[%s453 + $0xa68] sm:$0xff]
        %v830 = vld [vmem:[%s453 + $0xa70] sm:$0xff]
        %v831 = vld [vmem:[%s453 + $0xa78] sm:$0xff]
        %v832 = vld [vmem:[%s453 + $0xa80] sm:$0xff]
        %v833 = vld [vmem:[%s453 + $0xa88] sm:$0xff]
        %v834 = vld [vmem:[%s453 + $0xa90] sm:$0xff]
        %v835 = vld [vmem:[%s453 + $0xa98] sm:$0xff]
        %v836 = vld [vmem:[%s453 + $0xaa0] sm:$0xff]
        %v837 = vld [vmem:[%s453 + $0xaa8] sm:$0xff]
        %v838 = vld [vmem:[%s453 + $0xab0] sm:$0xff]
        %v839 = vld [vmem:[%s453 + $0xab8] sm:$0xff]
        %v840 = vld [vmem:[%s453 + $0xac0] sm:$0xff]
        %v841 = vld [vmem:[%s453 + $0xac8] sm:$0xff]
        %v842 = vld [vmem:[%s453 + $0xad0] sm:$0xff]
        %v843 = vld [vmem:[%s453 + $0xad8] sm:$0xff]
        %v844 = vld [vmem:[%s453 + $0xae0] sm:$0xff]
        %v845 = vld [vmem:[%s453 + $0xae8] sm:$0xff]
        %v846 = vld [vmem:[%s453 + $0xaf0] sm:$0xff]
        %v847 = vld [vmem:[%s453 + $0xaf8] sm:$0xff]
        %v848 = vld [vmem:[%s453 + $0xb00] sm:$0xff]
        %v849 = vld [vmem:[%s453 + $0xb08] sm:$0xff]
        %v850 = vld [vmem:[%s453 + $0xb10] sm:$0xff]
        %v851 = vld [vmem:[%s453 + $0xb18] sm:$0xff]
        %v852 = vld [vmem:[%s453 + $0xb20] sm:$0xff]
        %v853 = vld [vmem:[%s453 + $0xb28] sm:$0xff]
        %v854 = vld [vmem:[%s453 + $0xb30] sm:$0xff]
        %v855 = vld [vmem:[%s453 + $0xb38] sm:$0xff]
        %v856 = vld [vmem:[%s453 + $0xb40] sm:$0xff]
        %v857 = vld [vmem:[%s453 + $0xb48] sm:$0xff]
        %v858 = vld [vmem:[%s453 + $0xb50] sm:$0xff]
        %v859 = vld [vmem:[%s453 + $0xb58] sm:$0xff]
        %v860 = vld [vmem:[%s453 + $0xb60] sm:$0xff]
        %v861 = vld [vmem:[%s453 + $0xb68] sm:$0xff]
        %v862 = vld [vmem:[%s453 + $0xb70] sm:$0xff]
        %v863 = vld [vmem:[%s453 + $0xb78] sm:$0xff]
        %v864 = vld [vmem:[%s453 + $0xb80] sm:$0xff]
        %v865 = vld [vmem:[%s453 + $0xb88] sm:$0xff]
        %v866 = vld [vmem:[%s453 + $0xb90] sm:$0xff]
        %v867 = vld [vmem:[%s453 + $0xb98] sm:$0xff]
        %v868 = vld [vmem:[%s453 + $0xba0] sm:$0xff]
        %v869 = vld [vmem:[%s453 + $0xba8] sm:$0xff]
        %v870 = vld [vmem:[%s453 + $0xbb0] sm:$0xff]
        %v871 = vld [vmem:[%s453 + $0xbb8] sm:$0xff]
        %v872 = vld [vmem:[%s453 + $0xbc0] sm:$0xff]
        %v873 = vld [vmem:[%s453 + $0xbc8] sm:$0xff]
        %v874 = vld [vmem:[%s453 + $0xbd0] sm:$0xff]
        %v875 = vld [vmem:[%s453 + $0xbd8] sm:$0xff]
        %v876 = vld [vmem:[%s453 + $0xbe0] sm:$0xff]
        %v877 = vld [vmem:[%s453 + $0xbe8] sm:$0xff]
        %v878 = vld [vmem:[%s453 + $0xbf0] sm:$0xff]
        %v879 = vld [vmem:[%s453 + $0xbf8] sm:$0xff]
        %v880 = vld [vmem:[%s453 + $0xc00] sm:$0xff]
        %v881 = vld [vmem:[%s453 + $0xc08] sm:$0xff]
        %v882 = vld [vmem:[%s453 + $0xc10] sm:$0xff]
        %v883 = vld [vmem:[%s453 + $0xc18] sm:$0xff]
        %v884 = vld [vmem:[%s453 + $0xc20] sm:$0xff]
        %v885 = vld [vmem:[%s453 + $0xc28] sm:$0xff]
        %v886 = vld [vmem:[%s453 + $0xc30] sm:$0xff]
        %v887 = vld [vmem:[%s453 + $0xc38] sm:$0xff]
        %v888 = vld [vmem:[%s453 + $0xc40] sm:$0xff]
        %v889 = vld [vmem:[%s453 + $0xc48] sm:$0xff]
        %v890 = vld [vmem:[%s453 + $0xc50] sm:$0xff]
        %v891 = vld [vmem:[%s453 + $0xc58] sm:$0xff]
        %v892 = vld [vmem:[%s453 + $0xc60] sm:$0xff]
        %v893 = vld [vmem:[%s453 + $0xc68] sm:$0xff]
        %v894 = vld [vmem:[%s453 + $0xc70] sm:$0xff]
        %v895 = vld [vmem:[%s453 + $0xc78] sm:$0xff]
        %v896 = vld [vmem:[%s453 + $0xc80] sm:$0xff]
        %v897 = vld [vmem:[%s453 + $0xc88] sm:$0xff]
        %v898 = vld [vmem:[%s453 + $0xc90] sm:$0xff]
        %v899 = vld [vmem:[%s453 + $0xc98] sm:$0xff]
        %v900 = vld [vmem:[%s453 + $0xca0] sm:$0xff]
        %v901 = vld [vmem:[%s453 + $0xca8] sm:$0xff]
        %v902 = vld [vmem:[%s453 + $0xcb0] sm:$0xff]
        %v903 = vld [vmem:[%s453 + $0xcb8] sm:$0xff]
        %v904 = vld [vmem:[%s453 + $0xcc0] sm:$0xff]
        %v905 = vld [vmem:[%s453 + $0xcc8] sm:$0xff]
        %v906 = vld [vmem:[%s453 + $0xcd0] sm:$0xff]
        %v907 = vld [vmem:[%s453 + $0xcd8] sm:$0xff]
        %v908 = vld [vmem:[%s453 + $0xce0] sm:$0xff]
        %v909 = vld [vmem:[%s453 + $0xce8] sm:$0xff]
        %v910 = vld [vmem:[%s453 + $0xcf0] sm:$0xff]
        %v911 = vld [vmem:[%s453 + $0xcf8] sm:$0xff]
        %v912 = vld [vmem:[%s453 + $0xd00] sm:$0xff]
        %v913 = vld [vmem:[%s453 + $0xd08] sm:$0xff]
        %v914 = vld [vmem:[%s453 + $0xd10] sm:$0xff]
        %v915 = vld [vmem:[%s453 + $0xd18] sm:$0xff]
        %v916 = vld [vmem:[%s453 + $0xd20] sm:$0xff]
        %v917 = vld [vmem:[%s453 + $0xd28] sm:$0xff]
        %v918 = vld [vmem:[%s453 + $0xd30] sm:$0xff]
        %v919 = vld [vmem:[%s453 + $0xd38] sm:$0xff]
        %v920 = vld [vmem:[%s453 + $0xd40] sm:$0xff]
        %v921 = vld [vmem:[%s453 + $0xd48] sm:$0xff]
        %v922 = vld [vmem:[%s453 + $0xd50] sm:$0xff]
        %v923 = vld [vmem:[%s453 + $0xd58] sm:$0xff]
        %v924 = vld [vmem:[%s453 + $0xd60] sm:$0xff]
        %v925 = vld [vmem:[%s453 + $0xd68] sm:$0xff]
        %v926 = vld [vmem:[%s453 + $0xd70] sm:$0xff]
        %v927 = vld [vmem:[%s453 + $0xd78] sm:$0xff]
        %v956 = vunpack.c.l.b16 %v468
        %v957 = vunpack.c.h.b16 %v468
        %v958 = vunpack.c.l.b16 %v469
        %v959 = vunpack.c.h.b16 %v469
        %v960 = vunpack.c.l.b16 %v470
        %v961 = vunpack.c.h.b16 %v470
        %v962 = vunpack.c.l.b16 %v471
        %v963 = vunpack.c.h.b16 %v471
        %v964 = vunpack.c.l.b16 %v472
        %v965 = vunpack.c.h.b16 %v472
        %v966 = vunpack.c.l.b16 %v473
        %v967 = vunpack.c.h.b16 %v473
        %v968 = vunpack.c.l.b16 %v474
        %v969 = vunpack.c.h.b16 %v474
        %v970 = vunpack.c.l.b16 %v475
        %v971 = vunpack.c.h.b16 %v475
        %v972 = vunpack.c.l.b16 %v476
        %v973 = vunpack.c.h.b16 %v476
        %v974 = vunpack.c.l.b16 %v477
        %v975 = vunpack.c.h.b16 %v477
        %v976 = vunpack.c.l.b16 %v478
        %v977 = vunpack.c.h.b16 %v478
        %v978 = vunpack.c.l.b16 %v479
        %v979 = vunpack.c.h.b16 %v479
        %v980 = vunpack.c.l.b16 %v480
        %v981 = vunpack.c.h.b16 %v480
        %v982 = vunpack.c.l.b16 %v481
        %v983 = vunpack.c.l.b16 %v482
        %v984 = vunpack.c.h.b16 %v482
        %v985 = vunpack.c.l.b16 %v483
        %v986 = vunpack.c.h.b16 %v483
        %v987 = vunpack.c.l.b16 %v484
        %v988 = vunpack.c.h.b16 %v484
        %v989 = vunpack.c.l.b16 %v485
        %v990 = vunpack.c.h.b16 %v485
        %v991 = vunpack.c.l.b16 %v486
        %v992 = vunpack.c.h.b16 %v486
        %v993 = vunpack.c.l.b16 %v487
        %v994 = vunpack.c.h.b16 %v487
        %v995 = vunpack.c.l.b16 %v488
        %v996 = vunpack.c.h.b16 %v488
        %v997 = vunpack.c.l.b16 %v489
        %v998 = vunpack.c.h.b16 %v489
        %v999 = vunpack.c.l.b16 %v490
        %v1000 = vunpack.c.h.b16 %v490
        %v1001 = vunpack.c.l.b16 %v491
        %v1002 = vunpack.c.h.b16 %v491
        %v1003 = vunpack.c.l.b16 %v492
        %v1004 = vunpack.c.h.b16 %v492
        %v1005 = vunpack.c.l.b16 %v493
        %v1006 = vunpack.c.h.b16 %v493
        %v1007 = vunpack.c.l.b16 %v494
        %v1008 = vunpack.c.h.b16 %v494
        %v1009 = vunpack.c.l.b16 %v495
        %v1010 = vpack.c.b16 %v983, %v956
        %v1011 = vpack.c.b16 %v984, %v957
        %v1012 = vpack.c.b16 %v985, %v958
        %v1013 = vpack.c.b16 %v986, %v959
        %v1014 = vpack.c.b16 %v987, %v960
        %v1015 = vpack.c.b16 %v988, %v961
        %v1016 = vpack.c.b16 %v989, %v962
        %v1017 = vpack.c.b16 %v990, %v963
        %v1018 = vpack.c.b16 %v991, %v964
        %v1019 = vpack.c.b16 %v992, %v965
        %v1020 = vpack.c.b16 %v993, %v966
        %v1021 = vpack.c.b16 %v994, %v967
        %v1022 = vpack.c.b16 %v995, %v968
        %v1023 = vpack.c.b16 %v996, %v969
        %v1024 = vpack.c.b16 %v997, %v970
        %v1025 = vpack.c.b16 %v998, %v971
        %v1026 = vpack.c.b16 %v999, %v972
        %v1027 = vpack.c.b16 %v1000, %v973
        %v1028 = vpack.c.b16 %v1001, %v974
        %v1029 = vpack.c.b16 %v1002, %v975
        %v1030 = vpack.c.b16 %v1003, %v976
        %v1031 = vpack.c.b16 %v1004, %v977
        %v1032 = vpack.c.b16 %v1005, %v978
        %v1033 = vpack.c.b16 %v1006, %v979
        %v1034 = vpack.c.b16 %v1007, %v980
        %v1035 = vpack.c.b16 %v1008, %v981
        %v1036 = vpack.c.b16 %v1009, %v982
        %v1496 = vunpack.c.l.b16 %v496
        %v1497 = vunpack.c.h.b16 %v496
        %v1498 = vunpack.c.l.b16 %v497
        %v1499 = vunpack.c.h.b16 %v497
        %v1500 = vunpack.c.l.b16 %v498
        %v1501 = vunpack.c.h.b16 %v498
        %v1502 = vunpack.c.l.b16 %v499
        %v1503 = vunpack.c.h.b16 %v499
        %v1504 = vunpack.c.l.b16 %v500
        %v1505 = vunpack.c.h.b16 %v500
        %v1506 = vunpack.c.l.b16 %v501
        %v1507 = vunpack.c.h.b16 %v501
        %v1508 = vunpack.c.l.b16 %v502
        %v1509 = vunpack.c.h.b16 %v502
        %v1510 = vunpack.c.l.b16 %v503
        %v1511 = vunpack.c.h.b16 %v503
        %v1512 = vunpack.c.l.b16 %v504
        %v1513 = vunpack.c.h.b16 %v504
        %v1514 = vunpack.c.l.b16 %v505
        %v1515 = vunpack.c.h.b16 %v505
        %v1516 = vunpack.c.l.b16 %v506
        %v1517 = vunpack.c.h.b16 %v506
        %v1518 = vunpack.c.l.b16 %v507
        %v1519 = vunpack.c.h.b16 %v507
        %v1520 = vunpack.c.l.b16 %v508
        %v1521 = vunpack.c.h.b16 %v508
        %v1522 = vunpack.c.l.b16 %v509
        %v1523 = vunpack.c.h.b16 %v509
        %v1524 = vunpack.c.l.b16 %v510
        %v1525 = vunpack.c.h.b16 %v510
        %v1526 = vunpack.c.l.b16 %v511
        %v1527 = vunpack.c.h.b16 %v511
        %v1528 = vunpack.c.l.b16 %v512
        %v1529 = vunpack.c.h.b16 %v512
        %v1530 = vunpack.c.l.b16 %v513
        %v1531 = vunpack.c.h.b16 %v513
        %v1532 = vunpack.c.l.b16 %v514
        %v1533 = vunpack.c.h.b16 %v514
        %v1534 = vunpack.c.l.b16 %v515
        %v1535 = vunpack.c.h.b16 %v515
        %v1536 = vunpack.c.l.b16 %v516
        %v1537 = vunpack.c.h.b16 %v516
        %v1538 = vunpack.c.l.b16 %v517
        %v1539 = vunpack.c.h.b16 %v517
        %v1540 = vunpack.c.l.b16 %v518
        %v1541 = vunpack.c.h.b16 %v518
        %v1542 = vunpack.c.l.b16 %v519
        %v1543 = vunpack.c.h.b16 %v519
        %v1544 = vunpack.c.l.b16 %v520
        %v1545 = vunpack.c.h.b16 %v520
        %v1546 = vunpack.c.l.b16 %v521
        %v1547 = vunpack.c.h.b16 %v521
        %v1548 = vunpack.c.l.b16 %v522
        %v1549 = vunpack.c.h.b16 %v522
        %v1550 = vunpack.c.l.b16 %v523
        %v1551 = vunpack.c.h.b16 %v523
        %v1552 = vunpack.c.l.b16 %v524
        %v1553 = vunpack.c.h.b16 %v524
        %v1554 = vunpack.c.l.b16 %v525
        %v1555 = vunpack.c.h.b16 %v525
        %v1556 = vunpack.c.l.b16 %v526
        %v1557 = vunpack.c.h.b16 %v526
        %v1558 = vunpack.c.l.b16 %v527
        %v1559 = vunpack.c.h.b16 %v527
        %v1560 = vunpack.c.l.b16 %v528
        %v1561 = vunpack.c.h.b16 %v528
        %v1562 = vunpack.c.l.b16 %v529
        %v1563 = vunpack.c.h.b16 %v529
        %v1564 = vunpack.c.l.b16 %v530
        %v1565 = vunpack.c.h.b16 %v530
        %v1566 = vunpack.c.l.b16 %v531
        %v1567 = vunpack.c.h.b16 %v531
        %v1568 = vunpack.c.l.b16 %v532
        %v1569 = vunpack.c.h.b16 %v532
        %v1570 = vunpack.c.l.b16 %v533
        %v1571 = vunpack.c.h.b16 %v533
        %v1572 = vunpack.c.l.b16 %v534
        %v1573 = vunpack.c.h.b16 %v534
        %v1574 = vunpack.c.l.b16 %v535
        %v1575 = vunpack.c.h.b16 %v535
        %v1576 = vunpack.c.l.b16 %v536
        %v1577 = vunpack.c.h.b16 %v536
        %v1578 = vunpack.c.l.b16 %v537
        %v1579 = vunpack.c.h.b16 %v537
        %v1580 = vunpack.c.l.b16 %v538
        %v1581 = vunpack.c.h.b16 %v538
        %v1582 = vunpack.c.l.b16 %v539
        %v1583 = vunpack.c.h.b16 %v539
        %v1584 = vunpack.c.l.b16 %v540
        %v1585 = vunpack.c.h.b16 %v540
        %v1586 = vunpack.c.l.b16 %v541
        %v1587 = vunpack.c.h.b16 %v541
        %v1588 = vunpack.c.l.b16 %v542
        %v1589 = vunpack.c.h.b16 %v542
        %v1590 = vunpack.c.l.b16 %v543
        %v1591 = vunpack.c.h.b16 %v543
        %v1592 = vunpack.c.l.b16 %v544
        %v1593 = vunpack.c.h.b16 %v544
        %v1594 = vunpack.c.l.b16 %v545
        %v1595 = vunpack.c.h.b16 %v545
        %v1596 = vunpack.c.l.b16 %v546
        %v1597 = vunpack.c.h.b16 %v546
        %v1598 = vunpack.c.l.b16 %v547
        %v1599 = vunpack.c.h.b16 %v547
        %v1600 = vunpack.c.l.b16 %v548
        %v1601 = vunpack.c.h.b16 %v548
        %v1602 = vunpack.c.l.b16 %v549
        %v1603 = vunpack.c.h.b16 %v549
        %v1604 = vunpack.c.l.b16 %v550
        %v1605 = vunpack.c.h.b16 %v550
        %v1606 = vunpack.c.l.b16 %v551
        %v1607 = vunpack.c.h.b16 %v551
        %v1608 = vunpack.c.l.b16 %v552
        %v1609 = vunpack.c.h.b16 %v552
        %v1610 = vunpack.c.l.b16 %v553
        %v1611 = vunpack.c.h.b16 %v553
        %v1612 = vunpack.c.l.b16 %v554
        %v1613 = vunpack.c.h.b16 %v554
        %v1614 = vunpack.c.l.b16 %v555
        %v1615 = vunpack.c.h.b16 %v555
        %v1616 = vunpack.c.l.b16 %v556
        %v1617 = vunpack.c.h.b16 %v556
        %v1618 = vunpack.c.l.b16 %v557
        %v1619 = vunpack.c.h.b16 %v557
        %v1620 = vunpack.c.l.b16 %v558
        %v1621 = vunpack.c.h.b16 %v558
        %v1622 = vunpack.c.l.b16 %v559
        %v1623 = vunpack.c.h.b16 %v559
        %v1624 = vunpack.c.l.b16 %v560
        %v1625 = vunpack.c.h.b16 %v560
        %v1626 = vunpack.c.l.b16 %v561
        %v1627 = vunpack.c.h.b16 %v561
        %v1628 = vunpack.c.l.b16 %v562
        %v1629 = vunpack.c.h.b16 %v562
        %v1630 = vunpack.c.l.b16 %v563
        %v1631 = vunpack.c.h.b16 %v563
        %v1632 = vunpack.c.l.b16 %v564
        %v1633 = vunpack.c.h.b16 %v564
        %v1634 = vunpack.c.l.b16 %v565
        %v1635 = vunpack.c.h.b16 %v565
        %v1636 = vunpack.c.l.b16 %v566
        %v1637 = vunpack.c.h.b16 %v566
        %v1638 = vunpack.c.l.b16 %v567
        %v1639 = vunpack.c.h.b16 %v567
        %v1640 = vunpack.c.l.b16 %v568
        %v1641 = vunpack.c.h.b16 %v568
        %v1642 = vunpack.c.l.b16 %v569
        %v1643 = vunpack.c.h.b16 %v569
        %v1644 = vunpack.c.l.b16 %v570
        %v1645 = vunpack.c.h.b16 %v570
        %v1646 = vunpack.c.l.b16 %v571
        %v1647 = vunpack.c.h.b16 %v571
        %v1648 = vunpack.c.l.b16 %v572
        %v1649 = vunpack.c.h.b16 %v572
        %v1650 = vunpack.c.l.b16 %v573
        %v1651 = vunpack.c.h.b16 %v573
        %v1652 = vunpack.c.l.b16 %v574
        %v1653 = vunpack.c.h.b16 %v574
        %v1654 = vunpack.c.l.b16 %v575
        %v1655 = vunpack.c.h.b16 %v575
        %v1656 = vunpack.c.l.b16 %v576
        %v1657 = vunpack.c.h.b16 %v576
        %v1658 = vunpack.c.l.b16 %v577
        %v1659 = vunpack.c.h.b16 %v577
        %v1660 = vunpack.c.l.b16 %v578
        %v1661 = vunpack.c.h.b16 %v578
        %v1662 = vunpack.c.l.b16 %v579
        %v1663 = vunpack.c.h.b16 %v579
        %v1664 = vunpack.c.l.b16 %v580
        %v1665 = vunpack.c.h.b16 %v580
        %v1666 = vunpack.c.l.b16 %v581
        %v1667 = vunpack.c.h.b16 %v581
        %v1668 = vunpack.c.l.b16 %v582
        %v1669 = vunpack.c.h.b16 %v582
        %v1670 = vunpack.c.l.b16 %v583
        %v1671 = vunpack.c.h.b16 %v583
        %v1672 = vunpack.c.l.b16 %v584
        %v1673 = vunpack.c.h.b16 %v584
        %v1674 = vunpack.c.l.b16 %v585
        %v1675 = vunpack.c.h.b16 %v585
        %v1676 = vunpack.c.l.b16 %v586
        %v1677 = vunpack.c.h.b16 %v586
        %v1678 = vunpack.c.l.b16 %v587
        %v1679 = vunpack.c.h.b16 %v587
        %v1680 = vunpack.c.l.b16 %v588
        %v1681 = vunpack.c.h.b16 %v588
        %v1682 = vunpack.c.l.b16 %v589
        %v1683 = vunpack.c.h.b16 %v589
        %v1684 = vunpack.c.l.b16 %v590
        %v1685 = vunpack.c.h.b16 %v590
        %v1686 = vunpack.c.l.b16 %v591
        %v1687 = vunpack.c.h.b16 %v591
        %v1688 = vunpack.c.l.b16 %v592
        %v1689 = vunpack.c.h.b16 %v592
        %v1690 = vunpack.c.l.b16 %v593
        %v1691 = vunpack.c.h.b16 %v593
        %v1692 = vunpack.c.l.b16 %v594
        %v1693 = vunpack.c.h.b16 %v594
        %v1694 = vunpack.c.l.b16 %v595
        %v1695 = vunpack.c.h.b16 %v595
        %v1696 = vunpack.c.l.b16 %v596
        %v1697 = vunpack.c.h.b16 %v596
        %v1698 = vunpack.c.l.b16 %v597
        %v1699 = vunpack.c.h.b16 %v597
        %v1700 = vunpack.c.l.b16 %v598
        %v1701 = vunpack.c.h.b16 %v598
        %v1702 = vunpack.c.l.b16 %v599
        %v1703 = vunpack.c.h.b16 %v599
        %v1704 = vunpack.c.l.b16 %v600
        %v1705 = vunpack.c.h.b16 %v600
        %v1706 = vunpack.c.l.b16 %v601
        %v1707 = vunpack.c.h.b16 %v601
        %v1708 = vunpack.c.l.b16 %v602
        %v1709 = vunpack.c.h.b16 %v602
        %v1710 = vunpack.c.l.b16 %v603
        %v1711 = vunpack.c.h.b16 %v603
        %v1712 = vunpack.c.l.b16 %v604
        %v1713 = vunpack.c.h.b16 %v604
        %v1714 = vunpack.c.l.b16 %v605
        %v1715 = vunpack.c.h.b16 %v605
        %v1716 = vunpack.c.l.b16 %v606
        %v1717 = vunpack.c.h.b16 %v606
        %v1718 = vunpack.c.l.b16 %v607
        %v1719 = vunpack.c.h.b16 %v607
        %v1720 = vunpack.c.l.b16 %v608
        %v1721 = vunpack.c.h.b16 %v608
        %v1722 = vunpack.c.l.b16 %v609
        %v1723 = vunpack.c.h.b16 %v609
        %v1724 = vunpack.c.l.b16 %v610
        %v1725 = vunpack.c.h.b16 %v610
        %v1726 = vunpack.c.l.b16 %v611
        %v1727 = vunpack.c.h.b16 %v611
        %v1728 = vunpack.c.l.b16 %v612
        %v1729 = vunpack.c.h.b16 %v612
        %v1730 = vunpack.c.l.b16 %v613
        %v1731 = vunpack.c.h.b16 %v613
        %v1732 = vunpack.c.l.b16 %v614
        %v1733 = vunpack.c.h.b16 %v614
        %v1734 = vunpack.c.l.b16 %v615
        %v1735 = vunpack.c.h.b16 %v615
        %v1736 = vunpack.c.l.b16 %v616
        %v1737 = vunpack.c.h.b16 %v616
        %v1738 = vunpack.c.l.b16 %v617
        %v1739 = vunpack.c.h.b16 %v617
        %v1740 = vunpack.c.l.b16 %v618
        %v1741 = vunpack.c.h.b16 %v618
        %v1742 = vunpack.c.l.b16 %v619
        %v1743 = vunpack.c.h.b16 %v619
        %v1744 = vunpack.c.l.b16 %v620
        %v1745 = vunpack.c.h.b16 %v620
        %v1746 = vunpack.c.l.b16 %v621
        %v1747 = vunpack.c.h.b16 %v621
        %v1748 = vunpack.c.l.b16 %v622
        %v1749 = vunpack.c.h.b16 %v622
        %v1750 = vunpack.c.l.b16 %v623
        %v1751 = vunpack.c.h.b16 %v623
        %v1752 = vunpack.c.l.b16 %v624
        %v1753 = vunpack.c.h.b16 %v624
        %v1754 = vunpack.c.l.b16 %v625
        %v1755 = vunpack.c.h.b16 %v625
        %v1756 = vunpack.c.l.b16 %v626
        %v1757 = vunpack.c.h.b16 %v626
        %v1758 = vunpack.c.l.b16 %v627
        %v1759 = vunpack.c.h.b16 %v627
        %v1760 = vunpack.c.l.b16 %v628
        %v1761 = vunpack.c.h.b16 %v628
        %v1762 = vunpack.c.l.b16 %v629
        %v1763 = vunpack.c.h.b16 %v629
        %v1764 = vunpack.c.l.b16 %v630
        %v1765 = vunpack.c.h.b16 %v630
        %v1766 = vunpack.c.l.b16 %v631
        %v1767 = vunpack.c.h.b16 %v631
        %v1768 = vunpack.c.l.b16 %v632
        %v1769 = vunpack.c.h.b16 %v632
        %v1770 = vunpack.c.l.b16 %v633
        %v1771 = vunpack.c.h.b16 %v633
        %v1772 = vunpack.c.l.b16 %v634
        %v1773 = vunpack.c.h.b16 %v634
        %v1774 = vunpack.c.l.b16 %v635
        %v1775 = vunpack.c.h.b16 %v635
        %v1776 = vunpack.c.l.b16 %v636
        %v1777 = vunpack.c.h.b16 %v636
        %v1778 = vunpack.c.l.b16 %v637
        %v1779 = vunpack.c.h.b16 %v637
        %v1780 = vunpack.c.l.b16 %v638
        %v1781 = vunpack.c.h.b16 %v638
        %v1782 = vunpack.c.l.b16 %v639
        %v1783 = vunpack.c.h.b16 %v639
        %v1784 = vunpack.c.l.b16 %v640
        %v1785 = vunpack.c.h.b16 %v640
        %v1786 = vunpack.c.l.b16 %v641
        %v1787 = vunpack.c.h.b16 %v641
        %v1788 = vunpack.c.l.b16 %v642
        %v1789 = vunpack.c.h.b16 %v642
        %v1790 = vunpack.c.l.b16 %v643
        %v1791 = vunpack.c.h.b16 %v643
        %v1792 = vunpack.c.l.b16 %v644
        %v1793 = vunpack.c.h.b16 %v644
        %v1794 = vunpack.c.l.b16 %v645
        %v1795 = vunpack.c.h.b16 %v645
        %v1796 = vunpack.c.l.b16 %v646
        %v1797 = vunpack.c.h.b16 %v646
        %v1798 = vunpack.c.l.b16 %v647
        %v1799 = vunpack.c.h.b16 %v647
        %v1800 = vunpack.c.l.b16 %v648
        %v1801 = vunpack.c.h.b16 %v648
        %v1802 = vunpack.c.l.b16 %v649
        %v1803 = vunpack.c.h.b16 %v649
        %v1804 = vunpack.c.l.b16 %v650
        %v1805 = vunpack.c.h.b16 %v650
        %v1806 = vunpack.c.l.b16 %v651
        %v1807 = vunpack.c.h.b16 %v651
        %v1808 = vunpack.c.l.b16 %v652
        %v1809 = vunpack.c.h.b16 %v652
        %v1810 = vunpack.c.l.b16 %v653
        %v1811 = vunpack.c.h.b16 %v653
        %v1812 = vunpack.c.l.b16 %v654
        %v1813 = vunpack.c.h.b16 %v654
        %v1814 = vunpack.c.l.b16 %v655
        %v1815 = vunpack.c.h.b16 %v655
        %v1816 = vunpack.c.l.b16 %v656
        %v1817 = vunpack.c.h.b16 %v656
        %v1818 = vunpack.c.l.b16 %v657
        %v1819 = vunpack.c.h.b16 %v657
        %v1820 = vunpack.c.l.b16 %v658
        %v1821 = vunpack.c.h.b16 %v658
        %v1822 = vunpack.c.l.b16 %v659
        %v1823 = vunpack.c.h.b16 %v659
        %v1824 = vunpack.c.l.b16 %v660
        %v1825 = vunpack.c.h.b16 %v660
        %v1826 = vunpack.c.l.b16 %v661
        %v1827 = vunpack.c.h.b16 %v661
        %v1828 = vunpack.c.l.b16 %v662
        %v1829 = vunpack.c.h.b16 %v662
        %v1830 = vunpack.c.l.b16 %v663
        %v1831 = vunpack.c.h.b16 %v663
        %v1832 = vunpack.c.l.b16 %v664
        %v1833 = vunpack.c.h.b16 %v664
        %v1834 = vunpack.c.l.b16 %v665
        %v1835 = vunpack.c.h.b16 %v665
        %v1836 = vunpack.c.l.b16 %v666
        %v1837 = vunpack.c.h.b16 %v666
        %v1838 = vunpack.c.l.b16 %v667
        %v1839 = vunpack.c.h.b16 %v667
        %v1840 = vunpack.c.l.b16 %v668
        %v1841 = vunpack.c.h.b16 %v668
        %v1842 = vunpack.c.l.b16 %v669
        %v1843 = vunpack.c.h.b16 %v669
        %v1844 = vunpack.c.l.b16 %v670
        %v1845 = vunpack.c.h.b16 %v670
        %v1846 = vunpack.c.l.b16 %v671
        %v1847 = vunpack.c.h.b16 %v671
        %v1848 = vunpack.c.l.b16 %v672
        %v1849 = vunpack.c.h.b16 %v672
        %v1850 = vunpack.c.l.b16 %v673
        %v1851 = vunpack.c.h.b16 %v673
        %v1852 = vunpack.c.l.b16 %v674
        %v1853 = vunpack.c.h.b16 %v674
        %v1854 = vunpack.c.l.b16 %v675
        %v1855 = vunpack.c.h.b16 %v675
        %v1856 = vunpack.c.l.b16 %v676
        %v1857 = vunpack.c.h.b16 %v676
        %v1858 = vunpack.c.l.b16 %v677
        %v1859 = vunpack.c.h.b16 %v677
        %v1860 = vunpack.c.l.b16 %v678
        %v1861 = vunpack.c.h.b16 %v678
        %v1862 = vunpack.c.l.b16 %v679
        %v1863 = vunpack.c.h.b16 %v679
        %v1864 = vunpack.c.l.b16 %v680
        %v1865 = vunpack.c.h.b16 %v680
        %v1866 = vunpack.c.l.b16 %v681
        %v1867 = vunpack.c.h.b16 %v681
        %v1868 = vunpack.c.l.b16 %v682
        %v1869 = vunpack.c.h.b16 %v682
        %v1870 = vunpack.c.l.b16 %v683
        %v1871 = vunpack.c.h.b16 %v683
        %v1872 = vunpack.c.l.b16 %v684
        %v1873 = vunpack.c.h.b16 %v684
        %v1874 = vunpack.c.l.b16 %v685
        %v1875 = vunpack.c.h.b16 %v685
        %v1876 = vunpack.c.l.b16 %v686
        %v1877 = vunpack.c.h.b16 %v686
        %v1878 = vunpack.c.l.b16 %v687
        %v1879 = vunpack.c.h.b16 %v687
        %v1880 = vunpack.c.l.b16 %v688
        %v1881 = vunpack.c.h.b16 %v688
        %v1882 = vunpack.c.l.b16 %v689
        %v1883 = vunpack.c.h.b16 %v689
        %v1884 = vunpack.c.l.b16 %v690
        %v1885 = vunpack.c.h.b16 %v690
        %v1886 = vunpack.c.l.b16 %v691
        %v1887 = vunpack.c.h.b16 %v691
        %v1888 = vunpack.c.l.b16 %v692
        %v1889 = vunpack.c.h.b16 %v692
        %v1890 = vunpack.c.l.b16 %v693
        %v1891 = vunpack.c.h.b16 %v693
        %v1892 = vunpack.c.l.b16 %v694
        %v1893 = vunpack.c.h.b16 %v694
        %v1894 = vunpack.c.l.b16 %v695
        %v1895 = vunpack.c.h.b16 %v695
        %v1896 = vunpack.c.l.b16 %v696
        %v1897 = vunpack.c.h.b16 %v696
        %v1898 = vunpack.c.l.b16 %v697
        %v1899 = vunpack.c.h.b16 %v697
        %v1900 = vunpack.c.l.b16 %v698
        %v1901 = vunpack.c.h.b16 %v698
        %v1902 = vunpack.c.l.b16 %v699
        %v1903 = vunpack.c.h.b16 %v699
        %v1904 = vunpack.c.l.b16 %v700
        %v1905 = vunpack.c.h.b16 %v700
        %v1906 = vunpack.c.l.b16 %v701
        %v1907 = vunpack.c.h.b16 %v701
        %v1908 = vunpack.c.l.b16 %v702
        %v1909 = vunpack.c.h.b16 %v702
        %v1910 = vunpack.c.l.b16 %v703
        %v1911 = vunpack.c.h.b16 %v703
        %v1912 = vunpack.c.l.b16 %v704
        %v1913 = vunpack.c.h.b16 %v704
        %v1914 = vunpack.c.l.b16 %v705
        %v1915 = vunpack.c.h.b16 %v705
        %v1916 = vunpack.c.l.b16 %v706
        %v1917 = vunpack.c.h.b16 %v706
        %v1918 = vunpack.c.l.b16 %v707
        %v1919 = vunpack.c.h.b16 %v707
        %v1920 = vunpack.c.l.b16 %v708
        %v1921 = vunpack.c.h.b16 %v708
        %v1922 = vunpack.c.l.b16 %v709
        %v1923 = vunpack.c.h.b16 %v709
        %v1924 = vunpack.c.l.b16 %v710
        %v1925 = vunpack.c.h.b16 %v710
        %v1926 = vunpack.c.l.b16 %v711
        %v1927 = vunpack.c.h.b16 %v711
        %v1928 = vunpack.c.l.b16 %v712
        %v1929 = vunpack.c.h.b16 %v712
        %v1930 = vunpack.c.l.b16 %v713
        %v1931 = vunpack.c.h.b16 %v713
        %v1932 = vunpack.c.l.b16 %v714
        %v1933 = vunpack.c.h.b16 %v714
        %v1934 = vunpack.c.l.b16 %v715
        %v1935 = vunpack.c.h.b16 %v715
        %v1936 = vunpack.c.l.b16 %v716
        %v1937 = vunpack.c.h.b16 %v716
        %v1938 = vunpack.c.l.b16 %v717
        %v1939 = vunpack.c.h.b16 %v717
        %v1940 = vunpack.c.l.b16 %v718
        %v1941 = vunpack.c.h.b16 %v718
        %v1942 = vunpack.c.l.b16 %v719
        %v1943 = vunpack.c.h.b16 %v719
        %v1944 = vunpack.c.l.b16 %v720
        %v1945 = vunpack.c.h.b16 %v720
        %v1946 = vunpack.c.l.b16 %v721
        %v1947 = vunpack.c.h.b16 %v721
        %v1948 = vunpack.c.l.b16 %v722
        %v1949 = vunpack.c.h.b16 %v722
        %v1950 = vunpack.c.l.b16 %v723
        %v1951 = vunpack.c.h.b16 %v723
        %v1952 = vunpack.c.l.b16 %v724
        %v1953 = vunpack.c.h.b16 %v724
        %v1954 = vunpack.c.l.b16 %v725
        %v1955 = vunpack.c.h.b16 %v725
        %v1956 = vunpack.c.l.b16 %v726
        %v1957 = vunpack.c.h.b16 %v726
        %v1958 = vunpack.c.l.b16 %v727
        %v1959 = vunpack.c.h.b16 %v727
        %v1960 = vunpack.c.l.b16 %v728
        %v1961 = vunpack.c.h.b16 %v728
        %v1962 = vunpack.c.l.b16 %v729
        %v1963 = vunpack.c.h.b16 %v729
        %v1964 = vunpack.c.l.b16 %v730
        %v1965 = vunpack.c.h.b16 %v730
        %v1966 = vunpack.c.l.b16 %v731
        %v1967 = vunpack.c.h.b16 %v731
        %v1968 = vunpack.c.l.b16 %v732
        %v1969 = vunpack.c.h.b16 %v732
        %v1970 = vunpack.c.l.b16 %v733
        %v1971 = vunpack.c.h.b16 %v733
        %v1972 = vunpack.c.l.b16 %v734
        %v1973 = vunpack.c.h.b16 %v734
        %v1974 = vunpack.c.l.b16 %v735
        %v1975 = vunpack.c.h.b16 %v735
        %v1976 = vunpack.c.l.b16 %v736
        %v1977 = vunpack.c.h.b16 %v736
        %v1978 = vunpack.c.l.b16 %v737
        %v1979 = vunpack.c.h.b16 %v737
        %v1980 = vunpack.c.l.b16 %v738
        %v1981 = vunpack.c.h.b16 %v738
        %v1982 = vunpack.c.l.b16 %v739
        %v1983 = vunpack.c.h.b16 %v739
        %v1984 = vunpack.c.l.b16 %v740
        %v1985 = vunpack.c.h.b16 %v740
        %v1986 = vunpack.c.l.b16 %v741
        %v1987 = vunpack.c.h.b16 %v741
        %v1988 = vunpack.c.l.b16 %v742
        %v1989 = vunpack.c.h.b16 %v742
        %v1990 = vunpack.c.l.b16 %v743
        %v1991 = vunpack.c.h.b16 %v743
        %v1992 = vunpack.c.l.b16 %v744
        %v1993 = vunpack.c.h.b16 %v744
        %v1994 = vunpack.c.l.b16 %v745
        %v1995 = vunpack.c.h.b16 %v745
        %v1996 = vunpack.c.l.b16 %v746
        %v1997 = vunpack.c.h.b16 %v746
        %v1998 = vunpack.c.l.b16 %v747
        %v1999 = vunpack.c.h.b16 %v747
        %v2000 = vunpack.c.l.b16 %v748
        %v2001 = vunpack.c.h.b16 %v748
        %v2002 = vunpack.c.l.b16 %v749
        %v2003 = vunpack.c.h.b16 %v749
        %v2004 = vunpack.c.l.b16 %v750
        %v2005 = vunpack.c.h.b16 %v750
        %v2006 = vunpack.c.l.b16 %v751
        %v2007 = vunpack.c.h.b16 %v751
        %v2008 = vunpack.c.l.b16 %v752
        %v2009 = vunpack.c.h.b16 %v752
        %v2010 = vunpack.c.l.b16 %v753
        %v2011 = vunpack.c.h.b16 %v753
        %v2012 = vunpack.c.l.b16 %v754
        %v2013 = vunpack.c.h.b16 %v754
        %v2014 = vunpack.c.l.b16 %v755
        %v2015 = vunpack.c.h.b16 %v755
        %v2016 = vunpack.c.l.b16 %v756
        %v2017 = vunpack.c.h.b16 %v756
        %v2018 = vunpack.c.l.b16 %v757
        %v2019 = vunpack.c.h.b16 %v757
        %v2020 = vunpack.c.l.b16 %v758
        %v2021 = vunpack.c.h.b16 %v758
        %v2022 = vunpack.c.l.b16 %v759
        %v2023 = vunpack.c.h.b16 %v759
        %v2024 = vunpack.c.l.b16 %v760
        %v2025 = vunpack.c.h.b16 %v760
        %v2026 = vunpack.c.l.b16 %v761
        %v2027 = vunpack.c.h.b16 %v761
        %v2028 = vunpack.c.l.b16 %v762
        %v2029 = vunpack.c.h.b16 %v762
        %v2030 = vunpack.c.l.b16 %v763
        %v2031 = vunpack.c.h.b16 %v763
        %v2032 = vunpack.c.l.b16 %v764
        %v2033 = vunpack.c.h.b16 %v764
        %v2034 = vunpack.c.l.b16 %v765
        %v2035 = vunpack.c.h.b16 %v765
        %v2036 = vunpack.c.l.b16 %v766
        %v2037 = vunpack.c.h.b16 %v766
        %v2038 = vunpack.c.l.b16 %v767
        %v2039 = vunpack.c.h.b16 %v767
        %v2040 = vunpack.c.l.b16 %v768
        %v2041 = vunpack.c.h.b16 %v768
        %v2042 = vunpack.c.l.b16 %v769
        %v2043 = vunpack.c.h.b16 %v769
        %v2044 = vunpack.c.l.b16 %v770
        %v2045 = vunpack.c.h.b16 %v770
        %v2046 = vunpack.c.l.b16 %v771
        %v2047 = vunpack.c.h.b16 %v771
        %v2048 = vunpack.c.l.b16 %v772
        %v2049 = vunpack.c.h.b16 %v772
        %v2050 = vunpack.c.l.b16 %v773
        %v2051 = vunpack.c.h.b16 %v773
        %v2052 = vunpack.c.l.b16 %v774
        %v2053 = vunpack.c.h.b16 %v774
        %v2054 = vunpack.c.l.b16 %v775
        %v2055 = vunpack.c.h.b16 %v775
        %v2056 = vunpack.c.l.b16 %v776
        %v2057 = vunpack.c.h.b16 %v776
        %v2058 = vunpack.c.l.b16 %v777
        %v2059 = vunpack.c.h.b16 %v777
        %v2060 = vunpack.c.l.b16 %v778
        %v2061 = vunpack.c.h.b16 %v778
        %v2062 = vunpack.c.l.b16 %v779
        %v2063 = vunpack.c.h.b16 %v779
        %v2064 = vunpack.c.l.b16 %v780
        %v2065 = vunpack.c.h.b16 %v780
        %v2066 = vunpack.c.l.b16 %v781
        %v2067 = vunpack.c.h.b16 %v781
        %v2068 = vunpack.c.l.b16 %v782
        %v2069 = vunpack.c.h.b16 %v782
        %v2070 = vunpack.c.l.b16 %v783
        %v2071 = vunpack.c.h.b16 %v783
        %v2072 = vunpack.c.l.b16 %v784
        %v2073 = vunpack.c.h.b16 %v784
        %v2074 = vunpack.c.l.b16 %v785
        %v2075 = vunpack.c.h.b16 %v785
        %v2076 = vunpack.c.l.b16 %v786
        %v2077 = vunpack.c.h.b16 %v786
        %v2078 = vunpack.c.l.b16 %v787
        %v2079 = vunpack.c.h.b16 %v787
        %v2080 = vunpack.c.l.b16 %v788
        %v2081 = vunpack.c.h.b16 %v788
        %v2082 = vunpack.c.l.b16 %v789
        %v2083 = vunpack.c.h.b16 %v789
        %v2084 = vunpack.c.l.b16 %v790
        %v2085 = vunpack.c.h.b16 %v790
        %v2086 = vunpack.c.l.b16 %v791
        %v2087 = vunpack.c.h.b16 %v791
        %v2088 = vunpack.c.l.b16 %v792
        %v2089 = vunpack.c.h.b16 %v792
        %v2090 = vunpack.c.l.b16 %v793
        %v2091 = vunpack.c.h.b16 %v793
        %v2092 = vunpack.c.l.b16 %v794
        %v2093 = vunpack.c.h.b16 %v794
        %v2094 = vunpack.c.l.b16 %v795
        %v2095 = vunpack.c.h.b16 %v795
        %v2096 = vunpack.c.l.b16 %v796
        %v2097 = vunpack.c.h.b16 %v796
        %v2098 = vunpack.c.l.b16 %v797
        %v2099 = vunpack.c.h.b16 %v797
        %v2100 = vunpack.c.l.b16 %v798
        %v2101 = vunpack.c.h.b16 %v798
        %v2102 = vunpack.c.l.b16 %v799
        %v2103 = vunpack.c.h.b16 %v799
        %v2104 = vunpack.c.l.b16 %v800
        %v2105 = vunpack.c.h.b16 %v800
        %v2106 = vunpack.c.l.b16 %v801
        %v2107 = vunpack.c.h.b16 %v801
        %v2108 = vunpack.c.l.b16 %v802
        %v2109 = vunpack.c.h.b16 %v802
        %v2110 = vunpack.c.l.b16 %v803
        %v2111 = vunpack.c.h.b16 %v803
        %v2112 = vunpack.c.l.b16 %v804
        %v2113 = vunpack.c.h.b16 %v804
        %v2114 = vunpack.c.l.b16 %v805
        %v2115 = vunpack.c.h.b16 %v805
        %v2116 = vunpack.c.l.b16 %v806
        %v2117 = vunpack.c.h.b16 %v806
        %v2118 = vunpack.c.l.b16 %v807
        %v2119 = vunpack.c.h.b16 %v807
        %v2120 = vunpack.c.l.b16 %v808
        %v2121 = vunpack.c.h.b16 %v808
        %v2122 = vunpack.c.l.b16 %v809
        %v2123 = vunpack.c.h.b16 %v809
        %v2124 = vunpack.c.l.b16 %v810
        %v2125 = vunpack.c.h.b16 %v810
        %v2126 = vunpack.c.l.b16 %v811
        %v2127 = vunpack.c.h.b16 %v811
        %v2128 = vunpack.c.l.b16 %v812
        %v2129 = vunpack.c.h.b16 %v812
        %v2130 = vunpack.c.l.b16 %v813
        %v2131 = vunpack.c.h.b16 %v813
        %v2132 = vunpack.c.l.b16 %v814
        %v2133 = vunpack.c.h.b16 %v814
        %v2134 = vunpack.c.l.b16 %v815
        %v2135 = vunpack.c.h.b16 %v815
        %v2136 = vunpack.c.l.b16 %v816
        %v2137 = vunpack.c.h.b16 %v816
        %v2138 = vunpack.c.l.b16 %v817
        %v2139 = vunpack.c.h.b16 %v817
        %v2140 = vunpack.c.l.b16 %v818
        %v2141 = vunpack.c.h.b16 %v818
        %v2142 = vunpack.c.l.b16 %v819
        %v2143 = vunpack.c.h.b16 %v819
        %v2144 = vunpack.c.l.b16 %v820
        %v2145 = vunpack.c.h.b16 %v820
        %v2146 = vunpack.c.l.b16 %v821
        %v2147 = vunpack.c.h.b16 %v821
        %v2148 = vunpack.c.l.b16 %v822
        %v2149 = vunpack.c.h.b16 %v822
        %v2150 = vunpack.c.l.b16 %v823
        %v2151 = vunpack.c.h.b16 %v823
        %v2152 = vunpack.c.l.b16 %v824
        %v2153 = vunpack.c.h.b16 %v824
        %v2154 = vunpack.c.l.b16 %v825
        %v2155 = vunpack.c.h.b16 %v825
        %v2156 = vunpack.c.l.b16 %v826
        %v2157 = vunpack.c.h.b16 %v826
        %v2158 = vunpack.c.l.b16 %v827
        %v2159 = vunpack.c.h.b16 %v827
        %v2160 = vunpack.c.l.b16 %v828
        %v2161 = vunpack.c.h.b16 %v828
        %v2162 = vunpack.c.l.b16 %v829
        %v2163 = vunpack.c.h.b16 %v829
        %v2164 = vunpack.c.l.b16 %v830
        %v2165 = vunpack.c.h.b16 %v830
        %v2166 = vunpack.c.l.b16 %v831
        %v2167 = vunpack.c.h.b16 %v831
        %v2168 = vunpack.c.l.b16 %v832
        %v2169 = vunpack.c.h.b16 %v832
        %v2170 = vunpack.c.l.b16 %v833
        %v2171 = vunpack.c.h.b16 %v833
        %v2172 = vunpack.c.l.b16 %v834
        %v2173 = vunpack.c.h.b16 %v834
        %v2174 = vunpack.c.l.b16 %v835
        %v2175 = vunpack.c.h.b16 %v835
        %v2176 = vunpack.c.l.b16 %v836
        %v2177 = vunpack.c.h.b16 %v836
        %v2178 = vunpack.c.l.b16 %v837
        %v2179 = vunpack.c.h.b16 %v837
        %v2180 = vunpack.c.l.b16 %v838
        %v2181 = vunpack.c.h.b16 %v838
        %v2182 = vunpack.c.l.b16 %v839
        %v2183 = vunpack.c.h.b16 %v839
        %v2184 = vunpack.c.l.b16 %v840
        %v2185 = vunpack.c.h.b16 %v840
        %v2186 = vunpack.c.l.b16 %v841
        %v2187 = vunpack.c.h.b16 %v841
        %v2188 = vunpack.c.l.b16 %v842
        %v2189 = vunpack.c.h.b16 %v842
        %v2190 = vunpack.c.l.b16 %v843
        %v2191 = vunpack.c.h.b16 %v843
        %v2192 = vunpack.c.l.b16 %v844
        %v2193 = vunpack.c.h.b16 %v844
        %v2194 = vunpack.c.l.b16 %v845
        %v2195 = vunpack.c.h.b16 %v845
        %v2196 = vunpack.c.l.b16 %v846
        %v2197 = vunpack.c.h.b16 %v846
        %v2198 = vunpack.c.l.b16 %v847
        %v2199 = vunpack.c.h.b16 %v847
        %v2200 = vunpack.c.l.b16 %v848
        %v2201 = vunpack.c.h.b16 %v848
        %v2202 = vunpack.c.l.b16 %v849
        %v2203 = vunpack.c.h.b16 %v849
        %v2204 = vunpack.c.l.b16 %v850
        %v2205 = vunpack.c.h.b16 %v850
        %v2206 = vunpack.c.l.b16 %v851
        %v2207 = vunpack.c.h.b16 %v851
        %v2208 = vunpack.c.l.b16 %v852
        %v2209 = vunpack.c.h.b16 %v852
        %v2210 = vunpack.c.l.b16 %v853
        %v2211 = vunpack.c.h.b16 %v853
        %v2212 = vunpack.c.l.b16 %v854
        %v2213 = vunpack.c.h.b16 %v854
        %v2214 = vunpack.c.l.b16 %v855
        %v2215 = vunpack.c.h.b16 %v855
        %v2216 = vunpack.c.l.b16 %v856
        %v2217 = vunpack.c.h.b16 %v856
        %v2218 = vunpack.c.l.b16 %v857
        %v2219 = vunpack.c.h.b16 %v857
        %v2220 = vunpack.c.l.b16 %v858
        %v2221 = vunpack.c.h.b16 %v858
        %v2222 = vunpack.c.l.b16 %v859
        %v2223 = vunpack.c.h.b16 %v859
        %v2224 = vunpack.c.l.b16 %v860
        %v2225 = vunpack.c.h.b16 %v860
        %v2226 = vunpack.c.l.b16 %v861
        %v2227 = vunpack.c.h.b16 %v861
        %v2228 = vunpack.c.l.b16 %v862
        %v2229 = vunpack.c.h.b16 %v862
        %v2230 = vunpack.c.l.b16 %v863
        %v2231 = vunpack.c.h.b16 %v863
        %v2232 = vunpack.c.l.b16 %v864
        %v2233 = vunpack.c.h.b16 %v864
        %v2234 = vunpack.c.l.b16 %v865
        %v2235 = vunpack.c.h.b16 %v865
        %v2236 = vunpack.c.l.b16 %v866
        %v2237 = vunpack.c.h.b16 %v866
        %v2238 = vunpack.c.l.b16 %v867
        %v2239 = vunpack.c.h.b16 %v867
        %v2240 = vunpack.c.l.b16 %v868
        %v2241 = vunpack.c.h.b16 %v868
        %v2242 = vunpack.c.l.b16 %v869
        %v2243 = vunpack.c.h.b16 %v869
        %v2244 = vunpack.c.l.b16 %v870
        %v2245 = vunpack.c.h.b16 %v870
        %v2246 = vunpack.c.l.b16 %v871
        %v2247 = vunpack.c.h.b16 %v871
        %v2248 = vunpack.c.l.b16 %v872
        %v2249 = vunpack.c.h.b16 %v872
        %v2250 = vunpack.c.l.b16 %v873
        %v2251 = vunpack.c.h.b16 %v873
        %v2252 = vunpack.c.l.b16 %v874
        %v2253 = vunpack.c.h.b16 %v874
        %v2254 = vunpack.c.l.b16 %v875
        %v2255 = vunpack.c.h.b16 %v875
        %v2256 = vunpack.c.l.b16 %v876
        %v2257 = vunpack.c.h.b16 %v876
        %v2258 = vunpack.c.l.b16 %v877
        %v2259 = vunpack.c.h.b16 %v877
        %v2260 = vunpack.c.l.b16 %v878
        %v2261 = vunpack.c.h.b16 %v878
        %v2262 = vunpack.c.l.b16 %v879
        %v2263 = vunpack.c.h.b16 %v879
        %v2264 = vunpack.c.l.b16 %v880
        %v2265 = vunpack.c.h.b16 %v880
        %v2266 = vunpack.c.l.b16 %v881
        %v2267 = vunpack.c.h.b16 %v881
        %v2268 = vunpack.c.l.b16 %v882
        %v2269 = vunpack.c.h.b16 %v882
        %v2270 = vunpack.c.l.b16 %v883
        %v2271 = vunpack.c.h.b16 %v883
        %v2272 = vunpack.c.l.b16 %v884
        %v2273 = vunpack.c.h.b16 %v884
        %v2274 = vunpack.c.l.b16 %v885
        %v2275 = vunpack.c.h.b16 %v885
        %v2276 = vunpack.c.l.b16 %v886
        %v2277 = vunpack.c.h.b16 %v886
        %v2278 = vunpack.c.l.b16 %v887
        %v2279 = vunpack.c.h.b16 %v887
        %v2280 = vunpack.c.l.b16 %v888
        %v2281 = vunpack.c.h.b16 %v888
        %v2282 = vunpack.c.l.b16 %v889
        %v2283 = vunpack.c.h.b16 %v889
        %v2284 = vunpack.c.l.b16 %v890
        %v2285 = vunpack.c.h.b16 %v890
        %v2286 = vunpack.c.l.b16 %v891
        %v2287 = vunpack.c.h.b16 %v891
        %v2288 = vunpack.c.l.b16 %v892
        %v2289 = vunpack.c.h.b16 %v892
        %v2290 = vunpack.c.l.b16 %v893
        %v2291 = vunpack.c.h.b16 %v893
        %v2292 = vunpack.c.l.b16 %v894
        %v2293 = vunpack.c.h.b16 %v894
        %v2294 = vunpack.c.l.b16 %v895
        %v2295 = vunpack.c.h.b16 %v895
        %v2296 = vunpack.c.l.b16 %v896
        %v2297 = vunpack.c.h.b16 %v896
        %v2298 = vunpack.c.l.b16 %v897
        %v2299 = vunpack.c.h.b16 %v897
        %v2300 = vunpack.c.l.b16 %v898
        %v2301 = vunpack.c.h.b16 %v898
        %v2302 = vunpack.c.l.b16 %v899
        %v2303 = vunpack.c.h.b16 %v899
        %v2304 = vunpack.c.l.b16 %v900
        %v2305 = vunpack.c.h.b16 %v900
        %v2306 = vunpack.c.l.b16 %v901
        %v2307 = vunpack.c.h.b16 %v901
        %v2308 = vunpack.c.l.b16 %v902
        %v2309 = vunpack.c.h.b16 %v902
        %v2310 = vunpack.c.l.b16 %v903
        %v2311 = vunpack.c.h.b16 %v903
        %v2312 = vunpack.c.l.b16 %v904
        %v2313 = vunpack.c.h.b16 %v904
        %v2314 = vunpack.c.l.b16 %v905
        %v2315 = vunpack.c.h.b16 %v905
        %v2316 = vunpack.c.l.b16 %v906
        %v2317 = vunpack.c.h.b16 %v906
        %v2318 = vunpack.c.l.b16 %v907
        %v2319 = vunpack.c.h.b16 %v907
        %v2320 = vunpack.c.l.b16 %v908
        %v2321 = vunpack.c.h.b16 %v908
        %v2322 = vunpack.c.l.b16 %v909
        %v2323 = vunpack.c.h.b16 %v909
        %v2324 = vunpack.c.l.b16 %v910
        %v2325 = vunpack.c.h.b16 %v910
        %v2326 = vunpack.c.l.b16 %v911
        %v2327 = vunpack.c.h.b16 %v911
        %v2328 = vunpack.c.l.b16 %v912
        %v2329 = vunpack.c.h.b16 %v912
        %v2330 = vunpack.c.l.b16 %v913
        %v2331 = vunpack.c.h.b16 %v913
        %v2332 = vunpack.c.l.b16 %v914
        %v2333 = vunpack.c.h.b16 %v914
        %v2334 = vunpack.c.l.b16 %v915
        %v2335 = vunpack.c.h.b16 %v915
        %v2336 = vunpack.c.l.b16 %v916
        %v2337 = vunpack.c.h.b16 %v916
        %v2338 = vunpack.c.l.b16 %v917
        %v2339 = vunpack.c.h.b16 %v917
        %v2340 = vunpack.c.l.b16 %v918
        %v2341 = vunpack.c.h.b16 %v918
        %v2342 = vunpack.c.l.b16 %v919
        %v2343 = vunpack.c.h.b16 %v919
        %v2344 = vunpack.c.l.b16 %v920
        %v2345 = vunpack.c.h.b16 %v920
        %v2346 = vunpack.c.l.b16 %v921
        %v2347 = vunpack.c.h.b16 %v921
        %v2348 = vunpack.c.l.b16 %v922
        %v2349 = vunpack.c.h.b16 %v922
        %v2350 = vunpack.c.l.b16 %v923
        %v2351 = vunpack.c.h.b16 %v923
        %v2352 = vunpack.c.l.b16 %v924
        %v2353 = vunpack.c.h.b16 %v924
        %v2354 = vunpack.c.l.b16 %v925
        %v2355 = vunpack.c.h.b16 %v925
        %v2356 = vunpack.c.l.b16 %v926
        %v2357 = vunpack.c.h.b16 %v926
        %v2358 = vunpack.c.l.b16 %v927
        %v2359 = vunpack.c.h.b16 %v927
        %v2360 = vpack.c.b16 %v1498, %v1496
        %v2361 = vpack.c.b16 %v1499, %v1497
        %v2362 = vpack.c.b16 %v1502, %v1500
        %v2363 = vpack.c.b16 %v1503, %v1501
        %v2364 = vpack.c.b16 %v1506, %v1504
        %v2365 = vpack.c.b16 %v1507, %v1505
        %v2366 = vpack.c.b16 %v1510, %v1508
        %v2367 = vpack.c.b16 %v1511, %v1509
        %v2368 = vpack.c.b16 %v1514, %v1512
        %v2369 = vpack.c.b16 %v1515, %v1513
        %v2370 = vpack.c.b16 %v1518, %v1516
        %v2371 = vpack.c.b16 %v1519, %v1517
        %v2372 = vpack.c.b16 %v1522, %v1520
        %v2373 = vpack.c.b16 %v1523, %v1521
        %v2374 = vpack.c.b16 %v1526, %v1524
        %v2375 = vpack.c.b16 %v1527, %v1525
        %v2376 = vpack.c.b16 %v1530, %v1528
        %v2377 = vpack.c.b16 %v1531, %v1529
        %v2378 = vpack.c.b16 %v1534, %v1532
        %v2379 = vpack.c.b16 %v1535, %v1533
        %v2380 = vpack.c.b16 %v1538, %v1536
        %v2381 = vpack.c.b16 %v1539, %v1537
        %v2382 = vpack.c.b16 %v1542, %v1540
        %v2383 = vpack.c.b16 %v1543, %v1541
        %v2384 = vpack.c.b16 %v1546, %v1544
        %v2385 = vpack.c.b16 %v1547, %v1545
        %v2386 = vpack.c.b16 %v1550, %v1548
        %v2387 = vpack.c.b16 %v1551, %v1549
        %v2388 = vpack.c.b16 %v1554, %v1552
        %v2389 = vpack.c.b16 %v1555, %v1553
        %v2390 = vpack.c.b16 %v1558, %v1556
        %v2391 = vpack.c.b16 %v1559, %v1557
        %v2392 = vpack.c.b16 %v1562, %v1560
        %v2393 = vpack.c.b16 %v1563, %v1561
        %v2394 = vpack.c.b16 %v1566, %v1564
        %v2395 = vpack.c.b16 %v1567, %v1565
        %v2396 = vpack.c.b16 %v1570, %v1568
        %v2397 = vpack.c.b16 %v1571, %v1569
        %v2398 = vpack.c.b16 %v1574, %v1572
        %v2399 = vpack.c.b16 %v1575, %v1573
        %v2400 = vpack.c.b16 %v1578, %v1576
        %v2401 = vpack.c.b16 %v1579, %v1577
        %v2402 = vpack.c.b16 %v1582, %v1580
        %v2403 = vpack.c.b16 %v1583, %v1581
        %v2404 = vpack.c.b16 %v1586, %v1584
        %v2405 = vpack.c.b16 %v1587, %v1585
        %v2406 = vpack.c.b16 %v1590, %v1588
        %v2407 = vpack.c.b16 %v1591, %v1589
        %v2408 = vpack.c.b16 %v1594, %v1592
        %v2409 = vpack.c.b16 %v1595, %v1593
        %v2410 = vpack.c.b16 %v1598, %v1596
        %v2411 = vpack.c.b16 %v1599, %v1597
        %v2412 = vpack.c.b16 %v1602, %v1600
        %v2413 = vpack.c.b16 %v1603, %v1601
        %v2414 = vpack.c.b16 %v1606, %v1604
        %v2415 = vpack.c.b16 %v1607, %v1605
        %v2416 = vpack.c.b16 %v1610, %v1608
        %v2417 = vpack.c.b16 %v1611, %v1609
        %v2418 = vpack.c.b16 %v1614, %v1612
        %v2419 = vpack.c.b16 %v1615, %v1613
        %v2420 = vpack.c.b16 %v1618, %v1616
        %v2421 = vpack.c.b16 %v1619, %v1617
        %v2422 = vpack.c.b16 %v1622, %v1620
        %v2423 = vpack.c.b16 %v1623, %v1621
        %v2424 = vpack.c.b16 %v1626, %v1624
        %v2425 = vpack.c.b16 %v1627, %v1625
        %v2426 = vpack.c.b16 %v1630, %v1628
        %v2427 = vpack.c.b16 %v1631, %v1629
        %v2428 = vpack.c.b16 %v1634, %v1632
        %v2429 = vpack.c.b16 %v1635, %v1633
        %v2430 = vpack.c.b16 %v1638, %v1636
        %v2431 = vpack.c.b16 %v1639, %v1637
        %v2432 = vpack.c.b16 %v1642, %v1640
        %v2433 = vpack.c.b16 %v1643, %v1641
        %v2434 = vpack.c.b16 %v1646, %v1644
        %v2435 = vpack.c.b16 %v1647, %v1645
        %v2436 = vpack.c.b16 %v1650, %v1648
        %v2437 = vpack.c.b16 %v1651, %v1649
        %v2438 = vpack.c.b16 %v1654, %v1652
        %v2439 = vpack.c.b16 %v1655, %v1653
        %v2440 = vpack.c.b16 %v1658, %v1656
        %v2441 = vpack.c.b16 %v1659, %v1657
        %v2442 = vpack.c.b16 %v1662, %v1660
        %v2443 = vpack.c.b16 %v1663, %v1661
        %v2444 = vpack.c.b16 %v1666, %v1664
        %v2445 = vpack.c.b16 %v1667, %v1665
        %v2446 = vpack.c.b16 %v1670, %v1668
        %v2447 = vpack.c.b16 %v1671, %v1669
        %v2448 = vpack.c.b16 %v1674, %v1672
        %v2449 = vpack.c.b16 %v1675, %v1673
        %v2450 = vpack.c.b16 %v1678, %v1676
        %v2451 = vpack.c.b16 %v1679, %v1677
        %v2452 = vpack.c.b16 %v1682, %v1680
        %v2453 = vpack.c.b16 %v1683, %v1681
        %v2454 = vpack.c.b16 %v1686, %v1684
        %v2455 = vpack.c.b16 %v1687, %v1685
        %v2456 = vpack.c.b16 %v1690, %v1688
        %v2457 = vpack.c.b16 %v1691, %v1689
        %v2458 = vpack.c.b16 %v1694, %v1692
        %v2459 = vpack.c.b16 %v1695, %v1693
        %v2460 = vpack.c.b16 %v1698, %v1696
        %v2461 = vpack.c.b16 %v1699, %v1697
        %v2462 = vpack.c.b16 %v1702, %v1700
        %v2463 = vpack.c.b16 %v1703, %v1701
        %v2464 = vpack.c.b16 %v1706, %v1704
        %v2465 = vpack.c.b16 %v1707, %v1705
        %v2466 = vpack.c.b16 %v1710, %v1708
        %v2467 = vpack.c.b16 %v1711, %v1709
        %v2468 = vpack.c.b16 %v1714, %v1712
        %v2469 = vpack.c.b16 %v1715, %v1713
        %v2470 = vpack.c.b16 %v1718, %v1716
        %v2471 = vpack.c.b16 %v1719, %v1717
        %v2472 = vpack.c.b16 %v1722, %v1720
        %v2473 = vpack.c.b16 %v1723, %v1721
        %v2474 = vpack.c.b16 %v1726, %v1724
        %v2475 = vpack.c.b16 %v1727, %v1725
        %v2476 = vpack.c.b16 %v1730, %v1728
        %v2477 = vpack.c.b16 %v1731, %v1729
        %v2478 = vpack.c.b16 %v1734, %v1732
        %v2479 = vpack.c.b16 %v1735, %v1733
        %v2480 = vpack.c.b16 %v1738, %v1736
        %v2481 = vpack.c.b16 %v1739, %v1737
        %v2482 = vpack.c.b16 %v1742, %v1740
        %v2483 = vpack.c.b16 %v1743, %v1741
        %v2484 = vpack.c.b16 %v1746, %v1744
        %v2485 = vpack.c.b16 %v1747, %v1745
        %v2486 = vpack.c.b16 %v1750, %v1748
        %v2487 = vpack.c.b16 %v1751, %v1749
        %v2488 = vpack.c.b16 %v1754, %v1752
        %v2489 = vpack.c.b16 %v1755, %v1753
        %v2490 = vpack.c.b16 %v1758, %v1756
        %v2491 = vpack.c.b16 %v1759, %v1757
        %v2492 = vpack.c.b16 %v1762, %v1760
        %v2493 = vpack.c.b16 %v1763, %v1761
        %v2494 = vpack.c.b16 %v1766, %v1764
        %v2495 = vpack.c.b16 %v1767, %v1765
        %v2496 = vpack.c.b16 %v1770, %v1768
        %v2497 = vpack.c.b16 %v1771, %v1769
        %v2498 = vpack.c.b16 %v1774, %v1772
        %v2499 = vpack.c.b16 %v1775, %v1773
        %v2500 = vpack.c.b16 %v1778, %v1776
        %v2501 = vpack.c.b16 %v1779, %v1777
        %v2502 = vpack.c.b16 %v1782, %v1780
        %v2503 = vpack.c.b16 %v1783, %v1781
        %v2504 = vpack.c.b16 %v1786, %v1784
        %v2505 = vpack.c.b16 %v1787, %v1785
        %v2506 = vpack.c.b16 %v1790, %v1788
        %v2507 = vpack.c.b16 %v1791, %v1789
        %v2508 = vpack.c.b16 %v1794, %v1792
        %v2509 = vpack.c.b16 %v1795, %v1793
        %v2510 = vpack.c.b16 %v1798, %v1796
        %v2511 = vpack.c.b16 %v1799, %v1797
        %v2512 = vpack.c.b16 %v1802, %v1800
        %v2513 = vpack.c.b16 %v1803, %v1801
        %v2514 = vpack.c.b16 %v1806, %v1804
        %v2515 = vpack.c.b16 %v1807, %v1805
        %v2516 = vpack.c.b16 %v1810, %v1808
        %v2517 = vpack.c.b16 %v1811, %v1809
        %v2518 = vpack.c.b16 %v1814, %v1812
        %v2519 = vpack.c.b16 %v1815, %v1813
        %v2520 = vpack.c.b16 %v1818, %v1816
        %v2521 = vpack.c.b16 %v1819, %v1817
        %v2522 = vpack.c.b16 %v1822, %v1820
        %v2523 = vpack.c.b16 %v1823, %v1821
        %v2524 = vpack.c.b16 %v1826, %v1824
        %v2525 = vpack.c.b16 %v1827, %v1825
        %v2526 = vpack.c.b16 %v1830, %v1828
        %v2527 = vpack.c.b16 %v1831, %v1829
        %v2528 = vpack.c.b16 %v1834, %v1832
        %v2529 = vpack.c.b16 %v1835, %v1833
        %v2530 = vpack.c.b16 %v1838, %v1836
        %v2531 = vpack.c.b16 %v1839, %v1837
        %v2532 = vpack.c.b16 %v1842, %v1840
        %v2533 = vpack.c.b16 %v1843, %v1841
        %v2534 = vpack.c.b16 %v1846, %v1844
        %v2535 = vpack.c.b16 %v1847, %v1845
        %v2536 = vpack.c.b16 %v1850, %v1848
        %v2537 = vpack.c.b16 %v1851, %v1849
        %v2538 = vpack.c.b16 %v1854, %v1852
        %v2539 = vpack.c.b16 %v1855, %v1853
        %v2540 = vpack.c.b16 %v1858, %v1856
        %v2541 = vpack.c.b16 %v1859, %v1857
        %v2542 = vpack.c.b16 %v1862, %v1860
        %v2543 = vpack.c.b16 %v1863, %v1861
        %v2544 = vpack.c.b16 %v1866, %v1864
        %v2545 = vpack.c.b16 %v1867, %v1865
        %v2546 = vpack.c.b16 %v1870, %v1868
        %v2547 = vpack.c.b16 %v1871, %v1869
        %v2548 = vpack.c.b16 %v1874, %v1872
        %v2549 = vpack.c.b16 %v1875, %v1873
        %v2550 = vpack.c.b16 %v1878, %v1876
        %v2551 = vpack.c.b16 %v1879, %v1877
        %v2552 = vpack.c.b16 %v1882, %v1880
        %v2553 = vpack.c.b16 %v1883, %v1881
        %v2554 = vpack.c.b16 %v1886, %v1884
        %v2555 = vpack.c.b16 %v1887, %v1885
        %v2556 = vpack.c.b16 %v1890, %v1888
        %v2557 = vpack.c.b16 %v1891, %v1889
        %v2558 = vpack.c.b16 %v1894, %v1892
        %v2559 = vpack.c.b16 %v1895, %v1893
        %v2560 = vpack.c.b16 %v1898, %v1896
        %v2561 = vpack.c.b16 %v1899, %v1897
        %v2562 = vpack.c.b16 %v1902, %v1900
        %v2563 = vpack.c.b16 %v1903, %v1901
        %v2564 = vpack.c.b16 %v1906, %v1904
        %v2565 = vpack.c.b16 %v1907, %v1905
        %v2566 = vpack.c.b16 %v1910, %v1908
        %v2567 = vpack.c.b16 %v1911, %v1909
        %v2568 = vpack.c.b16 %v1914, %v1912
        %v2569 = vpack.c.b16 %v1915, %v1913
        %v2570 = vpack.c.b16 %v1918, %v1916
        %v2571 = vpack.c.b16 %v1919, %v1917
        %v2572 = vpack.c.b16 %v1922, %v1920
        %v2573 = vpack.c.b16 %v1923, %v1921
        %v2574 = vpack.c.b16 %v1926, %v1924
        %v2575 = vpack.c.b16 %v1927, %v1925
        %v2576 = vpack.c.b16 %v1930, %v1928
        %v2577 = vpack.c.b16 %v1931, %v1929
        %v2578 = vpack.c.b16 %v1934, %v1932
        %v2579 = vpack.c.b16 %v1935, %v1933
        %v2580 = vpack.c.b16 %v1938, %v1936
        %v2581 = vpack.c.b16 %v1939, %v1937
        %v2582 = vpack.c.b16 %v1942, %v1940
        %v2583 = vpack.c.b16 %v1943, %v1941
        %v2584 = vpack.c.b16 %v1946, %v1944
        %v2585 = vpack.c.b16 %v1947, %v1945
        %v2586 = vpack.c.b16 %v1950, %v1948
        %v2587 = vpack.c.b16 %v1951, %v1949
        %v2588 = vpack.c.b16 %v1954, %v1952
        %v2589 = vpack.c.b16 %v1955, %v1953
        %v2590 = vpack.c.b16 %v1958, %v1956
        %v2591 = vpack.c.b16 %v1959, %v1957
        %v2592 = vpack.c.b16 %v1962, %v1960
        %v2593 = vpack.c.b16 %v1963, %v1961
        %v2594 = vpack.c.b16 %v1966, %v1964
        %v2595 = vpack.c.b16 %v1967, %v1965
        %v2596 = vpack.c.b16 %v1970, %v1968
        %v2597 = vpack.c.b16 %v1971, %v1969
        %v2598 = vpack.c.b16 %v1974, %v1972
        %v2599 = vpack.c.b16 %v1975, %v1973
        %v2600 = vpack.c.b16 %v1978, %v1976
        %v2601 = vpack.c.b16 %v1979, %v1977
        %v2602 = vpack.c.b16 %v1982, %v1980
        %v2603 = vpack.c.b16 %v1983, %v1981
        %v2604 = vpack.c.b16 %v1986, %v1984
        %v2605 = vpack.c.b16 %v1987, %v1985
        %v2606 = vpack.c.b16 %v1990, %v1988
        %v2607 = vpack.c.b16 %v1991, %v1989
        %v2608 = vpack.c.b16 %v1994, %v1992
        %v2609 = vpack.c.b16 %v1995, %v1993
        %v2610 = vpack.c.b16 %v1998, %v1996
        %v2611 = vpack.c.b16 %v1999, %v1997
        %v2612 = vpack.c.b16 %v2002, %v2000
        %v2613 = vpack.c.b16 %v2003, %v2001
        %v2614 = vpack.c.b16 %v2006, %v2004
        %v2615 = vpack.c.b16 %v2007, %v2005
        %v2616 = vpack.c.b16 %v2010, %v2008
        %v2617 = vpack.c.b16 %v2011, %v2009
        %v2618 = vpack.c.b16 %v2014, %v2012
        %v2619 = vpack.c.b16 %v2015, %v2013
        %v2620 = vpack.c.b16 %v2018, %v2016
        %v2621 = vpack.c.b16 %v2019, %v2017
        %v2622 = vpack.c.b16 %v2022, %v2020
        %v2623 = vpack.c.b16 %v2023, %v2021
        %v2624 = vpack.c.b16 %v2026, %v2024
        %v2625 = vpack.c.b16 %v2027, %v2025
        %v2626 = vpack.c.b16 %v2030, %v2028
        %v2627 = vpack.c.b16 %v2031, %v2029
        %v2628 = vpack.c.b16 %v2034, %v2032
        %v2629 = vpack.c.b16 %v2035, %v2033
        %v2630 = vpack.c.b16 %v2038, %v2036
        %v2631 = vpack.c.b16 %v2039, %v2037
        %v2632 = vpack.c.b16 %v2042, %v2040
        %v2633 = vpack.c.b16 %v2043, %v2041
        %v2634 = vpack.c.b16 %v2046, %v2044
        %v2635 = vpack.c.b16 %v2047, %v2045
        %v2636 = vpack.c.b16 %v2050, %v2048
        %v2637 = vpack.c.b16 %v2051, %v2049
        %v2638 = vpack.c.b16 %v2054, %v2052
        %v2639 = vpack.c.b16 %v2055, %v2053
        %v2640 = vpack.c.b16 %v2058, %v2056
        %v2641 = vpack.c.b16 %v2059, %v2057
        %v2642 = vpack.c.b16 %v2062, %v2060
        %v2643 = vpack.c.b16 %v2063, %v2061
        %v2644 = vpack.c.b16 %v2066, %v2064
        %v2645 = vpack.c.b16 %v2067, %v2065
        %v2646 = vpack.c.b16 %v2070, %v2068
        %v2647 = vpack.c.b16 %v2071, %v2069
        %v2648 = vpack.c.b16 %v2074, %v2072
        %v2649 = vpack.c.b16 %v2075, %v2073
        %v2650 = vpack.c.b16 %v2078, %v2076
        %v2651 = vpack.c.b16 %v2079, %v2077
        %v2652 = vpack.c.b16 %v2082, %v2080
        %v2653 = vpack.c.b16 %v2083, %v2081
        %v2654 = vpack.c.b16 %v2086, %v2084
        %v2655 = vpack.c.b16 %v2087, %v2085
        %v2656 = vpack.c.b16 %v2090, %v2088
        %v2657 = vpack.c.b16 %v2091, %v2089
        %v2658 = vpack.c.b16 %v2094, %v2092
        %v2659 = vpack.c.b16 %v2095, %v2093
        %v2660 = vpack.c.b16 %v2098, %v2096
        %v2661 = vpack.c.b16 %v2099, %v2097
        %v2662 = vpack.c.b16 %v2102, %v2100
        %v2663 = vpack.c.b16 %v2103, %v2101
        %v2664 = vpack.c.b16 %v2106, %v2104
        %v2665 = vpack.c.b16 %v2107, %v2105
        %v2666 = vpack.c.b16 %v2110, %v2108
        %v2667 = vpack.c.b16 %v2111, %v2109
        %v2668 = vpack.c.b16 %v2114, %v2112
        %v2669 = vpack.c.b16 %v2115, %v2113
        %v2670 = vpack.c.b16 %v2118, %v2116
        %v2671 = vpack.c.b16 %v2119, %v2117
        %v2672 = vpack.c.b16 %v2122, %v2120
        %v2673 = vpack.c.b16 %v2123, %v2121
        %v2674 = vpack.c.b16 %v2126, %v2124
        %v2675 = vpack.c.b16 %v2127, %v2125
        %v2676 = vpack.c.b16 %v2130, %v2128
        %v2677 = vpack.c.b16 %v2131, %v2129
        %v2678 = vpack.c.b16 %v2134, %v2132
        %v2679 = vpack.c.b16 %v2135, %v2133
        %v2680 = vpack.c.b16 %v2138, %v2136
        %v2681 = vpack.c.b16 %v2139, %v2137
        %v2682 = vpack.c.b16 %v2142, %v2140
        %v2683 = vpack.c.b16 %v2143, %v2141
        %v2684 = vpack.c.b16 %v2146, %v2144
        %v2685 = vpack.c.b16 %v2147, %v2145
        %v2686 = vpack.c.b16 %v2150, %v2148
        %v2687 = vpack.c.b16 %v2151, %v2149
        %v2688 = vpack.c.b16 %v2154, %v2152
        %v2689 = vpack.c.b16 %v2155, %v2153
        %v2690 = vpack.c.b16 %v2158, %v2156
        %v2691 = vpack.c.b16 %v2159, %v2157
        %v2692 = vpack.c.b16 %v2162, %v2160
        %v2693 = vpack.c.b16 %v2163, %v2161
        %v2694 = vpack.c.b16 %v2166, %v2164
        %v2695 = vpack.c.b16 %v2167, %v2165
        %v2696 = vpack.c.b16 %v2170, %v2168
        %v2697 = vpack.c.b16 %v2171, %v2169
        %v2698 = vpack.c.b16 %v2174, %v2172
        %v2699 = vpack.c.b16 %v2175, %v2173
        %v2700 = vpack.c.b16 %v2178, %v2176
        %v2701 = vpack.c.b16 %v2179, %v2177
        %v2702 = vpack.c.b16 %v2182, %v2180
        %v2703 = vpack.c.b16 %v2183, %v2181
        %v2704 = vpack.c.b16 %v2186, %v2184
        %v2705 = vpack.c.b16 %v2187, %v2185
        %v2706 = vpack.c.b16 %v2190, %v2188
        %v2707 = vpack.c.b16 %v2191, %v2189
        %v2708 = vpack.c.b16 %v2194, %v2192
        %v2709 = vpack.c.b16 %v2195, %v2193
        %v2710 = vpack.c.b16 %v2198, %v2196
        %v2711 = vpack.c.b16 %v2199, %v2197
        %v2712 = vpack.c.b16 %v2202, %v2200
        %v2713 = vpack.c.b16 %v2203, %v2201
        %v2714 = vpack.c.b16 %v2206, %v2204
        %v2715 = vpack.c.b16 %v2207, %v2205
        %v2716 = vpack.c.b16 %v2210, %v2208
        %v2717 = vpack.c.b16 %v2211, %v2209
        %v2718 = vpack.c.b16 %v2214, %v2212
        %v2719 = vpack.c.b16 %v2215, %v2213
        %v2720 = vpack.c.b16 %v2218, %v2216
        %v2721 = vpack.c.b16 %v2219, %v2217
        %v2722 = vpack.c.b16 %v2222, %v2220
        %v2723 = vpack.c.b16 %v2223, %v2221
        %v2724 = vpack.c.b16 %v2226, %v2224
        %v2725 = vpack.c.b16 %v2227, %v2225
        %v2726 = vpack.c.b16 %v2230, %v2228
        %v2727 = vpack.c.b16 %v2231, %v2229
        %v2728 = vpack.c.b16 %v2234, %v2232
        %v2729 = vpack.c.b16 %v2235, %v2233
        %v2730 = vpack.c.b16 %v2238, %v2236
        %v2731 = vpack.c.b16 %v2239, %v2237
        %v2732 = vpack.c.b16 %v2242, %v2240
        %v2733 = vpack.c.b16 %v2243, %v2241
        %v2734 = vpack.c.b16 %v2246, %v2244
        %v2735 = vpack.c.b16 %v2247, %v2245
        %v2736 = vpack.c.b16 %v2250, %v2248
        %v2737 = vpack.c.b16 %v2251, %v2249
        %v2738 = vpack.c.b16 %v2254, %v2252
        %v2739 = vpack.c.b16 %v2255, %v2253
        %v2740 = vpack.c.b16 %v2258, %v2256
        %v2741 = vpack.c.b16 %v2259, %v2257
        %v2742 = vpack.c.b16 %v2262, %v2260
        %v2743 = vpack.c.b16 %v2263, %v2261
        %v2744 = vpack.c.b16 %v2266, %v2264
        %v2745 = vpack.c.b16 %v2267, %v2265
        %v2746 = vpack.c.b16 %v2270, %v2268
        %v2747 = vpack.c.b16 %v2271, %v2269
        %v2748 = vpack.c.b16 %v2274, %v2272
        %v2749 = vpack.c.b16 %v2275, %v2273
        %v2750 = vpack.c.b16 %v2278, %v2276
        %v2751 = vpack.c.b16 %v2279, %v2277
        %v2752 = vpack.c.b16 %v2282, %v2280
        %v2753 = vpack.c.b16 %v2283, %v2281
        %v2754 = vpack.c.b16 %v2286, %v2284
        %v2755 = vpack.c.b16 %v2287, %v2285
        %v2756 = vpack.c.b16 %v2290, %v2288
        %v2757 = vpack.c.b16 %v2291, %v2289
        %v2758 = vpack.c.b16 %v2294, %v2292
        %v2759 = vpack.c.b16 %v2295, %v2293
        %v2760 = vpack.c.b16 %v2298, %v2296
        %v2761 = vpack.c.b16 %v2299, %v2297
        %v2762 = vpack.c.b16 %v2302, %v2300
        %v2763 = vpack.c.b16 %v2303, %v2301
        %v2764 = vpack.c.b16 %v2306, %v2304
        %v2765 = vpack.c.b16 %v2307, %v2305
        %v2766 = vpack.c.b16 %v2310, %v2308
        %v2767 = vpack.c.b16 %v2311, %v2309
        %v2768 = vpack.c.b16 %v2314, %v2312
        %v2769 = vpack.c.b16 %v2315, %v2313
        %v2770 = vpack.c.b16 %v2318, %v2316
        %v2771 = vpack.c.b16 %v2319, %v2317
        %v2772 = vpack.c.b16 %v2322, %v2320
        %v2773 = vpack.c.b16 %v2323, %v2321
        %v2774 = vpack.c.b16 %v2326, %v2324
        %v2775 = vpack.c.b16 %v2327, %v2325
        %v2776 = vpack.c.b16 %v2330, %v2328
        %v2777 = vpack.c.b16 %v2331, %v2329
        %v2778 = vpack.c.b16 %v2334, %v2332
        %v2779 = vpack.c.b16 %v2335, %v2333
        %v2780 = vpack.c.b16 %v2338, %v2336
        %v2781 = vpack.c.b16 %v2339, %v2337
        %v2782 = vpack.c.b16 %v2342, %v2340
        %v2783 = vpack.c.b16 %v2343, %v2341
        %v2784 = vpack.c.b16 %v2346, %v2344
        %v2785 = vpack.c.b16 %v2347, %v2345
        %v2786 = vpack.c.b16 %v2350, %v2348
        %v2787 = vpack.c.b16 %v2351, %v2349
        %v2788 = vpack.c.b16 %v2354, %v2352
        %v2789 = vpack.c.b16 %v2355, %v2353
        %v2790 = vpack.c.b16 %v2358, %v2356
        %v2791 = vpack.c.b16 %v2359, %v2357
        %3224 = vmatprep.subr.bf16.mxu0 %v2375
        %3225 = vmatpush1.bf16.msra.mxu0 %v2374
        %3226 = vmatprep.subr.bf16.mxu0 %v2373
        %3227 = vmatpush1.bf16.msra.mxu0 %v2372
        %3228 = vmatprep.subr.bf16.mxu0 %v2371
        %3229 = vmatpush1.bf16.msra.mxu0 %v2370
        %3230 = vmatprep.subr.bf16.mxu0 %v2369
        %3231 = vmatpush1.bf16.msra.mxu0 %v2368
        %3232 = vmatprep.subr.bf16.mxu0 %v2367
        %3233 = vmatpush1.bf16.msra.mxu0 %v2366
        %3234 = vmatprep.subr.bf16.mxu0 %v2365
        %3235 = vmatpush1.bf16.msra.mxu0 %v2364
        %3236 = vmatprep.subr.bf16.mxu0 %v2363
        %3237 = vmatpush1.bf16.msra.mxu0 %v2362
        %3238 = vmatprep.subr.bf16.mxu0 %v2361
        %3239 = vmatpush1.bf16.msra.mxu0 %v2360
        %3240 = vmatprep.subr.bf16.mxu0 %v2391
        %3241 = vmatpush2.bf16.msra.mxu0 %v2390
        %3242 = vmatprep.subr.bf16.mxu0 %v2389
        %3243 = vmatpush2.bf16.msra.mxu0 %v2388
        %3244 = vmatprep.subr.bf16.mxu0 %v2387
        %3245 = vmatpush2.bf16.msra.mxu0 %v2386
        %3246 = vmatprep.subr.bf16.mxu0 %v2385
        %3247 = vmatpush2.bf16.msra.mxu0 %v2384
        %3248 = vmatprep.subr.bf16.mxu0 %v2383
        %3249 = vmatpush2.bf16.msra.mxu0 %v2382
        %3250 = vmatprep.subr.bf16.mxu0 %v2381
        %3251 = vmatpush2.bf16.msra.mxu0 %v2380
        %3252 = vmatprep.subr.bf16.mxu0 %v2379
        %3253 = vmatpush2.bf16.msra.mxu0 %v2378
        %3254 = vmatprep.subr.bf16.mxu0 %v2377
        %3255 = vmatpush2.bf16.msra.mxu0 %v2376
        %3256 = vmatprep.mubr.bf16.mxu0 %v1011
        %3257 = vmatmul.mubr.bf16.gmra.mxu0 %v1010
        %v3258 = vpop.f32.mrf.mxu0
        %v3259 = vadd.f32 0.0, %v3258
        %v3260 = vpop.f32.mrf.mxu0
        %v3261 = vadd.f32 0.0, %v3260
        %v3262 = vpop.f32.mrf.mxu0
        %v3263 = vadd.f32 0.0, %v3262
        %v3264 = vpop.f32.mrf.mxu0
        %v3265 = vadd.f32 0.0, %v3264
        %3266 = vdwg.mxu0
        %3267 = vmatprep.subr.bf16.mxu0 %v2407
        %3268 = vmatpush1.bf16.msra.mxu0 %v2406
        %3269 = vmatprep.subr.bf16.mxu0 %v2405
        %3270 = vmatpush1.bf16.msra.mxu0 %v2404
        %3271 = vmatprep.subr.bf16.mxu0 %v2403
        %3272 = vmatpush1.bf16.msra.mxu0 %v2402
        %3273 = vmatprep.subr.bf16.mxu0 %v2401
        %3274 = vmatpush1.bf16.msra.mxu0 %v2400
        %3275 = vmatprep.subr.bf16.mxu0 %v2399
        %3276 = vmatpush1.bf16.msra.mxu0 %v2398
        %3277 = vmatprep.subr.bf16.mxu0 %v2397
        %3278 = vmatpush1.bf16.msra.mxu0 %v2396
        %3279 = vmatprep.subr.bf16.mxu0 %v2395
        %3280 = vmatpush1.bf16.msra.mxu0 %v2394
        %3281 = vmatprep.subr.bf16.mxu0 %v2393
        %3282 = vmatpush1.bf16.msra.mxu0 %v2392
        %3283 = vmatprep.subr.bf16.mxu0 %v2423
        %3284 = vmatpush2.bf16.msra.mxu0 %v2422
        %3285 = vmatprep.subr.bf16.mxu0 %v2421
        %3286 = vmatpush2.bf16.msra.mxu0 %v2420
        %3287 = vmatprep.subr.bf16.mxu0 %v2419
        %3288 = vmatpush2.bf16.msra.mxu0 %v2418
        %3289 = vmatprep.subr.bf16.mxu0 %v2417
        %3290 = vmatpush2.bf16.msra.mxu0 %v2416
        %3291 = vmatprep.subr.bf16.mxu0 %v2415
        %3292 = vmatpush2.bf16.msra.mxu0 %v2414
        %3293 = vmatprep.subr.bf16.mxu0 %v2413
        %3294 = vmatpush2.bf16.msra.mxu0 %v2412
        %3295 = vmatprep.subr.bf16.mxu0 %v2411
        %3296 = vmatpush2.bf16.msra.mxu0 %v2410
        %3297 = vmatprep.subr.bf16.mxu0 %v2409
        %3298 = vmatpush2.bf16.msra.mxu0 %v2408
        %3299 = vmatprep.mubr.bf16.mxu0 %v1013
        %3300 = vmatmul.mubr.bf16.gmra.mxu0 %v1012
        %v3301 = vpop.f32.mrf.mxu0
        %v3302 = vadd.f32 %v3259, %v3301
        %v3303 = vpop.f32.mrf.mxu0
        %v3304 = vadd.f32 %v3261, %v3303
        %v3305 = vpop.f32.mrf.mxu0
        %v3306 = vadd.f32 %v3263, %v3305
        %v3307 = vpop.f32.mrf.mxu0
        %v3308 = vadd.f32 %v3265, %v3307
        %3309 = vdwg.mxu0
        %3310 = vmatprep.subr.bf16.mxu0 %v2439
        %3311 = vmatpush1.bf16.msra.mxu0 %v2438
        %3312 = vmatprep.subr.bf16.mxu0 %v2437
        %3313 = vmatpush1.bf16.msra.mxu0 %v2436
        %3314 = vmatprep.subr.bf16.mxu0 %v2435
        %3315 = vmatpush1.bf16.msra.mxu0 %v2434
        %3316 = vmatprep.subr.bf16.mxu0 %v2433
        %3317 = vmatpush1.bf16.msra.mxu0 %v2432
        %3318 = vmatprep.subr.bf16.mxu0 %v2431
        %3319 = vmatpush1.bf16.msra.mxu0 %v2430
        %3320 = vmatprep.subr.bf16.mxu0 %v2429
        %3321 = vmatpush1.bf16.msra.mxu0 %v2428
        %3322 = vmatprep.subr.bf16.mxu0 %v2427
        %3323 = vmatpush1.bf16.msra.mxu0 %v2426
        %3324 = vmatprep.subr.bf16.mxu0 %v2425
        %3325 = vmatpush1.bf16.msra.mxu0 %v2424
        %3326 = vmatprep.subr.bf16.mxu0 %v2455
        %3327 = vmatpush2.bf16.msra.mxu0 %v2454
        %3328 = vmatprep.subr.bf16.mxu0 %v2453
        %3329 = vmatpush2.bf16.msra.mxu0 %v2452
        %3330 = vmatprep.subr.bf16.mxu0 %v2451
        %3331 = vmatpush2.bf16.msra.mxu0 %v2450
        %3332 = vmatprep.subr.bf16.mxu0 %v2449
        %3333 = vmatpush2.bf16.msra.mxu0 %v2448
        %3334 = vmatprep.subr.bf16.mxu0 %v2447
        %3335 = vmatpush2.bf16.msra.mxu0 %v2446
        %3336 = vmatprep.subr.bf16.mxu0 %v2445
        %3337 = vmatpush2.bf16.msra.mxu0 %v2444
        %3338 = vmatprep.subr.bf16.mxu0 %v2443
        %3339 = vmatpush2.bf16.msra.mxu0 %v2442
        %3340 = vmatprep.subr.bf16.mxu0 %v2441
        %3341 = vmatpush2.bf16.msra.mxu0 %v2440
        %3342 = vmatprep.mubr.bf16.mxu0 %v1015
        %3343 = vmatmul.mubr.bf16.gmra.mxu0 %v1014
        %v3344 = vpop.f32.mrf.mxu0
        %v3345 = vadd.f32 %v3302, %v3344
        %v3346 = vpop.f32.mrf.mxu0
        %v3347 = vadd.f32 %v3304, %v3346
        %v3348 = vpop.f32.mrf.mxu0
        %v3349 = vadd.f32 %v3306, %v3348
        %v3350 = vpop.f32.mrf.mxu0
        %v3351 = vadd.f32 %v3308, %v3350
        %3352 = vdwg.mxu0
        %3353 = vmatprep.subr.bf16.mxu0 %v2471
        %3354 = vmatpush1.bf16.msra.mxu0 %v2470
        %3355 = vmatprep.subr.bf16.mxu0 %v2469
        %3356 = vmatpush1.bf16.msra.mxu0 %v2468
        %3357 = vmatprep.subr.bf16.mxu0 %v2467
        %3358 = vmatpush1.bf16.msra.mxu0 %v2466
        %3359 = vmatprep.subr.bf16.mxu0 %v2465
        %3360 = vmatpush1.bf16.msra.mxu0 %v2464
        %3361 = vmatprep.subr.bf16.mxu0 %v2463
        %3362 = vmatpush1.bf16.msra.mxu0 %v2462
        %3363 = vmatprep.subr.bf16.mxu0 %v2461
        %3364 = vmatpush1.bf16.msra.mxu0 %v2460
        %3365 = vmatprep.subr.bf16.mxu0 %v2459
        %3366 = vmatpush1.bf16.msra.mxu0 %v2458
        %3367 = vmatprep.subr.bf16.mxu0 %v2457
        %3368 = vmatpush1.bf16.msra.mxu0 %v2456
        %3369 = vmatprep.subr.bf16.mxu0 %v2487
        %3370 = vmatpush2.bf16.msra.mxu0 %v2486
        %3371 = vmatprep.subr.bf16.mxu0 %v2485
        %3372 = vmatpush2.bf16.msra.mxu0 %v2484
        %3373 = vmatprep.subr.bf16.mxu0 %v2483
        %3374 = vmatpush2.bf16.msra.mxu0 %v2482
        %3375 = vmatprep.subr.bf16.mxu0 %v2481
        %3376 = vmatpush2.bf16.msra.mxu0 %v2480
        %3377 = vmatprep.subr.bf16.mxu0 %v2479
        %3378 = vmatpush2.bf16.msra.mxu0 %v2478
        %3379 = vmatprep.subr.bf16.mxu0 %v2477
        %3380 = vmatpush2.bf16.msra.mxu0 %v2476
        %3381 = vmatprep.subr.bf16.mxu0 %v2475
        %3382 = vmatpush2.bf16.msra.mxu0 %v2474
        %3383 = vmatprep.subr.bf16.mxu0 %v2473
        %3384 = vmatpush2.bf16.msra.mxu0 %v2472
        %3385 = vmatprep.mubr.bf16.mxu0 %v1017
        %3386 = vmatmul.mubr.bf16.gmra.mxu0 %v1016
        %v3387 = vpop.f32.mrf.mxu0
        %v3388 = vadd.f32 %v3345, %v3387
        %v3389 = vpop.f32.mrf.mxu0
        %v3390 = vadd.f32 %v3347, %v3389
        %v3391 = vpop.f32.mrf.mxu0
        %v3392 = vadd.f32 %v3349, %v3391
        %v3393 = vpop.f32.mrf.mxu0
        %v3394 = vadd.f32 %v3351, %v3393
        %3395 = vdwg.mxu0
        %3396 = vmatprep.subr.bf16.mxu0 %v2503
        %3397 = vmatpush1.bf16.msra.mxu0 %v2502
        %3398 = vmatprep.subr.bf16.mxu0 %v2501
        %3399 = vmatpush1.bf16.msra.mxu0 %v2500
        %3400 = vmatprep.subr.bf16.mxu0 %v2499
        %3401 = vmatpush1.bf16.msra.mxu0 %v2498
        %3402 = vmatprep.subr.bf16.mxu0 %v2497
        %3403 = vmatpush1.bf16.msra.mxu0 %v2496
        %3404 = vmatprep.subr.bf16.mxu0 %v2495
        %3405 = vmatpush1.bf16.msra.mxu0 %v2494
        %3406 = vmatprep.subr.bf16.mxu0 %v2493
        %3407 = vmatpush1.bf16.msra.mxu0 %v2492
        %3408 = vmatprep.subr.bf16.mxu0 %v2491
        %3409 = vmatpush1.bf16.msra.mxu0 %v2490
        %3410 = vmatprep.subr.bf16.mxu0 %v2489
        %3411 = vmatpush1.bf16.msra.mxu0 %v2488
        %3412 = vmatprep.subr.bf16.mxu0 %v2519
        %3413 = vmatpush2.bf16.msra.mxu0 %v2518
        %3414 = vmatprep.subr.bf16.mxu0 %v2517
        %3415 = vmatpush2.bf16.msra.mxu0 %v2516
        %3416 = vmatprep.subr.bf16.mxu0 %v2515
        %3417 = vmatpush2.bf16.msra.mxu0 %v2514
        %3418 = vmatprep.subr.bf16.mxu0 %v2513
        %3419 = vmatpush2.bf16.msra.mxu0 %v2512
        %3420 = vmatprep.subr.bf16.mxu0 %v2511
        %3421 = vmatpush2.bf16.msra.mxu0 %v2510
        %3422 = vmatprep.subr.bf16.mxu0 %v2509
        %3423 = vmatpush2.bf16.msra.mxu0 %v2508
        %3424 = vmatprep.subr.bf16.mxu0 %v2507
        %3425 = vmatpush2.bf16.msra.mxu0 %v2506
        %3426 = vmatprep.subr.bf16.mxu0 %v2505
        %3427 = vmatpush2.bf16.msra.mxu0 %v2504
        %3428 = vmatprep.mubr.bf16.mxu0 %v1019
        %3429 = vmatmul.mubr.bf16.gmra.mxu0 %v1018
        %v3430 = vpop.f32.mrf.mxu0
        %v3431 = vadd.f32 %v3388, %v3430
        %v3432 = vpop.f32.mrf.mxu0
        %v3433 = vadd.f32 %v3390, %v3432
        %v3434 = vpop.f32.mrf.mxu0
        %v3435 = vadd.f32 %v3392, %v3434
        %v3436 = vpop.f32.mrf.mxu0
        %v3437 = vadd.f32 %v3394, %v3436
        %3438 = vdwg.mxu0
        %3439 = vmatprep.subr.bf16.mxu0 %v2535
        %3440 = vmatpush1.bf16.msra.mxu0 %v2534
        %3441 = vmatprep.subr.bf16.mxu0 %v2533
        %3442 = vmatpush1.bf16.msra.mxu0 %v2532
        %3443 = vmatprep.subr.bf16.mxu0 %v2531
        %3444 = vmatpush1.bf16.msra.mxu0 %v2530
        %3445 = vmatprep.subr.bf16.mxu0 %v2529
        %3446 = vmatpush1.bf16.msra.mxu0 %v2528
        %3447 = vmatprep.subr.bf16.mxu0 %v2527
        %3448 = vmatpush1.bf16.msra.mxu0 %v2526
        %3449 = vmatprep.subr.bf16.mxu0 %v2525
        %3450 = vmatpush1.bf16.msra.mxu0 %v2524
        %3451 = vmatprep.subr.bf16.mxu0 %v2523
        %3452 = vmatpush1.bf16.msra.mxu0 %v2522
        %3453 = vmatprep.subr.bf16.mxu0 %v2521
        %3454 = vmatpush1.bf16.msra.mxu0 %v2520
        %3455 = vmatprep.subr.bf16.mxu0 %v2551
        %3456 = vmatpush2.bf16.msra.mxu0 %v2550
        %3457 = vmatprep.subr.bf16.mxu0 %v2549
        %3458 = vmatpush2.bf16.msra.mxu0 %v2548
        %3459 = vmatprep.subr.bf16.mxu0 %v2547
        %3460 = vmatpush2.bf16.msra.mxu0 %v2546
        %3461 = vmatprep.subr.bf16.mxu0 %v2545
        %3462 = vmatpush2.bf16.msra.mxu0 %v2544
        %3463 = vmatprep.subr.bf16.mxu0 %v2543
        %3464 = vmatpush2.bf16.msra.mxu0 %v2542
        %3465 = vmatprep.subr.bf16.mxu0 %v2541
        %3466 = vmatpush2.bf16.msra.mxu0 %v2540
        %3467 = vmatprep.subr.bf16.mxu0 %v2539
        %3468 = vmatpush2.bf16.msra.mxu0 %v2538
        %3469 = vmatprep.subr.bf16.mxu0 %v2537
        %3470 = vmatpush2.bf16.msra.mxu0 %v2536
        %3471 = vmatprep.mubr.bf16.mxu0 %v1021
        %3472 = vmatmul.mubr.bf16.gmra.mxu0 %v1020
        %v3473 = vpop.f32.mrf.mxu0
        %v3474 = vadd.f32 %v3431, %v3473
        %v3475 = vpop.f32.mrf.mxu0
        %v3476 = vadd.f32 %v3433, %v3475
        %v3477 = vpop.f32.mrf.mxu0
        %v3478 = vadd.f32 %v3435, %v3477
        %v3479 = vpop.f32.mrf.mxu0
        %v3480 = vadd.f32 %v3437, %v3479
        %3481 = vdwg.mxu0
        %3482 = vmatprep.subr.bf16.mxu0 %v2567
        %3483 = vmatpush1.bf16.msra.mxu0 %v2566
        %3484 = vmatprep.subr.bf16.mxu0 %v2565
        %3485 = vmatpush1.bf16.msra.mxu0 %v2564
        %3486 = vmatprep.subr.bf16.mxu0 %v2563
        %3487 = vmatpush1.bf16.msra.mxu0 %v2562
        %3488 = vmatprep.subr.bf16.mxu0 %v2561
        %3489 = vmatpush1.bf16.msra.mxu0 %v2560
        %3490 = vmatprep.subr.bf16.mxu0 %v2559
        %3491 = vmatpush1.bf16.msra.mxu0 %v2558
        %3492 = vmatprep.subr.bf16.mxu0 %v2557
        %3493 = vmatpush1.bf16.msra.mxu0 %v2556
        %3494 = vmatprep.subr.bf16.mxu0 %v2555
        %3495 = vmatpush1.bf16.msra.mxu0 %v2554
        %3496 = vmatprep.subr.bf16.mxu0 %v2553
        %3497 = vmatpush1.bf16.msra.mxu0 %v2552
        %3498 = vmatprep.subr.bf16.mxu0 %v2583
        %3499 = vmatpush2.bf16.msra.mxu0 %v2582
        %3500 = vmatprep.subr.bf16.mxu0 %v2581
        %3501 = vmatpush2.bf16.msra.mxu0 %v2580
        %3502 = vmatprep.subr.bf16.mxu0 %v2579
        %3503 = vmatpush2.bf16.msra.mxu0 %v2578
        %3504 = vmatprep.subr.bf16.mxu0 %v2577
        %3505 = vmatpush2.bf16.msra.mxu0 %v2576
        %3506 = vmatprep.subr.bf16.mxu0 %v2575
        %3507 = vmatpush2.bf16.msra.mxu0 %v2574
        %3508 = vmatprep.subr.bf16.mxu0 %v2573
        %3509 = vmatpush2.bf16.msra.mxu0 %v2572
        %3510 = vmatprep.subr.bf16.mxu0 %v2571
        %3511 = vmatpush2.bf16.msra.mxu0 %v2570
        %3512 = vmatprep.subr.bf16.mxu0 %v2569
        %3513 = vmatpush2.bf16.msra.mxu0 %v2568
        %3514 = vmatprep.mubr.bf16.mxu0 %v1023
        %3515 = vmatmul.mubr.bf16.gmra.mxu0 %v1022
        %v3516 = vpop.f32.mrf.mxu0
        %v3517 = vadd.f32 %v3474, %v3516
        %v3518 = vpop.f32.mrf.mxu0
        %v3519 = vadd.f32 %v3476, %v3518
        %v3520 = vpop.f32.mrf.mxu0
        %v3521 = vadd.f32 %v3478, %v3520
        %v3522 = vpop.f32.mrf.mxu0
        %v3523 = vadd.f32 %v3480, %v3522
        %3524 = vdwg.mxu0
        %3525 = vmatprep.subr.bf16.mxu0 %v2599
        %3526 = vmatpush1.bf16.msra.mxu0 %v2598
        %3527 = vmatprep.subr.bf16.mxu0 %v2597
        %3528 = vmatpush1.bf16.msra.mxu0 %v2596
        %3529 = vmatprep.subr.bf16.mxu0 %v2595
        %3530 = vmatpush1.bf16.msra.mxu0 %v2594
        %3531 = vmatprep.subr.bf16.mxu0 %v2593
        %3532 = vmatpush1.bf16.msra.mxu0 %v2592
        %3533 = vmatprep.subr.bf16.mxu0 %v2591
        %3534 = vmatpush1.bf16.msra.mxu0 %v2590
        %3535 = vmatprep.subr.bf16.mxu0 %v2589
        %3536 = vmatpush1.bf16.msra.mxu0 %v2588
        %3537 = vmatprep.subr.bf16.mxu0 %v2587
        %3538 = vmatpush1.bf16.msra.mxu0 %v2586
        %3539 = vmatprep.subr.bf16.mxu0 %v2585
        %3540 = vmatpush1.bf16.msra.mxu0 %v2584
        %3541 = vmatprep.subr.bf16.mxu0 %v2615
        %3542 = vmatpush2.bf16.msra.mxu0 %v2614
        %3543 = vmatprep.subr.bf16.mxu0 %v2613
        %3544 = vmatpush2.bf16.msra.mxu0 %v2612
        %3545 = vmatprep.subr.bf16.mxu0 %v2611
        %3546 = vmatpush2.bf16.msra.mxu0 %v2610
        %3547 = vmatprep.subr.bf16.mxu0 %v2609
        %3548 = vmatpush2.bf16.msra.mxu0 %v2608
        %3549 = vmatprep.subr.bf16.mxu0 %v2607
        %3550 = vmatpush2.bf16.msra.mxu0 %v2606
        %3551 = vmatprep.subr.bf16.mxu0 %v2605
        %3552 = vmatpush2.bf16.msra.mxu0 %v2604
        %3553 = vmatprep.subr.bf16.mxu0 %v2603
        %3554 = vmatpush2.bf16.msra.mxu0 %v2602
        %3555 = vmatprep.subr.bf16.mxu0 %v2601
        %3556 = vmatpush2.bf16.msra.mxu0 %v2600
        %3557 = vmatprep.mubr.bf16.mxu0 %v1025
        %3558 = vmatmul.mubr.bf16.gmra.mxu0 %v1024
        %v3559 = vpop.f32.mrf.mxu0
        %v3560 = vadd.f32 %v3517, %v3559
        %v3561 = vpop.f32.mrf.mxu0
        %v3562 = vadd.f32 %v3519, %v3561
        %v3563 = vpop.f32.mrf.mxu0
        %v3564 = vadd.f32 %v3521, %v3563
        %v3565 = vpop.f32.mrf.mxu0
        %v3566 = vadd.f32 %v3523, %v3565
        %3567 = vdwg.mxu0
        %3568 = vmatprep.subr.bf16.mxu0 %v2631
        %3569 = vmatpush1.bf16.msra.mxu0 %v2630
        %3570 = vmatprep.subr.bf16.mxu0 %v2629
        %3571 = vmatpush1.bf16.msra.mxu0 %v2628
        %3572 = vmatprep.subr.bf16.mxu0 %v2627
        %3573 = vmatpush1.bf16.msra.mxu0 %v2626
        %3574 = vmatprep.subr.bf16.mxu0 %v2625
        %3575 = vmatpush1.bf16.msra.mxu0 %v2624
        %3576 = vmatprep.subr.bf16.mxu0 %v2623
        %3577 = vmatpush1.bf16.msra.mxu0 %v2622
        %3578 = vmatprep.subr.bf16.mxu0 %v2621
        %3579 = vmatpush1.bf16.msra.mxu0 %v2620
        %3580 = vmatprep.subr.bf16.mxu0 %v2619
        %3581 = vmatpush1.bf16.msra.mxu0 %v2618
        %3582 = vmatprep.subr.bf16.mxu0 %v2617
        %3583 = vmatpush1.bf16.msra.mxu0 %v2616
        %3584 = vmatprep.subr.bf16.mxu0 %v2647
        %3585 = vmatpush2.bf16.msra.mxu0 %v2646
        %3586 = vmatprep.subr.bf16.mxu0 %v2645
        %3587 = vmatpush2.bf16.msra.mxu0 %v2644
        %3588 = vmatprep.subr.bf16.mxu0 %v2643
        %3589 = vmatpush2.bf16.msra.mxu0 %v2642
        %3590 = vmatprep.subr.bf16.mxu0 %v2641
        %3591 = vmatpush2.bf16.msra.mxu0 %v2640
        %3592 = vmatprep.subr.bf16.mxu0 %v2639
        %3593 = vmatpush2.bf16.msra.mxu0 %v2638
        %3594 = vmatprep.subr.bf16.mxu0 %v2637
        %3595 = vmatpush2.bf16.msra.mxu0 %v2636
        %3596 = vmatprep.subr.bf16.mxu0 %v2635
        %3597 = vmatpush2.bf16.msra.mxu0 %v2634
        %3598 = vmatprep.subr.bf16.mxu0 %v2633
        %3599 = vmatpush2.bf16.msra.mxu0 %v2632
        %3600 = vmatprep.mubr.bf16.mxu0 %v1027
        %3601 = vmatmul.mubr.bf16.gmra.mxu0 %v1026
        %v3602 = vpop.f32.mrf.mxu0
        %v3603 = vadd.f32 %v3560, %v3602
        %v3604 = vpop.f32.mrf.mxu0
        %v3605 = vadd.f32 %v3562, %v3604
        %v3606 = vpop.f32.mrf.mxu0
        %v3607 = vadd.f32 %v3564, %v3606
        %v3608 = vpop.f32.mrf.mxu0
        %v3609 = vadd.f32 %v3566, %v3608
        %3610 = vdwg.mxu0
        %3611 = vmatprep.subr.bf16.mxu0 %v2663
        %3612 = vmatpush1.bf16.msra.mxu0 %v2662
        %3613 = vmatprep.subr.bf16.mxu0 %v2661
        %3614 = vmatpush1.bf16.msra.mxu0 %v2660
        %3615 = vmatprep.subr.bf16.mxu0 %v2659
        %3616 = vmatpush1.bf16.msra.mxu0 %v2658
        %3617 = vmatprep.subr.bf16.mxu0 %v2657
        %3618 = vmatpush1.bf16.msra.mxu0 %v2656
        %3619 = vmatprep.subr.bf16.mxu0 %v2655
        %3620 = vmatpush1.bf16.msra.mxu0 %v2654
        %3621 = vmatprep.subr.bf16.mxu0 %v2653
        %3622 = vmatpush1.bf16.msra.mxu0 %v2652
        %3623 = vmatprep.subr.bf16.mxu0 %v2651
        %3624 = vmatpush1.bf16.msra.mxu0 %v2650
        %3625 = vmatprep.subr.bf16.mxu0 %v2649
        %3626 = vmatpush1.bf16.msra.mxu0 %v2648
        %3627 = vmatprep.subr.bf16.mxu0 %v2679
        %3628 = vmatpush2.bf16.msra.mxu0 %v2678
        %3629 = vmatprep.subr.bf16.mxu0 %v2677
        %3630 = vmatpush2.bf16.msra.mxu0 %v2676
        %3631 = vmatprep.subr.bf16.mxu0 %v2675
        %3632 = vmatpush2.bf16.msra.mxu0 %v2674
        %3633 = vmatprep.subr.bf16.mxu0 %v2673
        %3634 = vmatpush2.bf16.msra.mxu0 %v2672
        %3635 = vmatprep.subr.bf16.mxu0 %v2671
        %3636 = vmatpush2.bf16.msra.mxu0 %v2670
        %3637 = vmatprep.subr.bf16.mxu0 %v2669
        %3638 = vmatpush2.bf16.msra.mxu0 %v2668
        %3639 = vmatprep.subr.bf16.mxu0 %v2667
        %3640 = vmatpush2.bf16.msra.mxu0 %v2666
        %3641 = vmatprep.subr.bf16.mxu0 %v2665
        %3642 = vmatpush2.bf16.msra.mxu0 %v2664
        %3643 = vmatprep.mubr.bf16.mxu0 %v1029
        %3644 = vmatmul.mubr.bf16.gmra.mxu0 %v1028
        %v3645 = vpop.f32.mrf.mxu0
        %v3646 = vadd.f32 %v3603, %v3645
        %v3647 = vpop.f32.mrf.mxu0
        %v3648 = vadd.f32 %v3605, %v3647
        %v3649 = vpop.f32.mrf.mxu0
        %v3650 = vadd.f32 %v3607, %v3649
        %v3651 = vpop.f32.mrf.mxu0
        %v3652 = vadd.f32 %v3609, %v3651
        %3653 = vdwg.mxu0
        %3654 = vmatprep.subr.bf16.mxu0 %v2695
        %3655 = vmatpush1.bf16.msra.mxu0 %v2694
        %3656 = vmatprep.subr.bf16.mxu0 %v2693
        %3657 = vmatpush1.bf16.msra.mxu0 %v2692
        %3658 = vmatprep.subr.bf16.mxu0 %v2691
        %3659 = vmatpush1.bf16.msra.mxu0 %v2690
        %3660 = vmatprep.subr.bf16.mxu0 %v2689
        %3661 = vmatpush1.bf16.msra.mxu0 %v2688
        %3662 = vmatprep.subr.bf16.mxu0 %v2687
        %3663 = vmatpush1.bf16.msra.mxu0 %v2686
        %3664 = vmatprep.subr.bf16.mxu0 %v2685
        %3665 = vmatpush1.bf16.msra.mxu0 %v2684
        %3666 = vmatprep.subr.bf16.mxu0 %v2683
        %3667 = vmatpush1.bf16.msra.mxu0 %v2682
        %3668 = vmatprep.subr.bf16.mxu0 %v2681
        %3669 = vmatpush1.bf16.msra.mxu0 %v2680
        %3670 = vmatprep.subr.bf16.mxu0 %v2711
        %3671 = vmatpush2.bf16.msra.mxu0 %v2710
        %3672 = vmatprep.subr.bf16.mxu0 %v2709
        %3673 = vmatpush2.bf16.msra.mxu0 %v2708
        %3674 = vmatprep.subr.bf16.mxu0 %v2707
        %3675 = vmatpush2.bf16.msra.mxu0 %v2706
        %3676 = vmatprep.subr.bf16.mxu0 %v2705
        %3677 = vmatpush2.bf16.msra.mxu0 %v2704
        %3678 = vmatprep.subr.bf16.mxu0 %v2703
        %3679 = vmatpush2.bf16.msra.mxu0 %v2702
        %3680 = vmatprep.subr.bf16.mxu0 %v2701
        %3681 = vmatpush2.bf16.msra.mxu0 %v2700
        %3682 = vmatprep.subr.bf16.mxu0 %v2699
        %3683 = vmatpush2.bf16.msra.mxu0 %v2698
        %3684 = vmatprep.subr.bf16.mxu0 %v2697
        %3685 = vmatpush2.bf16.msra.mxu0 %v2696
        %3686 = vmatprep.mubr.bf16.mxu0 %v1031
        %3687 = vmatmul.mubr.bf16.gmra.mxu0 %v1030
        %v3688 = vpop.f32.mrf.mxu0
        %v3689 = vadd.f32 %v3646, %v3688
        %v3690 = vpop.f32.mrf.mxu0
        %v3691 = vadd.f32 %v3648, %v3690
        %v3692 = vpop.f32.mrf.mxu0
        %v3693 = vadd.f32 %v3650, %v3692
        %v3694 = vpop.f32.mrf.mxu0
        %v3695 = vadd.f32 %v3652, %v3694
        %3696 = vdwg.mxu0
        %3697 = vmatprep.subr.bf16.mxu0 %v2727
        %3698 = vmatpush1.bf16.msra.mxu0 %v2726
        %3699 = vmatprep.subr.bf16.mxu0 %v2725
        %3700 = vmatpush1.bf16.msra.mxu0 %v2724
        %3701 = vmatprep.subr.bf16.mxu0 %v2723
        %3702 = vmatpush1.bf16.msra.mxu0 %v2722
        %3703 = vmatprep.subr.bf16.mxu0 %v2721
        %3704 = vmatpush1.bf16.msra.mxu0 %v2720
        %3705 = vmatprep.subr.bf16.mxu0 %v2719
        %3706 = vmatpush1.bf16.msra.mxu0 %v2718
        %3707 = vmatprep.subr.bf16.mxu0 %v2717
        %3708 = vmatpush1.bf16.msra.mxu0 %v2716
        %3709 = vmatprep.subr.bf16.mxu0 %v2715
        %3710 = vmatpush1.bf16.msra.mxu0 %v2714
        %3711 = vmatprep.subr.bf16.mxu0 %v2713
        %3712 = vmatpush1.bf16.msra.mxu0 %v2712
        %3713 = vmatprep.subr.bf16.mxu0 %v2743
        %3714 = vmatpush2.bf16.msra.mxu0 %v2742
        %3715 = vmatprep.subr.bf16.mxu0 %v2741
        %3716 = vmatpush2.bf16.msra.mxu0 %v2740
        %3717 = vmatprep.subr.bf16.mxu0 %v2739
        %3718 = vmatpush2.bf16.msra.mxu0 %v2738
        %3719 = vmatprep.subr.bf16.mxu0 %v2737
        %3720 = vmatpush2.bf16.msra.mxu0 %v2736
        %3721 = vmatprep.subr.bf16.mxu0 %v2735
        %3722 = vmatpush2.bf16.msra.mxu0 %v2734
        %3723 = vmatprep.subr.bf16.mxu0 %v2733
        %3724 = vmatpush2.bf16.msra.mxu0 %v2732
        %3725 = vmatprep.subr.bf16.mxu0 %v2731
        %3726 = vmatpush2.bf16.msra.mxu0 %v2730
        %3727 = vmatprep.subr.bf16.mxu0 %v2729
        %3728 = vmatpush2.bf16.msra.mxu0 %v2728
        %3729 = vmatprep.mubr.bf16.mxu0 %v1033
        %3730 = vmatmul.mubr.bf16.gmra.mxu0 %v1032
        %v3731 = vpop.f32.mrf.mxu0
        %v3732 = vadd.f32 %v3689, %v3731
        %v3733 = vpop.f32.mrf.mxu0
        %v3734 = vadd.f32 %v3691, %v3733
        %v3735 = vpop.f32.mrf.mxu0
        %v3736 = vadd.f32 %v3693, %v3735
        %v3737 = vpop.f32.mrf.mxu0
        %v3738 = vadd.f32 %v3695, %v3737
        %3739 = vdwg.mxu0
        %3740 = vmatprep.subr.bf16.mxu0 %v2759
        %3741 = vmatpush1.bf16.msra.mxu0 %v2758
        %3742 = vmatprep.subr.bf16.mxu0 %v2757
        %3743 = vmatpush1.bf16.msra.mxu0 %v2756
        %3744 = vmatprep.subr.bf16.mxu0 %v2755
        %3745 = vmatpush1.bf16.msra.mxu0 %v2754
        %3746 = vmatprep.subr.bf16.mxu0 %v2753
        %3747 = vmatpush1.bf16.msra.mxu0 %v2752
        %3748 = vmatprep.subr.bf16.mxu0 %v2751
        %3749 = vmatpush1.bf16.msra.mxu0 %v2750
        %3750 = vmatprep.subr.bf16.mxu0 %v2749
        %3751 = vmatpush1.bf16.msra.mxu0 %v2748
        %3752 = vmatprep.subr.bf16.mxu0 %v2747
        %3753 = vmatpush1.bf16.msra.mxu0 %v2746
        %3754 = vmatprep.subr.bf16.mxu0 %v2745
        %3755 = vmatpush1.bf16.msra.mxu0 %v2744
        %3756 = vmatprep.subr.bf16.mxu0 %v2775
        %3757 = vmatpush2.bf16.msra.mxu0 %v2774
        %3758 = vmatprep.subr.bf16.mxu0 %v2773
        %3759 = vmatpush2.bf16.msra.mxu0 %v2772
        %3760 = vmatprep.subr.bf16.mxu0 %v2771
        %3761 = vmatpush2.bf16.msra.mxu0 %v2770
        %3762 = vmatprep.subr.bf16.mxu0 %v2769
        %3763 = vmatpush2.bf16.msra.mxu0 %v2768
        %3764 = vmatprep.subr.bf16.mxu0 %v2767
        %3765 = vmatpush2.bf16.msra.mxu0 %v2766
        %3766 = vmatprep.subr.bf16.mxu0 %v2765
        %3767 = vmatpush2.bf16.msra.mxu0 %v2764
        %3768 = vmatprep.subr.bf16.mxu0 %v2763
        %3769 = vmatpush2.bf16.msra.mxu0 %v2762
        %3770 = vmatprep.subr.bf16.mxu0 %v2761
        %3771 = vmatpush2.bf16.msra.mxu0 %v2760
        %3772 = vmatprep.mubr.bf16.mxu0 %v1035
        %3773 = vmatmul.mubr.bf16.gmra.mxu0 %v1034
        %v3774 = vpop.f32.mrf.mxu0
        %v3775 = vadd.f32 %v3732, %v3774
        %v3776 = vpop.f32.mrf.mxu0
        %v3777 = vadd.f32 %v3734, %v3776
        %v3778 = vpop.f32.mrf.mxu0
        %v3779 = vadd.f32 %v3736, %v3778
        %v3780 = vpop.f32.mrf.mxu0
        %v3781 = vadd.f32 %v3738, %v3780
        %3782 = vdwg.mxu0
        %3783 = vmatprep.subr.bf16.mxu0 %v2791
        %3784 = vmatpush1.bf16.msra.mxu0 %v2790
        %3785 = vmatprep.subr.bf16.mxu0 %v2789
        %3786 = vmatpush1.bf16.msra.mxu0 %v2788
        %3787 = vmatprep.subr.bf16.mxu0 %v2787
        %3788 = vmatpush1.bf16.msra.mxu0 %v2786
        %3789 = vmatprep.subr.bf16.mxu0 %v2785
        %3790 = vmatpush1.bf16.msra.mxu0 %v2784
        %3791 = vmatprep.subr.bf16.mxu0 %v2783
        %3792 = vmatpush1.bf16.msra.mxu0 %v2782
        %3793 = vmatprep.subr.bf16.mxu0 %v2781
        %3794 = vmatpush1.bf16.msra.mxu0 %v2780
        %3795 = vmatprep.subr.bf16.mxu0 %v2779
        %3796 = vmatpush1.bf16.msra.mxu0 %v2778
        %3797 = vmatprep.subr.bf16.mxu0 %v2777
        %3798 = vmatpush1.bf16.msra.mxu0 %v2776
        %3799 = vmatprep.subr.bf16.mxu0 0
        %3800 = vmatpush2.bf16.msra.mxu0 0
        %3801 = vmatprep.subr.bf16.mxu0 0
        %3802 = vmatpush2.bf16.msra.mxu0 0
        %3803 = vmatprep.subr.bf16.mxu0 0
        %3804 = vmatpush2.bf16.msra.mxu0 0
        %3805 = vmatprep.subr.bf16.mxu0 0
        %3806 = vmatpush2.bf16.msra.mxu0 0
        %3807 = vmatprep.subr.bf16.mxu0 0
        %3808 = vmatpush2.bf16.msra.mxu0 0
        %3809 = vmatprep.subr.bf16.mxu0 0
        %3810 = vmatpush2.bf16.msra.mxu0 0
        %3811 = vmatprep.subr.bf16.mxu0 0
        %3812 = vmatpush2.bf16.msra.mxu0 0
        %3813 = vmatprep.subr.bf16.mxu0 0
        %3814 = vmatpush2.bf16.msra.mxu0 0
        %3815 = vmatprep.mubr.bf16.mxu0 0
        %3816 = vmatmul.mubr.bf16.gmra.mxu0 %v1036
        %v3817 = vpop.f32.mrf.mxu0
        %v3818 = vadd.f32 %v3775, %v3817
        %v3819 = vpop.f32.mrf.mxu0
        %v3820 = vadd.f32 %v3777, %v3819
        %v3821 = vpop.f32.mrf.mxu0
        %v3822 = vadd.f32 %v3779, %v3821
        %v3823 = vpop.f32.mrf.mxu0
        %v3824 = vadd.f32 %v3781, %v3823
        %3825 = vdwg.mxu0
        %v3826 = vadd.f32 %v464, %v3818
        %v3827 = vadd.f32 %v465, %v3820
        %v3828 = vadd.f32 %v466, %v3822
        %v3829 = vadd.f32 %v467, %v3824
        %3830 = vst [vmem:[#allocation2] sm:$0xff] %v3826
        %3831 = vst [vmem:[#allocation2 + $0x8] sm:$0xff] %v3827
        %3832 = vst [vmem:[#allocation2 + $0x10] sm:$0xff] %v3828
        %3833 = vst [vmem:[#allocation2 + $0x18] sm:$0xff] %v3829
        %p3834 = scmp.eq.s32.totalorder %s21, 1
        // Predicated region
        $region91: #{_lambda_.3} parent=81 // pred_check
          %p3835 = pneg %p3834
        $region92: #{_lambda_.3} parent=81 // pred_check_branch
          %3837 = sbr.rel (%p3835) target = $region94
        $region93: #{_lambda_.3} parent=81 // pred_region
          %v3838 = vld [vmem:[#allocation2] sm:$0xff]
          %v3839 = vld [vmem:[#allocation2 + $0x8] sm:$0xff]
          %v3840 = vld [vmem:[#allocation2 + $0x10] sm:$0xff]
          %v3841 = vld [vmem:[#allocation2 + $0x18] sm:$0xff]
          %vm3842 = vcmp.gt.f32.partialorder %v3838, 0.0
          %vm3843 = vcmp.gt.f32.partialorder %v3839, 0.0
          %vm3844 = vcmp.gt.f32.partialorder %v3840, 0.0
          %vm3845 = vcmp.gt.f32.partialorder %v3841, 0.0
          %v3846 = vmul.f32 %v3838, 0.01
          %v3847 = vmul.f32 %v3839, 0.01
          %v3848 = vmul.f32 %v3840, 0.01
          %v3849 = vmul.f32 %v3841, 0.01
          %v3850 = vsel %vm3842, %v3838, %v3846
          %v3851 = vsel %vm3843, %v3839, %v3847
          %v3852 = vsel %vm3844, %v3840, %v3848
          %v3853 = vsel %vm3845, %v3841, %v3849
          %v3854 = vpack.c.bf16 %v3852, %v3850
          %v3855 = vpack.c.bf16 %v3853, %v3851
          %v3856 = vld [vmem:[%s2] sm:$0xff]
          %v3857 = vld [vmem:[%s2 + $0x8] sm:$0xff]
          %v3858 = vld [vmem:[%s2 + $0x10] sm:$0xff]
          %v3859 = vld [vmem:[%s2 + $0x18] sm:$0xff]
          %v3860 = vld [vmem:[%s2 + $0x20] sm:$0xff]
          %v3861 = vld [vmem:[%s2 + $0x28] sm:$0xff]
          %v3862 = vld [vmem:[%s2 + $0x30] sm:$0xff]
          %v3863 = vld [vmem:[%s2 + $0x38] sm:$0xff]
          %v3864 = vld [vmem:[%s2 + $0x40] sm:$0xff]
          %v3865 = vld [vmem:[%s2 + $0x48] sm:$0xff]
          %v3866 = vld [vmem:[%s2 + $0x50] sm:$0xff]
          %v3867 = vld [vmem:[%s2 + $0x58] sm:$0xff]
          %v3868 = vld [vmem:[%s2 + $0x60] sm:$0xff]
          %v3869 = vld [vmem:[%s2 + $0x68] sm:$0xff]
          %v3870 = vld [vmem:[%s2 + $0x70] sm:$0xff]
          %v3871 = vld [vmem:[%s2 + $0x78] sm:$0xff]
          %v3872 = vld [vmem:[%s2 + $0x80] sm:$0xff]
          %v3873 = vld [vmem:[%s2 + $0x88] sm:$0xff]
          %v3874 = vld [vmem:[%s2 + $0x90] sm:$0xff]
          %v3875 = vld [vmem:[%s2 + $0x98] sm:$0xff]
          %v3876 = vld [vmem:[%s2 + $0xa0] sm:$0xff]
          %v3877 = vld [vmem:[%s2 + $0xa8] sm:$0xff]
          %v3878 = vld [vmem:[%s2 + $0xb0] sm:$0xff]
          %v3879 = vld [vmem:[%s2 + $0xb8] sm:$0xff]
          %v3880 = vld [vmem:[%s2 + $0xc0] sm:$0xff]
          %v3881 = vld [vmem:[%s2 + $0xc8] sm:$0xff]
          %v3882 = vld [vmem:[%s2 + $0xd0] sm:$0xff]
          %v3883 = vld [vmem:[%s2 + $0xd8] sm:$0xff]
          %v3884 = vld [vmem:[%s2 + $0xe0] sm:$0xff]
          %v3885 = vld [vmem:[%s2 + $0xe8] sm:$0xff]
          %v3886 = vld [vmem:[%s2 + $0xf0] sm:$0xff]
          %v3887 = vld [vmem:[%s2 + $0xf8] sm:$0xff]
          %v3888 = vld [vmem:[%s2 + $0x100] sm:$0xff]
          %v3889 = vld [vmem:[%s2 + $0x108] sm:$0xff]
          %v3890 = vld [vmem:[%s2 + $0x110] sm:$0xff]
          %v3891 = vld [vmem:[%s2 + $0x118] sm:$0xff]
          %v3892 = vld [vmem:[%s2 + $0x120] sm:$0xff]
          %v3893 = vld [vmem:[%s2 + $0x128] sm:$0xff]
          %v3894 = vld [vmem:[%s2 + $0x130] sm:$0xff]
          %v3895 = vld [vmem:[%s2 + $0x138] sm:$0xff]
          %v3896 = vld [vmem:[%s2 + $0x140] sm:$0xff]
          %v3897 = vld [vmem:[%s2 + $0x148] sm:$0xff]
          %v3898 = vld [vmem:[%s2 + $0x150] sm:$0xff]
          %v3899 = vld [vmem:[%s2 + $0x158] sm:$0xff]
          %v3900 = vld [vmem:[%s2 + $0x160] sm:$0xff]
          %v3901 = vld [vmem:[%s2 + $0x168] sm:$0xff]
          %v3902 = vld [vmem:[%s2 + $0x170] sm:$0xff]
          %v3903 = vld [vmem:[%s2 + $0x178] sm:$0xff]
          %v3904 = vld [vmem:[%s2 + $0x180] sm:$0xff]
          %v3905 = vld [vmem:[%s2 + $0x188] sm:$0xff]
          %v3906 = vld [vmem:[%s2 + $0x190] sm:$0xff]
          %v3907 = vld [vmem:[%s2 + $0x198] sm:$0xff]
          %v3908 = vld [vmem:[%s2 + $0x1a0] sm:$0xff]
          %v3909 = vld [vmem:[%s2 + $0x1a8] sm:$0xff]
          %v3910 = vld [vmem:[%s2 + $0x1b0] sm:$0xff]
          %v3911 = vld [vmem:[%s2 + $0x1b8] sm:$0xff]
          %v3912 = vld [vmem:[%s2 + $0x1c0] sm:$0xff]
          %v3913 = vld [vmem:[%s2 + $0x1c8] sm:$0xff]
          %v3914 = vld [vmem:[%s2 + $0x1d0] sm:$0xff]
          %v3915 = vld [vmem:[%s2 + $0x1d8] sm:$0xff]
          %v3916 = vld [vmem:[%s2 + $0x1e0] sm:$0xff]
          %v3917 = vld [vmem:[%s2 + $0x1e8] sm:$0xff]
          %v3918 = vld [vmem:[%s2 + $0x1f0] sm:$0xff]
          %v3919 = vld [vmem:[%s2 + $0x1f8] sm:$0xff]
          %v3920 = vld [vmem:[%s3] sm:$0xf]
          %v3922 = vlaneseq
          %v3923 = vshrl.u32 %v3922, 7
          %v3924 = vsub.s32 0, %v3923
          %v3925 = vrot.slane %v3920, %v3924
          %v3926 = vlaneseq
          %v3927 = vshrl.u32 %v3926, 7
          %v3928 = vsub.s32 1, %v3927
          %v3929 = vrot.slane %v3920, %v3928
          %v3930 = vlaneseq
          %v3931 = vshrl.u32 %v3930, 7
          %v3932 = vsub.s32 2, %v3931
          %v3933 = vrot.slane %v3920, %v3932
          %v3934 = vlaneseq
          %v3935 = vshrl.u32 %v3934, 7
          %v3936 = vsub.s32 3, %v3935
          %v3937 = vrot.slane %v3920, %v3936
          %v4006 = vunpack.c.l.b16 %v3856
          %v4007 = vunpack.c.h.b16 %v3856
          %v4008 = vunpack.c.l.b16 %v3857
          %v4009 = vunpack.c.h.b16 %v3857
          %v4010 = vunpack.c.l.b16 %v3858
          %v4011 = vunpack.c.h.b16 %v3858
          %v4012 = vunpack.c.l.b16 %v3859
          %v4013 = vunpack.c.h.b16 %v3859
          %v4014 = vunpack.c.l.b16 %v3860
          %v4015 = vunpack.c.h.b16 %v3860
          %v4016 = vunpack.c.l.b16 %v3861
          %v4017 = vunpack.c.h.b16 %v3861
          %v4018 = vunpack.c.l.b16 %v3862
          %v4019 = vunpack.c.h.b16 %v3862
          %v4020 = vunpack.c.l.b16 %v3863
          %v4021 = vunpack.c.h.b16 %v3863
          %v4022 = vunpack.c.l.b16 %v3864
          %v4023 = vunpack.c.h.b16 %v3864
          %v4024 = vunpack.c.l.b16 %v3865
          %v4025 = vunpack.c.h.b16 %v3865
          %v4026 = vunpack.c.l.b16 %v3866
          %v4027 = vunpack.c.h.b16 %v3866
          %v4028 = vunpack.c.l.b16 %v3867
          %v4029 = vunpack.c.h.b16 %v3867
          %v4030 = vunpack.c.l.b16 %v3868
          %v4031 = vunpack.c.h.b16 %v3868
          %v4032 = vunpack.c.l.b16 %v3869
          %v4033 = vunpack.c.h.b16 %v3869
          %v4034 = vunpack.c.l.b16 %v3870
          %v4035 = vunpack.c.h.b16 %v3870
          %v4036 = vunpack.c.l.b16 %v3871
          %v4037 = vunpack.c.h.b16 %v3871
          %v4038 = vunpack.c.l.b16 %v3872
          %v4039 = vunpack.c.h.b16 %v3872
          %v4040 = vunpack.c.l.b16 %v3873
          %v4041 = vunpack.c.h.b16 %v3873
          %v4042 = vunpack.c.l.b16 %v3874
          %v4043 = vunpack.c.h.b16 %v3874
          %v4044 = vunpack.c.l.b16 %v3875
          %v4045 = vunpack.c.h.b16 %v3875
          %v4046 = vunpack.c.l.b16 %v3876
          %v4047 = vunpack.c.h.b16 %v3876
          %v4048 = vunpack.c.l.b16 %v3877
          %v4049 = vunpack.c.h.b16 %v3877
          %v4050 = vunpack.c.l.b16 %v3878
          %v4051 = vunpack.c.h.b16 %v3878
          %v4052 = vunpack.c.l.b16 %v3879
          %v4053 = vunpack.c.h.b16 %v3879
          %v4054 = vunpack.c.l.b16 %v3880
          %v4055 = vunpack.c.h.b16 %v3880
          %v4056 = vunpack.c.l.b16 %v3881
          %v4057 = vunpack.c.h.b16 %v3881
          %v4058 = vunpack.c.l.b16 %v3882
          %v4059 = vunpack.c.h.b16 %v3882
          %v4060 = vunpack.c.l.b16 %v3883
          %v4061 = vunpack.c.h.b16 %v3883
          %v4062 = vunpack.c.l.b16 %v3884
          %v4063 = vunpack.c.h.b16 %v3884
          %v4064 = vunpack.c.l.b16 %v3885
          %v4065 = vunpack.c.h.b16 %v3885
          %v4066 = vunpack.c.l.b16 %v3886
          %v4067 = vunpack.c.h.b16 %v3886
          %v4068 = vunpack.c.l.b16 %v3887
          %v4069 = vunpack.c.h.b16 %v3887
          %v4070 = vunpack.c.l.b16 %v3888
          %v4071 = vunpack.c.h.b16 %v3888
          %v4072 = vunpack.c.l.b16 %v3889
          %v4073 = vunpack.c.h.b16 %v3889
          %v4074 = vunpack.c.l.b16 %v3890
          %v4075 = vunpack.c.h.b16 %v3890
          %v4076 = vunpack.c.l.b16 %v3891
          %v4077 = vunpack.c.h.b16 %v3891
          %v4078 = vunpack.c.l.b16 %v3892
          %v4079 = vunpack.c.h.b16 %v3892
          %v4080 = vunpack.c.l.b16 %v3893
          %v4081 = vunpack.c.h.b16 %v3893
          %v4082 = vunpack.c.l.b16 %v3894
          %v4083 = vunpack.c.h.b16 %v3894
          %v4084 = vunpack.c.l.b16 %v3895
          %v4085 = vunpack.c.h.b16 %v3895
          %v4086 = vunpack.c.l.b16 %v3896
          %v4087 = vunpack.c.h.b16 %v3896
          %v4088 = vunpack.c.l.b16 %v3897
          %v4089 = vunpack.c.h.b16 %v3897
          %v4090 = vunpack.c.l.b16 %v3898
          %v4091 = vunpack.c.h.b16 %v3898
          %v4092 = vunpack.c.l.b16 %v3899
          %v4093 = vunpack.c.h.b16 %v3899
          %v4094 = vunpack.c.l.b16 %v3900
          %v4095 = vunpack.c.h.b16 %v3900
          %v4096 = vunpack.c.l.b16 %v3901
          %v4097 = vunpack.c.h.b16 %v3901
          %v4098 = vunpack.c.l.b16 %v3902
          %v4099 = vunpack.c.h.b16 %v3902
          %v4100 = vunpack.c.l.b16 %v3903
          %v4101 = vunpack.c.h.b16 %v3903
          %v4102 = vunpack.c.l.b16 %v3904
          %v4103 = vunpack.c.h.b16 %v3904
          %v4104 = vunpack.c.l.b16 %v3905
          %v4105 = vunpack.c.h.b16 %v3905
          %v4106 = vunpack.c.l.b16 %v3906
          %v4107 = vunpack.c.h.b16 %v3906
          %v4108 = vunpack.c.l.b16 %v3907
          %v4109 = vunpack.c.h.b16 %v3907
          %v4110 = vunpack.c.l.b16 %v3908
          %v4111 = vunpack.c.h.b16 %v3908
          %v4112 = vunpack.c.l.b16 %v3909
          %v4113 = vunpack.c.h.b16 %v3909
          %v4114 = vunpack.c.l.b16 %v3910
          %v4115 = vunpack.c.h.b16 %v3910
          %v4116 = vunpack.c.l.b16 %v3911
          %v4117 = vunpack.c.h.b16 %v3911
          %v4118 = vunpack.c.l.b16 %v3912
          %v4119 = vunpack.c.h.b16 %v3912
          %v4120 = vunpack.c.l.b16 %v3913
          %v4121 = vunpack.c.h.b16 %v3913
          %v4122 = vunpack.c.l.b16 %v3914
          %v4123 = vunpack.c.h.b16 %v3914
          %v4124 = vunpack.c.l.b16 %v3915
          %v4125 = vunpack.c.h.b16 %v3915
          %v4126 = vunpack.c.l.b16 %v3916
          %v4127 = vunpack.c.h.b16 %v3916
          %v4128 = vunpack.c.l.b16 %v3917
          %v4129 = vunpack.c.h.b16 %v3917
          %v4130 = vunpack.c.l.b16 %v3918
          %v4131 = vunpack.c.h.b16 %v3918
          %v4132 = vunpack.c.l.b16 %v3919
          %v4133 = vunpack.c.h.b16 %v3919
          %v4134 = vpack.c.b16 %v4010, %v4006
          %v4135 = vpack.c.b16 %v4011, %v4007
          %v4136 = vpack.c.b16 %v4012, %v4008
          %v4137 = vpack.c.b16 %v4013, %v4009
          %v4138 = vpack.c.b16 %v4018, %v4014
          %v4139 = vpack.c.b16 %v4019, %v4015
          %v4140 = vpack.c.b16 %v4020, %v4016
          %v4141 = vpack.c.b16 %v4021, %v4017
          %v4142 = vpack.c.b16 %v4026, %v4022
          %v4143 = vpack.c.b16 %v4027, %v4023
          %v4144 = vpack.c.b16 %v4028, %v4024
          %v4145 = vpack.c.b16 %v4029, %v4025
          %v4146 = vpack.c.b16 %v4034, %v4030
          %v4147 = vpack.c.b16 %v4035, %v4031
          %v4148 = vpack.c.b16 %v4036, %v4032
          %v4149 = vpack.c.b16 %v4037, %v4033
          %v4150 = vpack.c.b16 %v4042, %v4038
          %v4151 = vpack.c.b16 %v4043, %v4039
          %v4152 = vpack.c.b16 %v4044, %v4040
          %v4153 = vpack.c.b16 %v4045, %v4041
          %v4154 = vpack.c.b16 %v4050, %v4046
          %v4155 = vpack.c.b16 %v4051, %v4047
          %v4156 = vpack.c.b16 %v4052, %v4048
          %v4157 = vpack.c.b16 %v4053, %v4049
          %v4158 = vpack.c.b16 %v4058, %v4054
          %v4159 = vpack.c.b16 %v4059, %v4055
          %v4160 = vpack.c.b16 %v4060, %v4056
          %v4161 = vpack.c.b16 %v4061, %v4057
          %v4162 = vpack.c.b16 %v4066, %v4062
          %v4163 = vpack.c.b16 %v4067, %v4063
          %v4164 = vpack.c.b16 %v4068, %v4064
          %v4165 = vpack.c.b16 %v4069, %v4065
          %v4166 = vpack.c.b16 %v4074, %v4070
          %v4167 = vpack.c.b16 %v4075, %v4071
          %v4168 = vpack.c.b16 %v4076, %v4072
          %v4169 = vpack.c.b16 %v4077, %v4073
          %v4170 = vpack.c.b16 %v4082, %v4078
          %v4171 = vpack.c.b16 %v4083, %v4079
          %v4172 = vpack.c.b16 %v4084, %v4080
          %v4173 = vpack.c.b16 %v4085, %v4081
          %v4174 = vpack.c.b16 %v4090, %v4086
          %v4175 = vpack.c.b16 %v4091, %v4087
          %v4176 = vpack.c.b16 %v4092, %v4088
          %v4177 = vpack.c.b16 %v4093, %v4089
          %v4178 = vpack.c.b16 %v4098, %v4094
          %v4179 = vpack.c.b16 %v4099, %v4095
          %v4180 = vpack.c.b16 %v4100, %v4096
          %v4181 = vpack.c.b16 %v4101, %v4097
          %v4182 = vpack.c.b16 %v4106, %v4102
          %v4183 = vpack.c.b16 %v4107, %v4103
          %v4184 = vpack.c.b16 %v4108, %v4104
          %v4185 = vpack.c.b16 %v4109, %v4105
          %v4186 = vpack.c.b16 %v4114, %v4110
          %v4187 = vpack.c.b16 %v4115, %v4111
          %v4188 = vpack.c.b16 %v4116, %v4112
          %v4189 = vpack.c.b16 %v4117, %v4113
          %v4190 = vpack.c.b16 %v4122, %v4118
          %v4191 = vpack.c.b16 %v4123, %v4119
          %v4192 = vpack.c.b16 %v4124, %v4120
          %v4193 = vpack.c.b16 %v4125, %v4121
          %v4194 = vpack.c.b16 %v4130, %v4126
          %v4195 = vpack.c.b16 %v4131, %v4127
          %v4196 = vpack.c.b16 %v4132, %v4128
          %v4197 = vpack.c.b16 %v4133, %v4129
          %4262 = vmatprep.subr.bf16.mxu0 %v4163
          %4263 = vmatpush1.bf16.msra.mxu0 %v4162
          %4264 = vmatprep.subr.bf16.mxu0 %v4159
          %4265 = vmatpush1.bf16.msra.mxu0 %v4158
          %4266 = vmatprep.subr.bf16.mxu0 %v4155
          %4267 = vmatpush1.bf16.msra.mxu0 %v4154
          %4268 = vmatprep.subr.bf16.mxu0 %v4151
          %4269 = vmatpush1.bf16.msra.mxu0 %v4150
          %4270 = vmatprep.subr.bf16.mxu0 %v4147
          %4271 = vmatpush1.bf16.msra.mxu0 %v4146
          %4272 = vmatprep.subr.bf16.mxu0 %v4143
          %4273 = vmatpush1.bf16.msra.mxu0 %v4142
          %4274 = vmatprep.subr.bf16.mxu0 %v4139
          %4275 = vmatpush1.bf16.msra.mxu0 %v4138
          %4276 = vmatprep.subr.bf16.mxu0 %v4135
          %4277 = vmatpush1.bf16.msra.mxu0 %v4134
          %4278 = vmatprep.subr.bf16.mxu0 %v4195
          %4279 = vmatpush2.bf16.msra.mxu0 %v4194
          %4280 = vmatprep.subr.bf16.mxu0 %v4191
          %4281 = vmatpush2.bf16.msra.mxu0 %v4190
          %4282 = vmatprep.subr.bf16.mxu0 %v4187
          %4283 = vmatpush2.bf16.msra.mxu0 %v4186
          %4284 = vmatprep.subr.bf16.mxu0 %v4183
          %4285 = vmatpush2.bf16.msra.mxu0 %v4182
          %4286 = vmatprep.subr.bf16.mxu0 %v4179
          %4287 = vmatpush2.bf16.msra.mxu0 %v4178
          %4288 = vmatprep.subr.bf16.mxu0 %v4175
          %4289 = vmatpush2.bf16.msra.mxu0 %v4174
          %4290 = vmatprep.subr.bf16.mxu0 %v4171
          %4291 = vmatpush2.bf16.msra.mxu0 %v4170
          %4292 = vmatprep.subr.bf16.mxu0 %v4167
          %4293 = vmatpush2.bf16.msra.mxu0 %v4166
          %4294 = vmatprep.mubr.bf16.mxu0 %v3855
          %4295 = vmatmul.mubr.bf16.gmra.mxu0 %v3854
          %v4296 = vpop.f32.mrf.mxu0
          %v4297 = vadd.f32 %v3925, %v4296
          %v4298 = vpop.f32.mrf.mxu0
          %v4299 = vadd.f32 %v3929, %v4298
          %v4300 = vpop.f32.mrf.mxu0
          %v4301 = vadd.f32 %v3925, %v4300
          %v4302 = vpop.f32.mrf.mxu0
          %v4303 = vadd.f32 %v3929, %v4302
          %4304 = vdwg.mxu0
          %4305 = vmatprep.subr.bf16.mxu0 %v4165
          %4306 = vmatpush1.bf16.msra.mxu0 %v4164
          %4307 = vmatprep.subr.bf16.mxu0 %v4161
          %4308 = vmatpush1.bf16.msra.mxu0 %v4160
          %4309 = vmatprep.subr.bf16.mxu0 %v4157
          %4310 = vmatpush1.bf16.msra.mxu0 %v4156
          %4311 = vmatprep.subr.bf16.mxu0 %v4153
          %4312 = vmatpush1.bf16.msra.mxu0 %v4152
          %4313 = vmatprep.subr.bf16.mxu0 %v4149
          %4314 = vmatpush1.bf16.msra.mxu0 %v4148
          %4315 = vmatprep.subr.bf16.mxu0 %v4145
          %4316 = vmatpush1.bf16.msra.mxu0 %v4144
          %4317 = vmatprep.subr.bf16.mxu0 %v4141
          %4318 = vmatpush1.bf16.msra.mxu0 %v4140
          %4319 = vmatprep.subr.bf16.mxu0 %v4137
          %4320 = vmatpush1.bf16.msra.mxu0 %v4136
          %4321 = vmatprep.subr.bf16.mxu0 %v4197
          %4322 = vmatpush2.bf16.msra.mxu0 %v4196
          %4323 = vmatprep.subr.bf16.mxu0 %v4193
          %4324 = vmatpush2.bf16.msra.mxu0 %v4192
          %4325 = vmatprep.subr.bf16.mxu0 %v4189
          %4326 = vmatpush2.bf16.msra.mxu0 %v4188
          %4327 = vmatprep.subr.bf16.mxu0 %v4185
          %4328 = vmatpush2.bf16.msra.mxu0 %v4184
          %4329 = vmatprep.subr.bf16.mxu0 %v4181
          %4330 = vmatpush2.bf16.msra.mxu0 %v4180
          %4331 = vmatprep.subr.bf16.mxu0 %v4177
          %4332 = vmatpush2.bf16.msra.mxu0 %v4176
          %4333 = vmatprep.subr.bf16.mxu0 %v4173
          %4334 = vmatpush2.bf16.msra.mxu0 %v4172
          %4335 = vmatprep.subr.bf16.mxu0 %v4169
          %4336 = vmatpush2.bf16.msra.mxu0 %v4168
          %4337 = vmatprep.mubr.bf16.mxu0 %v3855
          %4338 = vmatmul.mubr.bf16.gmra.mxu0 %v3854
          %v4339 = vpop.f32.mrf.mxu0
          %v4340 = vadd.f32 %v3933, %v4339
          %v4341 = vpop.f32.mrf.mxu0
          %v4342 = vadd.f32 %v3937, %v4341
          %v4343 = vpop.f32.mrf.mxu0
          %v4344 = vadd.f32 %v3933, %v4343
          %v4345 = vpop.f32.mrf.mxu0
          %v4346 = vadd.f32 %v3937, %v4345
          %4347 = vdwg.mxu0
          %vm4348 = vcmp.gt.f32.partialorder %v4297, 0.0
          %vm4349 = vcmp.gt.f32.partialorder %v4299, 0.0
          %vm4350 = vcmp.gt.f32.partialorder %v4340, 0.0
          %vm4351 = vcmp.gt.f32.partialorder %v4342, 0.0
          %vm4352 = vcmp.gt.f32.partialorder %v4301, 0.0
          %vm4353 = vcmp.gt.f32.partialorder %v4303, 0.0
          %vm4354 = vcmp.gt.f32.partialorder %v4344, 0.0
          %vm4355 = vcmp.gt.f32.partialorder %v4346, 0.0
          %v4356 = vmul.f32 %v4297, 0.01
          %v4357 = vmul.f32 %v4299, 0.01
          %v4358 = vmul.f32 %v4340, 0.01
          %v4359 = vmul.f32 %v4342, 0.01
          %v4360 = vmul.f32 %v4301, 0.01
          %v4361 = vmul.f32 %v4303, 0.01
          %v4362 = vmul.f32 %v4344, 0.01
          %v4363 = vmul.f32 %v4346, 0.01
          %v4364 = vsel %vm4348, %v4297, %v4356
          %v4365 = vsel %vm4349, %v4299, %v4357
          %v4366 = vsel %vm4350, %v4340, %v4358
          %v4367 = vsel %vm4351, %v4342, %v4359
          %v4368 = vsel %vm4352, %v4301, %v4360
          %v4369 = vsel %vm4353, %v4303, %v4361
          %v4370 = vsel %vm4354, %v4344, %v4362
          %v4371 = vsel %vm4355, %v4346, %v4363
          %v4372 = vpack.c.bf16 %v4368, %v4364
          %v4373 = vpack.c.bf16 %v4369, %v4365
          %v4374 = vpack.c.bf16 %v4370, %v4366
          %v4375 = vpack.c.bf16 %v4371, %v4367
          %v4376 = vld [vmem:[%s4] sm:$0xff]
          %v4377 = vld [vmem:[%s4 + $0x8] sm:$0xff]
          %v4378 = vld [vmem:[%s4 + $0x10] sm:$0xff]
          %v4379 = vld [vmem:[%s4 + $0x18] sm:$0xff]
          %v4380 = vld [vmem:[%s4 + $0x20] sm:$0xff]
          %v4381 = vld [vmem:[%s4 + $0x28] sm:$0xff]
          %v4382 = vld [vmem:[%s4 + $0x30] sm:$0xff]
          %v4383 = vld [vmem:[%s4 + $0x38] sm:$0xff]
          %v4384 = vld [vmem:[%s4 + $0x40] sm:$0xff]
          %v4385 = vld [vmem:[%s4 + $0x48] sm:$0xff]
          %v4386 = vld [vmem:[%s4 + $0x50] sm:$0xff]
          %v4387 = vld [vmem:[%s4 + $0x58] sm:$0xff]
          %v4388 = vld [vmem:[%s4 + $0x60] sm:$0xff]
          %v4389 = vld [vmem:[%s4 + $0x68] sm:$0xff]
          %v4390 = vld [vmem:[%s4 + $0x70] sm:$0xff]
          %v4391 = vld [vmem:[%s4 + $0x78] sm:$0xff]
          %v4392 = vld [vmem:[%s4 + $0x80] sm:$0xff]
          %v4393 = vld [vmem:[%s4 + $0x88] sm:$0xff]
          %v4394 = vld [vmem:[%s4 + $0x90] sm:$0xff]
          %v4395 = vld [vmem:[%s4 + $0x98] sm:$0xff]
          %v4396 = vld [vmem:[%s4 + $0xa0] sm:$0xff]
          %v4397 = vld [vmem:[%s4 + $0xa8] sm:$0xff]
          %v4398 = vld [vmem:[%s4 + $0xb0] sm:$0xff]
          %v4399 = vld [vmem:[%s4 + $0xb8] sm:$0xff]
          %v4400 = vld [vmem:[%s4 + $0xc0] sm:$0xff]
          %v4401 = vld [vmem:[%s4 + $0xc8] sm:$0xff]
          %v4402 = vld [vmem:[%s4 + $0xd0] sm:$0xff]
          %v4403 = vld [vmem:[%s4 + $0xd8] sm:$0xff]
          %v4404 = vld [vmem:[%s4 + $0xe0] sm:$0xff]
          %v4405 = vld [vmem:[%s4 + $0xe8] sm:$0xff]
          %v4406 = vld [vmem:[%s4 + $0xf0] sm:$0xff]
          %v4407 = vld [vmem:[%s4 + $0xf8] sm:$0xff]
          %v4408 = vld [vmem:[%s4 + $0x100] sm:$0xff]
          %v4409 = vld [vmem:[%s4 + $0x108] sm:$0xff]
          %v4410 = vld [vmem:[%s4 + $0x110] sm:$0xff]
          %v4411 = vld [vmem:[%s4 + $0x118] sm:$0xff]
          %v4412 = vld [vmem:[%s4 + $0x120] sm:$0xff]
          %v4413 = vld [vmem:[%s4 + $0x128] sm:$0xff]
          %v4414 = vld [vmem:[%s4 + $0x130] sm:$0xff]
          %v4415 = vld [vmem:[%s4 + $0x138] sm:$0xff]
          %v4416 = vld [vmem:[%s4 + $0x140] sm:$0xff]
          %v4417 = vld [vmem:[%s4 + $0x148] sm:$0xff]
          %v4418 = vld [vmem:[%s4 + $0x150] sm:$0xff]
          %v4419 = vld [vmem:[%s4 + $0x158] sm:$0xff]
          %v4420 = vld [vmem:[%s4 + $0x160] sm:$0xff]
          %v4421 = vld [vmem:[%s4 + $0x168] sm:$0xff]
          %v4422 = vld [vmem:[%s4 + $0x170] sm:$0xff]
          %v4423 = vld [vmem:[%s4 + $0x178] sm:$0xff]
          %v4424 = vld [vmem:[%s4 + $0x180] sm:$0xff]
          %v4425 = vld [vmem:[%s4 + $0x188] sm:$0xff]
          %v4426 = vld [vmem:[%s4 + $0x190] sm:$0xff]
          %v4427 = vld [vmem:[%s4 + $0x198] sm:$0xff]
          %v4428 = vld [vmem:[%s4 + $0x1a0] sm:$0xff]
          %v4429 = vld [vmem:[%s4 + $0x1a8] sm:$0xff]
          %v4430 = vld [vmem:[%s4 + $0x1b0] sm:$0xff]
          %v4431 = vld [vmem:[%s4 + $0x1b8] sm:$0xff]
          %v4432 = vld [vmem:[%s4 + $0x1c0] sm:$0xff]
          %v4433 = vld [vmem:[%s4 + $0x1c8] sm:$0xff]
          %v4434 = vld [vmem:[%s4 + $0x1d0] sm:$0xff]
          %v4435 = vld [vmem:[%s4 + $0x1d8] sm:$0xff]
          %v4436 = vld [vmem:[%s4 + $0x1e0] sm:$0xff]
          %v4437 = vld [vmem:[%s4 + $0x1e8] sm:$0xff]
          %v4438 = vld [vmem:[%s4 + $0x1f0] sm:$0xff]
          %v4439 = vld [vmem:[%s4 + $0x1f8] sm:$0xff]
          %v4440 = vld [vmem:[%s4 + $0x200] sm:$0xff]
          %v4441 = vld [vmem:[%s4 + $0x208] sm:$0xff]
          %v4442 = vld [vmem:[%s4 + $0x210] sm:$0xff]
          %v4443 = vld [vmem:[%s4 + $0x218] sm:$0xff]
          %v4444 = vld [vmem:[%s4 + $0x220] sm:$0xff]
          %v4445 = vld [vmem:[%s4 + $0x228] sm:$0xff]
          %v4446 = vld [vmem:[%s4 + $0x230] sm:$0xff]
          %v4447 = vld [vmem:[%s4 + $0x238] sm:$0xff]
          %v4448 = vld [vmem:[%s4 + $0x240] sm:$0xff]
          %v4449 = vld [vmem:[%s4 + $0x248] sm:$0xff]
          %v4450 = vld [vmem:[%s4 + $0x250] sm:$0xff]
          %v4451 = vld [vmem:[%s4 + $0x258] sm:$0xff]
          %v4452 = vld [vmem:[%s4 + $0x260] sm:$0xff]
          %v4453 = vld [vmem:[%s4 + $0x268] sm:$0xff]
          %v4454 = vld [vmem:[%s4 + $0x270] sm:$0xff]
          %v4455 = vld [vmem:[%s4 + $0x278] sm:$0xff]
          %v4456 = vld [vmem:[%s4 + $0x280] sm:$0xff]
          %v4457 = vld [vmem:[%s4 + $0x288] sm:$0xff]
          %v4458 = vld [vmem:[%s4 + $0x290] sm:$0xff]
          %v4459 = vld [vmem:[%s4 + $0x298] sm:$0xff]
          %v4460 = vld [vmem:[%s4 + $0x2a0] sm:$0xff]
          %v4461 = vld [vmem:[%s4 + $0x2a8] sm:$0xff]
          %v4462 = vld [vmem:[%s4 + $0x2b0] sm:$0xff]
          %v4463 = vld [vmem:[%s4 + $0x2b8] sm:$0xff]
          %v4464 = vld [vmem:[%s4 + $0x2c0] sm:$0xff]
          %v4465 = vld [vmem:[%s4 + $0x2c8] sm:$0xff]
          %v4466 = vld [vmem:[%s4 + $0x2d0] sm:$0xff]
          %v4467 = vld [vmem:[%s4 + $0x2d8] sm:$0xff]
          %v4468 = vld [vmem:[%s4 + $0x2e0] sm:$0xff]
          %v4469 = vld [vmem:[%s4 + $0x2e8] sm:$0xff]
          %v4470 = vld [vmem:[%s4 + $0x2f0] sm:$0xff]
          %v4471 = vld [vmem:[%s4 + $0x2f8] sm:$0xff]
          %v4472 = vld [vmem:[%s4 + $0x300] sm:$0xff]
          %v4473 = vld [vmem:[%s4 + $0x308] sm:$0xff]
          %v4474 = vld [vmem:[%s4 + $0x310] sm:$0xff]
          %v4475 = vld [vmem:[%s4 + $0x318] sm:$0xff]
          %v4476 = vld [vmem:[%s4 + $0x320] sm:$0xff]
          %v4477 = vld [vmem:[%s4 + $0x328] sm:$0xff]
          %v4478 = vld [vmem:[%s4 + $0x330] sm:$0xff]
          %v4479 = vld [vmem:[%s4 + $0x338] sm:$0xff]
          %v4480 = vld [vmem:[%s4 + $0x340] sm:$0xff]
          %v4481 = vld [vmem:[%s4 + $0x348] sm:$0xff]
          %v4482 = vld [vmem:[%s4 + $0x350] sm:$0xff]
          %v4483 = vld [vmem:[%s4 + $0x358] sm:$0xff]
          %v4484 = vld [vmem:[%s4 + $0x360] sm:$0xff]
          %v4485 = vld [vmem:[%s4 + $0x368] sm:$0xff]
          %v4486 = vld [vmem:[%s4 + $0x370] sm:$0xff]
          %v4487 = vld [vmem:[%s4 + $0x378] sm:$0xff]
          %v4488 = vld [vmem:[%s4 + $0x380] sm:$0xff]
          %v4489 = vld [vmem:[%s4 + $0x388] sm:$0xff]
          %v4490 = vld [vmem:[%s4 + $0x390] sm:$0xff]
          %v4491 = vld [vmem:[%s4 + $0x398] sm:$0xff]
          %v4492 = vld [vmem:[%s4 + $0x3a0] sm:$0xff]
          %v4493 = vld [vmem:[%s4 + $0x3a8] sm:$0xff]
          %v4494 = vld [vmem:[%s4 + $0x3b0] sm:$0xff]
          %v4495 = vld [vmem:[%s4 + $0x3b8] sm:$0xff]
          %v4496 = vld [vmem:[%s4 + $0x3c0] sm:$0xff]
          %v4497 = vld [vmem:[%s4 + $0x3c8] sm:$0xff]
          %v4498 = vld [vmem:[%s4 + $0x3d0] sm:$0xff]
          %v4499 = vld [vmem:[%s4 + $0x3d8] sm:$0xff]
          %v4500 = vld [vmem:[%s4 + $0x3e0] sm:$0xff]
          %v4501 = vld [vmem:[%s4 + $0x3e8] sm:$0xff]
          %v4502 = vld [vmem:[%s4 + $0x3f0] sm:$0xff]
          %v4503 = vld [vmem:[%s4 + $0x3f8] sm:$0xff]
          %v4504 = vld [vmem:[%s5] sm:$0xf]
          %v4506 = vlaneseq
          %v4507 = vshrl.u32 %v4506, 7
          %v4508 = vsub.s32 0, %v4507
          %v4509 = vrot.slane %v4504, %v4508
          %v4510 = vlaneseq
          %v4511 = vshrl.u32 %v4510, 7
          %v4512 = vsub.s32 1, %v4511
          %v4513 = vrot.slane %v4504, %v4512
          %v4514 = vlaneseq
          %v4515 = vshrl.u32 %v4514, 7
          %v4516 = vsub.s32 2, %v4515
          %v4517 = vrot.slane %v4504, %v4516
          %v4518 = vlaneseq
          %v4519 = vshrl.u32 %v4518, 7
          %v4520 = vsub.s32 3, %v4519
          %v4521 = vrot.slane %v4504, %v4520
          %v4654 = vunpack.c.l.b16 %v4376
          %v4655 = vunpack.c.h.b16 %v4376
          %v4656 = vunpack.c.l.b16 %v4377
          %v4657 = vunpack.c.h.b16 %v4377
          %v4658 = vunpack.c.l.b16 %v4378
          %v4659 = vunpack.c.h.b16 %v4378
          %v4660 = vunpack.c.l.b16 %v4379
          %v4661 = vunpack.c.h.b16 %v4379
          %v4662 = vunpack.c.l.b16 %v4380
          %v4663 = vunpack.c.h.b16 %v4380
          %v4664 = vunpack.c.l.b16 %v4381
          %v4665 = vunpack.c.h.b16 %v4381
          %v4666 = vunpack.c.l.b16 %v4382
          %v4667 = vunpack.c.h.b16 %v4382
          %v4668 = vunpack.c.l.b16 %v4383
          %v4669 = vunpack.c.h.b16 %v4383
          %v4670 = vunpack.c.l.b16 %v4384
          %v4671 = vunpack.c.h.b16 %v4384
          %v4672 = vunpack.c.l.b16 %v4385
          %v4673 = vunpack.c.h.b16 %v4385
          %v4674 = vunpack.c.l.b16 %v4386
          %v4675 = vunpack.c.h.b16 %v4386
          %v4676 = vunpack.c.l.b16 %v4387
          %v4677 = vunpack.c.h.b16 %v4387
          %v4678 = vunpack.c.l.b16 %v4388
          %v4679 = vunpack.c.h.b16 %v4388
          %v4680 = vunpack.c.l.b16 %v4389
          %v4681 = vunpack.c.h.b16 %v4389
          %v4682 = vunpack.c.l.b16 %v4390
          %v4683 = vunpack.c.h.b16 %v4390
          %v4684 = vunpack.c.l.b16 %v4391
          %v4685 = vunpack.c.h.b16 %v4391
          %v4686 = vunpack.c.l.b16 %v4392
          %v4687 = vunpack.c.h.b16 %v4392
          %v4688 = vunpack.c.l.b16 %v4393
          %v4689 = vunpack.c.h.b16 %v4393
          %v4690 = vunpack.c.l.b16 %v4394
          %v4691 = vunpack.c.h.b16 %v4394
          %v4692 = vunpack.c.l.b16 %v4395
          %v4693 = vunpack.c.h.b16 %v4395
          %v4694 = vunpack.c.l.b16 %v4396
          %v4695 = vunpack.c.h.b16 %v4396
          %v4696 = vunpack.c.l.b16 %v4397
          %v4697 = vunpack.c.h.b16 %v4397
          %v4698 = vunpack.c.l.b16 %v4398
          %v4699 = vunpack.c.h.b16 %v4398
          %v4700 = vunpack.c.l.b16 %v4399
          %v4701 = vunpack.c.h.b16 %v4399
          %v4702 = vunpack.c.l.b16 %v4400
          %v4703 = vunpack.c.h.b16 %v4400
          %v4704 = vunpack.c.l.b16 %v4401
          %v4705 = vunpack.c.h.b16 %v4401
          %v4706 = vunpack.c.l.b16 %v4402
          %v4707 = vunpack.c.h.b16 %v4402
          %v4708 = vunpack.c.l.b16 %v4403
          %v4709 = vunpack.c.h.b16 %v4403
          %v4710 = vunpack.c.l.b16 %v4404
          %v4711 = vunpack.c.h.b16 %v4404
          %v4712 = vunpack.c.l.b16 %v4405
          %v4713 = vunpack.c.h.b16 %v4405
          %v4714 = vunpack.c.l.b16 %v4406
          %v4715 = vunpack.c.h.b16 %v4406
          %v4716 = vunpack.c.l.b16 %v4407
          %v4717 = vunpack.c.h.b16 %v4407
          %v4718 = vunpack.c.l.b16 %v4408
          %v4719 = vunpack.c.h.b16 %v4408
          %v4720 = vunpack.c.l.b16 %v4409
          %v4721 = vunpack.c.h.b16 %v4409
          %v4722 = vunpack.c.l.b16 %v4410
          %v4723 = vunpack.c.h.b16 %v4410
          %v4724 = vunpack.c.l.b16 %v4411
          %v4725 = vunpack.c.h.b16 %v4411
          %v4726 = vunpack.c.l.b16 %v4412
          %v4727 = vunpack.c.h.b16 %v4412
          %v4728 = vunpack.c.l.b16 %v4413
          %v4729 = vunpack.c.h.b16 %v4413
          %v4730 = vunpack.c.l.b16 %v4414
          %v4731 = vunpack.c.h.b16 %v4414
          %v4732 = vunpack.c.l.b16 %v4415
          %v4733 = vunpack.c.h.b16 %v4415
          %v4734 = vunpack.c.l.b16 %v4416
          %v4735 = vunpack.c.h.b16 %v4416
          %v4736 = vunpack.c.l.b16 %v4417
          %v4737 = vunpack.c.h.b16 %v4417
          %v4738 = vunpack.c.l.b16 %v4418
          %v4739 = vunpack.c.h.b16 %v4418
          %v4740 = vunpack.c.l.b16 %v4419
          %v4741 = vunpack.c.h.b16 %v4419
          %v4742 = vunpack.c.l.b16 %v4420
          %v4743 = vunpack.c.h.b16 %v4420
          %v4744 = vunpack.c.l.b16 %v4421
          %v4745 = vunpack.c.h.b16 %v4421
          %v4746 = vunpack.c.l.b16 %v4422
          %v4747 = vunpack.c.h.b16 %v4422
          %v4748 = vunpack.c.l.b16 %v4423
          %v4749 = vunpack.c.h.b16 %v4423
          %v4750 = vunpack.c.l.b16 %v4424
          %v4751 = vunpack.c.h.b16 %v4424
          %v4752 = vunpack.c.l.b16 %v4425
          %v4753 = vunpack.c.h.b16 %v4425
          %v4754 = vunpack.c.l.b16 %v4426
          %v4755 = vunpack.c.h.b16 %v4426
          %v4756 = vunpack.c.l.b16 %v4427
          %v4757 = vunpack.c.h.b16 %v4427
          %v4758 = vunpack.c.l.b16 %v4428
          %v4759 = vunpack.c.h.b16 %v4428
          %v4760 = vunpack.c.l.b16 %v4429
          %v4761 = vunpack.c.h.b16 %v4429
          %v4762 = vunpack.c.l.b16 %v4430
          %v4763 = vunpack.c.h.b16 %v4430
          %v4764 = vunpack.c.l.b16 %v4431
          %v4765 = vunpack.c.h.b16 %v4431
          %v4766 = vunpack.c.l.b16 %v4432
          %v4767 = vunpack.c.h.b16 %v4432
          %v4768 = vunpack.c.l.b16 %v4433
          %v4769 = vunpack.c.h.b16 %v4433
          %v4770 = vunpack.c.l.b16 %v4434
          %v4771 = vunpack.c.h.b16 %v4434
          %v4772 = vunpack.c.l.b16 %v4435
          %v4773 = vunpack.c.h.b16 %v4435
          %v4774 = vunpack.c.l.b16 %v4436
          %v4775 = vunpack.c.h.b16 %v4436
          %v4776 = vunpack.c.l.b16 %v4437
          %v4777 = vunpack.c.h.b16 %v4437
          %v4778 = vunpack.c.l.b16 %v4438
          %v4779 = vunpack.c.h.b16 %v4438
          %v4780 = vunpack.c.l.b16 %v4439
          %v4781 = vunpack.c.h.b16 %v4439
          %v4782 = vunpack.c.l.b16 %v4440
          %v4783 = vunpack.c.h.b16 %v4440
          %v4784 = vunpack.c.l.b16 %v4441
          %v4785 = vunpack.c.h.b16 %v4441
          %v4786 = vunpack.c.l.b16 %v4442
          %v4787 = vunpack.c.h.b16 %v4442
          %v4788 = vunpack.c.l.b16 %v4443
          %v4789 = vunpack.c.h.b16 %v4443
          %v4790 = vunpack.c.l.b16 %v4444
          %v4791 = vunpack.c.h.b16 %v4444
          %v4792 = vunpack.c.l.b16 %v4445
          %v4793 = vunpack.c.h.b16 %v4445
          %v4794 = vunpack.c.l.b16 %v4446
          %v4795 = vunpack.c.h.b16 %v4446
          %v4796 = vunpack.c.l.b16 %v4447
          %v4797 = vunpack.c.h.b16 %v4447
          %v4798 = vunpack.c.l.b16 %v4448
          %v4799 = vunpack.c.h.b16 %v4448
          %v4800 = vunpack.c.l.b16 %v4449
          %v4801 = vunpack.c.h.b16 %v4449
          %v4802 = vunpack.c.l.b16 %v4450
          %v4803 = vunpack.c.h.b16 %v4450
          %v4804 = vunpack.c.l.b16 %v4451
          %v4805 = vunpack.c.h.b16 %v4451
          %v4806 = vunpack.c.l.b16 %v4452
          %v4807 = vunpack.c.h.b16 %v4452
          %v4808 = vunpack.c.l.b16 %v4453
          %v4809 = vunpack.c.h.b16 %v4453
          %v4810 = vunpack.c.l.b16 %v4454
          %v4811 = vunpack.c.h.b16 %v4454
          %v4812 = vunpack.c.l.b16 %v4455
          %v4813 = vunpack.c.h.b16 %v4455
          %v4814 = vunpack.c.l.b16 %v4456
          %v4815 = vunpack.c.h.b16 %v4456
          %v4816 = vunpack.c.l.b16 %v4457
          %v4817 = vunpack.c.h.b16 %v4457
          %v4818 = vunpack.c.l.b16 %v4458
          %v4819 = vunpack.c.h.b16 %v4458
          %v4820 = vunpack.c.l.b16 %v4459
          %v4821 = vunpack.c.h.b16 %v4459
          %v4822 = vunpack.c.l.b16 %v4460
          %v4823 = vunpack.c.h.b16 %v4460
          %v4824 = vunpack.c.l.b16 %v4461
          %v4825 = vunpack.c.h.b16 %v4461
          %v4826 = vunpack.c.l.b16 %v4462
          %v4827 = vunpack.c.h.b16 %v4462
          %v4828 = vunpack.c.l.b16 %v4463
          %v4829 = vunpack.c.h.b16 %v4463
          %v4830 = vunpack.c.l.b16 %v4464
          %v4831 = vunpack.c.h.b16 %v4464
          %v4832 = vunpack.c.l.b16 %v4465
          %v4833 = vunpack.c.h.b16 %v4465
          %v4834 = vunpack.c.l.b16 %v4466
          %v4835 = vunpack.c.h.b16 %v4466
          %v4836 = vunpack.c.l.b16 %v4467
          %v4837 = vunpack.c.h.b16 %v4467
          %v4838 = vunpack.c.l.b16 %v4468
          %v4839 = vunpack.c.h.b16 %v4468
          %v4840 = vunpack.c.l.b16 %v4469
          %v4841 = vunpack.c.h.b16 %v4469
          %v4842 = vunpack.c.l.b16 %v4470
          %v4843 = vunpack.c.h.b16 %v4470
          %v4844 = vunpack.c.l.b16 %v4471
          %v4845 = vunpack.c.h.b16 %v4471
          %v4846 = vunpack.c.l.b16 %v4472
          %v4847 = vunpack.c.h.b16 %v4472
          %v4848 = vunpack.c.l.b16 %v4473
          %v4849 = vunpack.c.h.b16 %v4473
          %v4850 = vunpack.c.l.b16 %v4474
          %v4851 = vunpack.c.h.b16 %v4474
          %v4852 = vunpack.c.l.b16 %v4475
          %v4853 = vunpack.c.h.b16 %v4475
          %v4854 = vunpack.c.l.b16 %v4476
          %v4855 = vunpack.c.h.b16 %v4476
          %v4856 = vunpack.c.l.b16 %v4477
          %v4857 = vunpack.c.h.b16 %v4477
          %v4858 = vunpack.c.l.b16 %v4478
          %v4859 = vunpack.c.h.b16 %v4478
          %v4860 = vunpack.c.l.b16 %v4479
          %v4861 = vunpack.c.h.b16 %v4479
          %v4862 = vunpack.c.l.b16 %v4480
          %v4863 = vunpack.c.h.b16 %v4480
          %v4864 = vunpack.c.l.b16 %v4481
          %v4865 = vunpack.c.h.b16 %v4481
          %v4866 = vunpack.c.l.b16 %v4482
          %v4867 = vunpack.c.h.b16 %v4482
          %v4868 = vunpack.c.l.b16 %v4483
          %v4869 = vunpack.c.h.b16 %v4483
          %v4870 = vunpack.c.l.b16 %v4484
          %v4871 = vunpack.c.h.b16 %v4484
          %v4872 = vunpack.c.l.b16 %v4485
          %v4873 = vunpack.c.h.b16 %v4485
          %v4874 = vunpack.c.l.b16 %v4486
          %v4875 = vunpack.c.h.b16 %v4486
          %v4876 = vunpack.c.l.b16 %v4487
          %v4877 = vunpack.c.h.b16 %v4487
          %v4878 = vunpack.c.l.b16 %v4488
          %v4879 = vunpack.c.h.b16 %v4488
          %v4880 = vunpack.c.l.b16 %v4489
          %v4881 = vunpack.c.h.b16 %v4489
          %v4882 = vunpack.c.l.b16 %v4490
          %v4883 = vunpack.c.h.b16 %v4490
          %v4884 = vunpack.c.l.b16 %v4491
          %v4885 = vunpack.c.h.b16 %v4491
          %v4886 = vunpack.c.l.b16 %v4492
          %v4887 = vunpack.c.h.b16 %v4492
          %v4888 = vunpack.c.l.b16 %v4493
          %v4889 = vunpack.c.h.b16 %v4493
          %v4890 = vunpack.c.l.b16 %v4494
          %v4891 = vunpack.c.h.b16 %v4494
          %v4892 = vunpack.c.l.b16 %v4495
          %v4893 = vunpack.c.h.b16 %v4495
          %v4894 = vunpack.c.l.b16 %v4496
          %v4895 = vunpack.c.h.b16 %v4496
          %v4896 = vunpack.c.l.b16 %v4497
          %v4897 = vunpack.c.h.b16 %v4497
          %v4898 = vunpack.c.l.b16 %v4498
          %v4899 = vunpack.c.h.b16 %v4498
          %v4900 = vunpack.c.l.b16 %v4499
          %v4901 = vunpack.c.h.b16 %v4499
          %v4902 = vunpack.c.l.b16 %v4500
          %v4903 = vunpack.c.h.b16 %v4500
          %v4904 = vunpack.c.l.b16 %v4501
          %v4905 = vunpack.c.h.b16 %v4501
          %v4906 = vunpack.c.l.b16 %v4502
          %v4907 = vunpack.c.h.b16 %v4502
          %v4908 = vunpack.c.l.b16 %v4503
          %v4909 = vunpack.c.h.b16 %v4503
          %v4910 = vpack.c.b16 %v4658, %v4654
          %v4911 = vpack.c.b16 %v4659, %v4655
          %v4912 = vpack.c.b16 %v4660, %v4656
          %v4913 = vpack.c.b16 %v4661, %v4657
          %v4914 = vpack.c.b16 %v4666, %v4662
          %v4915 = vpack.c.b16 %v4667, %v4663
          %v4916 = vpack.c.b16 %v4668, %v4664
          %v4917 = vpack.c.b16 %v4669, %v4665
          %v4918 = vpack.c.b16 %v4674, %v4670
          %v4919 = vpack.c.b16 %v4675, %v4671
          %v4920 = vpack.c.b16 %v4676, %v4672
          %v4921 = vpack.c.b16 %v4677, %v4673
          %v4922 = vpack.c.b16 %v4682, %v4678
          %v4923 = vpack.c.b16 %v4683, %v4679
          %v4924 = vpack.c.b16 %v4684, %v4680
          %v4925 = vpack.c.b16 %v4685, %v4681
          %v4926 = vpack.c.b16 %v4690, %v4686
          %v4927 = vpack.c.b16 %v4691, %v4687
          %v4928 = vpack.c.b16 %v4692, %v4688
          %v4929 = vpack.c.b16 %v4693, %v4689
          %v4930 = vpack.c.b16 %v4698, %v4694
          %v4931 = vpack.c.b16 %v4699, %v4695
          %v4932 = vpack.c.b16 %v4700, %v4696
          %v4933 = vpack.c.b16 %v4701, %v4697
          %v4934 = vpack.c.b16 %v4706, %v4702
          %v4935 = vpack.c.b16 %v4707, %v4703
          %v4936 = vpack.c.b16 %v4708, %v4704
          %v4937 = vpack.c.b16 %v4709, %v4705
          %v4938 = vpack.c.b16 %v4714, %v4710
          %v4939 = vpack.c.b16 %v4715, %v4711
          %v4940 = vpack.c.b16 %v4716, %v4712
          %v4941 = vpack.c.b16 %v4717, %v4713
          %v4942 = vpack.c.b16 %v4722, %v4718
          %v4943 = vpack.c.b16 %v4723, %v4719
          %v4944 = vpack.c.b16 %v4724, %v4720
          %v4945 = vpack.c.b16 %v4725, %v4721
          %v4946 = vpack.c.b16 %v4730, %v4726
          %v4947 = vpack.c.b16 %v4731, %v4727
          %v4948 = vpack.c.b16 %v4732, %v4728
          %v4949 = vpack.c.b16 %v4733, %v4729
          %v4950 = vpack.c.b16 %v4738, %v4734
          %v4951 = vpack.c.b16 %v4739, %v4735
          %v4952 = vpack.c.b16 %v4740, %v4736
          %v4953 = vpack.c.b16 %v4741, %v4737
          %v4954 = vpack.c.b16 %v4746, %v4742
          %v4955 = vpack.c.b16 %v4747, %v4743
          %v4956 = vpack.c.b16 %v4748, %v4744
          %v4957 = vpack.c.b16 %v4749, %v4745
          %v4958 = vpack.c.b16 %v4754, %v4750
          %v4959 = vpack.c.b16 %v4755, %v4751
          %v4960 = vpack.c.b16 %v4756, %v4752
          %v4961 = vpack.c.b16 %v4757, %v4753
          %v4962 = vpack.c.b16 %v4762, %v4758
          %v4963 = vpack.c.b16 %v4763, %v4759
          %v4964 = vpack.c.b16 %v4764, %v4760
          %v4965 = vpack.c.b16 %v4765, %v4761
          %v4966 = vpack.c.b16 %v4770, %v4766
          %v4967 = vpack.c.b16 %v4771, %v4767
          %v4968 = vpack.c.b16 %v4772, %v4768
          %v4969 = vpack.c.b16 %v4773, %v4769
          %v4970 = vpack.c.b16 %v4778, %v4774
          %v4971 = vpack.c.b16 %v4779, %v4775
          %v4972 = vpack.c.b16 %v4780, %v4776
          %v4973 = vpack.c.b16 %v4781, %v4777
          %v4974 = vpack.c.b16 %v4786, %v4782
          %v4975 = vpack.c.b16 %v4787, %v4783
          %v4976 = vpack.c.b16 %v4788, %v4784
          %v4977 = vpack.c.b16 %v4789, %v4785
          %v4978 = vpack.c.b16 %v4794, %v4790
          %v4979 = vpack.c.b16 %v4795, %v4791
          %v4980 = vpack.c.b16 %v4796, %v4792
          %v4981 = vpack.c.b16 %v4797, %v4793
          %v4982 = vpack.c.b16 %v4802, %v4798
          %v4983 = vpack.c.b16 %v4803, %v4799
          %v4984 = vpack.c.b16 %v4804, %v4800
          %v4985 = vpack.c.b16 %v4805, %v4801
          %v4986 = vpack.c.b16 %v4810, %v4806
          %v4987 = vpack.c.b16 %v4811, %v4807
          %v4988 = vpack.c.b16 %v4812, %v4808
          %v4989 = vpack.c.b16 %v4813, %v4809
          %v4990 = vpack.c.b16 %v4818, %v4814
          %v4991 = vpack.c.b16 %v4819, %v4815
          %v4992 = vpack.c.b16 %v4820, %v4816
          %v4993 = vpack.c.b16 %v4821, %v4817
          %v4994 = vpack.c.b16 %v4826, %v4822
          %v4995 = vpack.c.b16 %v4827, %v4823
          %v4996 = vpack.c.b16 %v4828, %v4824
          %v4997 = vpack.c.b16 %v4829, %v4825
          %v4998 = vpack.c.b16 %v4834, %v4830
          %v4999 = vpack.c.b16 %v4835, %v4831
          %v5000 = vpack.c.b16 %v4836, %v4832
          %v5001 = vpack.c.b16 %v4837, %v4833
          %v5002 = vpack.c.b16 %v4842, %v4838
          %v5003 = vpack.c.b16 %v4843, %v4839
          %v5004 = vpack.c.b16 %v4844, %v4840
          %v5005 = vpack.c.b16 %v4845, %v4841
          %v5006 = vpack.c.b16 %v4850, %v4846
          %v5007 = vpack.c.b16 %v4851, %v4847
          %v5008 = vpack.c.b16 %v4852, %v4848
          %v5009 = vpack.c.b16 %v4853, %v4849
          %v5010 = vpack.c.b16 %v4858, %v4854
          %v5011 = vpack.c.b16 %v4859, %v4855
          %v5012 = vpack.c.b16 %v4860, %v4856
          %v5013 = vpack.c.b16 %v4861, %v4857
          %v5014 = vpack.c.b16 %v4866, %v4862
          %v5015 = vpack.c.b16 %v4867, %v4863
          %v5016 = vpack.c.b16 %v4868, %v4864
          %v5017 = vpack.c.b16 %v4869, %v4865
          %v5018 = vpack.c.b16 %v4874, %v4870
          %v5019 = vpack.c.b16 %v4875, %v4871
          %v5020 = vpack.c.b16 %v4876, %v4872
          %v5021 = vpack.c.b16 %v4877, %v4873
          %v5022 = vpack.c.b16 %v4882, %v4878
          %v5023 = vpack.c.b16 %v4883, %v4879
          %v5024 = vpack.c.b16 %v4884, %v4880
          %v5025 = vpack.c.b16 %v4885, %v4881
          %v5026 = vpack.c.b16 %v4890, %v4886
          %v5027 = vpack.c.b16 %v4891, %v4887
          %v5028 = vpack.c.b16 %v4892, %v4888
          %v5029 = vpack.c.b16 %v4893, %v4889
          %v5030 = vpack.c.b16 %v4898, %v4894
          %v5031 = vpack.c.b16 %v4899, %v4895
          %v5032 = vpack.c.b16 %v4900, %v4896
          %v5033 = vpack.c.b16 %v4901, %v4897
          %v5034 = vpack.c.b16 %v4906, %v4902
          %v5035 = vpack.c.b16 %v4907, %v4903
          %v5036 = vpack.c.b16 %v4908, %v4904
          %v5037 = vpack.c.b16 %v4909, %v4905
          %5166 = vmatprep.subr.bf16.mxu0 %v4939
          %5167 = vmatpush1.bf16.msra.mxu0 %v4938
          %5168 = vmatprep.subr.bf16.mxu0 %v4935
          %5169 = vmatpush1.bf16.msra.mxu0 %v4934
          %5170 = vmatprep.subr.bf16.mxu0 %v4931
          %5171 = vmatpush1.bf16.msra.mxu0 %v4930
          %5172 = vmatprep.subr.bf16.mxu0 %v4927
          %5173 = vmatpush1.bf16.msra.mxu0 %v4926
          %5174 = vmatprep.subr.bf16.mxu0 %v4923
          %5175 = vmatpush1.bf16.msra.mxu0 %v4922
          %5176 = vmatprep.subr.bf16.mxu0 %v4919
          %5177 = vmatpush1.bf16.msra.mxu0 %v4918
          %5178 = vmatprep.subr.bf16.mxu0 %v4915
          %5179 = vmatpush1.bf16.msra.mxu0 %v4914
          %5180 = vmatprep.subr.bf16.mxu0 %v4911
          %5181 = vmatpush1.bf16.msra.mxu0 %v4910
          %5182 = vmatprep.subr.bf16.mxu0 %v4971
          %5183 = vmatpush2.bf16.msra.mxu0 %v4970
          %5184 = vmatprep.subr.bf16.mxu0 %v4967
          %5185 = vmatpush2.bf16.msra.mxu0 %v4966
          %5186 = vmatprep.subr.bf16.mxu0 %v4963
          %5187 = vmatpush2.bf16.msra.mxu0 %v4962
          %5188 = vmatprep.subr.bf16.mxu0 %v4959
          %5189 = vmatpush2.bf16.msra.mxu0 %v4958
          %5190 = vmatprep.subr.bf16.mxu0 %v4955
          %5191 = vmatpush2.bf16.msra.mxu0 %v4954
          %5192 = vmatprep.subr.bf16.mxu0 %v4951
          %5193 = vmatpush2.bf16.msra.mxu0 %v4950
          %5194 = vmatprep.subr.bf16.mxu0 %v4947
          %5195 = vmatpush2.bf16.msra.mxu0 %v4946
          %5196 = vmatprep.subr.bf16.mxu0 %v4943
          %5197 = vmatpush2.bf16.msra.mxu0 %v4942
          %5198 = vmatprep.mubr.bf16.mxu0 %v4373
          %5199 = vmatmul.mubr.bf16.gmra.mxu0 %v4372
          %v5200 = vpop.f32.mrf.mxu0
          %v5201 = vadd.f32 %v4509, %v5200
          %v5202 = vpop.f32.mrf.mxu0
          %v5203 = vadd.f32 %v4513, %v5202
          %v5204 = vpop.f32.mrf.mxu0
          %v5205 = vadd.f32 %v4509, %v5204
          %v5206 = vpop.f32.mrf.mxu0
          %v5207 = vadd.f32 %v4513, %v5206
          %5208 = vdwg.mxu0
          %5209 = vmatprep.subr.bf16.mxu0 %v5003
          %5210 = vmatpush1.bf16.msra.mxu0 %v5002
          %5211 = vmatprep.subr.bf16.mxu0 %v4999
          %5212 = vmatpush1.bf16.msra.mxu0 %v4998
          %5213 = vmatprep.subr.bf16.mxu0 %v4995
          %5214 = vmatpush1.bf16.msra.mxu0 %v4994
          %5215 = vmatprep.subr.bf16.mxu0 %v4991
          %5216 = vmatpush1.bf16.msra.mxu0 %v4990
          %5217 = vmatprep.subr.bf16.mxu0 %v4987
          %5218 = vmatpush1.bf16.msra.mxu0 %v4986
          %5219 = vmatprep.subr.bf16.mxu0 %v4983
          %5220 = vmatpush1.bf16.msra.mxu0 %v4982
          %5221 = vmatprep.subr.bf16.mxu0 %v4979
          %5222 = vmatpush1.bf16.msra.mxu0 %v4978
          %5223 = vmatprep.subr.bf16.mxu0 %v4975
          %5224 = vmatpush1.bf16.msra.mxu0 %v4974
          %5225 = vmatprep.subr.bf16.mxu0 %v5035
          %5226 = vmatpush2.bf16.msra.mxu0 %v5034
          %5227 = vmatprep.subr.bf16.mxu0 %v5031
          %5228 = vmatpush2.bf16.msra.mxu0 %v5030
          %5229 = vmatprep.subr.bf16.mxu0 %v5027
          %5230 = vmatpush2.bf16.msra.mxu0 %v5026
          %5231 = vmatprep.subr.bf16.mxu0 %v5023
          %5232 = vmatpush2.bf16.msra.mxu0 %v5022
          %5233 = vmatprep.subr.bf16.mxu0 %v5019
          %5234 = vmatpush2.bf16.msra.mxu0 %v5018
          %5235 = vmatprep.subr.bf16.mxu0 %v5015
          %5236 = vmatpush2.bf16.msra.mxu0 %v5014
          %5237 = vmatprep.subr.bf16.mxu0 %v5011
          %5238 = vmatpush2.bf16.msra.mxu0 %v5010
          %5239 = vmatprep.subr.bf16.mxu0 %v5007
          %5240 = vmatpush2.bf16.msra.mxu0 %v5006
          %5241 = vmatprep.mubr.bf16.mxu0 %v4375
          %5242 = vmatmul.mubr.bf16.gmra.mxu0 %v4374
          %v5243 = vpop.f32.mrf.mxu0
          %v5244 = vadd.f32 %v5201, %v5243
          %v5245 = vpop.f32.mrf.mxu0
          %v5246 = vadd.f32 %v5203, %v5245
          %v5247 = vpop.f32.mrf.mxu0
          %v5248 = vadd.f32 %v5205, %v5247
          %v5249 = vpop.f32.mrf.mxu0
          %v5250 = vadd.f32 %v5207, %v5249
          %5251 = vdwg.mxu0
          %5252 = vmatprep.subr.bf16.mxu0 %v4941
          %5253 = vmatpush1.bf16.msra.mxu0 %v4940
          %5254 = vmatprep.subr.bf16.mxu0 %v4937
          %5255 = vmatpush1.bf16.msra.mxu0 %v4936
          %5256 = vmatprep.subr.bf16.mxu0 %v4933
          %5257 = vmatpush1.bf16.msra.mxu0 %v4932
          %5258 = vmatprep.subr.bf16.mxu0 %v4929
          %5259 = vmatpush1.bf16.msra.mxu0 %v4928
          %5260 = vmatprep.subr.bf16.mxu0 %v4925
          %5261 = vmatpush1.bf16.msra.mxu0 %v4924
          %5262 = vmatprep.subr.bf16.mxu0 %v4921
          %5263 = vmatpush1.bf16.msra.mxu0 %v4920
          %5264 = vmatprep.subr.bf16.mxu0 %v4917
          %5265 = vmatpush1.bf16.msra.mxu0 %v4916
          %5266 = vmatprep.subr.bf16.mxu0 %v4913
          %5267 = vmatpush1.bf16.msra.mxu0 %v4912
          %5268 = vmatprep.subr.bf16.mxu0 %v4973
          %5269 = vmatpush2.bf16.msra.mxu0 %v4972
          %5270 = vmatprep.subr.bf16.mxu0 %v4969
          %5271 = vmatpush2.bf16.msra.mxu0 %v4968
          %5272 = vmatprep.subr.bf16.mxu0 %v4965
          %5273 = vmatpush2.bf16.msra.mxu0 %v4964
          %5274 = vmatprep.subr.bf16.mxu0 %v4961
          %5275 = vmatpush2.bf16.msra.mxu0 %v4960
          %5276 = vmatprep.subr.bf16.mxu0 %v4957
          %5277 = vmatpush2.bf16.msra.mxu0 %v4956
          %5278 = vmatprep.subr.bf16.mxu0 %v4953
          %5279 = vmatpush2.bf16.msra.mxu0 %v4952
          %5280 = vmatprep.subr.bf16.mxu0 %v4949
          %5281 = vmatpush2.bf16.msra.mxu0 %v4948
          %5282 = vmatprep.subr.bf16.mxu0 %v4945
          %5283 = vmatpush2.bf16.msra.mxu0 %v4944
          %5284 = vmatprep.mubr.bf16.mxu0 %v4373
          %5285 = vmatmul.mubr.bf16.gmra.mxu0 %v4372
          %v5286 = vpop.f32.mrf.mxu0
          %v5287 = vadd.f32 %v4517, %v5286
          %v5288 = vpop.f32.mrf.mxu0
          %v5289 = vadd.f32 %v4521, %v5288
          %v5290 = vpop.f32.mrf.mxu0
          %v5291 = vadd.f32 %v4517, %v5290
          %v5292 = vpop.f32.mrf.mxu0
          %v5293 = vadd.f32 %v4521, %v5292
          %5294 = vdwg.mxu0
          %5295 = vmatprep.subr.bf16.mxu0 %v5005
          %5296 = vmatpush1.bf16.msra.mxu0 %v5004
          %5297 = vmatprep.subr.bf16.mxu0 %v5001
          %5298 = vmatpush1.bf16.msra.mxu0 %v5000
          %5299 = vmatprep.subr.bf16.mxu0 %v4997
          %5300 = vmatpush1.bf16.msra.mxu0 %v4996
          %5301 = vmatprep.subr.bf16.mxu0 %v4993
          %5302 = vmatpush1.bf16.msra.mxu0 %v4992
          %5303 = vmatprep.subr.bf16.mxu0 %v4989
          %5304 = vmatpush1.bf16.msra.mxu0 %v4988
          %5305 = vmatprep.subr.bf16.mxu0 %v4985
          %5306 = vmatpush1.bf16.msra.mxu0 %v4984
          %5307 = vmatprep.subr.bf16.mxu0 %v4981
          %5308 = vmatpush1.bf16.msra.mxu0 %v4980
          %5309 = vmatprep.subr.bf16.mxu0 %v4977
          %5310 = vmatpush1.bf16.msra.mxu0 %v4976
          %5311 = vmatprep.subr.bf16.mxu0 %v5037
          %5312 = vmatpush2.bf16.msra.mxu0 %v5036
          %5313 = vmatprep.subr.bf16.mxu0 %v5033
          %5314 = vmatpush2.bf16.msra.mxu0 %v5032
          %5315 = vmatprep.subr.bf16.mxu0 %v5029
          %5316 = vmatpush2.bf16.msra.mxu0 %v5028
          %5317 = vmatprep.subr.bf16.mxu0 %v5025
          %5318 = vmatpush2.bf16.msra.mxu0 %v5024
          %5319 = vmatprep.subr.bf16.mxu0 %v5021
          %5320 = vmatpush2.bf16.msra.mxu0 %v5020
          %5321 = vmatprep.subr.bf16.mxu0 %v5017
          %5322 = vmatpush2.bf16.msra.mxu0 %v5016
          %5323 = vmatprep.subr.bf16.mxu0 %v5013
          %5324 = vmatpush2.bf16.msra.mxu0 %v5012
          %5325 = vmatprep.subr.bf16.mxu0 %v5009
          %5326 = vmatpush2.bf16.msra.mxu0 %v5008
          %5327 = vmatprep.mubr.bf16.mxu0 %v4375
          %5328 = vmatmul.mubr.bf16.gmra.mxu0 %v4374
          %v5329 = vpop.f32.mrf.mxu0
          %v5330 = vadd.f32 %v5287, %v5329
          %v5331 = vpop.f32.mrf.mxu0
          %v5332 = vadd.f32 %v5289, %v5331
          %v5333 = vpop.f32.mrf.mxu0
          %v5334 = vadd.f32 %v5291, %v5333
          %v5335 = vpop.f32.mrf.mxu0
          %v5336 = vadd.f32 %v5293, %v5335
          %5337 = vdwg.mxu0
          %vm5338 = vcmp.gt.f32.partialorder %v5244, 0.0
          %vm5339 = vcmp.gt.f32.partialorder %v5246, 0.0
          %vm5340 = vcmp.gt.f32.partialorder %v5330, 0.0
          %vm5341 = vcmp.gt.f32.partialorder %v5332, 0.0
          %vm5342 = vcmp.gt.f32.partialorder %v5248, 0.0
          %vm5343 = vcmp.gt.f32.partialorder %v5250, 0.0
          %vm5344 = vcmp.gt.f32.partialorder %v5334, 0.0
          %vm5345 = vcmp.gt.f32.partialorder %v5336, 0.0
          %v5346 = vmul.f32 %v5244, 0.01
          %v5347 = vmul.f32 %v5246, 0.01
          %v5348 = vmul.f32 %v5330, 0.01
          %v5349 = vmul.f32 %v5332, 0.01
          %v5350 = vmul.f32 %v5248, 0.01
          %v5351 = vmul.f32 %v5250, 0.01
          %v5352 = vmul.f32 %v5334, 0.01
          %v5353 = vmul.f32 %v5336, 0.01
          %v5354 = vsel %vm5338, %v5244, %v5346
          %v5355 = vsel %vm5339, %v5246, %v5347
          %v5356 = vsel %vm5340, %v5330, %v5348
          %v5357 = vsel %vm5341, %v5332, %v5349
          %v5358 = vsel %vm5342, %v5248, %v5350
          %v5359 = vsel %vm5343, %v5250, %v5351
          %v5360 = vsel %vm5344, %v5334, %v5352
          %v5361 = vsel %vm5345, %v5336, %v5353
          %v5362 = vpack.c.bf16 %v5358, %v5354
          %v5363 = vpack.c.bf16 %v5359, %v5355
          %v5364 = vpack.c.bf16 %v5360, %v5356
          %v5365 = vpack.c.bf16 %v5361, %v5357
          %v5366 = vld [vmem:[%s6] sm:$0xff]
          %v5367 = vld [vmem:[%s6 + $0x8] sm:$0xff]
          %v5368 = vld [vmem:[%s6 + $0x10] sm:$0xff]
          %v5369 = vld [vmem:[%s6 + $0x18] sm:$0xff]
          %v5370 = vld [vmem:[%s6 + $0x20] sm:$0xff]
          %v5371 = vld [vmem:[%s6 + $0x28] sm:$0xff]
          %v5372 = vld [vmem:[%s6 + $0x30] sm:$0xff]
          %v5373 = vld [vmem:[%s6 + $0x38] sm:$0xff]
          %v5374 = vld [vmem:[%s6 + $0x40] sm:$0xff]
          %v5375 = vld [vmem:[%s6 + $0x48] sm:$0xff]
          %v5376 = vld [vmem:[%s6 + $0x50] sm:$0xff]
          %v5377 = vld [vmem:[%s6 + $0x58] sm:$0xff]
          %v5378 = vld [vmem:[%s6 + $0x60] sm:$0xff]
          %v5379 = vld [vmem:[%s6 + $0x68] sm:$0xff]
          %v5380 = vld [vmem:[%s6 + $0x70] sm:$0xff]
          %v5381 = vld [vmem:[%s6 + $0x78] sm:$0xff]
          %v5382 = vld [vmem:[%s6 + $0x80] sm:$0xff]
          %v5383 = vld [vmem:[%s6 + $0x88] sm:$0xff]
          %v5384 = vld [vmem:[%s6 + $0x90] sm:$0xff]
          %v5385 = vld [vmem:[%s6 + $0x98] sm:$0xff]
          %v5386 = vld [vmem:[%s6 + $0xa0] sm:$0xff]
          %v5387 = vld [vmem:[%s6 + $0xa8] sm:$0xff]
          %v5388 = vld [vmem:[%s6 + $0xb0] sm:$0xff]
          %v5389 = vld [vmem:[%s6 + $0xb8] sm:$0xff]
          %v5390 = vld [vmem:[%s6 + $0xc0] sm:$0xff]
          %v5391 = vld [vmem:[%s6 + $0xc8] sm:$0xff]
          %v5392 = vld [vmem:[%s6 + $0xd0] sm:$0xff]
          %v5393 = vld [vmem:[%s6 + $0xd8] sm:$0xff]
          %v5394 = vld [vmem:[%s6 + $0xe0] sm:$0xff]
          %v5395 = vld [vmem:[%s6 + $0xe8] sm:$0xff]
          %v5396 = vld [vmem:[%s6 + $0xf0] sm:$0xff]
          %v5397 = vld [vmem:[%s6 + $0xf8] sm:$0xff]
          %v5398 = vld [vmem:[%s6 + $0x100] sm:$0xff]
          %v5399 = vld [vmem:[%s6 + $0x108] sm:$0xff]
          %v5400 = vld [vmem:[%s6 + $0x110] sm:$0xff]
          %v5401 = vld [vmem:[%s6 + $0x118] sm:$0xff]
          %v5402 = vld [vmem:[%s6 + $0x120] sm:$0xff]
          %v5403 = vld [vmem:[%s6 + $0x128] sm:$0xff]
          %v5404 = vld [vmem:[%s6 + $0x130] sm:$0xff]
          %v5405 = vld [vmem:[%s6 + $0x138] sm:$0xff]
          %v5406 = vld [vmem:[%s6 + $0x140] sm:$0xff]
          %v5407 = vld [vmem:[%s6 + $0x148] sm:$0xff]
          %v5408 = vld [vmem:[%s6 + $0x150] sm:$0xff]
          %v5409 = vld [vmem:[%s6 + $0x158] sm:$0xff]
          %v5410 = vld [vmem:[%s6 + $0x160] sm:$0xff]
          %v5411 = vld [vmem:[%s6 + $0x168] sm:$0xff]
          %v5412 = vld [vmem:[%s6 + $0x170] sm:$0xff]
          %v5413 = vld [vmem:[%s6 + $0x178] sm:$0xff]
          %v5414 = vld [vmem:[%s6 + $0x180] sm:$0xff]
          %v5415 = vld [vmem:[%s6 + $0x188] sm:$0xff]
          %v5416 = vld [vmem:[%s6 + $0x190] sm:$0xff]
          %v5417 = vld [vmem:[%s6 + $0x198] sm:$0xff]
          %v5418 = vld [vmem:[%s6 + $0x1a0] sm:$0xff]
          %v5419 = vld [vmem:[%s6 + $0x1a8] sm:$0xff]
          %v5420 = vld [vmem:[%s6 + $0x1b0] sm:$0xff]
          %v5421 = vld [vmem:[%s6 + $0x1b8] sm:$0xff]
          %v5422 = vld [vmem:[%s6 + $0x1c0] sm:$0xff]
          %v5423 = vld [vmem:[%s6 + $0x1c8] sm:$0xff]
          %v5424 = vld [vmem:[%s6 + $0x1d0] sm:$0xff]
          %v5425 = vld [vmem:[%s6 + $0x1d8] sm:$0xff]
          %v5426 = vld [vmem:[%s6 + $0x1e0] sm:$0xff]
          %v5427 = vld [vmem:[%s6 + $0x1e8] sm:$0xff]
          %v5428 = vld [vmem:[%s6 + $0x1f0] sm:$0xff]
          %v5429 = vld [vmem:[%s6 + $0x1f8] sm:$0xff]
          %v5430 = vld [vmem:[%s7] sm:$0x3]
          %v5432 = vlaneseq
          %v5433 = vshrl.u32 %v5432, 7
          %v5434 = vsub.s32 0, %v5433
          %v5435 = vrot.slane %v5430, %v5434
          %v5436 = vlaneseq
          %v5437 = vshrl.u32 %v5436, 7
          %v5438 = vsub.s32 1, %v5437
          %v5439 = vrot.slane %v5430, %v5438
          %v5506 = vunpack.c.l.b16 %v5366
          %v5507 = vunpack.c.h.b16 %v5366
          %v5508 = vunpack.c.l.b16 %v5367
          %v5509 = vunpack.c.h.b16 %v5367
          %v5510 = vunpack.c.l.b16 %v5368
          %v5511 = vunpack.c.h.b16 %v5368
          %v5512 = vunpack.c.l.b16 %v5369
          %v5513 = vunpack.c.h.b16 %v5369
          %v5514 = vunpack.c.l.b16 %v5370
          %v5515 = vunpack.c.h.b16 %v5370
          %v5516 = vunpack.c.l.b16 %v5371
          %v5517 = vunpack.c.h.b16 %v5371
          %v5518 = vunpack.c.l.b16 %v5372
          %v5519 = vunpack.c.h.b16 %v5372
          %v5520 = vunpack.c.l.b16 %v5373
          %v5521 = vunpack.c.h.b16 %v5373
          %v5522 = vunpack.c.l.b16 %v5374
          %v5523 = vunpack.c.h.b16 %v5374
          %v5524 = vunpack.c.l.b16 %v5375
          %v5525 = vunpack.c.h.b16 %v5375
          %v5526 = vunpack.c.l.b16 %v5376
          %v5527 = vunpack.c.h.b16 %v5376
          %v5528 = vunpack.c.l.b16 %v5377
          %v5529 = vunpack.c.h.b16 %v5377
          %v5530 = vunpack.c.l.b16 %v5378
          %v5531 = vunpack.c.h.b16 %v5378
          %v5532 = vunpack.c.l.b16 %v5379
          %v5533 = vunpack.c.h.b16 %v5379
          %v5534 = vunpack.c.l.b16 %v5380
          %v5535 = vunpack.c.h.b16 %v5380
          %v5536 = vunpack.c.l.b16 %v5381
          %v5537 = vunpack.c.h.b16 %v5381
          %v5538 = vunpack.c.l.b16 %v5382
          %v5539 = vunpack.c.h.b16 %v5382
          %v5540 = vunpack.c.l.b16 %v5383
          %v5541 = vunpack.c.h.b16 %v5383
          %v5542 = vunpack.c.l.b16 %v5384
          %v5543 = vunpack.c.h.b16 %v5384
          %v5544 = vunpack.c.l.b16 %v5385
          %v5545 = vunpack.c.h.b16 %v5385
          %v5546 = vunpack.c.l.b16 %v5386
          %v5547 = vunpack.c.h.b16 %v5386
          %v5548 = vunpack.c.l.b16 %v5387
          %v5549 = vunpack.c.h.b16 %v5387
          %v5550 = vunpack.c.l.b16 %v5388
          %v5551 = vunpack.c.h.b16 %v5388
          %v5552 = vunpack.c.l.b16 %v5389
          %v5553 = vunpack.c.h.b16 %v5389
          %v5554 = vunpack.c.l.b16 %v5390
          %v5555 = vunpack.c.h.b16 %v5390
          %v5556 = vunpack.c.l.b16 %v5391
          %v5557 = vunpack.c.h.b16 %v5391
          %v5558 = vunpack.c.l.b16 %v5392
          %v5559 = vunpack.c.h.b16 %v5392
          %v5560 = vunpack.c.l.b16 %v5393
          %v5561 = vunpack.c.h.b16 %v5393
          %v5562 = vunpack.c.l.b16 %v5394
          %v5563 = vunpack.c.h.b16 %v5394
          %v5564 = vunpack.c.l.b16 %v5395
          %v5565 = vunpack.c.h.b16 %v5395
          %v5566 = vunpack.c.l.b16 %v5396
          %v5567 = vunpack.c.h.b16 %v5396
          %v5568 = vunpack.c.l.b16 %v5397
          %v5569 = vunpack.c.h.b16 %v5397
          %v5570 = vunpack.c.l.b16 %v5398
          %v5571 = vunpack.c.h.b16 %v5398
          %v5572 = vunpack.c.l.b16 %v5399
          %v5573 = vunpack.c.h.b16 %v5399
          %v5574 = vunpack.c.l.b16 %v5400
          %v5575 = vunpack.c.h.b16 %v5400
          %v5576 = vunpack.c.l.b16 %v5401
          %v5577 = vunpack.c.h.b16 %v5401
          %v5578 = vunpack.c.l.b16 %v5402
          %v5579 = vunpack.c.h.b16 %v5402
          %v5580 = vunpack.c.l.b16 %v5403
          %v5581 = vunpack.c.h.b16 %v5403
          %v5582 = vunpack.c.l.b16 %v5404
          %v5583 = vunpack.c.h.b16 %v5404
          %v5584 = vunpack.c.l.b16 %v5405
          %v5585 = vunpack.c.h.b16 %v5405
          %v5586 = vunpack.c.l.b16 %v5406
          %v5587 = vunpack.c.h.b16 %v5406
          %v5588 = vunpack.c.l.b16 %v5407
          %v5589 = vunpack.c.h.b16 %v5407
          %v5590 = vunpack.c.l.b16 %v5408
          %v5591 = vunpack.c.h.b16 %v5408
          %v5592 = vunpack.c.l.b16 %v5409
          %v5593 = vunpack.c.h.b16 %v5409
          %v5594 = vunpack.c.l.b16 %v5410
          %v5595 = vunpack.c.h.b16 %v5410
          %v5596 = vunpack.c.l.b16 %v5411
          %v5597 = vunpack.c.h.b16 %v5411
          %v5598 = vunpack.c.l.b16 %v5412
          %v5599 = vunpack.c.h.b16 %v5412
          %v5600 = vunpack.c.l.b16 %v5413
          %v5601 = vunpack.c.h.b16 %v5413
          %v5602 = vunpack.c.l.b16 %v5414
          %v5603 = vunpack.c.h.b16 %v5414
          %v5604 = vunpack.c.l.b16 %v5415
          %v5605 = vunpack.c.h.b16 %v5415
          %v5606 = vunpack.c.l.b16 %v5416
          %v5607 = vunpack.c.h.b16 %v5416
          %v5608 = vunpack.c.l.b16 %v5417
          %v5609 = vunpack.c.h.b16 %v5417
          %v5610 = vunpack.c.l.b16 %v5418
          %v5611 = vunpack.c.h.b16 %v5418
          %v5612 = vunpack.c.l.b16 %v5419
          %v5613 = vunpack.c.h.b16 %v5419
          %v5614 = vunpack.c.l.b16 %v5420
          %v5615 = vunpack.c.h.b16 %v5420
          %v5616 = vunpack.c.l.b16 %v5421
          %v5617 = vunpack.c.h.b16 %v5421
          %v5618 = vunpack.c.l.b16 %v5422
          %v5619 = vunpack.c.h.b16 %v5422
          %v5620 = vunpack.c.l.b16 %v5423
          %v5621 = vunpack.c.h.b16 %v5423
          %v5622 = vunpack.c.l.b16 %v5424
          %v5623 = vunpack.c.h.b16 %v5424
          %v5624 = vunpack.c.l.b16 %v5425
          %v5625 = vunpack.c.h.b16 %v5425
          %v5626 = vunpack.c.l.b16 %v5426
          %v5627 = vunpack.c.h.b16 %v5426
          %v5628 = vunpack.c.l.b16 %v5427
          %v5629 = vunpack.c.h.b16 %v5427
          %v5630 = vunpack.c.l.b16 %v5428
          %v5631 = vunpack.c.h.b16 %v5428
          %v5632 = vunpack.c.l.b16 %v5429
          %v5633 = vunpack.c.h.b16 %v5429
          %v5634 = vpack.c.b16 %v5508, %v5506
          %v5635 = vpack.c.b16 %v5509, %v5507
          %v5636 = vpack.c.b16 %v5512, %v5510
          %v5637 = vpack.c.b16 %v5513, %v5511
          %v5638 = vpack.c.b16 %v5516, %v5514
          %v5639 = vpack.c.b16 %v5517, %v5515
          %v5640 = vpack.c.b16 %v5520, %v5518
          %v5641 = vpack.c.b16 %v5521, %v5519
          %v5642 = vpack.c.b16 %v5524, %v5522
          %v5643 = vpack.c.b16 %v5525, %v5523
          %v5644 = vpack.c.b16 %v5528, %v5526
          %v5645 = vpack.c.b16 %v5529, %v5527
          %v5646 = vpack.c.b16 %v5532, %v5530
          %v5647 = vpack.c.b16 %v5533, %v5531
          %v5648 = vpack.c.b16 %v5536, %v5534
          %v5649 = vpack.c.b16 %v5537, %v5535
          %v5650 = vpack.c.b16 %v5540, %v5538
          %v5651 = vpack.c.b16 %v5541, %v5539
          %v5652 = vpack.c.b16 %v5544, %v5542
          %v5653 = vpack.c.b16 %v5545, %v5543
          %v5654 = vpack.c.b16 %v5548, %v5546
          %v5655 = vpack.c.b16 %v5549, %v5547
          %v5656 = vpack.c.b16 %v5552, %v5550
          %v5657 = vpack.c.b16 %v5553, %v5551
          %v5658 = vpack.c.b16 %v5556, %v5554
          %v5659 = vpack.c.b16 %v5557, %v5555
          %v5660 = vpack.c.b16 %v5560, %v5558
          %v5661 = vpack.c.b16 %v5561, %v5559
          %v5662 = vpack.c.b16 %v5564, %v5562
          %v5663 = vpack.c.b16 %v5565, %v5563
          %v5664 = vpack.c.b16 %v5568, %v5566
          %v5665 = vpack.c.b16 %v5569, %v5567
          %v5666 = vpack.c.b16 %v5572, %v5570
          %v5667 = vpack.c.b16 %v5573, %v5571
          %v5668 = vpack.c.b16 %v5576, %v5574
          %v5669 = vpack.c.b16 %v5577, %v5575
          %v5670 = vpack.c.b16 %v5580, %v5578
          %v5671 = vpack.c.b16 %v5581, %v5579
          %v5672 = vpack.c.b16 %v5584, %v5582
          %v5673 = vpack.c.b16 %v5585, %v5583
          %v5674 = vpack.c.b16 %v5588, %v5586
          %v5675 = vpack.c.b16 %v5589, %v5587
          %v5676 = vpack.c.b16 %v5592, %v5590
          %v5677 = vpack.c.b16 %v5593, %v5591
          %v5678 = vpack.c.b16 %v5596, %v5594
          %v5679 = vpack.c.b16 %v5597, %v5595
          %v5680 = vpack.c.b16 %v5600, %v5598
          %v5681 = vpack.c.b16 %v5601, %v5599
          %v5682 = vpack.c.b16 %v5604, %v5602
          %v5683 = vpack.c.b16 %v5605, %v5603
          %v5684 = vpack.c.b16 %v5608, %v5606
          %v5685 = vpack.c.b16 %v5609, %v5607
          %v5686 = vpack.c.b16 %v5612, %v5610
          %v5687 = vpack.c.b16 %v5613, %v5611
          %v5688 = vpack.c.b16 %v5616, %v5614
          %v5689 = vpack.c.b16 %v5617, %v5615
          %v5690 = vpack.c.b16 %v5620, %v5618
          %v5691 = vpack.c.b16 %v5621, %v5619
          %v5692 = vpack.c.b16 %v5624, %v5622
          %v5693 = vpack.c.b16 %v5625, %v5623
          %v5694 = vpack.c.b16 %v5628, %v5626
          %v5695 = vpack.c.b16 %v5629, %v5627
          %v5696 = vpack.c.b16 %v5632, %v5630
          %v5697 = vpack.c.b16 %v5633, %v5631
          %5762 = vmatprep.subr.bf16.mxu0 %v5649
          %5763 = vmatpush1.bf16.msra.mxu0 %v5648
          %5764 = vmatprep.subr.bf16.mxu0 %v5647
          %5765 = vmatpush1.bf16.msra.mxu0 %v5646
          %5766 = vmatprep.subr.bf16.mxu0 %v5645
          %5767 = vmatpush1.bf16.msra.mxu0 %v5644
          %5768 = vmatprep.subr.bf16.mxu0 %v5643
          %5769 = vmatpush1.bf16.msra.mxu0 %v5642
          %5770 = vmatprep.subr.bf16.mxu0 %v5641
          %5771 = vmatpush1.bf16.msra.mxu0 %v5640
          %5772 = vmatprep.subr.bf16.mxu0 %v5639
          %5773 = vmatpush1.bf16.msra.mxu0 %v5638
          %5774 = vmatprep.subr.bf16.mxu0 %v5637
          %5775 = vmatpush1.bf16.msra.mxu0 %v5636
          %5776 = vmatprep.subr.bf16.mxu0 %v5635
          %5777 = vmatpush1.bf16.msra.mxu0 %v5634
          %5778 = vmatprep.subr.bf16.mxu0 %v5665
          %5779 = vmatpush2.bf16.msra.mxu0 %v5664
          %5780 = vmatprep.subr.bf16.mxu0 %v5663
          %5781 = vmatpush2.bf16.msra.mxu0 %v5662
          %5782 = vmatprep.subr.bf16.mxu0 %v5661
          %5783 = vmatpush2.bf16.msra.mxu0 %v5660
          %5784 = vmatprep.subr.bf16.mxu0 %v5659
          %5785 = vmatpush2.bf16.msra.mxu0 %v5658
          %5786 = vmatprep.subr.bf16.mxu0 %v5657
          %5787 = vmatpush2.bf16.msra.mxu0 %v5656
          %5788 = vmatprep.subr.bf16.mxu0 %v5655
          %5789 = vmatpush2.bf16.msra.mxu0 %v5654
          %5790 = vmatprep.subr.bf16.mxu0 %v5653
          %5791 = vmatpush2.bf16.msra.mxu0 %v5652
          %5792 = vmatprep.subr.bf16.mxu0 %v5651
          %5793 = vmatpush2.bf16.msra.mxu0 %v5650
          %5794 = vmatprep.mubr.bf16.mxu0 %v5363
          %5795 = vmatmul.mubr.bf16.gmra.mxu0 %v5362
          %v5796 = vpop.f32.mrf.mxu0
          %v5797 = vadd.f32 %v5435, %v5796
          %v5798 = vpop.f32.mrf.mxu0
          %v5799 = vadd.f32 %v5439, %v5798
          %v5800 = vpop.f32.mrf.mxu0
          %v5801 = vadd.f32 %v5435, %v5800
          %v5802 = vpop.f32.mrf.mxu0
          %v5803 = vadd.f32 %v5439, %v5802
          %5804 = vdwg.mxu0
          %5805 = vmatprep.subr.bf16.mxu0 %v5681
          %5806 = vmatpush1.bf16.msra.mxu0 %v5680
          %5807 = vmatprep.subr.bf16.mxu0 %v5679
          %5808 = vmatpush1.bf16.msra.mxu0 %v5678
          %5809 = vmatprep.subr.bf16.mxu0 %v5677
          %5810 = vmatpush1.bf16.msra.mxu0 %v5676
          %5811 = vmatprep.subr.bf16.mxu0 %v5675
          %5812 = vmatpush1.bf16.msra.mxu0 %v5674
          %5813 = vmatprep.subr.bf16.mxu0 %v5673
          %5814 = vmatpush1.bf16.msra.mxu0 %v5672
          %5815 = vmatprep.subr.bf16.mxu0 %v5671
          %5816 = vmatpush1.bf16.msra.mxu0 %v5670
          %5817 = vmatprep.subr.bf16.mxu0 %v5669
          %5818 = vmatpush1.bf16.msra.mxu0 %v5668
          %5819 = vmatprep.subr.bf16.mxu0 %v5667
          %5820 = vmatpush1.bf16.msra.mxu0 %v5666
          %5821 = vmatprep.subr.bf16.mxu0 %v5697
          %5822 = vmatpush2.bf16.msra.mxu0 %v5696
          %5823 = vmatprep.subr.bf16.mxu0 %v5695
          %5824 = vmatpush2.bf16.msra.mxu0 %v5694
          %5825 = vmatprep.subr.bf16.mxu0 %v5693
          %5826 = vmatpush2.bf16.msra.mxu0 %v5692
          %5827 = vmatprep.subr.bf16.mxu0 %v5691
          %5828 = vmatpush2.bf16.msra.mxu0 %v5690
          %5829 = vmatprep.subr.bf16.mxu0 %v5689
          %5830 = vmatpush2.bf16.msra.mxu0 %v5688
          %5831 = vmatprep.subr.bf16.mxu0 %v5687
          %5832 = vmatpush2.bf16.msra.mxu0 %v5686
          %5833 = vmatprep.subr.bf16.mxu0 %v5685
          %5834 = vmatpush2.bf16.msra.mxu0 %v5684
          %5835 = vmatprep.subr.bf16.mxu0 %v5683
          %5836 = vmatpush2.bf16.msra.mxu0 %v5682
          %5837 = vmatprep.mubr.bf16.mxu0 %v5365
          %5838 = vmatmul.mubr.bf16.gmra.mxu0 %v5364
          %v5839 = vpop.f32.mrf.mxu0
          %v5840 = vadd.f32 %v5797, %v5839
          %v5841 = vpop.f32.mrf.mxu0
          %v5842 = vadd.f32 %v5799, %v5841
          %v5843 = vpop.f32.mrf.mxu0
          %v5844 = vadd.f32 %v5801, %v5843
          %v5845 = vpop.f32.mrf.mxu0
          %v5846 = vadd.f32 %v5803, %v5845
          %5847 = vdwg.mxu0
          %vm5848 = vcmp.gt.f32.partialorder %v5840, 0.0
          %vm5849 = vcmp.gt.f32.partialorder %v5842, 0.0
          %vm5850 = vcmp.gt.f32.partialorder %v5844, 0.0
          %vm5851 = vcmp.gt.f32.partialorder %v5846, 0.0
          %v5852 = vmul.f32 %v5840, 0.01
          %v5853 = vmul.f32 %v5842, 0.01
          %v5854 = vmul.f32 %v5844, 0.01
          %v5855 = vmul.f32 %v5846, 0.01
          %v5856 = vsel %vm5848, %v5840, %v5852
          %v5857 = vsel %vm5849, %v5842, %v5853
          %v5858 = vsel %vm5850, %v5844, %v5854
          %v5859 = vsel %vm5851, %v5846, %v5855
          %v5860 = vadd.f32 %v5856, %v3850
          %v5861 = vadd.f32 %v5857, %v3851
          %v5862 = vadd.f32 %v5858, %v3852
          %v5863 = vadd.f32 %v5859, %v3853
          %v5864 = vpack.c.bf16 %v5862, %v5860
          %v5865 = vpack.c.bf16 %v5863, %v5861
          %v5866 = vld [vmem:[%s8] sm:$0xf]
          %v5867 = vld [vmem:[%s8 + $0x4] sm:$0xf]
          %v5868 = vld [vmem:[%s8 + $0x8] sm:$0xf]
          %v5869 = vld [vmem:[%s8 + $0xc] sm:$0xf]
          %v5870 = vld [vmem:[%s8 + $0x10] sm:$0xf]
          %v5871 = vld [vmem:[%s8 + $0x14] sm:$0xf]
          %v5872 = vld [vmem:[%s8 + $0x18] sm:$0xf]
          %v5873 = vld [vmem:[%s8 + $0x1c] sm:$0xf]
          %v5874 = vld [vmem:[%s8 + $0x20] sm:$0xf]
          %v5875 = vld [vmem:[%s8 + $0x24] sm:$0xf]
          %v5876 = vld [vmem:[%s8 + $0x28] sm:$0xf]
          %v5877 = vld [vmem:[%s8 + $0x2c] sm:$0xf]
          %v5878 = vld [vmem:[%s8 + $0x30] sm:$0xf]
          %v5879 = vld [vmem:[%s8 + $0x34] sm:$0xf]
          %v5880 = vld [vmem:[%s8 + $0x38] sm:$0xf]
          %v5881 = vld [vmem:[%s8 + $0x3c] sm:$0xf]
          %v5882 = vld [vmem:[%s8 + $0x40] sm:$0xf]
          %v5883 = vld [vmem:[%s8 + $0x44] sm:$0xf]
          %v5884 = vld [vmem:[%s8 + $0x48] sm:$0xf]
          %v5885 = vld [vmem:[%s8 + $0x4c] sm:$0xf]
          %v5886 = vld [vmem:[%s8 + $0x50] sm:$0xf]
          %v5887 = vld [vmem:[%s8 + $0x54] sm:$0xf]
          %v5888 = vld [vmem:[%s8 + $0x58] sm:$0xf]
          %v5889 = vld [vmem:[%s8 + $0x5c] sm:$0xf]
          %v5890 = vld [vmem:[%s8 + $0x60] sm:$0xf]
          %v5891 = vld [vmem:[%s8 + $0x64] sm:$0xf]
          %v5892 = vld [vmem:[%s8 + $0x68] sm:$0xf]
          %v5893 = vld [vmem:[%s8 + $0x6c] sm:$0xf]
          %v5894 = vld [vmem:[%s8 + $0x70] sm:$0xf]
          %v5895 = vld [vmem:[%s8 + $0x74] sm:$0xf]
          %v5896 = vld [vmem:[%s8 + $0x78] sm:$0xf]
          %v5897 = vld [vmem:[%s8 + $0x7c] sm:$0xf]
          %v5898 = vld [vmem:[%s9] sm:$0x1]
          %v5900 = vlaneseq
          %v5901 = vshrl.u32 %v5900, 7
          %v5902 = vsub.s32 0, %v5901
          %v5903 = vrot.slane %v5898, %v5902
          %v5937 = vunpack.c.l.b16 %v5866
          %v5938 = vunpack.c.l.b16 %v5867
          %v5939 = vunpack.c.l.b16 %v5868
          %v5940 = vunpack.c.l.b16 %v5869
          %v5941 = vunpack.c.l.b16 %v5870
          %v5942 = vunpack.c.l.b16 %v5871
          %v5943 = vunpack.c.l.b16 %v5872
          %v5944 = vunpack.c.l.b16 %v5873
          %v5945 = vunpack.c.l.b16 %v5874
          %v5946 = vunpack.c.l.b16 %v5875
          %v5947 = vunpack.c.l.b16 %v5876
          %v5948 = vunpack.c.l.b16 %v5877
          %v5949 = vunpack.c.l.b16 %v5878
          %v5950 = vunpack.c.l.b16 %v5879
          %v5951 = vunpack.c.l.b16 %v5880
          %v5952 = vunpack.c.l.b16 %v5881
          %v5953 = vunpack.c.l.b16 %v5882
          %v5954 = vunpack.c.l.b16 %v5883
          %v5955 = vunpack.c.l.b16 %v5884
          %v5956 = vunpack.c.l.b16 %v5885
          %v5957 = vunpack.c.l.b16 %v5886
          %v5958 = vunpack.c.l.b16 %v5887
          %v5959 = vunpack.c.l.b16 %v5888
          %v5960 = vunpack.c.l.b16 %v5889
          %v5961 = vunpack.c.l.b16 %v5890
          %v5962 = vunpack.c.l.b16 %v5891
          %v5963 = vunpack.c.l.b16 %v5892
          %v5964 = vunpack.c.l.b16 %v5893
          %v5965 = vunpack.c.l.b16 %v5894
          %v5966 = vunpack.c.l.b16 %v5895
          %v5967 = vunpack.c.l.b16 %v5896
          %v5968 = vunpack.c.l.b16 %v5897
          %v5969 = vpack.c.b16 %v5938, %v5937
          %v5970 = vpack.c.b16 %v5940, %v5939
          %v5971 = vpack.c.b16 %v5942, %v5941
          %v5972 = vpack.c.b16 %v5944, %v5943
          %v5973 = vpack.c.b16 %v5946, %v5945
          %v5974 = vpack.c.b16 %v5948, %v5947
          %v5975 = vpack.c.b16 %v5950, %v5949
          %v5976 = vpack.c.b16 %v5952, %v5951
          %v5977 = vpack.c.b16 %v5954, %v5953
          %v5978 = vpack.c.b16 %v5956, %v5955
          %v5979 = vpack.c.b16 %v5958, %v5957
          %v5980 = vpack.c.b16 %v5960, %v5959
          %v5981 = vpack.c.b16 %v5962, %v5961
          %v5982 = vpack.c.b16 %v5964, %v5963
          %v5983 = vpack.c.b16 %v5966, %v5965
          %v5984 = vpack.c.b16 %v5968, %v5967
          %6001 = vmatprep.subr.bf16.mxu0 0
          %6002 = vmatpush1.bf16.msra.mxu0 %v5976
          %6003 = vmatprep.subr.bf16.mxu0 0
          %6004 = vmatpush1.bf16.msra.mxu0 %v5975
          %6005 = vmatprep.subr.bf16.mxu0 0
          %6006 = vmatpush1.bf16.msra.mxu0 %v5974
          %6007 = vmatprep.subr.bf16.mxu0 0
          %6008 = vmatpush1.bf16.msra.mxu0 %v5973
          %6009 = vmatprep.subr.bf16.mxu0 0
          %6010 = vmatpush1.bf16.msra.mxu0 %v5972
          %6011 = vmatprep.subr.bf16.mxu0 0
          %6012 = vmatpush1.bf16.msra.mxu0 %v5971
          %6013 = vmatprep.subr.bf16.mxu0 0
          %6014 = vmatpush1.bf16.msra.mxu0 %v5970
          %6015 = vmatprep.subr.bf16.mxu0 0
          %6016 = vmatpush1.bf16.msra.mxu0 %v5969
          %6017 = vmatprep.subr.bf16.mxu0 0
          %6018 = vmatpush2.bf16.msra.mxu0 %v5984
          %6019 = vmatprep.subr.bf16.mxu0 0
          %6020 = vmatpush2.bf16.msra.mxu0 %v5983
          %6021 = vmatprep.subr.bf16.mxu0 0
          %6022 = vmatpush2.bf16.msra.mxu0 %v5982
          %6023 = vmatprep.subr.bf16.mxu0 0
          %6024 = vmatpush2.bf16.msra.mxu0 %v5981
          %6025 = vmatprep.subr.bf16.mxu0 0
          %6026 = vmatpush2.bf16.msra.mxu0 %v5980
          %6027 = vmatprep.subr.bf16.mxu0 0
          %6028 = vmatpush2.bf16.msra.mxu0 %v5979
          %6029 = vmatprep.subr.bf16.mxu0 0
          %6030 = vmatpush2.bf16.msra.mxu0 %v5978
          %6031 = vmatprep.subr.bf16.mxu0 0
          %6032 = vmatpush2.bf16.msra.mxu0 %v5977
          %6033 = vmatprep.mubr.bf16.mxu0 %v5865
          %6034 = vmatmul.mubr.bf16.gmra.mxu0 %v5864
          %v6035 = vpop.f32.mrf.mxu0
          %v6036 = vadd.f32 %v5903, %v6035
          %v6037 = vpop.f32.mrf.mxu0
          %v6038 = vpop.f32.mrf.mxu0
          %v6039 = vadd.f32 %v5903, %v6038
          %v6040 = vpop.f32.mrf.mxu0
          %6041 = vdwg.mxu0
          %6042 = vst [vmem:[%s10] sm:$0xff] %v6036
          %6043 = vst [vmem:[%s10 + $0x8] sm:$0xff] %v6039
        $region94: #{_lambda_.3} parent=81 // pred_fallthru
          _
        // Predicated region
        $region95: #{_lambda_.3} parent=81 // pred_check
          %p6044 = pneg %p254
        $region96: #{_lambda_.3} parent=81 // pred_check_branch
          %6046 = sbr.rel (%p6044) target = $region98
        $region97: #{_lambda_.3} parent=81 // pred_region
          _
        $region98: #{_lambda_.3} parent=81 // pred_fallthru
          _
        // Predicated region
        $region99: #{_lambda_.3} parent=81 // pred_check
          %p6047 = pneg %p254
        $region100: #{_lambda_.3} parent=81 // pred_check_branch
          %6049 = sbr.rel (%p6047) target = $region102
        $region101: #{_lambda_.3} parent=81 // pred_region
          _
        $region102: #{_lambda_.3} parent=81 // pred_fallthru
          _
      $region82: #{_lambda_.3} parent=5 // pred_fallthru
        _
      %p6050 = scmp.le.s32.totalorder 2, %s16
      // Predicated region
      $region103: #{_lambda_.3} parent=5 // pred_check
        %p6051 = pneg %p6050
      $region104: #{_lambda_.3} parent=5 // pred_check_branch
        %6053 = sbr.rel (%p6051) target = $region106
      $region105: #{_lambda_.3} parent=5 // pred_region
        %s6054 = ssub.s32 %s16, 2
      $region106: #{_lambda_.3} parent=5 // pred_fallthru
        _
    $region6: #{_lambda_.3} parent=1 // loop_footer
      %s20 = sadd.s32 1, %s16
    $region7: #{_lambda_.3} parent=1 // loop_footer_branch
      %15 = sbr.rel target = $region3
    $region8: #{_lambda_.3} parent=1 // loop_exit
      _

</llo_original>
